<compile_context>
chip_gen: v7x
topology: tpu7x:2x2x1
jax: 0.10.0
libtpu: 0.0.40
codegen_flags: <defaults>
</compile_context>

<pallas_src>
import functools

import jax
import jax.numpy as jnp
from jax.experimental import pallas as pl
from jax.experimental.pallas import tpu as pltpu


def _sgcn_kernel(nb, L, H, R, offs, x_ref, f_ref, adj_ref, slab_ref, o_ref):
    off_wx, off_wf, off_p, off_w = offs
    prec = jax.lax.Precision.HIGHEST

    x = x_ref[...]                                   # [nb*L, H] (also residual)
    feat = f_ref[...]                                # [nb*L, 2]

    # Static, 8-row-aligned slices of the packed parameter slab (free).
    fcw_x = slab_ref[off_wx:off_wx + H, :]           # [H, H]  fc weight, x rows
    w_f0 = slab_ref[off_wf:off_wf + 1, :]            # [1, H]  fc weight, feat row 0
    w_f1 = slab_ref[off_wf + 1:off_wf + 2, :]        # [1, H]  fc weight, feat row 1
    fc_b = slab_ref[off_p:off_p + 1, :]              # [1, H]
    gamma = slab_ref[off_p + 1:off_p + 2, :]         # [1, H]
    beta = slab_ref[off_p + 2:off_p + 3, :]          # [1, H]

    # fc(cat([x, feature])): MXU dot for the H-wide part, VPU broadcast FMAs
    # for the 2-wide feature part (a K=2 matmul wastes a full MXU push/pop).
    h = jnp.dot(x, fcw_x, preferred_element_type=jnp.float32, precision=prec)
    h = h + feat[:, 0:1] * w_f0 + feat[:, 1:2] * w_f1 + fc_b

    # LayerNorm (biased variance, eps=1e-5): two independent lane reductions,
    # var = E[h^2] - mean^2.
    inv_h = 1.0 / H
    mean = jnp.sum(h, axis=-1, keepdims=True) * inv_h
    ex2 = jnp.sum(h * h, axis=-1, keepdims=True) * inv_h
    var = ex2 - mean * mean
    h = (h - mean) * jax.lax.rsqrt(var + 1e-5)
    h = jnp.tanh(h * gamma + beta)
    # dropout(p=0.1) is identity in eval mode.

    # Graph conv.  Per batch: one fused [R*L, L] @ [L, H] dot yields every
    # A_r @ h; the R+1 mixing matmuls accumulate directly into the output
    # tile.  Only sublane-aligned slices -- no lane-axis concatenates.
    scale = 1.0 / (R + 1)
    w_self = slab_ref[off_w + R * H:off_w + (R + 1) * H, :]      # W[R]
    for b in range(nb):                              # static (nb is 1 or B)
        hb = h[b * L:(b + 1) * L, :]                 # [L, H]
        ah = jnp.dot(adj_ref[b], hb,                 # [R*L, L] @ [L, H]
                     preferred_element_type=jnp.float32, precision=prec)
        acc = jnp.dot(hb, w_self,
                      preferred_element_type=jnp.float32, precision=prec)
        for r in range(R):
            w_r = slab_ref[off_w + r * H:off_w + (r + 1) * H, :]
            acc = acc + jnp.dot(ah[r * L:(r + 1) * L, :], w_r,
                                preferred_element_type=jnp.float32,
                                precision=prec)
        o_ref[b * L:(b + 1) * L, :] = (
            acc * scale + x[b * L:(b + 1) * L, :]).astype(o_ref.dtype)


def _multi_core_chip():
    """True on chips with >1 TensorCore (v7x); batch-grid only helps there."""
    try:
        kind = jax.devices()[0].device_kind.lower()
    except Exception:
        return False
    return "v7" in kind


def sgcn_layer(x, feature, adj, fc_w, fc_b, gamma, beta, W):
    """Fused SGCNLayer forward (eval mode). Returns dict like the PyTorch module."""
    B, L, H = x.shape
    R = adj.shape[1]
    assert W.shape == (R + 1, H, H)
    assert fc_w.shape == (H + 2, H)

    # Copy-free reshapes + one-time parameter packing in the wrapper.
    x2 = x.reshape(B * L, H).astype(jnp.float32)
    f2 = feature.reshape(B * L, 2).astype(jnp.float32)
    adj2 = adj.reshape(B, R * L, L).astype(jnp.float32)

    r8 = lambda n: -(-n // 8) * 8
    off_wx = 0                       # fc weight, x rows      [H, H]
    off_wf = r8(H)                   # fc weight, feature rows [2, H] (8-row pad)
    off_p = off_wf + 8               # fc_b / gamma / beta     [3, H] (8-row pad)
    off_w = off_p + 8                # W flattened             [(R+1)*H, H]
    tot = off_w + (R + 1) * H
    slab = jnp.zeros((tot, H), jnp.float32)
    slab = slab.at[off_wx:off_wx + H].set(fc_w[:H])
    slab = slab.at[off_wf:off_wf + 2].set(fc_w[H:])
    slab = slab.at[off_p + 0].set(fc_b)
    slab = slab.at[off_p + 1].set(gamma)
    slab = slab.at[off_p + 2].set(beta)
    slab = slab.at[off_w:off_w + (R + 1) * H].set(W.reshape((R + 1) * H, H))

    # One batch per grid step on multi-core chips (v7x -> cores work in
    # parallel); everything in a single step on v5e/v6e (extra grid steps on a
    # single TensorCore only add ~0.35 us each at this size).
    nb = 1 if (_multi_core_chip() and B > 1) else B
    grid = (B // nb,)

    kernel = functools.partial(_sgcn_kernel, nb, L, H, R,
                               (off_wx, off_wf, off_p, off_w))

    out = pl.pallas_call(
        kernel,
        out_shape=jax.ShapeDtypeStruct((B * L, H), x.dtype),
        grid_spec=pltpu.PrefetchScalarGridSpec(
            num_scalar_prefetch=0,
            grid=grid,
            in_specs=[
                pl.BlockSpec((nb * L, H), lambda i: (i, 0)),        # x
                pl.BlockSpec((nb * L, 2), lambda i: (i, 0)),        # feature
                pl.BlockSpec((nb, R * L, L), lambda i: (i, 0, 0)),  # adj
                pl.BlockSpec((tot, H), lambda i: (0, 0)),           # param slab
            ],
            out_specs=pl.BlockSpec((nb * L, H), lambda i: (i, 0)),
        ),
        compiler_params=pltpu.CompilerParams(
            dimension_semantics=("parallel",)),
    )(x2, f2, adj2, slab)

    return {'x': out.reshape(B, L, H), 'feature': feature, 'adj': adj}


def _init_params(key, hidden_dim, label_num):
    """Deterministic parameter init mirroring the PyTorch module's shapes."""
    k1, k2, k3 = jax.random.split(key, 3)
    H, R = hidden_dim, label_num
    # nn.Linear(H+2, H): weight [H, H+2] -> pre-transposed to [H+2, H]
    bound = 1.0 / jnp.sqrt(H + 2.0)
    fc_w = jax.random.uniform(k1, (H + 2, H), jnp.float32, -bound, bound)
    fc_b = jax.random.uniform(k2, (H,), jnp.float32, -bound, bound)
    # LayerNorm(H)
    gamma = jnp.ones((H,), jnp.float32)
    beta = jnp.zeros((H,), jnp.float32)
    # W: [R+1, H, H], xavier_uniform over (fan_in=H, fan_out=H)
    xav = jnp.sqrt(6.0 / (H + H))
    W = jax.random.uniform(k3, (R + 1, H, H), jnp.float32, -xav, xav)
    return fc_w, fc_b, gamma, beta, W


if __name__ == "__main__":
    key = jax.random.PRNGKey(0)
    B, L, H, R = 2, 16, 32, 3   # batch, nodes, hidden_dim, label_num

    kx, kf, ka, kp = jax.random.split(key, 4)
    x = jax.random.normal(kx, (B, L, H), jnp.float32)
    feature = jax.random.normal(kf, (B, L, 2), jnp.float32)
    adj = jax.random.uniform(ka, (B, R, L, L), jnp.float32)

    fc_w, fc_b, gamma, beta, W = _init_params(kp, H, R)

    out = sgcn_layer(x, feature, adj, fc_w, fc_b, gamma, beta, W)
    jax.block_until_ready(out['x'])

    # Pure-JAX reference (eval mode; matmuls at 'highest' precision to match
    # the kernel's full-f32 MXU dots).
    with jax.default_matmul_precision('highest'):
        xcat = jnp.concatenate([x, feature], axis=-1)
        h = xcat @ fc_w + fc_b
        mean = h.mean(-1, keepdims=True)
        var = ((h - mean) ** 2).mean(-1, keepdims=True)
        h = jnp.tanh((h - mean) / jnp.sqrt(var + 1e-5) * gamma + beta)
        ref = h @ W[-1]
        for r in range(R):
            ref = ref + (adj[:, r] @ h) @ W[r]
        ref = ref / (R + 1) + x
    err = float(jnp.max(jnp.abs(out['x'] - ref)))
    assert jnp.allclose(out['x'], ref, atol=1e-4, rtol=1e-4), err

    print("KERNEL_OK")
</pallas_src>

<mosaic_0001>
module attributes {stable_mosaic.version = 11 : i64} {
  func.func @_sgcn_kernel(%arg0: i32, %arg1: memref<32x32xf32, #tpu.memory_space<vmem>>, %arg2: memref<32x2xf32, #tpu.memory_space<vmem>>, %arg3: memref<2x48x16xf32, #tpu.memory_space<vmem>>, %arg4: memref<176x32xf32, #tpu.memory_space<vmem>>, %arg5: memref<32x32xf32, #tpu.memory_space<vmem>>) attributes {dimension_semantics = [#tpu.dimension_semantics<parallel>], iteration_bounds = array<i64: 1>, scalar_prefetch = 0 : i64, scratch_operands = 0 : i64, tpu.core_type = #tpu.core_type<tc>, window_params = [{transform_indices = @transform_0, window_bounds = array<i64: 32, 32>}, {transform_indices = @transform_1, window_bounds = array<i64: 32, 2>}, {transform_indices = @transform_2, window_bounds = array<i64: 2, 48, 16>}, {pipeline_mode = #tpu.pipeline_mode<synchronous>, transform_indices = @transform_3, window_bounds = array<i64: 176, 32>}, {transform_indices = @transform_4, window_bounds = array<i64: 32, 32>}]} {
    %c0 = arith.constant 0 : index
    %c0_0 = arith.constant 0 : index
    %0 = vector.load %arg1[%c0, %c0_0] : memref<32x32xf32, #tpu.memory_space<vmem>>, vector<32x32xf32>
    %c0_1 = arith.constant 0 : index
    %c0_2 = arith.constant 0 : index
    %1 = vector.load %arg2[%c0_1, %c0_2] : memref<32x2xf32, #tpu.memory_space<vmem>>, vector<32x2xf32>
    %c0_3 = arith.constant 0 : index
    %c0_4 = arith.constant 0 : index
    %2 = vector.load %arg4[%c0_3, %c0_4] : memref<176x32xf32, #tpu.memory_space<vmem>>, vector<32x32xf32>
    %c32 = arith.constant 32 : index
    %c0_5 = arith.constant 0 : index
    %3 = vector.load %arg4[%c32, %c0_5] : memref<176x32xf32, #tpu.memory_space<vmem>>, vector<1x32xf32>
    %c33 = arith.constant 33 : index
    %c0_6 = arith.constant 0 : index
    %4 = vector.load %arg4[%c33, %c0_6] : memref<176x32xf32, #tpu.memory_space<vmem>>, vector<1x32xf32>
    %c40 = arith.constant 40 : index
    %c0_7 = arith.constant 0 : index
    %5 = vector.load %arg4[%c40, %c0_7] : memref<176x32xf32, #tpu.memory_space<vmem>>, vector<1x32xf32>
    %c41 = arith.constant 41 : index
    %c0_8 = arith.constant 0 : index
    %6 = vector.load %arg4[%c41, %c0_8] : memref<176x32xf32, #tpu.memory_space<vmem>>, vector<1x32xf32>
    %c42 = arith.constant 42 : index
    %c0_9 = arith.constant 0 : index
    %7 = vector.load %arg4[%c42, %c0_9] : memref<176x32xf32, #tpu.memory_space<vmem>>, vector<1x32xf32>
    %cst = arith.constant dense<0.000000e+00> : vector<32x32xf32>
    %8 = tpu.matmul %0, %2, %cst {dimension_numbers = #tpu.dot_dimension_numbers<[1], [0], [0], [1], [0, 0, 1, 1], [], []>, precision = #tpu.contract_precision<fp32>} : vector<32x32xf32>, vector<32x32xf32>, vector<32x32xf32> -> vector<32x32xf32>
    %9 = vector.extract_strided_slice %1 {offsets = [0, 0], sizes = [32, 1], strides = [1, 1]} : vector<32x2xf32> to vector<32x1xf32>
    %10 = vector.broadcast %9 : vector<32x1xf32> to vector<32x32xf32>
    %11 = vector.broadcast %3 : vector<1x32xf32> to vector<32x32xf32>
    %12 = arith.mulf %10, %11 : vector<32x32xf32>
    %13 = arith.addf %8, %12 : vector<32x32xf32>
    %14 = vector.extract_strided_slice %1 {offsets = [0, 1], sizes = [32, 1], strides = [1, 1]} : vector<32x2xf32> to vector<32x1xf32>
    %15 = vector.broadcast %14 : vector<32x1xf32> to vector<32x32xf32>
    %16 = vector.broadcast %4 : vector<1x32xf32> to vector<32x32xf32>
    %17 = arith.mulf %15, %16 : vector<32x32xf32>
    %18 = arith.addf %13, %17 : vector<32x32xf32>
    %19 = vector.broadcast %5 : vector<1x32xf32> to vector<32x32xf32>
    %20 = arith.addf %18, %19 : vector<32x32xf32>
    %cst_10 = arith.constant dense<0.000000e+00> : vector<32xf32>
    %21 = vector.multi_reduction <add>, %20, %cst_10 [1] : vector<32x32xf32> to vector<32xf32>
    %22 = vector.shape_cast %21 : vector<32xf32> to vector<32x1xf32>
    %cst_11 = arith.constant 3.125000e-02 : f32
    %23 = vector.broadcast %cst_11 : f32 to vector<32x1xf32>
    %24 = arith.mulf %22, %23 : vector<32x1xf32>
    %25 = arith.mulf %20, %20 : vector<32x32xf32>
    %cst_12 = arith.constant dense<0.000000e+00> : vector<32xf32>
    %26 = vector.multi_reduction <add>, %25, %cst_12 [1] : vector<32x32xf32> to vector<32xf32>
    %27 = vector.shape_cast %26 : vector<32xf32> to vector<32x1xf32>
    %cst_13 = arith.constant 3.125000e-02 : f32
    %28 = vector.broadcast %cst_13 : f32 to vector<32x1xf32>
    %29 = arith.mulf %27, %28 : vector<32x1xf32>
    %30 = arith.mulf %24, %24 : vector<32x1xf32>
    %31 = arith.subf %29, %30 : vector<32x1xf32>
    %32 = vector.broadcast %24 : vector<32x1xf32> to vector<32x32xf32>
    %33 = arith.subf %20, %32 : vector<32x32xf32>
    %cst_14 = arith.constant 9.99999974E-6 : f32
    %34 = vector.broadcast %cst_14 : f32 to vector<32x1xf32>
    %35 = arith.addf %31, %34 : vector<32x1xf32>
    %36 = math.rsqrt %35 : vector<32x1xf32>
    %37 = vector.broadcast %36 : vector<32x1xf32> to vector<32x32xf32>
    %38 = arith.mulf %33, %37 : vector<32x32xf32>
    %39 = vector.broadcast %6 : vector<1x32xf32> to vector<32x32xf32>
    %40 = arith.mulf %38, %39 : vector<32x32xf32>
    %41 = vector.broadcast %7 : vector<1x32xf32> to vector<32x32xf32>
    %42 = arith.addf %40, %41 : vector<32x32xf32>
    %43 = math.tanh %42 : vector<32x32xf32>
    %c144 = arith.constant 144 : index
    %c0_15 = arith.constant 0 : index
    %44 = vector.load %arg4[%c144, %c0_15] : memref<176x32xf32, #tpu.memory_space<vmem>>, vector<32x32xf32>
    %45 = vector.extract_strided_slice %43 {offsets = [0, 0], sizes = [16, 32], strides = [1, 1]} : vector<32x32xf32> to vector<16x32xf32>
    %c0_16 = arith.constant 0 : index
    %c0_17 = arith.constant 0 : index
    %c0_18 = arith.constant 0 : index
    %46 = vector.load %arg3[%c0_16, %c0_17, %c0_18] : memref<2x48x16xf32, #tpu.memory_space<vmem>>, vector<1x48x16xf32>
    %47 = vector.shape_cast %46 : vector<1x48x16xf32> to vector<48x16xf32>
    %cst_19 = arith.constant dense<0.000000e+00> : vector<48x32xf32>
    %48 = tpu.matmul %47, %45, %cst_19 {dimension_numbers = #tpu.dot_dimension_numbers<[1], [0], [0], [1], [0, 0, 1, 1], [], []>, precision = #tpu.contract_precision<fp32>} : vector<48x16xf32>, vector<16x32xf32>, vector<48x32xf32> -> vector<48x32xf32>
    %cst_20 = arith.constant dense<0.000000e+00> : vector<16x32xf32>
    %49 = tpu.matmul %45, %44, %cst_20 {dimension_numbers = #tpu.dot_dimension_numbers<[1], [0], [0], [1], [0, 0, 1, 1], [], []>, precision = #tpu.contract_precision<fp32>} : vector<16x32xf32>, vector<32x32xf32>, vector<16x32xf32> -> vector<16x32xf32>
    %c48 = arith.constant 48 : index
    %c0_21 = arith.constant 0 : index
    %50 = vector.load %arg4[%c48, %c0_21] : memref<176x32xf32, #tpu.memory_space<vmem>>, vector<32x32xf32>
    %51 = vector.extract_strided_slice %48 {offsets = [0, 0], sizes = [16, 32], strides = [1, 1]} : vector<48x32xf32> to vector<16x32xf32>
    %cst_22 = arith.constant dense<0.000000e+00> : vector<16x32xf32>
    %52 = tpu.matmul %51, %50, %cst_22 {dimension_numbers = #tpu.dot_dimension_numbers<[1], [0], [0], [1], [0, 0, 1, 1], [], []>, precision = #tpu.contract_precision<fp32>} : vector<16x32xf32>, vector<32x32xf32>, vector<16x32xf32> -> vector<16x32xf32>
    %53 = arith.addf %49, %52 : vector<16x32xf32>
    %c80 = arith.constant 80 : index
    %c0_23 = arith.constant 0 : index
    %54 = vector.load %arg4[%c80, %c0_23] : memref<176x32xf32, #tpu.memory_space<vmem>>, vector<32x32xf32>
    %55 = vector.extract_strided_slice %48 {offsets = [16, 0], sizes = [16, 32], strides = [1, 1]} : vector<48x32xf32> to vector<16x32xf32>
    %cst_24 = arith.constant dense<0.000000e+00> : vector<16x32xf32>
    %56 = tpu.matmul %55, %54, %cst_24 {dimension_numbers = #tpu.dot_dimension_numbers<[1], [0], [0], [1], [0, 0, 1, 1], [], []>, precision = #tpu.contract_precision<fp32>} : vector<16x32xf32>, vector<32x32xf32>, vector<16x32xf32> -> vector<16x32xf32>
    %57 = arith.addf %53, %56 : vector<16x32xf32>
    %c112 = arith.constant 112 : index
    %c0_25 = arith.constant 0 : index
    %58 = vector.load %arg4[%c112, %c0_25] : memref<176x32xf32, #tpu.memory_space<vmem>>, vector<32x32xf32>
    %59 = vector.extract_strided_slice %48 {offsets = [32, 0], sizes = [16, 32], strides = [1, 1]} : vector<48x32xf32> to vector<16x32xf32>
    %cst_26 = arith.constant dense<0.000000e+00> : vector<16x32xf32>
    %60 = tpu.matmul %59, %58, %cst_26 {dimension_numbers = #tpu.dot_dimension_numbers<[1], [0], [0], [1], [0, 0, 1, 1], [], []>, precision = #tpu.contract_precision<fp32>} : vector<16x32xf32>, vector<32x32xf32>, vector<16x32xf32> -> vector<16x32xf32>
    %61 = arith.addf %57, %60 : vector<16x32xf32>
    %cst_27 = arith.constant 2.500000e-01 : f32
    %62 = vector.broadcast %cst_27 : f32 to vector<16x32xf32>
    %63 = arith.mulf %61, %62 : vector<16x32xf32>
    %64 = vector.extract_strided_slice %0 {offsets = [0, 0], sizes = [16, 32], strides = [1, 1]} : vector<32x32xf32> to vector<16x32xf32>
    %65 = arith.addf %63, %64 : vector<16x32xf32>
    %c0_28 = arith.constant 0 : index
    %c0_29 = arith.constant 0 : index
    %66 = vector.load %arg5[%c0_28, %c0_29] : memref<32x32xf32, #tpu.memory_space<vmem>>, vector<16x32xf32>
    tpu.vector_store %arg5[%c0_28, %c0_29], %65 {strides = array<i32>} : memref<32x32xf32, #tpu.memory_space<vmem>>, vector<16x32xf32>,
    %67 = vector.extract_strided_slice %43 {offsets = [16, 0], sizes = [16, 32], strides = [1, 1]} : vector<32x32xf32> to vector<16x32xf32>
    %c1 = arith.constant 1 : index
    %c0_30 = arith.constant 0 : index
    %c0_31 = arith.constant 0 : index
    %68 = vector.load %arg3[%c1, %c0_30, %c0_31] : memref<2x48x16xf32, #tpu.memory_space<vmem>>, vector<1x48x16xf32>
    %69 = vector.shape_cast %68 : vector<1x48x16xf32> to vector<48x16xf32>
    %cst_32 = arith.constant dense<0.000000e+00> : vector<48x32xf32>
    %70 = tpu.matmul %69, %67, %cst_32 {dimension_numbers = #tpu.dot_dimension_numbers<[1], [0], [0], [1], [0, 0, 1, 1], [], []>, precision = #tpu.contract_precision<fp32>} : vector<48x16xf32>, vector<16x32xf32>, vector<48x32xf32> -> vector<48x32xf32>
    %cst_33 = arith.constant dense<0.000000e+00> : vector<16x32xf32>
    %71 = tpu.matmul %67, %44, %cst_33 {dimension_numbers = #tpu.dot_dimension_numbers<[1], [0], [0], [1], [0, 0, 1, 1], [], []>, precision = #tpu.contract_precision<fp32>} : vector<16x32xf32>, vector<32x32xf32>, vector<16x32xf32> -> vector<16x32xf32>
    %c48_34 = arith.constant 48 : index
    %c0_35 = arith.constant 0 : index
    %72 = vector.load %arg4[%c48_34, %c0_35] : memref<176x32xf32, #tpu.memory_space<vmem>>, vector<32x32xf32>
    %73 = vector.extract_strided_slice %70 {offsets = [0, 0], sizes = [16, 32], strides = [1, 1]} : vector<48x32xf32> to vector<16x32xf32>
    %cst_36 = arith.constant dense<0.000000e+00> : vector<16x32xf32>
    %74 = tpu.matmul %73, %72, %cst_36 {dimension_numbers = #tpu.dot_dimension_numbers<[1], [0], [0], [1], [0, 0, 1, 1], [], []>, precision = #tpu.contract_precision<fp32>} : vector<16x32xf32>, vector<32x32xf32>, vector<16x32xf32> -> vector<16x32xf32>
    %75 = arith.addf %71, %74 : vector<16x32xf32>
    %c80_37 = arith.constant 80 : index
    %c0_38 = arith.constant 0 : index
    %76 = vector.load %arg4[%c80_37, %c0_38] : memref<176x32xf32, #tpu.memory_space<vmem>>, vector<32x32xf32>
    %77 = vector.extract_strided_slice %70 {offsets = [16, 0], sizes = [16, 32], strides = [1, 1]} : vector<48x32xf32> to vector<16x32xf32>
    %cst_39 = arith.constant dense<0.000000e+00> : vector<16x32xf32>
    %78 = tpu.matmul %77, %76, %cst_39 {dimension_numbers = #tpu.dot_dimension_numbers<[1], [0], [0], [1], [0, 0, 1, 1], [], []>, precision = #tpu.contract_precision<fp32>} : vector<16x32xf32>, vector<32x32xf32>, vector<16x32xf32> -> vector<16x32xf32>
    %79 = arith.addf %75, %78 : vector<16x32xf32>
    %c112_40 = arith.constant 112 : index
    %c0_41 = arith.constant 0 : index
    %80 = vector.load %arg4[%c112_40, %c0_41] : memref<176x32xf32, #tpu.memory_space<vmem>>, vector<32x32xf32>
    %81 = vector.extract_strided_slice %70 {offsets = [32, 0], sizes = [16, 32], strides = [1, 1]} : vector<48x32xf32> to vector<16x32xf32>
    %cst_42 = arith.constant dense<0.000000e+00> : vector<16x32xf32>
    %82 = tpu.matmul %81, %80, %cst_42 {dimension_numbers = #tpu.dot_dimension_numbers<[1], [0], [0], [1], [0, 0, 1, 1], [], []>, precision = #tpu.contract_precision<fp32>} : vector<16x32xf32>, vector<32x32xf32>, vector<16x32xf32> -> vector<16x32xf32>
    %83 = arith.addf %79, %82 : vector<16x32xf32>
    %cst_43 = arith.constant 2.500000e-01 : f32
    %84 = vector.broadcast %cst_43 : f32 to vector<16x32xf32>
    %85 = arith.mulf %83, %84 : vector<16x32xf32>
    %86 = vector.extract_strided_slice %0 {offsets = [16, 0], sizes = [16, 32], strides = [1, 1]} : vector<32x32xf32> to vector<16x32xf32>
    %87 = arith.addf %85, %86 : vector<16x32xf32>
    %c16 = arith.constant 16 : index
    %c0_44 = arith.constant 0 : index
    %88 = vector.load %arg5[%c16, %c0_44] : memref<32x32xf32, #tpu.memory_space<vmem>>, vector<16x32xf32>
    tpu.vector_store %arg5[%c16, %c0_44], %87 {strides = array<i32>} : memref<32x32xf32, #tpu.memory_space<vmem>>, vector<16x32xf32>,
    return
  }
  func.func @transform_0(%arg0: i32) -> (i32, i32) {
    %c0_i32 = arith.constant 0 : i32
    %c0_i32_0 = arith.constant 0 : i32
    return %arg0, %c0_i32 : i32, i32
  }
  func.func @transform_1(%arg0: i32) -> (i32, i32) {
    %c0_i32 = arith.constant 0 : i32
    %c0_i32_0 = arith.constant 0 : i32
    return %arg0, %c0_i32 : i32, i32
  }
  func.func @transform_2(%arg0: i32) -> (i32, i32, i32) {
    %c0_i32 = arith.constant 0 : i32
    %c0_i32_0 = arith.constant 0 : i32
    %c0_i32_1 = arith.constant 0 : i32
    return %arg0, %c0_i32, %c0_i32_0 : i32, i32, i32
  }
  func.func @transform_3(%arg0: i32) -> (i32, i32) {
    %c0_i32 = arith.constant 0 : i32
    %c0_i32_0 = arith.constant 0 : i32
    %c0_i32_1 = arith.constant 0 : i32
    return %c0_i32, %c0_i32_0 : i32, i32
  }
  func.func @transform_4(%arg0: i32) -> (i32, i32) {
    %c0_i32 = arith.constant 0 : i32
    %c0_i32_0 = arith.constant 0 : i32
    return %arg0, %c0_i32 : i32, i32
  }
}

</mosaic_0001>

<llo_original>
// kernel: tpu_custom_call.1
$region0: #{tpu_custom_call.1}
  #allocation0 [shape = 'u32[]', space=smem, size = 0x4, offset = 0x4, fixed_abs, tag = 'smem constant byte address 0x4 - core index']
  #allocation1 [shape = 'u32[144,128]{1,0:T(1,128)}', space=vmem, size = 0x12000, scoped, tag = 'internal scratch']
  %s0 = inlined_call_operand.vmem [shape: f32[32,32], index: 0, kind: input, shape index: {}]
  %s1 = inlined_call_operand.vmem [shape: f32[32,2], index: 1, kind: input, shape index: {}]
  %s2 = inlined_call_operand.vmem [shape: f32[2,48,16], index: 2, kind: input, shape index: {}]
  %s3 = inlined_call_operand.vmem [shape: f32[176,32], index: 3, kind: input, shape index: {}]
  %s4 = inlined_call_operand.hbm [shape: f32[32,32], index: 4, kind: output, shape index: {}]
  %s5 = sld [smem:[#allocation0]]
  $region26: #{tpu_custom_call.1} parent=0
    _
  %s7 = ssub.s32 1, %s5
  %s8 = scalar_select 0, %s7, %s5
  $region1: #{tpu_custom_call.1} parent=0
    #allocation2 [shape = 'u8[16384]{0}', space=vmem, size = 0x4000, scoped, tag = 'output window, operand 0, single buffered']
    #allocation3 [shape = 's32[1]{0}', space=sflag, size = 0x4, scoped, tag = 'scoped memory for tpu_custom_call.1']
    %9 = vsyncpa [#allocation3], 0
    // Predicated region
    $region2: #{tpu_custom_call.1} parent=1 // pred_check
      _
    $region3: #{tpu_custom_call.1} parent=1 // pred_check_branch
      %11 = sbr.rel (0) target = $region5
    $region4: #{tpu_custom_call.1} parent=1 // pred_region
      _
    $region5: #{tpu_custom_call.1} parent=1 // pred_fallthru
      _
    // Predicated region
    $region6: #{tpu_custom_call.1} parent=1 // pred_check
      _
    $region7: #{tpu_custom_call.1} parent=1 // pred_check_branch
      %13 = sbr.rel (0) target = $region9
    $region8: #{tpu_custom_call.1} parent=1 // pred_region
      _
    $region9: #{tpu_custom_call.1} parent=1 // pred_fallthru
      _
    // Predicated region
    $region10: #{tpu_custom_call.1} parent=1 // pred_check
      _
    $region11: #{tpu_custom_call.1} parent=1 // pred_check_branch
      %15 = sbr.rel (0) target = $region13
    $region12: #{tpu_custom_call.1} parent=1 // pred_region
      _
    $region13: #{tpu_custom_call.1} parent=1 // pred_fallthru
      _
    // Predicated region
    $region14: #{tpu_custom_call.1} parent=1 // pred_check
      _
    $region15: #{tpu_custom_call.1} parent=1 // pred_check_branch
      %17 = sbr.rel (0) target = $region17
    $region16: #{tpu_custom_call.1} parent=1 // pred_region
      _
    $region17: #{tpu_custom_call.1} parent=1 // pred_fallthru
      _
    %v18 = vld [vmem:[%s0] sm:$0xff]
    %v19 = vld [vmem:[%s0 + $0x8] sm:$0xff]
    %v20 = vld [vmem:[%s0 + $0x10] sm:$0xff]
    %v21 = vld [vmem:[%s0 + $0x18] sm:$0xff]
    %v22 = vld [vmem:[%s1] sm:$0xff]
    %v23 = vld [vmem:[%s1 + $0x8] sm:$0xff]
    %v24 = vld [vmem:[%s1 + $0x10] sm:$0xff]
    %v25 = vld [vmem:[%s1 + $0x18] sm:$0xff]
    %v26 = vld [vmem:[%s3] sm:$0xff]
    %v27 = vld [vmem:[%s3 + $0x8] sm:$0xff]
    %v28 = vld [vmem:[%s3 + $0x10] sm:$0xff]
    %v29 = vld [vmem:[%s3 + $0x18] sm:$0xff]
    %v30 = vld [vmem:[%s3 + $0x20] sm:$0x1]
    %v31 = vld [vmem:[%s3 + $0x21] sm:$0x1]
    %v32 = vld [vmem:[%s3 + $0x28] sm:$0x1]
    %v33 = vld [vmem:[%s3 + $0x29] sm:$0x1]
    %v34 = vld [vmem:[%s3 + $0x2a] sm:$0x1]
    %36 = vset.pattern.permute.xlu0 0
    %37 = vperm.xlu0 %36, %v22
    %v38 = vpop.permute.xlu0 %37
    %41 = vset.pattern.permute.xlu0 0
    %42 = vperm.xlu0 %41, %v23
    %v43 = vpop.permute.xlu0 %42
    %46 = vset.pattern.permute.xlu0 0
    %47 = vperm.xlu0 %46, %v24
    %v48 = vpop.permute.xlu0 %47
    %51 = vset.pattern.permute.xlu0 0
    %52 = vperm.xlu0 %51, %v25
    %v53 = vpop.permute.xlu0 %52
    %v55 = vlaneseq
    %v56 = vshrl.u32 %v55, 7
    %v57 = vsub.s32 0, %v56
    %v58 = vrot.slane %v30, %v57
    %v59 = vmul.f32 %v38, %v58
    %v60 = vmul.f32 %v43, %v58
    %v61 = vmul.f32 %v48, %v58
    %v62 = vmul.f32 %v53, %v58
    %vm63 = vcmask 261120
    %v65 = vsel %vm63, %v18, 0
    %v68 = vsel %vm63, %v19, 0
    %v71 = vsel %vm63, %v20, 0
    %v74 = vsel %vm63, %v21, 0
    %76 = vmatprep.subr.mxu0 0.0
    %v77 = vand.u32 %v26, 4294901760
    %78 = vmatpush1.msra.mxu0 %v77
    %79 = vmatprep.subr.mxu0 0.0
    %v80 = vand.u32 %v27, 4294901760
    %81 = vmatpush1.msra.mxu0 %v80
    %82 = vmatprep.subr.mxu0 0.0
    %v83 = vand.u32 %v28, 4294901760
    %84 = vmatpush1.msra.mxu0 %v83
    %85 = vmatprep.subr.mxu0 0.0
    %v86 = vand.u32 %v29, 4294901760
    %87 = vmatpush1.msra.mxu0 %v86
    %88 = vmatprep.subr.mxu0 0.0
    %89 = vmatpush1.msra.mxu0 0.0
    %90 = vmatprep.subr.mxu0 0.0
    %91 = vmatpush1.msra.mxu0 0.0
    %92 = vmatprep.subr.mxu0 0.0
    %93 = vmatpush1.msra.mxu0 0.0
    %94 = vmatprep.subr.mxu0 0.0
    %95 = vmatpush1.msra.mxu0 0.0
    %96 = vmatprep.subr.mxu0 0.0
    %97 = vmatpush1.msra.mxu0 0.0
    %98 = vmatprep.subr.mxu0 0.0
    %99 = vmatpush1.msra.mxu0 0.0
    %100 = vmatprep.subr.mxu0 0.0
    %101 = vmatpush1.msra.mxu0 0.0
    %102 = vmatprep.subr.mxu0 0.0
    %103 = vmatpush1.msra.mxu0 0.0
    %104 = vmatprep.subr.mxu0 0.0
    %105 = vmatpush1.msra.mxu0 0.0
    %106 = vmatprep.subr.mxu0 0.0
    %107 = vmatpush1.msra.mxu0 0.0
    %108 = vmatprep.subr.mxu0 0.0
    %109 = vmatpush1.msra.mxu0 0.0
    %110 = vmatprep.subr.mxu0 0.0
    %111 = vmatpush1.msra.mxu0 0.0
    %112 = vmatprep.subr.mxu0 0.0
    %113 = vmatpush1.msra.mxu0 0.0
    %114 = vmatprep.subr.mxu0 0.0
    %115 = vmatpush1.msra.mxu0 0.0
    %116 = vmatprep.subr.mxu0 0.0
    %117 = vmatpush1.msra.mxu0 0.0
    %118 = vmatprep.subr.mxu0 0.0
    %119 = vmatpush1.msra.mxu0 0.0
    %120 = vmatprep.subr.mxu0 0.0
    %121 = vmatpush1.msra.mxu0 0.0
    %122 = vmatprep.subr.mxu0 0.0
    %123 = vmatpush1.msra.mxu0 0.0
    %124 = vmatprep.subr.mxu0 0.0
    %125 = vmatpush1.msra.mxu0 0.0
    %126 = vmatprep.subr.mxu0 0.0
    %127 = vmatpush1.msra.mxu0 0.0
    %128 = vmatprep.subr.mxu0 0.0
    %129 = vmatpush1.msra.mxu0 0.0
    %130 = vmatprep.subr.mxu0 0.0
    %131 = vmatpush1.msra.mxu0 0.0
    %132 = vmatprep.subr.mxu0 0.0
    %133 = vmatpush1.msra.mxu0 0.0
    %134 = vmatprep.subr.mxu0 0.0
    %135 = vmatpush1.msra.mxu0 0.0
    %136 = vmatprep.subr.mxu0 0.0
    %137 = vmatpush1.msra.mxu0 0.0
    %138 = vmatprep.subr.mxu0 0.0
    %139 = vmatpush1.msra.mxu0 0.0
    %140 = vmatprep.subr.mxu0 0.0
    %141 = vmatpush1.msra.mxu0 0.0
    %142 = vmatprep.subr.mxu0 0.0
    %143 = vmatpush1.msra.mxu0 0.0
    %144 = vmatprep.mubr.f32.mxu0 0.0
    %v145 = vand.u32 %v65, 4294901760
    %v146 = vsub.f32 %v65, %v145
    %v147 = vand.u32 %v146, 4294901760
    %v148 = vsub.f32 %v146, %v147
    %v149 = vand.u32 %v148, 4294901760
    %150 = vmatmul.mubr.f32.gmra.mrb[0].mxu0 %v149
    %v151 = vpop.f32.mrb[0].mxu0
    %v152 = vadd.f32 %v59, %v151
    %v153 = vpop.f32.mrb[0].mxu0
    %154 = vmatprep.mubr.f32.mxu0 0.0
    %v155 = vand.u32 %v68, 4294901760
    %v156 = vsub.f32 %v68, %v155
    %v157 = vand.u32 %v156, 4294901760
    %v158 = vsub.f32 %v156, %v157
    %v159 = vand.u32 %v158, 4294901760
    %160 = vmatmul.mubr.f32.gmra.mrb[0].mxu0 %v159
    %v161 = vpop.f32.mrb[0].mxu0
    %v162 = vadd.f32 %v60, %v161
    %v163 = vpop.f32.mrb[0].mxu0
    %164 = vmatprep.mubr.f32.mxu0 0.0
    %v165 = vand.u32 %v71, 4294901760
    %v166 = vsub.f32 %v71, %v165
    %v167 = vand.u32 %v166, 4294901760
    %v168 = vsub.f32 %v166, %v167
    %v169 = vand.u32 %v168, 4294901760
    %170 = vmatmul.mubr.f32.gmra.mrb[0].mxu0 %v169
    %v171 = vpop.f32.mrb[0].mxu0
    %v172 = vadd.f32 %v61, %v171
    %v173 = vpop.f32.mrb[0].mxu0
    %174 = vmatprep.mubr.f32.mxu0 0.0
    %v175 = vand.u32 %v74, 4294901760
    %v176 = vsub.f32 %v74, %v175
    %v177 = vand.u32 %v176, 4294901760
    %v178 = vsub.f32 %v176, %v177
    %v179 = vand.u32 %v178, 4294901760
    %180 = vmatmul.mubr.f32.gmra.mrb[0].mxu0 %v179
    %v181 = vpop.f32.mrb[0].mxu0
    %v182 = vadd.f32 %v62, %v181
    %v183 = vpop.f32.mrb[0].mxu0
    %184 = vdwg.mxu0
    %185 = vmatprep.subr.mxu0 0.0
    %v186 = vand.u32 %v26, 4294901760
    %v187 = vsub.f32 %v26, %v186
    %v188 = vand.u32 %v187, 4294901760
    %v189 = vsub.f32 %v187, %v188
    %v190 = vand.u32 %v189, 4294901760
    %191 = vmatpush1.msra.mxu0 %v190
    %192 = vmatprep.subr.mxu0 0.0
    %v193 = vand.u32 %v27, 4294901760
    %v194 = vsub.f32 %v27, %v193
    %v195 = vand.u32 %v194, 4294901760
    %v196 = vsub.f32 %v194, %v195
    %v197 = vand.u32 %v196, 4294901760
    %198 = vmatpush1.msra.mxu0 %v197
    %199 = vmatprep.subr.mxu0 0.0
    %v200 = vand.u32 %v28, 4294901760
    %v201 = vsub.f32 %v28, %v200
    %v202 = vand.u32 %v201, 4294901760
    %v203 = vsub.f32 %v201, %v202
    %v204 = vand.u32 %v203, 4294901760
    %205 = vmatpush1.msra.mxu0 %v204
    %206 = vmatprep.subr.mxu0 0.0
    %v207 = vand.u32 %v29, 4294901760
    %v208 = vsub.f32 %v29, %v207
    %v209 = vand.u32 %v208, 4294901760
    %v210 = vsub.f32 %v208, %v209
    %v211 = vand.u32 %v210, 4294901760
    %212 = vmatpush1.msra.mxu0 %v211
    %213 = vmatprep.subr.mxu0 0.0
    %214 = vmatpush1.msra.mxu0 0.0
    %215 = vmatprep.subr.mxu0 0.0
    %216 = vmatpush1.msra.mxu0 0.0
    %217 = vmatprep.subr.mxu0 0.0
    %218 = vmatpush1.msra.mxu0 0.0
    %219 = vmatprep.subr.mxu0 0.0
    %220 = vmatpush1.msra.mxu0 0.0
    %221 = vmatprep.subr.mxu0 0.0
    %222 = vmatpush1.msra.mxu0 0.0
    %223 = vmatprep.subr.mxu0 0.0
    %224 = vmatpush1.msra.mxu0 0.0
    %225 = vmatprep.subr.mxu0 0.0
    %226 = vmatpush1.msra.mxu0 0.0
    %227 = vmatprep.subr.mxu0 0.0
    %228 = vmatpush1.msra.mxu0 0.0
    %229 = vmatprep.subr.mxu0 0.0
    %230 = vmatpush1.msra.mxu0 0.0
    %231 = vmatprep.subr.mxu0 0.0
    %232 = vmatpush1.msra.mxu0 0.0
    %233 = vmatprep.subr.mxu0 0.0
    %234 = vmatpush1.msra.mxu0 0.0
    %235 = vmatprep.subr.mxu0 0.0
    %236 = vmatpush1.msra.mxu0 0.0
    %237 = vmatprep.subr.mxu0 0.0
    %238 = vmatpush1.msra.mxu0 0.0
    %239 = vmatprep.subr.mxu0 0.0
    %240 = vmatpush1.msra.mxu0 0.0
    %241 = vmatprep.subr.mxu0 0.0
    %242 = vmatpush1.msra.mxu0 0.0
    %243 = vmatprep.subr.mxu0 0.0
    %244 = vmatpush1.msra.mxu0 0.0
    %245 = vmatprep.subr.mxu0 0.0
    %246 = vmatpush1.msra.mxu0 0.0
    %247 = vmatprep.subr.mxu0 0.0
    %248 = vmatpush1.msra.mxu0 0.0
    %249 = vmatprep.subr.mxu0 0.0
    %250 = vmatpush1.msra.mxu0 0.0
    %251 = vmatprep.subr.mxu0 0.0
    %252 = vmatpush1.msra.mxu0 0.0
    %253 = vmatprep.subr.mxu0 0.0
    %254 = vmatpush1.msra.mxu0 0.0
    %255 = vmatprep.subr.mxu0 0.0
    %256 = vmatpush1.msra.mxu0 0.0
    %257 = vmatprep.subr.mxu0 0.0
    %258 = vmatpush1.msra.mxu0 0.0
    %259 = vmatprep.subr.mxu0 0.0
    %260 = vmatpush1.msra.mxu0 0.0
    %261 = vmatprep.subr.mxu0 0.0
    %262 = vmatpush1.msra.mxu0 0.0
    %263 = vmatprep.subr.mxu0 0.0
    %264 = vmatpush1.msra.mxu0 0.0
    %265 = vmatprep.subr.mxu0 0.0
    %266 = vmatpush1.msra.mxu0 0.0
    %267 = vmatprep.subr.mxu0 0.0
    %268 = vmatpush1.msra.mxu0 0.0
    %269 = vmatprep.mubr.f32.mxu0 0.0
    %v270 = vand.u32 %v65, 4294901760
    %271 = vmatmul.mubr.f32.gmra.mrb[0].mxu0 %v270
    %v272 = vpop.f32.mrb[0].mxu0
    %v273 = vadd.f32 %v152, %v272
    %v274 = vpop.f32.mrb[0].mxu0
    %275 = vmatprep.mubr.f32.mxu0 0.0
    %v276 = vand.u32 %v68, 4294901760
    %277 = vmatmul.mubr.f32.gmra.mrb[0].mxu0 %v276
    %v278 = vpop.f32.mrb[0].mxu0
    %v279 = vadd.f32 %v162, %v278
    %v280 = vpop.f32.mrb[0].mxu0
    %281 = vmatprep.mubr.f32.mxu0 0.0
    %v282 = vand.u32 %v71, 4294901760
    %283 = vmatmul.mubr.f32.gmra.mrb[0].mxu0 %v282
    %v284 = vpop.f32.mrb[0].mxu0
    %v285 = vadd.f32 %v172, %v284
    %v286 = vpop.f32.mrb[0].mxu0
    %287 = vmatprep.mubr.f32.mxu0 0.0
    %v288 = vand.u32 %v74, 4294901760
    %289 = vmatmul.mubr.f32.gmra.mrb[0].mxu0 %v288
    %v290 = vpop.f32.mrb[0].mxu0
    %v291 = vadd.f32 %v182, %v290
    %v292 = vpop.f32.mrb[0].mxu0
    %293 = vdwg.mxu0
    %294 = vmatprep.subr.mxu0 0.0
    %v295 = vand.u32 %v26, 4294901760
    %v296 = vsub.f32 %v26, %v295
    %297 = vmatpush1.msra.mxu0 %v296
    %298 = vmatprep.subr.mxu0 0.0
    %v299 = vand.u32 %v27, 4294901760
    %v300 = vsub.f32 %v27, %v299
    %301 = vmatpush1.msra.mxu0 %v300
    %302 = vmatprep.subr.mxu0 0.0
    %v303 = vand.u32 %v28, 4294901760
    %v304 = vsub.f32 %v28, %v303
    %305 = vmatpush1.msra.mxu0 %v304
    %306 = vmatprep.subr.mxu0 0.0
    %v307 = vand.u32 %v29, 4294901760
    %v308 = vsub.f32 %v29, %v307
    %309 = vmatpush1.msra.mxu0 %v308
    %310 = vmatprep.subr.mxu0 0.0
    %311 = vmatpush1.msra.mxu0 0.0
    %312 = vmatprep.subr.mxu0 0.0
    %313 = vmatpush1.msra.mxu0 0.0
    %314 = vmatprep.subr.mxu0 0.0
    %315 = vmatpush1.msra.mxu0 0.0
    %316 = vmatprep.subr.mxu0 0.0
    %317 = vmatpush1.msra.mxu0 0.0
    %318 = vmatprep.subr.mxu0 0.0
    %319 = vmatpush1.msra.mxu0 0.0
    %320 = vmatprep.subr.mxu0 0.0
    %321 = vmatpush1.msra.mxu0 0.0
    %322 = vmatprep.subr.mxu0 0.0
    %323 = vmatpush1.msra.mxu0 0.0
    %324 = vmatprep.subr.mxu0 0.0
    %325 = vmatpush1.msra.mxu0 0.0
    %326 = vmatprep.subr.mxu0 0.0
    %327 = vmatpush1.msra.mxu0 0.0
    %328 = vmatprep.subr.mxu0 0.0
    %329 = vmatpush1.msra.mxu0 0.0
    %330 = vmatprep.subr.mxu0 0.0
    %331 = vmatpush1.msra.mxu0 0.0
    %332 = vmatprep.subr.mxu0 0.0
    %333 = vmatpush1.msra.mxu0 0.0
    %334 = vmatprep.subr.mxu0 0.0
    %335 = vmatpush1.msra.mxu0 0.0
    %336 = vmatprep.subr.mxu0 0.0
    %337 = vmatpush1.msra.mxu0 0.0
    %338 = vmatprep.subr.mxu0 0.0
    %339 = vmatpush1.msra.mxu0 0.0
    %340 = vmatprep.subr.mxu0 0.0
    %341 = vmatpush1.msra.mxu0 0.0
    %342 = vmatprep.subr.mxu0 0.0
    %343 = vmatpush1.msra.mxu0 0.0
    %344 = vmatprep.subr.mxu0 0.0
    %345 = vmatpush1.msra.mxu0 0.0
    %346 = vmatprep.subr.mxu0 0.0
    %347 = vmatpush1.msra.mxu0 0.0
    %348 = vmatprep.subr.mxu0 0.0
    %349 = vmatpush1.msra.mxu0 0.0
    %350 = vmatprep.subr.mxu0 0.0
    %351 = vmatpush1.msra.mxu0 0.0
    %352 = vmatprep.subr.mxu0 0.0
    %353 = vmatpush1.msra.mxu0 0.0
    %354 = vmatprep.subr.mxu0 0.0
    %355 = vmatpush1.msra.mxu0 0.0
    %356 = vmatprep.subr.mxu0 0.0
    %357 = vmatpush1.msra.mxu0 0.0
    %358 = vmatprep.subr.mxu0 0.0
    %359 = vmatpush1.msra.mxu0 0.0
    %360 = vmatprep.subr.mxu0 0.0
    %361 = vmatpush1.msra.mxu0 0.0
    %362 = vmatprep.subr.mxu0 0.0
    %363 = vmatpush1.msra.mxu0 0.0
    %364 = vmatprep.subr.mxu0 0.0
    %365 = vmatpush1.msra.mxu0 0.0
    %366 = vmatprep.mubr.f32.mxu0 0.0
    %v367 = vand.u32 %v65, 4294901760
    %v368 = vsub.f32 %v65, %v367
    %369 = vmatmul.mubr.f32.gmra.mrb[0].mxu0 %v368
    %v370 = vpop.f32.mrb[0].mxu0
    %v371 = vadd.f32 %v273, %v370
    %v372 = vpop.f32.mrb[0].mxu0
    %373 = vmatprep.mubr.f32.mxu0 0.0
    %v374 = vand.u32 %v68, 4294901760
    %v375 = vsub.f32 %v68, %v374
    %376 = vmatmul.mubr.f32.gmra.mrb[0].mxu0 %v375
    %v377 = vpop.f32.mrb[0].mxu0
    %v378 = vadd.f32 %v279, %v377
    %v379 = vpop.f32.mrb[0].mxu0
    %380 = vmatprep.mubr.f32.mxu0 0.0
    %v381 = vand.u32 %v71, 4294901760
    %v382 = vsub.f32 %v71, %v381
    %383 = vmatmul.mubr.f32.gmra.mrb[0].mxu0 %v382
    %v384 = vpop.f32.mrb[0].mxu0
    %v385 = vadd.f32 %v285, %v384
    %v386 = vpop.f32.mrb[0].mxu0
    %387 = vmatprep.mubr.f32.mxu0 0.0
    %v388 = vand.u32 %v74, 4294901760
    %v389 = vsub.f32 %v74, %v388
    %390 = vmatmul.mubr.f32.gmra.mrb[0].mxu0 %v389
    %v391 = vpop.f32.mrb[0].mxu0
    %v392 = vadd.f32 %v291, %v391
    %v393 = vpop.f32.mrb[0].mxu0
    %394 = vdwg.mxu0
    %395 = vmatprep.subr.mxu0 0.0
    %v396 = vand.u32 %v26, 4294901760
    %397 = vmatpush1.msra.mxu0 %v396
    %398 = vmatprep.subr.mxu0 0.0
    %v399 = vand.u32 %v27, 4294901760
    %400 = vmatpush1.msra.mxu0 %v399
    %401 = vmatprep.subr.mxu0 0.0
    %v402 = vand.u32 %v28, 4294901760
    %403 = vmatpush1.msra.mxu0 %v402
    %404 = vmatprep.subr.mxu0 0.0
    %v405 = vand.u32 %v29, 4294901760
    %406 = vmatpush1.msra.mxu0 %v405
    %407 = vmatprep.subr.mxu0 0.0
    %408 = vmatpush1.msra.mxu0 0.0
    %409 = vmatprep.subr.mxu0 0.0
    %410 = vmatpush1.msra.mxu0 0.0
    %411 = vmatprep.subr.mxu0 0.0
    %412 = vmatpush1.msra.mxu0 0.0
    %413 = vmatprep.subr.mxu0 0.0
    %414 = vmatpush1.msra.mxu0 0.0
    %415 = vmatprep.subr.mxu0 0.0
    %416 = vmatpush1.msra.mxu0 0.0
    %417 = vmatprep.subr.mxu0 0.0
    %418 = vmatpush1.msra.mxu0 0.0
    %419 = vmatprep.subr.mxu0 0.0
    %420 = vmatpush1.msra.mxu0 0.0
    %421 = vmatprep.subr.mxu0 0.0
    %422 = vmatpush1.msra.mxu0 0.0
    %423 = vmatprep.subr.mxu0 0.0
    %424 = vmatpush1.msra.mxu0 0.0
    %425 = vmatprep.subr.mxu0 0.0
    %426 = vmatpush1.msra.mxu0 0.0
    %427 = vmatprep.subr.mxu0 0.0
    %428 = vmatpush1.msra.mxu0 0.0
    %429 = vmatprep.subr.mxu0 0.0
    %430 = vmatpush1.msra.mxu0 0.0
    %431 = vmatprep.subr.mxu0 0.0
    %432 = vmatpush1.msra.mxu0 0.0
    %433 = vmatprep.subr.mxu0 0.0
    %434 = vmatpush1.msra.mxu0 0.0
    %435 = vmatprep.subr.mxu0 0.0
    %436 = vmatpush1.msra.mxu0 0.0
    %437 = vmatprep.subr.mxu0 0.0
    %438 = vmatpush1.msra.mxu0 0.0
    %439 = vmatprep.subr.mxu0 0.0
    %440 = vmatpush1.msra.mxu0 0.0
    %441 = vmatprep.subr.mxu0 0.0
    %442 = vmatpush1.msra.mxu0 0.0
    %443 = vmatprep.subr.mxu0 0.0
    %444 = vmatpush1.msra.mxu0 0.0
    %445 = vmatprep.subr.mxu0 0.0
    %446 = vmatpush1.msra.mxu0 0.0
    %447 = vmatprep.subr.mxu0 0.0
    %448 = vmatpush1.msra.mxu0 0.0
    %449 = vmatprep.subr.mxu0 0.0
    %450 = vmatpush1.msra.mxu0 0.0
    %451 = vmatprep.subr.mxu0 0.0
    %452 = vmatpush1.msra.mxu0 0.0
    %453 = vmatprep.subr.mxu0 0.0
    %454 = vmatpush1.msra.mxu0 0.0
    %455 = vmatprep.subr.mxu0 0.0
    %456 = vmatpush1.msra.mxu0 0.0
    %457 = vmatprep.subr.mxu0 0.0
    %458 = vmatpush1.msra.mxu0 0.0
    %459 = vmatprep.subr.mxu0 0.0
    %460 = vmatpush1.msra.mxu0 0.0
    %461 = vmatprep.subr.mxu0 0.0
    %462 = vmatpush1.msra.mxu0 0.0
    %463 = vmatprep.mubr.f32.mxu0 0.0
    %v464 = vand.u32 %v65, 4294901760
    %v465 = vsub.f32 %v65, %v464
    %v466 = vand.u32 %v465, 4294901760
    %467 = vmatmul.mubr.f32.gmra.mrb[0].mxu0 %v466
    %v468 = vpop.f32.mrb[0].mxu0
    %v469 = vadd.f32 %v371, %v468
    %v470 = vpop.f32.mrb[0].mxu0
    %471 = vmatprep.mubr.f32.mxu0 0.0
    %v472 = vand.u32 %v68, 4294901760
    %v473 = vsub.f32 %v68, %v472
    %v474 = vand.u32 %v473, 4294901760
    %475 = vmatmul.mubr.f32.gmra.mrb[0].mxu0 %v474
    %v476 = vpop.f32.mrb[0].mxu0
    %v477 = vadd.f32 %v378, %v476
    %v478 = vpop.f32.mrb[0].mxu0
    %479 = vmatprep.mubr.f32.mxu0 0.0
    %v480 = vand.u32 %v71, 4294901760
    %v481 = vsub.f32 %v71, %v480
    %v482 = vand.u32 %v481, 4294901760
    %483 = vmatmul.mubr.f32.gmra.mrb[0].mxu0 %v482
    %v484 = vpop.f32.mrb[0].mxu0
    %v485 = vadd.f32 %v385, %v484
    %v486 = vpop.f32.mrb[0].mxu0
    %487 = vmatprep.mubr.f32.mxu0 0.0
    %v488 = vand.u32 %v74, 4294901760
    %v489 = vsub.f32 %v74, %v488
    %v490 = vand.u32 %v489, 4294901760
    %491 = vmatmul.mubr.f32.gmra.mrb[0].mxu0 %v490
    %v492 = vpop.f32.mrb[0].mxu0
    %v493 = vadd.f32 %v392, %v492
    %v494 = vpop.f32.mrb[0].mxu0
    %495 = vdwg.mxu0
    %496 = vmatprep.subr.mxu0 0.0
    %v497 = vand.u32 %v26, 4294901760
    %v498 = vsub.f32 %v26, %v497
    %v499 = vand.u32 %v498, 4294901760
    %500 = vmatpush1.msra.mxu0 %v499
    %501 = vmatprep.subr.mxu0 0.0
    %v502 = vand.u32 %v27, 4294901760
    %v503 = vsub.f32 %v27, %v502
    %v504 = vand.u32 %v503, 4294901760
    %505 = vmatpush1.msra.mxu0 %v504
    %506 = vmatprep.subr.mxu0 0.0
    %v507 = vand.u32 %v28, 4294901760
    %v508 = vsub.f32 %v28, %v507
    %v509 = vand.u32 %v508, 4294901760
    %510 = vmatpush1.msra.mxu0 %v509
    %511 = vmatprep.subr.mxu0 0.0
    %v512 = vand.u32 %v29, 4294901760
    %v513 = vsub.f32 %v29, %v512
    %v514 = vand.u32 %v513, 4294901760
    %515 = vmatpush1.msra.mxu0 %v514
    %516 = vmatprep.subr.mxu0 0.0
    %517 = vmatpush1.msra.mxu0 0.0
    %518 = vmatprep.subr.mxu0 0.0
    %519 = vmatpush1.msra.mxu0 0.0
    %520 = vmatprep.subr.mxu0 0.0
    %521 = vmatpush1.msra.mxu0 0.0
    %522 = vmatprep.subr.mxu0 0.0
    %523 = vmatpush1.msra.mxu0 0.0
    %524 = vmatprep.subr.mxu0 0.0
    %525 = vmatpush1.msra.mxu0 0.0
    %526 = vmatprep.subr.mxu0 0.0
    %527 = vmatpush1.msra.mxu0 0.0
    %528 = vmatprep.subr.mxu0 0.0
    %529 = vmatpush1.msra.mxu0 0.0
    %530 = vmatprep.subr.mxu0 0.0
    %531 = vmatpush1.msra.mxu0 0.0
    %532 = vmatprep.subr.mxu0 0.0
    %533 = vmatpush1.msra.mxu0 0.0
    %534 = vmatprep.subr.mxu0 0.0
    %535 = vmatpush1.msra.mxu0 0.0
    %536 = vmatprep.subr.mxu0 0.0
    %537 = vmatpush1.msra.mxu0 0.0
    %538 = vmatprep.subr.mxu0 0.0
    %539 = vmatpush1.msra.mxu0 0.0
    %540 = vmatprep.subr.mxu0 0.0
    %541 = vmatpush1.msra.mxu0 0.0
    %542 = vmatprep.subr.mxu0 0.0
    %543 = vmatpush1.msra.mxu0 0.0
    %544 = vmatprep.subr.mxu0 0.0
    %545 = vmatpush1.msra.mxu0 0.0
    %546 = vmatprep.subr.mxu0 0.0
    %547 = vmatpush1.msra.mxu0 0.0
    %548 = vmatprep.subr.mxu0 0.0
    %549 = vmatpush1.msra.mxu0 0.0
    %550 = vmatprep.subr.mxu0 0.0
    %551 = vmatpush1.msra.mxu0 0.0
    %552 = vmatprep.subr.mxu0 0.0
    %553 = vmatpush1.msra.mxu0 0.0
    %554 = vmatprep.subr.mxu0 0.0
    %555 = vmatpush1.msra.mxu0 0.0
    %556 = vmatprep.subr.mxu0 0.0
    %557 = vmatpush1.msra.mxu0 0.0
    %558 = vmatprep.subr.mxu0 0.0
    %559 = vmatpush1.msra.mxu0 0.0
    %560 = vmatprep.subr.mxu0 0.0
    %561 = vmatpush1.msra.mxu0 0.0
    %562 = vmatprep.subr.mxu0 0.0
    %563 = vmatpush1.msra.mxu0 0.0
    %564 = vmatprep.subr.mxu0 0.0
    %565 = vmatpush1.msra.mxu0 0.0
    %566 = vmatprep.subr.mxu0 0.0
    %567 = vmatpush1.msra.mxu0 0.0
    %568 = vmatprep.subr.mxu0 0.0
    %569 = vmatpush1.msra.mxu0 0.0
    %570 = vmatprep.subr.mxu0 0.0
    %571 = vmatpush1.msra.mxu0 0.0
    %572 = vmatprep.mubr.f32.mxu0 0.0
    %v573 = vand.u32 %v65, 4294901760
    %574 = vmatmul.mubr.f32.gmra.mrb[0].mxu0 %v573
    %v575 = vpop.f32.mrb[0].mxu0
    %v576 = vadd.f32 %v469, %v575
    %v577 = vpop.f32.mrb[0].mxu0
    %578 = vmatprep.mubr.f32.mxu0 0.0
    %v579 = vand.u32 %v68, 4294901760
    %580 = vmatmul.mubr.f32.gmra.mrb[0].mxu0 %v579
    %v581 = vpop.f32.mrb[0].mxu0
    %v582 = vadd.f32 %v477, %v581
    %v583 = vpop.f32.mrb[0].mxu0
    %584 = vmatprep.mubr.f32.mxu0 0.0
    %v585 = vand.u32 %v71, 4294901760
    %586 = vmatmul.mubr.f32.gmra.mrb[0].mxu0 %v585
    %v587 = vpop.f32.mrb[0].mxu0
    %v588 = vadd.f32 %v485, %v587
    %v589 = vpop.f32.mrb[0].mxu0
    %590 = vmatprep.mubr.f32.mxu0 0.0
    %v591 = vand.u32 %v74, 4294901760
    %592 = vmatmul.mubr.f32.gmra.mrb[0].mxu0 %v591
    %v593 = vpop.f32.mrb[0].mxu0
    %v594 = vadd.f32 %v493, %v593
    %v595 = vpop.f32.mrb[0].mxu0
    %596 = vdwg.mxu0
    %597 = vmatprep.subr.mxu0 0.0
    %v598 = vand.u32 %v26, 4294901760
    %599 = vmatpush1.msra.mxu0 %v598
    %600 = vmatprep.subr.mxu0 0.0
    %v601 = vand.u32 %v27, 4294901760
    %602 = vmatpush1.msra.mxu0 %v601
    %603 = vmatprep.subr.mxu0 0.0
    %v604 = vand.u32 %v28, 4294901760
    %605 = vmatpush1.msra.mxu0 %v604
    %606 = vmatprep.subr.mxu0 0.0
    %v607 = vand.u32 %v29, 4294901760
    %608 = vmatpush1.msra.mxu0 %v607
    %609 = vmatprep.subr.mxu0 0.0
    %610 = vmatpush1.msra.mxu0 0.0
    %611 = vmatprep.subr.mxu0 0.0
    %612 = vmatpush1.msra.mxu0 0.0
    %613 = vmatprep.subr.mxu0 0.0
    %614 = vmatpush1.msra.mxu0 0.0
    %615 = vmatprep.subr.mxu0 0.0
    %616 = vmatpush1.msra.mxu0 0.0
    %617 = vmatprep.subr.mxu0 0.0
    %618 = vmatpush1.msra.mxu0 0.0
    %619 = vmatprep.subr.mxu0 0.0
    %620 = vmatpush1.msra.mxu0 0.0
    %621 = vmatprep.subr.mxu0 0.0
    %622 = vmatpush1.msra.mxu0 0.0
    %623 = vmatprep.subr.mxu0 0.0
    %624 = vmatpush1.msra.mxu0 0.0
    %625 = vmatprep.subr.mxu0 0.0
    %626 = vmatpush1.msra.mxu0 0.0
    %627 = vmatprep.subr.mxu0 0.0
    %628 = vmatpush1.msra.mxu0 0.0
    %629 = vmatprep.subr.mxu0 0.0
    %630 = vmatpush1.msra.mxu0 0.0
    %631 = vmatprep.subr.mxu0 0.0
    %632 = vmatpush1.msra.mxu0 0.0
    %633 = vmatprep.subr.mxu0 0.0
    %634 = vmatpush1.msra.mxu0 0.0
    %635 = vmatprep.subr.mxu0 0.0
    %636 = vmatpush1.msra.mxu0 0.0
    %637 = vmatprep.subr.mxu0 0.0
    %638 = vmatpush1.msra.mxu0 0.0
    %639 = vmatprep.subr.mxu0 0.0
    %640 = vmatpush1.msra.mxu0 0.0
    %641 = vmatprep.subr.mxu0 0.0
    %642 = vmatpush1.msra.mxu0 0.0
    %643 = vmatprep.subr.mxu0 0.0
    %644 = vmatpush1.msra.mxu0 0.0
    %645 = vmatprep.subr.mxu0 0.0
    %646 = vmatpush1.msra.mxu0 0.0
    %647 = vmatprep.subr.mxu0 0.0
    %648 = vmatpush1.msra.mxu0 0.0
    %649 = vmatprep.subr.mxu0 0.0
    %650 = vmatpush1.msra.mxu0 0.0
    %651 = vmatprep.subr.mxu0 0.0
    %652 = vmatpush1.msra.mxu0 0.0
    %653 = vmatprep.subr.mxu0 0.0
    %654 = vmatpush1.msra.mxu0 0.0
    %655 = vmatprep.subr.mxu0 0.0
    %656 = vmatpush1.msra.mxu0 0.0
    %657 = vmatprep.subr.mxu0 0.0
    %658 = vmatpush1.msra.mxu0 0.0
    %659 = vmatprep.subr.mxu0 0.0
    %660 = vmatpush1.msra.mxu0 0.0
    %661 = vmatprep.subr.mxu0 0.0
    %662 = vmatpush1.msra.mxu0 0.0
    %663 = vmatprep.subr.mxu0 0.0
    %664 = vmatpush1.msra.mxu0 0.0
    %665 = vmatprep.mubr.f32.mxu0 0.0
    %v666 = vand.u32 %v65, 4294901760
    %667 = vmatmul.mubr.f32.gmra.mrb[0].mxu0 %v666
    %v668 = vpop.f32.mrb[0].mxu0
    %v669 = vadd.f32 %v576, %v668
    %v670 = vpop.f32.mrb[0].mxu0
    %671 = vmatprep.mubr.f32.mxu0 0.0
    %v672 = vand.u32 %v68, 4294901760
    %673 = vmatmul.mubr.f32.gmra.mrb[0].mxu0 %v672
    %v674 = vpop.f32.mrb[0].mxu0
    %v675 = vadd.f32 %v582, %v674
    %v676 = vpop.f32.mrb[0].mxu0
    %677 = vmatprep.mubr.f32.mxu0 0.0
    %v678 = vand.u32 %v71, 4294901760
    %679 = vmatmul.mubr.f32.gmra.mrb[0].mxu0 %v678
    %v680 = vpop.f32.mrb[0].mxu0
    %v681 = vadd.f32 %v588, %v680
    %v682 = vpop.f32.mrb[0].mxu0
    %683 = vmatprep.mubr.f32.mxu0 0.0
    %v684 = vand.u32 %v74, 4294901760
    %685 = vmatmul.mubr.f32.gmra.mrb[0].mxu0 %v684
    %v686 = vpop.f32.mrb[0].mxu0
    %v687 = vadd.f32 %v594, %v686
    %v688 = vpop.f32.mrb[0].mxu0
    %689 = vdwg.mxu0
    %690 = vset.pattern.permute.xlu0 1
    %691 = vperm.xlu0 %690, %v22
    %v692 = vpop.permute.xlu0 %691
    %694 = vset.pattern.permute.xlu0 1
    %695 = vperm.xlu0 %694, %v23
    %v696 = vpop.permute.xlu0 %695
    %698 = vset.pattern.permute.xlu0 1
    %699 = vperm.xlu0 %698, %v24
    %v700 = vpop.permute.xlu0 %699
    %702 = vset.pattern.permute.xlu0 1
    %703 = vperm.xlu0 %702, %v25
    %v704 = vpop.permute.xlu0 %703
    %v706 = vlaneseq
    %v707 = vshrl.u32 %v706, 7
    %v708 = vsub.s32 0, %v707
    %v709 = vrot.slane %v31, %v708
    %v710 = vmul.f32 %v692, %v709
    %v711 = vmul.f32 %v696, %v709
    %v712 = vmul.f32 %v700, %v709
    %v713 = vmul.f32 %v704, %v709
    %v714 = vadd.f32 %v669, %v710
    %v715 = vadd.f32 %v675, %v711
    %v716 = vadd.f32 %v681, %v712
    %v717 = vadd.f32 %v687, %v713
    %v718 = vlaneseq
    %v719 = vshrl.u32 %v718, 7
    %v720 = vsub.s32 0, %v719
    %v721 = vrot.slane %v32, %v720
    %v722 = vadd.f32 %v714, %v721
    %v723 = vadd.f32 %v715, %v721
    %v724 = vadd.f32 %v716, %v721
    %v725 = vadd.f32 %v717, %v721
    %v726 = vsel %vm63, %v722, 0.0
    %727 = vadd.xlane.f32.xlu0 %v726
    %v728 = vpop.xlane.xlu0 %727
    %v729 = vsel %vm63, %v723, 0.0
    %730 = vadd.xlane.f32.xlu0 %v729
    %v731 = vpop.xlane.xlu0 %730
    %v732 = vsel %vm63, %v724, 0.0
    %733 = vadd.xlane.f32.xlu0 %v732
    %v734 = vpop.xlane.xlu0 %733
    %v735 = vsel %vm63, %v725, 0.0
    %736 = vadd.xlane.f32.xlu0 %v735
    %v737 = vpop.xlane.xlu0 %736
    %v738 = vmul.f32 %v728, 0.03125
    %v739 = vmul.f32 %v731, 0.03125
    %v740 = vmul.f32 %v734, 0.03125
    %v741 = vmul.f32 %v737, 0.03125
    %v742 = vmul.f32 %v722, %v722
    %v743 = vmul.f32 %v723, %v723
    %v744 = vmul.f32 %v724, %v724
    %v745 = vmul.f32 %v725, %v725
    %v746 = vsel %vm63, %v742, 0.0
    %747 = vadd.xlane.f32.xlu0 %v746
    %v748 = vpop.xlane.xlu0 %747
    %v749 = vsel %vm63, %v743, 0.0
    %750 = vadd.xlane.f32.xlu0 %v749
    %v751 = vpop.xlane.xlu0 %750
    %v752 = vsel %vm63, %v744, 0.0
    %753 = vadd.xlane.f32.xlu0 %v752
    %v754 = vpop.xlane.xlu0 %753
    %v755 = vsel %vm63, %v745, 0.0
    %756 = vadd.xlane.f32.xlu0 %v755
    %v757 = vpop.xlane.xlu0 %756
    %v758 = vmul.f32 %v748, 0.03125
    %v759 = vmul.f32 %v751, 0.03125
    %v760 = vmul.f32 %v754, 0.03125
    %v761 = vmul.f32 %v757, 0.03125
    %v762 = vmul.f32 %v738, %v738
    %v763 = vmul.f32 %v739, %v739
    %v764 = vmul.f32 %v740, %v740
    %v765 = vmul.f32 %v741, %v741
    %v766 = vsub.f32 %v758, %v762
    %v767 = vsub.f32 %v759, %v763
    %v768 = vsub.f32 %v760, %v764
    %v769 = vsub.f32 %v761, %v765
    %v770 = vsub.f32 %v722, %v738
    %v771 = vsub.f32 %v723, %v739
    %v772 = vsub.f32 %v724, %v740
    %v773 = vsub.f32 %v725, %v741
    %v774 = vadd.f32 %v766, 1e-05
    %v775 = vadd.f32 %v767, 1e-05
    %v776 = vadd.f32 %v768, 1e-05
    %v777 = vadd.f32 %v769, 1e-05
    %v778 = vrsqrt.pop %v774
    %v779 = vrsqrt.pop %v775
    %v780 = vrsqrt.pop %v776
    %v781 = vrsqrt.pop %v777
    %v782 = vmul.f32 %v770, %v778
    %v783 = vmul.f32 %v771, %v779
    %v784 = vmul.f32 %v772, %v780
    %v785 = vmul.f32 %v773, %v781
    %v786 = vlaneseq
    %v787 = vshrl.u32 %v786, 7
    %v788 = vsub.s32 0, %v787
    %v789 = vrot.slane %v33, %v788
    %v790 = vmul.f32 %v782, %v789
    %v791 = vmul.f32 %v783, %v789
    %v792 = vmul.f32 %v784, %v789
    %v793 = vmul.f32 %v785, %v789
    %v794 = vlaneseq
    %v795 = vshrl.u32 %v794, 7
    %v796 = vsub.s32 0, %v795
    %v797 = vrot.slane %v34, %v796
    %v798 = vadd.f32 %v790, %v797
    %v799 = vadd.f32 %v791, %v797
    %v800 = vadd.f32 %v792, %v797
    %v801 = vadd.f32 %v793, %v797
    %v802 = vtanh.pop %v798
    %v803 = vtanh.pop %v799
    %v804 = vtanh.pop %v800
    %v805 = vtanh.pop %v801
    %v806 = vld [vmem:[%s3 + $0x90] sm:$0xff]
    %v807 = vld [vmem:[%s3 + $0x98] sm:$0xff]
    %v808 = vld [vmem:[%s3 + $0xa0] sm:$0xff]
    %v809 = vld [vmem:[%s3 + $0xa8] sm:$0xff]
    %v810 = vld [vmem:[%s2] sm:$0xff]
    %v811 = vld [vmem:[%s2 + $0x8] sm:$0xff]
    %v812 = vld [vmem:[%s2 + $0x10] sm:$0xff]
    %v813 = vld [vmem:[%s2 + $0x18] sm:$0xff]
    %v814 = vld [vmem:[%s2 + $0x20] sm:$0xff]
    %v815 = vld [vmem:[%s2 + $0x28] sm:$0xff]
    %vm816 = vcmask 130048
    %v818 = vsel %vm816, %v810, 0
    %v821 = vsel %vm816, %v811, 0
    %v824 = vsel %vm816, %v812, 0
    %v827 = vsel %vm816, %v813, 0
    %v830 = vsel %vm816, %v814, 0
    %v833 = vsel %vm816, %v815, 0
    %835 = vmatprep.subr.mxu0 0.0
    %v836 = vand.u32 %v802, 4294901760
    %837 = vmatpush1.msra.mxu0 %v836
    %838 = vmatprep.subr.mxu0 0.0
    %v839 = vand.u32 %v803, 4294901760
    %840 = vmatpush1.msra.mxu0 %v839
    %841 = vmatprep.subr.mxu0 0.0
    %842 = vmatpush1.msra.mxu0 0.0
    %843 = vmatprep.subr.mxu0 0.0
    %844 = vmatpush1.msra.mxu0 0.0
    %845 = vmatprep.subr.mxu0 0.0
    %846 = vmatpush1.msra.mxu0 0.0
    %847 = vmatprep.subr.mxu0 0.0
    %848 = vmatpush1.msra.mxu0 0.0
    %849 = vmatprep.subr.mxu0 0.0
    %850 = vmatpush1.msra.mxu0 0.0
    %851 = vmatprep.subr.mxu0 0.0
    %852 = vmatpush1.msra.mxu0 0.0
    %853 = vmatprep.subr.mxu0 0.0
    %854 = vmatpush1.msra.mxu0 0.0
    %855 = vmatprep.subr.mxu0 0.0
    %856 = vmatpush1.msra.mxu0 0.0
    %857 = vmatprep.subr.mxu0 0.0
    %858 = vmatpush1.msra.mxu0 0.0
    %859 = vmatprep.subr.mxu0 0.0
    %860 = vmatpush1.msra.mxu0 0.0
    %861 = vmatprep.subr.mxu0 0.0
    %862 = vmatpush1.msra.mxu0 0.0
    %863 = vmatprep.subr.mxu0 0.0
    %864 = vmatpush1.msra.mxu0 0.0
    %865 = vmatprep.subr.mxu0 0.0
    %866 = vmatpush1.msra.mxu0 0.0
    %867 = vmatprep.subr.mxu0 0.0
    %868 = vmatpush1.msra.mxu0 0.0
    %869 = vmatprep.subr.mxu0 0.0
    %870 = vmatpush1.msra.mxu0 0.0
    %871 = vmatprep.subr.mxu0 0.0
    %872 = vmatpush1.msra.mxu0 0.0
    %873 = vmatprep.subr.mxu0 0.0
    %874 = vmatpush1.msra.mxu0 0.0
    %875 = vmatprep.subr.mxu0 0.0
    %876 = vmatpush1.msra.mxu0 0.0
    %877 = vmatprep.subr.mxu0 0.0
    %878 = vmatpush1.msra.mxu0 0.0
    %879 = vmatprep.subr.mxu0 0.0
    %880 = vmatpush1.msra.mxu0 0.0
    %881 = vmatprep.subr.mxu0 0.0
    %882 = vmatpush1.msra.mxu0 0.0
    %883 = vmatprep.subr.mxu0 0.0
    %884 = vmatpush1.msra.mxu0 0.0
    %885 = vmatprep.subr.mxu0 0.0
    %886 = vmatpush1.msra.mxu0 0.0
    %887 = vmatprep.subr.mxu0 0.0
    %888 = vmatpush1.msra.mxu0 0.0
    %889 = vmatprep.subr.mxu0 0.0
    %890 = vmatpush1.msra.mxu0 0.0
    %891 = vmatprep.subr.mxu0 0.0
    %892 = vmatpush1.msra.mxu0 0.0
    %893 = vmatprep.subr.mxu0 0.0
    %894 = vmatpush1.msra.mxu0 0.0
    %895 = vmatprep.subr.mxu0 0.0
    %896 = vmatpush1.msra.mxu0 0.0
    %897 = vmatprep.subr.mxu0 0.0
    %898 = vmatpush1.msra.mxu0 0.0
    %899 = vmatprep.subr.mxu0 0.0
    %900 = vmatpush1.msra.mxu0 0.0
    %901 = vmatprep.mubr.f32.mxu0 0.0
    %v902 = vand.u32 %v818, 4294901760
    %v903 = vsub.f32 %v818, %v902
    %v904 = vand.u32 %v903, 4294901760
    %v905 = vsub.f32 %v903, %v904
    %v906 = vand.u32 %v905, 4294901760
    %907 = vmatmul.mubr.f32.gmra.mrb[0].mxu0 %v906
    %v908 = vpop.f32.mrb[0].mxu0
    %v909 = vadd.f32 0.0, %v908
    %v910 = vpop.f32.mrb[0].mxu0
    %911 = vmatprep.mubr.f32.mxu0 0.0
    %v912 = vand.u32 %v821, 4294901760
    %v913 = vsub.f32 %v821, %v912
    %v914 = vand.u32 %v913, 4294901760
    %v915 = vsub.f32 %v913, %v914
    %v916 = vand.u32 %v915, 4294901760
    %917 = vmatmul.mubr.f32.gmra.mrb[0].mxu0 %v916
    %v918 = vpop.f32.mrb[0].mxu0
    %v919 = vadd.f32 0.0, %v918
    %v920 = vpop.f32.mrb[0].mxu0
    %921 = vmatprep.mubr.f32.mxu0 0.0
    %v922 = vand.u32 %v824, 4294901760
    %v923 = vsub.f32 %v824, %v922
    %v924 = vand.u32 %v923, 4294901760
    %v925 = vsub.f32 %v923, %v924
    %v926 = vand.u32 %v925, 4294901760
    %927 = vmatmul.mubr.f32.gmra.mrb[0].mxu0 %v926
    %v928 = vpop.f32.mrb[0].mxu0
    %v929 = vadd.f32 0.0, %v928
    %v930 = vpop.f32.mrb[0].mxu0
    %931 = vmatprep.mubr.f32.mxu0 0.0
    %v932 = vand.u32 %v827, 4294901760
    %v933 = vsub.f32 %v827, %v932
    %v934 = vand.u32 %v933, 4294901760
    %v935 = vsub.f32 %v933, %v934
    %v936 = vand.u32 %v935, 4294901760
    %937 = vmatmul.mubr.f32.gmra.mrb[0].mxu0 %v936
    %v938 = vpop.f32.mrb[0].mxu0
    %v939 = vadd.f32 0.0, %v938
    %v940 = vpop.f32.mrb[0].mxu0
    %941 = vmatprep.mubr.f32.mxu0 0.0
    %v942 = vand.u32 %v830, 4294901760
    %v943 = vsub.f32 %v830, %v942
    %v944 = vand.u32 %v943, 4294901760
    %v945 = vsub.f32 %v943, %v944
    %v946 = vand.u32 %v945, 4294901760
    %947 = vmatmul.mubr.f32.gmra.mrb[0].mxu0 %v946
    %v948 = vpop.f32.mrb[0].mxu0
    %v949 = vadd.f32 0.0, %v948
    %v950 = vpop.f32.mrb[0].mxu0
    %951 = vmatprep.mubr.f32.mxu0 0.0
    %v952 = vand.u32 %v833, 4294901760
    %v953 = vsub.f32 %v833, %v952
    %v954 = vand.u32 %v953, 4294901760
    %v955 = vsub.f32 %v953, %v954
    %v956 = vand.u32 %v955, 4294901760
    %957 = vmatmul.mubr.f32.gmra.mrb[0].mxu0 %v956
    %v958 = vpop.f32.mrb[0].mxu0
    %v959 = vadd.f32 0.0, %v958
    %v960 = vpop.f32.mrb[0].mxu0
    %961 = vdwg.mxu0
    %962 = vmatprep.subr.mxu0 0.0
    %v963 = vand.u32 %v802, 4294901760
    %v964 = vsub.f32 %v802, %v963
    %v965 = vand.u32 %v964, 4294901760
    %v966 = vsub.f32 %v964, %v965
    %v967 = vand.u32 %v966, 4294901760
    %968 = vmatpush1.msra.mxu0 %v967
    %969 = vmatprep.subr.mxu0 0.0
    %v970 = vand.u32 %v803, 4294901760
    %v971 = vsub.f32 %v803, %v970
    %v972 = vand.u32 %v971, 4294901760
    %v973 = vsub.f32 %v971, %v972
    %v974 = vand.u32 %v973, 4294901760
    %975 = vmatpush1.msra.mxu0 %v974
    %976 = vmatprep.subr.mxu0 0.0
    %977 = vmatpush1.msra.mxu0 0.0
    %978 = vmatprep.subr.mxu0 0.0
    %979 = vmatpush1.msra.mxu0 0.0
    %980 = vmatprep.subr.mxu0 0.0
    %981 = vmatpush1.msra.mxu0 0.0
    %982 = vmatprep.subr.mxu0 0.0
    %983 = vmatpush1.msra.mxu0 0.0
    %984 = vmatprep.subr.mxu0 0.0
    %985 = vmatpush1.msra.mxu0 0.0
    %986 = vmatprep.subr.mxu0 0.0
    %987 = vmatpush1.msra.mxu0 0.0
    %988 = vmatprep.subr.mxu0 0.0
    %989 = vmatpush1.msra.mxu0 0.0
    %990 = vmatprep.subr.mxu0 0.0
    %991 = vmatpush1.msra.mxu0 0.0
    %992 = vmatprep.subr.mxu0 0.0
    %993 = vmatpush1.msra.mxu0 0.0
    %994 = vmatprep.subr.mxu0 0.0
    %995 = vmatpush1.msra.mxu0 0.0
    %996 = vmatprep.subr.mxu0 0.0
    %997 = vmatpush1.msra.mxu0 0.0
    %998 = vmatprep.subr.mxu0 0.0
    %999 = vmatpush1.msra.mxu0 0.0
    %1000 = vmatprep.subr.mxu0 0.0
    %1001 = vmatpush1.msra.mxu0 0.0
    %1002 = vmatprep.subr.mxu0 0.0
    %1003 = vmatpush1.msra.mxu0 0.0
    %1004 = vmatprep.subr.mxu0 0.0
    %1005 = vmatpush1.msra.mxu0 0.0
    %1006 = vmatprep.subr.mxu0 0.0
    %1007 = vmatpush1.msra.mxu0 0.0
    %1008 = vmatprep.subr.mxu0 0.0
    %1009 = vmatpush1.msra.mxu0 0.0
    %1010 = vmatprep.subr.mxu0 0.0
    %1011 = vmatpush1.msra.mxu0 0.0
    %1012 = vmatprep.subr.mxu0 0.0
    %1013 = vmatpush1.msra.mxu0 0.0
    %1014 = vmatprep.subr.mxu0 0.0
    %1015 = vmatpush1.msra.mxu0 0.0
    %1016 = vmatprep.subr.mxu0 0.0
    %1017 = vmatpush1.msra.mxu0 0.0
    %1018 = vmatprep.subr.mxu0 0.0
    %1019 = vmatpush1.msra.mxu0 0.0
    %1020 = vmatprep.subr.mxu0 0.0
    %1021 = vmatpush1.msra.mxu0 0.0
    %1022 = vmatprep.subr.mxu0 0.0
    %1023 = vmatpush1.msra.mxu0 0.0
    %1024 = vmatprep.subr.mxu0 0.0
    %1025 = vmatpush1.msra.mxu0 0.0
    %1026 = vmatprep.subr.mxu0 0.0
    %1027 = vmatpush1.msra.mxu0 0.0
    %1028 = vmatprep.subr.mxu0 0.0
    %1029 = vmatpush1.msra.mxu0 0.0
    %1030 = vmatprep.subr.mxu0 0.0
    %1031 = vmatpush1.msra.mxu0 0.0
    %1032 = vmatprep.subr.mxu0 0.0
    %1033 = vmatpush1.msra.mxu0 0.0
    %1034 = vmatprep.subr.mxu0 0.0
    %1035 = vmatpush1.msra.mxu0 0.0
    %1036 = vmatprep.mubr.f32.mxu0 0.0
    %v1037 = vand.u32 %v818, 4294901760
    %1038 = vmatmul.mubr.f32.gmra.mrb[0].mxu0 %v1037
    %v1039 = vpop.f32.mrb[0].mxu0
    %v1040 = vadd.f32 %v909, %v1039
    %v1041 = vpop.f32.mrb[0].mxu0
    %1042 = vmatprep.mubr.f32.mxu0 0.0
    %v1043 = vand.u32 %v821, 4294901760
    %1044 = vmatmul.mubr.f32.gmra.mrb[0].mxu0 %v1043
    %v1045 = vpop.f32.mrb[0].mxu0
    %v1046 = vadd.f32 %v919, %v1045
    %v1047 = vpop.f32.mrb[0].mxu0
    %1048 = vmatprep.mubr.f32.mxu0 0.0
    %v1049 = vand.u32 %v824, 4294901760
    %1050 = vmatmul.mubr.f32.gmra.mrb[0].mxu0 %v1049
    %v1051 = vpop.f32.mrb[0].mxu0
    %v1052 = vadd.f32 %v929, %v1051
    %v1053 = vpop.f32.mrb[0].mxu0
    %1054 = vmatprep.mubr.f32.mxu0 0.0
    %v1055 = vand.u32 %v827, 4294901760
    %1056 = vmatmul.mubr.f32.gmra.mrb[0].mxu0 %v1055
    %v1057 = vpop.f32.mrb[0].mxu0
    %v1058 = vadd.f32 %v939, %v1057
    %v1059 = vpop.f32.mrb[0].mxu0
    %1060 = vmatprep.mubr.f32.mxu0 0.0
    %v1061 = vand.u32 %v830, 4294901760
    %1062 = vmatmul.mubr.f32.gmra.mrb[0].mxu0 %v1061
    %v1063 = vpop.f32.mrb[0].mxu0
    %v1064 = vadd.f32 %v949, %v1063
    %v1065 = vpop.f32.mrb[0].mxu0
    %1066 = vmatprep.mubr.f32.mxu0 0.0
    %v1067 = vand.u32 %v833, 4294901760
    %1068 = vmatmul.mubr.f32.gmra.mrb[0].mxu0 %v1067
    %v1069 = vpop.f32.mrb[0].mxu0
    %v1070 = vadd.f32 %v959, %v1069
    %v1071 = vpop.f32.mrb[0].mxu0
    %1072 = vdwg.mxu0
    %1073 = vmatprep.subr.mxu0 0.0
    %v1074 = vand.u32 %v802, 4294901760
    %v1075 = vsub.f32 %v802, %v1074
    %1076 = vmatpush1.msra.mxu0 %v1075
    %1077 = vmatprep.subr.mxu0 0.0
    %v1078 = vand.u32 %v803, 4294901760
    %v1079 = vsub.f32 %v803, %v1078
    %1080 = vmatpush1.msra.mxu0 %v1079
    %1081 = vmatprep.subr.mxu0 0.0
    %1082 = vmatpush1.msra.mxu0 0.0
    %1083 = vmatprep.subr.mxu0 0.0
    %1084 = vmatpush1.msra.mxu0 0.0
    %1085 = vmatprep.subr.mxu0 0.0
    %1086 = vmatpush1.msra.mxu0 0.0
    %1087 = vmatprep.subr.mxu0 0.0
    %1088 = vmatpush1.msra.mxu0 0.0
    %1089 = vmatprep.subr.mxu0 0.0
    %1090 = vmatpush1.msra.mxu0 0.0
    %1091 = vmatprep.subr.mxu0 0.0
    %1092 = vmatpush1.msra.mxu0 0.0
    %1093 = vmatprep.subr.mxu0 0.0
    %1094 = vmatpush1.msra.mxu0 0.0
    %1095 = vmatprep.subr.mxu0 0.0
    %1096 = vmatpush1.msra.mxu0 0.0
    %1097 = vmatprep.subr.mxu0 0.0
    %1098 = vmatpush1.msra.mxu0 0.0
    %1099 = vmatprep.subr.mxu0 0.0
    %1100 = vmatpush1.msra.mxu0 0.0
    %1101 = vmatprep.subr.mxu0 0.0
    %1102 = vmatpush1.msra.mxu0 0.0
    %1103 = vmatprep.subr.mxu0 0.0
    %1104 = vmatpush1.msra.mxu0 0.0
    %1105 = vmatprep.subr.mxu0 0.0
    %1106 = vmatpush1.msra.mxu0 0.0
    %1107 = vmatprep.subr.mxu0 0.0
    %1108 = vmatpush1.msra.mxu0 0.0
    %1109 = vmatprep.subr.mxu0 0.0
    %1110 = vmatpush1.msra.mxu0 0.0
    %1111 = vmatprep.subr.mxu0 0.0
    %1112 = vmatpush1.msra.mxu0 0.0
    %1113 = vmatprep.subr.mxu0 0.0
    %1114 = vmatpush1.msra.mxu0 0.0
    %1115 = vmatprep.subr.mxu0 0.0
    %1116 = vmatpush1.msra.mxu0 0.0
    %1117 = vmatprep.subr.mxu0 0.0
    %1118 = vmatpush1.msra.mxu0 0.0
    %1119 = vmatprep.subr.mxu0 0.0
    %1120 = vmatpush1.msra.mxu0 0.0
    %1121 = vmatprep.subr.mxu0 0.0
    %1122 = vmatpush1.msra.mxu0 0.0
    %1123 = vmatprep.subr.mxu0 0.0
    %1124 = vmatpush1.msra.mxu0 0.0
    %1125 = vmatprep.subr.mxu0 0.0
    %1126 = vmatpush1.msra.mxu0 0.0
    %1127 = vmatprep.subr.mxu0 0.0
    %1128 = vmatpush1.msra.mxu0 0.0
    %1129 = vmatprep.subr.mxu0 0.0
    %1130 = vmatpush1.msra.mxu0 0.0
    %1131 = vmatprep.subr.mxu0 0.0
    %1132 = vmatpush1.msra.mxu0 0.0
    %1133 = vmatprep.subr.mxu0 0.0
    %1134 = vmatpush1.msra.mxu0 0.0
    %1135 = vmatprep.subr.mxu0 0.0
    %1136 = vmatpush1.msra.mxu0 0.0
    %1137 = vmatprep.subr.mxu0 0.0
    %1138 = vmatpush1.msra.mxu0 0.0
    %1139 = vmatprep.subr.mxu0 0.0
    %1140 = vmatpush1.msra.mxu0 0.0
    %1141 = vmatprep.mubr.f32.mxu0 0.0
    %v1142 = vand.u32 %v818, 4294901760
    %v1143 = vsub.f32 %v818, %v1142
    %1144 = vmatmul.mubr.f32.gmra.mrb[0].mxu0 %v1143
    %v1145 = vpop.f32.mrb[0].mxu0
    %v1146 = vadd.f32 %v1040, %v1145
    %v1147 = vpop.f32.mrb[0].mxu0
    %1148 = vmatprep.mubr.f32.mxu0 0.0
    %v1149 = vand.u32 %v821, 4294901760
    %v1150 = vsub.f32 %v821, %v1149
    %1151 = vmatmul.mubr.f32.gmra.mrb[0].mxu0 %v1150
    %v1152 = vpop.f32.mrb[0].mxu0
    %v1153 = vadd.f32 %v1046, %v1152
    %v1154 = vpop.f32.mrb[0].mxu0
    %1155 = vmatprep.mubr.f32.mxu0 0.0
    %v1156 = vand.u32 %v824, 4294901760
    %v1157 = vsub.f32 %v824, %v1156
    %1158 = vmatmul.mubr.f32.gmra.mrb[0].mxu0 %v1157
    %v1159 = vpop.f32.mrb[0].mxu0
    %v1160 = vadd.f32 %v1052, %v1159
    %v1161 = vpop.f32.mrb[0].mxu0
    %1162 = vmatprep.mubr.f32.mxu0 0.0
    %v1163 = vand.u32 %v827, 4294901760
    %v1164 = vsub.f32 %v827, %v1163
    %1165 = vmatmul.mubr.f32.gmra.mrb[0].mxu0 %v1164
    %v1166 = vpop.f32.mrb[0].mxu0
    %v1167 = vadd.f32 %v1058, %v1166
    %v1168 = vpop.f32.mrb[0].mxu0
    %1169 = vmatprep.mubr.f32.mxu0 0.0
    %v1170 = vand.u32 %v830, 4294901760
    %v1171 = vsub.f32 %v830, %v1170
    %1172 = vmatmul.mubr.f32.gmra.mrb[0].mxu0 %v1171
    %v1173 = vpop.f32.mrb[0].mxu0
    %v1174 = vadd.f32 %v1064, %v1173
    %v1175 = vpop.f32.mrb[0].mxu0
    %1176 = vmatprep.mubr.f32.mxu0 0.0
    %v1177 = vand.u32 %v833, 4294901760
    %v1178 = vsub.f32 %v833, %v1177
    %1179 = vmatmul.mubr.f32.gmra.mrb[0].mxu0 %v1178
    %v1180 = vpop.f32.mrb[0].mxu0
    %v1181 = vadd.f32 %v1070, %v1180
    %v1182 = vpop.f32.mrb[0].mxu0
    %1183 = vdwg.mxu0
    %1184 = vmatprep.subr.mxu0 0.0
    %v1185 = vand.u32 %v802, 4294901760
    %1186 = vmatpush1.msra.mxu0 %v1185
    %1187 = vmatprep.subr.mxu0 0.0
    %v1188 = vand.u32 %v803, 4294901760
    %1189 = vmatpush1.msra.mxu0 %v1188
    %1190 = vmatprep.subr.mxu0 0.0
    %1191 = vmatpush1.msra.mxu0 0.0
    %1192 = vmatprep.subr.mxu0 0.0
    %1193 = vmatpush1.msra.mxu0 0.0
    %1194 = vmatprep.subr.mxu0 0.0
    %1195 = vmatpush1.msra.mxu0 0.0
    %1196 = vmatprep.subr.mxu0 0.0
    %1197 = vmatpush1.msra.mxu0 0.0
    %1198 = vmatprep.subr.mxu0 0.0
    %1199 = vmatpush1.msra.mxu0 0.0
    %1200 = vmatprep.subr.mxu0 0.0
    %1201 = vmatpush1.msra.mxu0 0.0
    %1202 = vmatprep.subr.mxu0 0.0
    %1203 = vmatpush1.msra.mxu0 0.0
    %1204 = vmatprep.subr.mxu0 0.0
    %1205 = vmatpush1.msra.mxu0 0.0
    %1206 = vmatprep.subr.mxu0 0.0
    %1207 = vmatpush1.msra.mxu0 0.0
    %1208 = vmatprep.subr.mxu0 0.0
    %1209 = vmatpush1.msra.mxu0 0.0
    %1210 = vmatprep.subr.mxu0 0.0
    %1211 = vmatpush1.msra.mxu0 0.0
    %1212 = vmatprep.subr.mxu0 0.0
    %1213 = vmatpush1.msra.mxu0 0.0
    %1214 = vmatprep.subr.mxu0 0.0
    %1215 = vmatpush1.msra.mxu0 0.0
    %1216 = vmatprep.subr.mxu0 0.0
    %1217 = vmatpush1.msra.mxu0 0.0
    %1218 = vmatprep.subr.mxu0 0.0
    %1219 = vmatpush1.msra.mxu0 0.0
    %1220 = vmatprep.subr.mxu0 0.0
    %1221 = vmatpush1.msra.mxu0 0.0
    %1222 = vmatprep.subr.mxu0 0.0
    %1223 = vmatpush1.msra.mxu0 0.0
    %1224 = vmatprep.subr.mxu0 0.0
    %1225 = vmatpush1.msra.mxu0 0.0
    %1226 = vmatprep.subr.mxu0 0.0
    %1227 = vmatpush1.msra.mxu0 0.0
    %1228 = vmatprep.subr.mxu0 0.0
    %1229 = vmatpush1.msra.mxu0 0.0
    %1230 = vmatprep.subr.mxu0 0.0
    %1231 = vmatpush1.msra.mxu0 0.0
    %1232 = vmatprep.subr.mxu0 0.0
    %1233 = vmatpush1.msra.mxu0 0.0
    %1234 = vmatprep.subr.mxu0 0.0
    %1235 = vmatpush1.msra.mxu0 0.0
    %1236 = vmatprep.subr.mxu0 0.0
    %1237 = vmatpush1.msra.mxu0 0.0
    %1238 = vmatprep.subr.mxu0 0.0
    %1239 = vmatpush1.msra.mxu0 0.0
    %1240 = vmatprep.subr.mxu0 0.0
    %1241 = vmatpush1.msra.mxu0 0.0
    %1242 = vmatprep.subr.mxu0 0.0
    %1243 = vmatpush1.msra.mxu0 0.0
    %1244 = vmatprep.subr.mxu0 0.0
    %1245 = vmatpush1.msra.mxu0 0.0
    %1246 = vmatprep.subr.mxu0 0.0
    %1247 = vmatpush1.msra.mxu0 0.0
    %1248 = vmatprep.subr.mxu0 0.0
    %1249 = vmatpush1.msra.mxu0 0.0
    %1250 = vmatprep.mubr.f32.mxu0 0.0
    %v1251 = vand.u32 %v818, 4294901760
    %v1252 = vsub.f32 %v818, %v1251
    %v1253 = vand.u32 %v1252, 4294901760
    %1254 = vmatmul.mubr.f32.gmra.mrb[0].mxu0 %v1253
    %v1255 = vpop.f32.mrb[0].mxu0
    %v1256 = vadd.f32 %v1146, %v1255
    %v1257 = vpop.f32.mrb[0].mxu0
    %1258 = vmatprep.mubr.f32.mxu0 0.0
    %v1259 = vand.u32 %v821, 4294901760
    %v1260 = vsub.f32 %v821, %v1259
    %v1261 = vand.u32 %v1260, 4294901760
    %1262 = vmatmul.mubr.f32.gmra.mrb[0].mxu0 %v1261
    %v1263 = vpop.f32.mrb[0].mxu0
    %v1264 = vadd.f32 %v1153, %v1263
    %v1265 = vpop.f32.mrb[0].mxu0
    %1266 = vmatprep.mubr.f32.mxu0 0.0
    %v1267 = vand.u32 %v824, 4294901760
    %v1268 = vsub.f32 %v824, %v1267
    %v1269 = vand.u32 %v1268, 4294901760
    %1270 = vmatmul.mubr.f32.gmra.mrb[0].mxu0 %v1269
    %v1271 = vpop.f32.mrb[0].mxu0
    %v1272 = vadd.f32 %v1160, %v1271
    %v1273 = vpop.f32.mrb[0].mxu0
    %1274 = vmatprep.mubr.f32.mxu0 0.0
    %v1275 = vand.u32 %v827, 4294901760
    %v1276 = vsub.f32 %v827, %v1275
    %v1277 = vand.u32 %v1276, 4294901760
    %1278 = vmatmul.mubr.f32.gmra.mrb[0].mxu0 %v1277
    %v1279 = vpop.f32.mrb[0].mxu0
    %v1280 = vadd.f32 %v1167, %v1279
    %v1281 = vpop.f32.mrb[0].mxu0
    %1282 = vmatprep.mubr.f32.mxu0 0.0
    %v1283 = vand.u32 %v830, 4294901760
    %v1284 = vsub.f32 %v830, %v1283
    %v1285 = vand.u32 %v1284, 4294901760
    %1286 = vmatmul.mubr.f32.gmra.mrb[0].mxu0 %v1285
    %v1287 = vpop.f32.mrb[0].mxu0
    %v1288 = vadd.f32 %v1174, %v1287
    %v1289 = vpop.f32.mrb[0].mxu0
    %1290 = vmatprep.mubr.f32.mxu0 0.0
    %v1291 = vand.u32 %v833, 4294901760
    %v1292 = vsub.f32 %v833, %v1291
    %v1293 = vand.u32 %v1292, 4294901760
    %1294 = vmatmul.mubr.f32.gmra.mrb[0].mxu0 %v1293
    %v1295 = vpop.f32.mrb[0].mxu0
    %v1296 = vadd.f32 %v1181, %v1295
    %v1297 = vpop.f32.mrb[0].mxu0
    %1298 = vdwg.mxu0
    %1299 = vmatprep.subr.mxu0 0.0
    %v1300 = vand.u32 %v802, 4294901760
    %v1301 = vsub.f32 %v802, %v1300
    %v1302 = vand.u32 %v1301, 4294901760
    %1303 = vmatpush1.msra.mxu0 %v1302
    %1304 = vmatprep.subr.mxu0 0.0
    %v1305 = vand.u32 %v803, 4294901760
    %v1306 = vsub.f32 %v803, %v1305
    %v1307 = vand.u32 %v1306, 4294901760
    %1308 = vmatpush1.msra.mxu0 %v1307
    %1309 = vmatprep.subr.mxu0 0.0
    %1310 = vmatpush1.msra.mxu0 0.0
    %1311 = vmatprep.subr.mxu0 0.0
    %1312 = vmatpush1.msra.mxu0 0.0
    %1313 = vmatprep.subr.mxu0 0.0
    %1314 = vmatpush1.msra.mxu0 0.0
    %1315 = vmatprep.subr.mxu0 0.0
    %1316 = vmatpush1.msra.mxu0 0.0
    %1317 = vmatprep.subr.mxu0 0.0
    %1318 = vmatpush1.msra.mxu0 0.0
    %1319 = vmatprep.subr.mxu0 0.0
    %1320 = vmatpush1.msra.mxu0 0.0
    %1321 = vmatprep.subr.mxu0 0.0
    %1322 = vmatpush1.msra.mxu0 0.0
    %1323 = vmatprep.subr.mxu0 0.0
    %1324 = vmatpush1.msra.mxu0 0.0
    %1325 = vmatprep.subr.mxu0 0.0
    %1326 = vmatpush1.msra.mxu0 0.0
    %1327 = vmatprep.subr.mxu0 0.0
    %1328 = vmatpush1.msra.mxu0 0.0
    %1329 = vmatprep.subr.mxu0 0.0
    %1330 = vmatpush1.msra.mxu0 0.0
    %1331 = vmatprep.subr.mxu0 0.0
    %1332 = vmatpush1.msra.mxu0 0.0
    %1333 = vmatprep.subr.mxu0 0.0
    %1334 = vmatpush1.msra.mxu0 0.0
    %1335 = vmatprep.subr.mxu0 0.0
    %1336 = vmatpush1.msra.mxu0 0.0
    %1337 = vmatprep.subr.mxu0 0.0
    %1338 = vmatpush1.msra.mxu0 0.0
    %1339 = vmatprep.subr.mxu0 0.0
    %1340 = vmatpush1.msra.mxu0 0.0
    %1341 = vmatprep.subr.mxu0 0.0
    %1342 = vmatpush1.msra.mxu0 0.0
    %1343 = vmatprep.subr.mxu0 0.0
    %1344 = vmatpush1.msra.mxu0 0.0
    %1345 = vmatprep.subr.mxu0 0.0
    %1346 = vmatpush1.msra.mxu0 0.0
    %1347 = vmatprep.subr.mxu0 0.0
    %1348 = vmatpush1.msra.mxu0 0.0
    %1349 = vmatprep.subr.mxu0 0.0
    %1350 = vmatpush1.msra.mxu0 0.0
    %1351 = vmatprep.subr.mxu0 0.0
    %1352 = vmatpush1.msra.mxu0 0.0
    %1353 = vmatprep.subr.mxu0 0.0
    %1354 = vmatpush1.msra.mxu0 0.0
    %1355 = vmatprep.subr.mxu0 0.0
    %1356 = vmatpush1.msra.mxu0 0.0
    %1357 = vmatprep.subr.mxu0 0.0
    %1358 = vmatpush1.msra.mxu0 0.0
    %1359 = vmatprep.subr.mxu0 0.0
    %1360 = vmatpush1.msra.mxu0 0.0
    %1361 = vmatprep.subr.mxu0 0.0
    %1362 = vmatpush1.msra.mxu0 0.0
    %1363 = vmatprep.subr.mxu0 0.0
    %1364 = vmatpush1.msra.mxu0 0.0
    %1365 = vmatprep.subr.mxu0 0.0
    %1366 = vmatpush1.msra.mxu0 0.0
    %1367 = vmatprep.subr.mxu0 0.0
    %1368 = vmatpush1.msra.mxu0 0.0
    %1369 = vmatprep.mubr.f32.mxu0 0.0
    %v1370 = vand.u32 %v818, 4294901760
    %1371 = vmatmul.mubr.f32.gmra.mrb[0].mxu0 %v1370
    %v1372 = vpop.f32.mrb[0].mxu0
    %v1373 = vadd.f32 %v1256, %v1372
    %v1374 = vpop.f32.mrb[0].mxu0
    %1375 = vmatprep.mubr.f32.mxu0 0.0
    %v1376 = vand.u32 %v821, 4294901760
    %1377 = vmatmul.mubr.f32.gmra.mrb[0].mxu0 %v1376
    %v1378 = vpop.f32.mrb[0].mxu0
    %v1379 = vadd.f32 %v1264, %v1378
    %v1380 = vpop.f32.mrb[0].mxu0
    %1381 = vmatprep.mubr.f32.mxu0 0.0
    %v1382 = vand.u32 %v824, 4294901760
    %1383 = vmatmul.mubr.f32.gmra.mrb[0].mxu0 %v1382
    %v1384 = vpop.f32.mrb[0].mxu0
    %v1385 = vadd.f32 %v1272, %v1384
    %v1386 = vpop.f32.mrb[0].mxu0
    %1387 = vmatprep.mubr.f32.mxu0 0.0
    %v1388 = vand.u32 %v827, 4294901760
    %1389 = vmatmul.mubr.f32.gmra.mrb[0].mxu0 %v1388
    %v1390 = vpop.f32.mrb[0].mxu0
    %v1391 = vadd.f32 %v1280, %v1390
    %v1392 = vpop.f32.mrb[0].mxu0
    %1393 = vmatprep.mubr.f32.mxu0 0.0
    %v1394 = vand.u32 %v830, 4294901760
    %1395 = vmatmul.mubr.f32.gmra.mrb[0].mxu0 %v1394
    %v1396 = vpop.f32.mrb[0].mxu0
    %v1397 = vadd.f32 %v1288, %v1396
    %v1398 = vpop.f32.mrb[0].mxu0
    %1399 = vmatprep.mubr.f32.mxu0 0.0
    %v1400 = vand.u32 %v833, 4294901760
    %1401 = vmatmul.mubr.f32.gmra.mrb[0].mxu0 %v1400
    %v1402 = vpop.f32.mrb[0].mxu0
    %v1403 = vadd.f32 %v1296, %v1402
    %v1404 = vpop.f32.mrb[0].mxu0
    %1405 = vdwg.mxu0
    %1406 = vmatprep.subr.mxu0 0.0
    %v1407 = vand.u32 %v802, 4294901760
    %1408 = vmatpush1.msra.mxu0 %v1407
    %1409 = vmatprep.subr.mxu0 0.0
    %v1410 = vand.u32 %v803, 4294901760
    %1411 = vmatpush1.msra.mxu0 %v1410
    %1412 = vmatprep.subr.mxu0 0.0
    %1413 = vmatpush1.msra.mxu0 0.0
    %1414 = vmatprep.subr.mxu0 0.0
    %1415 = vmatpush1.msra.mxu0 0.0
    %1416 = vmatprep.subr.mxu0 0.0
    %1417 = vmatpush1.msra.mxu0 0.0
    %1418 = vmatprep.subr.mxu0 0.0
    %1419 = vmatpush1.msra.mxu0 0.0
    %1420 = vmatprep.subr.mxu0 0.0
    %1421 = vmatpush1.msra.mxu0 0.0
    %1422 = vmatprep.subr.mxu0 0.0
    %1423 = vmatpush1.msra.mxu0 0.0
    %1424 = vmatprep.subr.mxu0 0.0
    %1425 = vmatpush1.msra.mxu0 0.0
    %1426 = vmatprep.subr.mxu0 0.0
    %1427 = vmatpush1.msra.mxu0 0.0
    %1428 = vmatprep.subr.mxu0 0.0
    %1429 = vmatpush1.msra.mxu0 0.0
    %1430 = vmatprep.subr.mxu0 0.0
    %1431 = vmatpush1.msra.mxu0 0.0
    %1432 = vmatprep.subr.mxu0 0.0
    %1433 = vmatpush1.msra.mxu0 0.0
    %1434 = vmatprep.subr.mxu0 0.0
    %1435 = vmatpush1.msra.mxu0 0.0
    %1436 = vmatprep.subr.mxu0 0.0
    %1437 = vmatpush1.msra.mxu0 0.0
    %1438 = vmatprep.subr.mxu0 0.0
    %1439 = vmatpush1.msra.mxu0 0.0
    %1440 = vmatprep.subr.mxu0 0.0
    %1441 = vmatpush1.msra.mxu0 0.0
    %1442 = vmatprep.subr.mxu0 0.0
    %1443 = vmatpush1.msra.mxu0 0.0
    %1444 = vmatprep.subr.mxu0 0.0
    %1445 = vmatpush1.msra.mxu0 0.0
    %1446 = vmatprep.subr.mxu0 0.0
    %1447 = vmatpush1.msra.mxu0 0.0
    %1448 = vmatprep.subr.mxu0 0.0
    %1449 = vmatpush1.msra.mxu0 0.0
    %1450 = vmatprep.subr.mxu0 0.0
    %1451 = vmatpush1.msra.mxu0 0.0
    %1452 = vmatprep.subr.mxu0 0.0
    %1453 = vmatpush1.msra.mxu0 0.0
    %1454 = vmatprep.subr.mxu0 0.0
    %1455 = vmatpush1.msra.mxu0 0.0
    %1456 = vmatprep.subr.mxu0 0.0
    %1457 = vmatpush1.msra.mxu0 0.0
    %1458 = vmatprep.subr.mxu0 0.0
    %1459 = vmatpush1.msra.mxu0 0.0
    %1460 = vmatprep.subr.mxu0 0.0
    %1461 = vmatpush1.msra.mxu0 0.0
    %1462 = vmatprep.subr.mxu0 0.0
    %1463 = vmatpush1.msra.mxu0 0.0
    %1464 = vmatprep.subr.mxu0 0.0
    %1465 = vmatpush1.msra.mxu0 0.0
    %1466 = vmatprep.subr.mxu0 0.0
    %1467 = vmatpush1.msra.mxu0 0.0
    %1468 = vmatprep.subr.mxu0 0.0
    %1469 = vmatpush1.msra.mxu0 0.0
    %1470 = vmatprep.subr.mxu0 0.0
    %1471 = vmatpush1.msra.mxu0 0.0
    %1472 = vmatprep.mubr.f32.mxu0 0.0
    %v1473 = vand.u32 %v818, 4294901760
    %1474 = vmatmul.mubr.f32.gmra.mrb[0].mxu0 %v1473
    %v1475 = vpop.f32.mrb[0].mxu0
    %v1476 = vadd.f32 %v1373, %v1475
    %v1477 = vpop.f32.mrb[0].mxu0
    %1478 = vmatprep.mubr.f32.mxu0 0.0
    %v1479 = vand.u32 %v821, 4294901760
    %1480 = vmatmul.mubr.f32.gmra.mrb[0].mxu0 %v1479
    %v1481 = vpop.f32.mrb[0].mxu0
    %v1482 = vadd.f32 %v1379, %v1481
    %v1483 = vpop.f32.mrb[0].mxu0
    %1484 = vmatprep.mubr.f32.mxu0 0.0
    %v1485 = vand.u32 %v824, 4294901760
    %1486 = vmatmul.mubr.f32.gmra.mrb[0].mxu0 %v1485
    %v1487 = vpop.f32.mrb[0].mxu0
    %v1488 = vadd.f32 %v1385, %v1487
    %v1489 = vpop.f32.mrb[0].mxu0
    %1490 = vmatprep.mubr.f32.mxu0 0.0
    %v1491 = vand.u32 %v827, 4294901760
    %1492 = vmatmul.mubr.f32.gmra.mrb[0].mxu0 %v1491
    %v1493 = vpop.f32.mrb[0].mxu0
    %v1494 = vadd.f32 %v1391, %v1493
    %v1495 = vpop.f32.mrb[0].mxu0
    %1496 = vmatprep.mubr.f32.mxu0 0.0
    %v1497 = vand.u32 %v830, 4294901760
    %1498 = vmatmul.mubr.f32.gmra.mrb[0].mxu0 %v1497
    %v1499 = vpop.f32.mrb[0].mxu0
    %v1500 = vadd.f32 %v1397, %v1499
    %v1501 = vpop.f32.mrb[0].mxu0
    %1502 = vmatprep.mubr.f32.mxu0 0.0
    %v1503 = vand.u32 %v833, 4294901760
    %1504 = vmatmul.mubr.f32.gmra.mrb[0].mxu0 %v1503
    %v1505 = vpop.f32.mrb[0].mxu0
    %v1506 = vadd.f32 %v1403, %v1505
    %v1507 = vpop.f32.mrb[0].mxu0
    %1508 = vdwg.mxu0
    %v1509 = vld [vmem:[%s3 + $0x30] sm:$0xff]
    %v1510 = vld [vmem:[%s3 + $0x38] sm:$0xff]
    %v1511 = vld [vmem:[%s3 + $0x40] sm:$0xff]
    %v1512 = vld [vmem:[%s3 + $0x48] sm:$0xff]
    %v1514 = vsel %vm63, %v1476, 0
    %v1517 = vsel %vm63, %v1482, 0
    %1519 = vmatprep.subr.mxu0 0.0
    %v1520 = vand.u32 %v1509, 4294901760
    %1521 = vmatpush1.msra.mxu0 %v1520
    %1522 = vmatprep.subr.mxu0 0.0
    %v1523 = vand.u32 %v1510, 4294901760
    %1524 = vmatpush1.msra.mxu0 %v1523
    %1525 = vmatprep.subr.mxu0 0.0
    %v1526 = vand.u32 %v1511, 4294901760
    %1527 = vmatpush1.msra.mxu0 %v1526
    %1528 = vmatprep.subr.mxu0 0.0
    %v1529 = vand.u32 %v1512, 4294901760
    %1530 = vmatpush1.msra.mxu0 %v1529
    %1531 = vmatprep.subr.mxu0 0.0
    %1532 = vmatpush1.msra.mxu0 0.0
    %1533 = vmatprep.subr.mxu0 0.0
    %1534 = vmatpush1.msra.mxu0 0.0
    %1535 = vmatprep.subr.mxu0 0.0
    %1536 = vmatpush1.msra.mxu0 0.0
    %1537 = vmatprep.subr.mxu0 0.0
    %1538 = vmatpush1.msra.mxu0 0.0
    %1539 = vmatprep.subr.mxu0 0.0
    %1540 = vmatpush1.msra.mxu0 0.0
    %1541 = vmatprep.subr.mxu0 0.0
    %1542 = vmatpush1.msra.mxu0 0.0
    %1543 = vmatprep.subr.mxu0 0.0
    %1544 = vmatpush1.msra.mxu0 0.0
    %1545 = vmatprep.subr.mxu0 0.0
    %1546 = vmatpush1.msra.mxu0 0.0
    %1547 = vmatprep.subr.mxu0 0.0
    %1548 = vmatpush1.msra.mxu0 0.0
    %1549 = vmatprep.subr.mxu0 0.0
    %1550 = vmatpush1.msra.mxu0 0.0
    %1551 = vmatprep.subr.mxu0 0.0
    %1552 = vmatpush1.msra.mxu0 0.0
    %1553 = vmatprep.subr.mxu0 0.0
    %1554 = vmatpush1.msra.mxu0 0.0
    %1555 = vmatprep.subr.mxu0 0.0
    %1556 = vmatpush1.msra.mxu0 0.0
    %1557 = vmatprep.subr.mxu0 0.0
    %1558 = vmatpush1.msra.mxu0 0.0
    %1559 = vmatprep.subr.mxu0 0.0
    %1560 = vmatpush1.msra.mxu0 0.0
    %1561 = vmatprep.subr.mxu0 0.0
    %1562 = vmatpush1.msra.mxu0 0.0
    %1563 = vmatprep.subr.mxu0 0.0
    %1564 = vmatpush1.msra.mxu0 0.0
    %1565 = vmatprep.subr.mxu0 0.0
    %1566 = vmatpush1.msra.mxu0 0.0
    %1567 = vmatprep.subr.mxu0 0.0
    %1568 = vmatpush1.msra.mxu0 0.0
    %1569 = vmatprep.subr.mxu0 0.0
    %1570 = vmatpush1.msra.mxu0 0.0
    %1571 = vmatprep.subr.mxu0 0.0
    %1572 = vmatpush1.msra.mxu0 0.0
    %1573 = vmatprep.subr.mxu0 0.0
    %1574 = vmatpush1.msra.mxu0 0.0
    %1575 = vmatprep.subr.mxu0 0.0
    %1576 = vmatpush1.msra.mxu0 0.0
    %1577 = vmatprep.subr.mxu0 0.0
    %1578 = vmatpush1.msra.mxu0 0.0
    %1579 = vmatprep.subr.mxu0 0.0
    %1580 = vmatpush1.msra.mxu0 0.0
    %1581 = vmatprep.subr.mxu0 0.0
    %1582 = vmatpush1.msra.mxu0 0.0
    %1583 = vmatprep.subr.mxu0 0.0
    %1584 = vmatpush1.msra.mxu0 0.0
    %1585 = vmatprep.subr.mxu0 0.0
    %1586 = vmatpush1.msra.mxu0 0.0
    %1587 = vmatprep.mubr.f32.mxu0 0.0
    %v1588 = vand.u32 %v1514, 4294901760
    %v1589 = vsub.f32 %v1514, %v1588
    %v1590 = vand.u32 %v1589, 4294901760
    %v1591 = vsub.f32 %v1589, %v1590
    %v1592 = vand.u32 %v1591, 4294901760
    %1593 = vmatmul.mubr.f32.gmra.mrb[0].mxu0 %v1592
    %v1594 = vpop.f32.mrb[0].mxu0
    %v1595 = vadd.f32 0.0, %v1594
    %v1596 = vpop.f32.mrb[0].mxu0
    %1597 = vmatprep.mubr.f32.mxu0 0.0
    %v1598 = vand.u32 %v1517, 4294901760
    %v1599 = vsub.f32 %v1517, %v1598
    %v1600 = vand.u32 %v1599, 4294901760
    %v1601 = vsub.f32 %v1599, %v1600
    %v1602 = vand.u32 %v1601, 4294901760
    %1603 = vmatmul.mubr.f32.gmra.mrb[0].mxu0 %v1602
    %v1604 = vpop.f32.mrb[0].mxu0
    %v1605 = vadd.f32 0.0, %v1604
    %v1606 = vpop.f32.mrb[0].mxu0
    %1607 = vdwg.mxu0
    %1608 = vmatprep.subr.mxu0 0.0
    %v1609 = vand.u32 %v1509, 4294901760
    %v1610 = vsub.f32 %v1509, %v1609
    %v1611 = vand.u32 %v1610, 4294901760
    %v1612 = vsub.f32 %v1610, %v1611
    %v1613 = vand.u32 %v1612, 4294901760
    %1614 = vmatpush1.msra.mxu0 %v1613
    %1615 = vmatprep.subr.mxu0 0.0
    %v1616 = vand.u32 %v1510, 4294901760
    %v1617 = vsub.f32 %v1510, %v1616
    %v1618 = vand.u32 %v1617, 4294901760
    %v1619 = vsub.f32 %v1617, %v1618
    %v1620 = vand.u32 %v1619, 4294901760
    %1621 = vmatpush1.msra.mxu0 %v1620
    %1622 = vmatprep.subr.mxu0 0.0
    %v1623 = vand.u32 %v1511, 4294901760
    %v1624 = vsub.f32 %v1511, %v1623
    %v1625 = vand.u32 %v1624, 4294901760
    %v1626 = vsub.f32 %v1624, %v1625
    %v1627 = vand.u32 %v1626, 4294901760
    %1628 = vmatpush1.msra.mxu0 %v1627
    %1629 = vmatprep.subr.mxu0 0.0
    %v1630 = vand.u32 %v1512, 4294901760
    %v1631 = vsub.f32 %v1512, %v1630
    %v1632 = vand.u32 %v1631, 4294901760
    %v1633 = vsub.f32 %v1631, %v1632
    %v1634 = vand.u32 %v1633, 4294901760
    %1635 = vmatpush1.msra.mxu0 %v1634
    %1636 = vmatprep.subr.mxu0 0.0
    %1637 = vmatpush1.msra.mxu0 0.0
    %1638 = vmatprep.subr.mxu0 0.0
    %1639 = vmatpush1.msra.mxu0 0.0
    %1640 = vmatprep.subr.mxu0 0.0
    %1641 = vmatpush1.msra.mxu0 0.0
    %1642 = vmatprep.subr.mxu0 0.0
    %1643 = vmatpush1.msra.mxu0 0.0
    %1644 = vmatprep.subr.mxu0 0.0
    %1645 = vmatpush1.msra.mxu0 0.0
    %1646 = vmatprep.subr.mxu0 0.0
    %1647 = vmatpush1.msra.mxu0 0.0
    %1648 = vmatprep.subr.mxu0 0.0
    %1649 = vmatpush1.msra.mxu0 0.0
    %1650 = vmatprep.subr.mxu0 0.0
    %1651 = vmatpush1.msra.mxu0 0.0
    %1652 = vmatprep.subr.mxu0 0.0
    %1653 = vmatpush1.msra.mxu0 0.0
    %1654 = vmatprep.subr.mxu0 0.0
    %1655 = vmatpush1.msra.mxu0 0.0
    %1656 = vmatprep.subr.mxu0 0.0
    %1657 = vmatpush1.msra.mxu0 0.0
    %1658 = vmatprep.subr.mxu0 0.0
    %1659 = vmatpush1.msra.mxu0 0.0
    %1660 = vmatprep.subr.mxu0 0.0
    %1661 = vmatpush1.msra.mxu0 0.0
    %1662 = vmatprep.subr.mxu0 0.0
    %1663 = vmatpush1.msra.mxu0 0.0
    %1664 = vmatprep.subr.mxu0 0.0
    %1665 = vmatpush1.msra.mxu0 0.0
    %1666 = vmatprep.subr.mxu0 0.0
    %1667 = vmatpush1.msra.mxu0 0.0
    %1668 = vmatprep.subr.mxu0 0.0
    %1669 = vmatpush1.msra.mxu0 0.0
    %1670 = vmatprep.subr.mxu0 0.0
    %1671 = vmatpush1.msra.mxu0 0.0
    %1672 = vmatprep.subr.mxu0 0.0
    %1673 = vmatpush1.msra.mxu0 0.0
    %1674 = vmatprep.subr.mxu0 0.0
    %1675 = vmatpush1.msra.mxu0 0.0
    %1676 = vmatprep.subr.mxu0 0.0
    %1677 = vmatpush1.msra.mxu0 0.0
    %1678 = vmatprep.subr.mxu0 0.0
    %1679 = vmatpush1.msra.mxu0 0.0
    %1680 = vmatprep.subr.mxu0 0.0
    %1681 = vmatpush1.msra.mxu0 0.0
    %1682 = vmatprep.subr.mxu0 0.0
    %1683 = vmatpush1.msra.mxu0 0.0
    %1684 = vmatprep.subr.mxu0 0.0
    %1685 = vmatpush1.msra.mxu0 0.0
    %1686 = vmatprep.subr.mxu0 0.0
    %1687 = vmatpush1.msra.mxu0 0.0
    %1688 = vmatprep.subr.mxu0 0.0
    %1689 = vmatpush1.msra.mxu0 0.0
    %1690 = vmatprep.subr.mxu0 0.0
    %1691 = vmatpush1.msra.mxu0 0.0
    %1692 = vmatprep.mubr.f32.mxu0 0.0
    %v1693 = vand.u32 %v1514, 4294901760
    %1694 = vmatmul.mubr.f32.gmra.mrb[0].mxu0 %v1693
    %v1695 = vpop.f32.mrb[0].mxu0
    %v1696 = vadd.f32 %v1595, %v1695
    %v1697 = vpop.f32.mrb[0].mxu0
    %1698 = vmatprep.mubr.f32.mxu0 0.0
    %v1699 = vand.u32 %v1517, 4294901760
    %1700 = vmatmul.mubr.f32.gmra.mrb[0].mxu0 %v1699
    %v1701 = vpop.f32.mrb[0].mxu0
    %v1702 = vadd.f32 %v1605, %v1701
    %v1703 = vpop.f32.mrb[0].mxu0
    %1704 = vdwg.mxu0
    %1705 = vmatprep.subr.mxu0 0.0
    %v1706 = vand.u32 %v1509, 4294901760
    %v1707 = vsub.f32 %v1509, %v1706
    %1708 = vmatpush1.msra.mxu0 %v1707
    %1709 = vmatprep.subr.mxu0 0.0
    %v1710 = vand.u32 %v1510, 4294901760
    %v1711 = vsub.f32 %v1510, %v1710
    %1712 = vmatpush1.msra.mxu0 %v1711
    %1713 = vmatprep.subr.mxu0 0.0
    %v1714 = vand.u32 %v1511, 4294901760
    %v1715 = vsub.f32 %v1511, %v1714
    %1716 = vmatpush1.msra.mxu0 %v1715
    %1717 = vmatprep.subr.mxu0 0.0
    %v1718 = vand.u32 %v1512, 4294901760
    %v1719 = vsub.f32 %v1512, %v1718
    %1720 = vmatpush1.msra.mxu0 %v1719
    %1721 = vmatprep.subr.mxu0 0.0
    %1722 = vmatpush1.msra.mxu0 0.0
    %1723 = vmatprep.subr.mxu0 0.0
    %1724 = vmatpush1.msra.mxu0 0.0
    %1725 = vmatprep.subr.mxu0 0.0
    %1726 = vmatpush1.msra.mxu0 0.0
    %1727 = vmatprep.subr.mxu0 0.0
    %1728 = vmatpush1.msra.mxu0 0.0
    %1729 = vmatprep.subr.mxu0 0.0
    %1730 = vmatpush1.msra.mxu0 0.0
    %1731 = vmatprep.subr.mxu0 0.0
    %1732 = vmatpush1.msra.mxu0 0.0
    %1733 = vmatprep.subr.mxu0 0.0
    %1734 = vmatpush1.msra.mxu0 0.0
    %1735 = vmatprep.subr.mxu0 0.0
    %1736 = vmatpush1.msra.mxu0 0.0
    %1737 = vmatprep.subr.mxu0 0.0
    %1738 = vmatpush1.msra.mxu0 0.0
    %1739 = vmatprep.subr.mxu0 0.0
    %1740 = vmatpush1.msra.mxu0 0.0
    %1741 = vmatprep.subr.mxu0 0.0
    %1742 = vmatpush1.msra.mxu0 0.0
    %1743 = vmatprep.subr.mxu0 0.0
    %1744 = vmatpush1.msra.mxu0 0.0
    %1745 = vmatprep.subr.mxu0 0.0
    %1746 = vmatpush1.msra.mxu0 0.0
    %1747 = vmatprep.subr.mxu0 0.0
    %1748 = vmatpush1.msra.mxu0 0.0
    %1749 = vmatprep.subr.mxu0 0.0
    %1750 = vmatpush1.msra.mxu0 0.0
    %1751 = vmatprep.subr.mxu0 0.0
    %1752 = vmatpush1.msra.mxu0 0.0
    %1753 = vmatprep.subr.mxu0 0.0
    %1754 = vmatpush1.msra.mxu0 0.0
    %1755 = vmatprep.subr.mxu0 0.0
    %1756 = vmatpush1.msra.mxu0 0.0
    %1757 = vmatprep.subr.mxu0 0.0
    %1758 = vmatpush1.msra.mxu0 0.0
    %1759 = vmatprep.subr.mxu0 0.0
    %1760 = vmatpush1.msra.mxu0 0.0
    %1761 = vmatprep.subr.mxu0 0.0
    %1762 = vmatpush1.msra.mxu0 0.0
    %1763 = vmatprep.subr.mxu0 0.0
    %1764 = vmatpush1.msra.mxu0 0.0
    %1765 = vmatprep.subr.mxu0 0.0
    %1766 = vmatpush1.msra.mxu0 0.0
    %1767 = vmatprep.subr.mxu0 0.0
    %1768 = vmatpush1.msra.mxu0 0.0
    %1769 = vmatprep.subr.mxu0 0.0
    %1770 = vmatpush1.msra.mxu0 0.0
    %1771 = vmatprep.subr.mxu0 0.0
    %1772 = vmatpush1.msra.mxu0 0.0
    %1773 = vmatprep.subr.mxu0 0.0
    %1774 = vmatpush1.msra.mxu0 0.0
    %1775 = vmatprep.subr.mxu0 0.0
    %1776 = vmatpush1.msra.mxu0 0.0
    %1777 = vmatprep.mubr.f32.mxu0 0.0
    %v1778 = vand.u32 %v1514, 4294901760
    %v1779 = vsub.f32 %v1514, %v1778
    %1780 = vmatmul.mubr.f32.gmra.mrb[0].mxu0 %v1779
    %v1781 = vpop.f32.mrb[0].mxu0
    %v1782 = vadd.f32 %v1696, %v1781
    %v1783 = vpop.f32.mrb[0].mxu0
    %1784 = vmatprep.mubr.f32.mxu0 0.0
    %v1785 = vand.u32 %v1517, 4294901760
    %v1786 = vsub.f32 %v1517, %v1785
    %1787 = vmatmul.mubr.f32.gmra.mrb[0].mxu0 %v1786
    %v1788 = vpop.f32.mrb[0].mxu0
    %v1789 = vadd.f32 %v1702, %v1788
    %v1790 = vpop.f32.mrb[0].mxu0
    %1791 = vdwg.mxu0
    %1792 = vmatprep.subr.mxu0 0.0
    %v1793 = vand.u32 %v1509, 4294901760
    %1794 = vmatpush1.msra.mxu0 %v1793
    %1795 = vmatprep.subr.mxu0 0.0
    %v1796 = vand.u32 %v1510, 4294901760
    %1797 = vmatpush1.msra.mxu0 %v1796
    %1798 = vmatprep.subr.mxu0 0.0
    %v1799 = vand.u32 %v1511, 4294901760
    %1800 = vmatpush1.msra.mxu0 %v1799
    %1801 = vmatprep.subr.mxu0 0.0
    %v1802 = vand.u32 %v1512, 4294901760
    %1803 = vmatpush1.msra.mxu0 %v1802
    %1804 = vmatprep.subr.mxu0 0.0
    %1805 = vmatpush1.msra.mxu0 0.0
    %1806 = vmatprep.subr.mxu0 0.0
    %1807 = vmatpush1.msra.mxu0 0.0
    %1808 = vmatprep.subr.mxu0 0.0
    %1809 = vmatpush1.msra.mxu0 0.0
    %1810 = vmatprep.subr.mxu0 0.0
    %1811 = vmatpush1.msra.mxu0 0.0
    %1812 = vmatprep.subr.mxu0 0.0
    %1813 = vmatpush1.msra.mxu0 0.0
    %1814 = vmatprep.subr.mxu0 0.0
    %1815 = vmatpush1.msra.mxu0 0.0
    %1816 = vmatprep.subr.mxu0 0.0
    %1817 = vmatpush1.msra.mxu0 0.0
    %1818 = vmatprep.subr.mxu0 0.0
    %1819 = vmatpush1.msra.mxu0 0.0
    %1820 = vmatprep.subr.mxu0 0.0
    %1821 = vmatpush1.msra.mxu0 0.0
    %1822 = vmatprep.subr.mxu0 0.0
    %1823 = vmatpush1.msra.mxu0 0.0
    %1824 = vmatprep.subr.mxu0 0.0
    %1825 = vmatpush1.msra.mxu0 0.0
    %1826 = vmatprep.subr.mxu0 0.0
    %1827 = vmatpush1.msra.mxu0 0.0
    %1828 = vmatprep.subr.mxu0 0.0
    %1829 = vmatpush1.msra.mxu0 0.0
    %1830 = vmatprep.subr.mxu0 0.0
    %1831 = vmatpush1.msra.mxu0 0.0
    %1832 = vmatprep.subr.mxu0 0.0
    %1833 = vmatpush1.msra.mxu0 0.0
    %1834 = vmatprep.subr.mxu0 0.0
    %1835 = vmatpush1.msra.mxu0 0.0
    %1836 = vmatprep.subr.mxu0 0.0
    %1837 = vmatpush1.msra.mxu0 0.0
    %1838 = vmatprep.subr.mxu0 0.0
    %1839 = vmatpush1.msra.mxu0 0.0
    %1840 = vmatprep.subr.mxu0 0.0
    %1841 = vmatpush1.msra.mxu0 0.0
    %1842 = vmatprep.subr.mxu0 0.0
    %1843 = vmatpush1.msra.mxu0 0.0
    %1844 = vmatprep.subr.mxu0 0.0
    %1845 = vmatpush1.msra.mxu0 0.0
    %1846 = vmatprep.subr.mxu0 0.0
    %1847 = vmatpush1.msra.mxu0 0.0
    %1848 = vmatprep.subr.mxu0 0.0
    %1849 = vmatpush1.msra.mxu0 0.0
    %1850 = vmatprep.subr.mxu0 0.0
    %1851 = vmatpush1.msra.mxu0 0.0
    %1852 = vmatprep.subr.mxu0 0.0
    %1853 = vmatpush1.msra.mxu0 0.0
    %1854 = vmatprep.subr.mxu0 0.0
    %1855 = vmatpush1.msra.mxu0 0.0
    %1856 = vmatprep.subr.mxu0 0.0
    %1857 = vmatpush1.msra.mxu0 0.0
    %1858 = vmatprep.subr.mxu0 0.0
    %1859 = vmatpush1.msra.mxu0 0.0
    %1860 = vmatprep.mubr.f32.mxu0 0.0
    %v1861 = vand.u32 %v1514, 4294901760
    %v1862 = vsub.f32 %v1514, %v1861
    %v1863 = vand.u32 %v1862, 4294901760
    %1864 = vmatmul.mubr.f32.gmra.mrb[0].mxu0 %v1863
    %v1865 = vpop.f32.mrb[0].mxu0
    %v1866 = vadd.f32 %v1782, %v1865
    %v1867 = vpop.f32.mrb[0].mxu0
    %1868 = vmatprep.mubr.f32.mxu0 0.0
    %v1869 = vand.u32 %v1517, 4294901760
    %v1870 = vsub.f32 %v1517, %v1869
    %v1871 = vand.u32 %v1870, 4294901760
    %1872 = vmatmul.mubr.f32.gmra.mrb[0].mxu0 %v1871
    %v1873 = vpop.f32.mrb[0].mxu0
    %v1874 = vadd.f32 %v1789, %v1873
    %v1875 = vpop.f32.mrb[0].mxu0
    %1876 = vdwg.mxu0
    %1877 = vmatprep.subr.mxu0 0.0
    %v1878 = vand.u32 %v1509, 4294901760
    %v1879 = vsub.f32 %v1509, %v1878
    %v1880 = vand.u32 %v1879, 4294901760
    %1881 = vmatpush1.msra.mxu0 %v1880
    %1882 = vmatprep.subr.mxu0 0.0
    %v1883 = vand.u32 %v1510, 4294901760
    %v1884 = vsub.f32 %v1510, %v1883
    %v1885 = vand.u32 %v1884, 4294901760
    %1886 = vmatpush1.msra.mxu0 %v1885
    %1887 = vmatprep.subr.mxu0 0.0
    %v1888 = vand.u32 %v1511, 4294901760
    %v1889 = vsub.f32 %v1511, %v1888
    %v1890 = vand.u32 %v1889, 4294901760
    %1891 = vmatpush1.msra.mxu0 %v1890
    %1892 = vmatprep.subr.mxu0 0.0
    %v1893 = vand.u32 %v1512, 4294901760
    %v1894 = vsub.f32 %v1512, %v1893
    %v1895 = vand.u32 %v1894, 4294901760
    %1896 = vmatpush1.msra.mxu0 %v1895
    %1897 = vmatprep.subr.mxu0 0.0
    %1898 = vmatpush1.msra.mxu0 0.0
    %1899 = vmatprep.subr.mxu0 0.0
    %1900 = vmatpush1.msra.mxu0 0.0
    %1901 = vmatprep.subr.mxu0 0.0
    %1902 = vmatpush1.msra.mxu0 0.0
    %1903 = vmatprep.subr.mxu0 0.0
    %1904 = vmatpush1.msra.mxu0 0.0
    %1905 = vmatprep.subr.mxu0 0.0
    %1906 = vmatpush1.msra.mxu0 0.0
    %1907 = vmatprep.subr.mxu0 0.0
    %1908 = vmatpush1.msra.mxu0 0.0
    %1909 = vmatprep.subr.mxu0 0.0
    %1910 = vmatpush1.msra.mxu0 0.0
    %1911 = vmatprep.subr.mxu0 0.0
    %1912 = vmatpush1.msra.mxu0 0.0
    %1913 = vmatprep.subr.mxu0 0.0
    %1914 = vmatpush1.msra.mxu0 0.0
    %1915 = vmatprep.subr.mxu0 0.0
    %1916 = vmatpush1.msra.mxu0 0.0
    %1917 = vmatprep.subr.mxu0 0.0
    %1918 = vmatpush1.msra.mxu0 0.0
    %1919 = vmatprep.subr.mxu0 0.0
    %1920 = vmatpush1.msra.mxu0 0.0
    %1921 = vmatprep.subr.mxu0 0.0
    %1922 = vmatpush1.msra.mxu0 0.0
    %1923 = vmatprep.subr.mxu0 0.0
    %1924 = vmatpush1.msra.mxu0 0.0
    %1925 = vmatprep.subr.mxu0 0.0
    %1926 = vmatpush1.msra.mxu0 0.0
    %1927 = vmatprep.subr.mxu0 0.0
    %1928 = vmatpush1.msra.mxu0 0.0
    %1929 = vmatprep.subr.mxu0 0.0
    %1930 = vmatpush1.msra.mxu0 0.0
    %1931 = vmatprep.subr.mxu0 0.0
    %1932 = vmatpush1.msra.mxu0 0.0
    %1933 = vmatprep.subr.mxu0 0.0
    %1934 = vmatpush1.msra.mxu0 0.0
    %1935 = vmatprep.subr.mxu0 0.0
    %1936 = vmatpush1.msra.mxu0 0.0
    %1937 = vmatprep.subr.mxu0 0.0
    %1938 = vmatpush1.msra.mxu0 0.0
    %1939 = vmatprep.subr.mxu0 0.0
    %1940 = vmatpush1.msra.mxu0 0.0
    %1941 = vmatprep.subr.mxu0 0.0
    %1942 = vmatpush1.msra.mxu0 0.0
    %1943 = vmatprep.subr.mxu0 0.0
    %1944 = vmatpush1.msra.mxu0 0.0
    %1945 = vmatprep.subr.mxu0 0.0
    %1946 = vmatpush1.msra.mxu0 0.0
    %1947 = vmatprep.subr.mxu0 0.0
    %1948 = vmatpush1.msra.mxu0 0.0
    %1949 = vmatprep.subr.mxu0 0.0
    %1950 = vmatpush1.msra.mxu0 0.0
    %1951 = vmatprep.subr.mxu0 0.0
    %1952 = vmatpush1.msra.mxu0 0.0
    %1953 = vmatprep.mubr.f32.mxu0 0.0
    %v1954 = vand.u32 %v1514, 4294901760
    %1955 = vmatmul.mubr.f32.gmra.mrb[0].mxu0 %v1954
    %v1956 = vpop.f32.mrb[0].mxu0
    %v1957 = vadd.f32 %v1866, %v1956
    %v1958 = vpop.f32.mrb[0].mxu0
    %1959 = vmatprep.mubr.f32.mxu0 0.0
    %v1960 = vand.u32 %v1517, 4294901760
    %1961 = vmatmul.mubr.f32.gmra.mrb[0].mxu0 %v1960
    %v1962 = vpop.f32.mrb[0].mxu0
    %v1963 = vadd.f32 %v1874, %v1962
    %v1964 = vpop.f32.mrb[0].mxu0
    %1965 = vdwg.mxu0
    %1966 = vmatprep.subr.mxu0 0.0
    %v1967 = vand.u32 %v1509, 4294901760
    %1968 = vmatpush1.msra.mxu0 %v1967
    %1969 = vmatprep.subr.mxu0 0.0
    %v1970 = vand.u32 %v1510, 4294901760
    %1971 = vmatpush1.msra.mxu0 %v1970
    %1972 = vmatprep.subr.mxu0 0.0
    %v1973 = vand.u32 %v1511, 4294901760
    %1974 = vmatpush1.msra.mxu0 %v1973
    %1975 = vmatprep.subr.mxu0 0.0
    %v1976 = vand.u32 %v1512, 4294901760
    %1977 = vmatpush1.msra.mxu0 %v1976
    %1978 = vmatprep.subr.mxu0 0.0
    %1979 = vmatpush1.msra.mxu0 0.0
    %1980 = vmatprep.subr.mxu0 0.0
    %1981 = vmatpush1.msra.mxu0 0.0
    %1982 = vmatprep.subr.mxu0 0.0
    %1983 = vmatpush1.msra.mxu0 0.0
    %1984 = vmatprep.subr.mxu0 0.0
    %1985 = vmatpush1.msra.mxu0 0.0
    %1986 = vmatprep.subr.mxu0 0.0
    %1987 = vmatpush1.msra.mxu0 0.0
    %1988 = vmatprep.subr.mxu0 0.0
    %1989 = vmatpush1.msra.mxu0 0.0
    %1990 = vmatprep.subr.mxu0 0.0
    %1991 = vmatpush1.msra.mxu0 0.0
    %1992 = vmatprep.subr.mxu0 0.0
    %1993 = vmatpush1.msra.mxu0 0.0
    %1994 = vmatprep.subr.mxu0 0.0
    %1995 = vmatpush1.msra.mxu0 0.0
    %1996 = vmatprep.subr.mxu0 0.0
    %1997 = vmatpush1.msra.mxu0 0.0
    %1998 = vmatprep.subr.mxu0 0.0
    %1999 = vmatpush1.msra.mxu0 0.0
    %2000 = vmatprep.subr.mxu0 0.0
    %2001 = vmatpush1.msra.mxu0 0.0
    %2002 = vmatprep.subr.mxu0 0.0
    %2003 = vmatpush1.msra.mxu0 0.0
    %2004 = vmatprep.subr.mxu0 0.0
    %2005 = vmatpush1.msra.mxu0 0.0
    %2006 = vmatprep.subr.mxu0 0.0
    %2007 = vmatpush1.msra.mxu0 0.0
    %2008 = vmatprep.subr.mxu0 0.0
    %2009 = vmatpush1.msra.mxu0 0.0
    %2010 = vmatprep.subr.mxu0 0.0
    %2011 = vmatpush1.msra.mxu0 0.0
    %2012 = vmatprep.subr.mxu0 0.0
    %2013 = vmatpush1.msra.mxu0 0.0
    %2014 = vmatprep.subr.mxu0 0.0
    %2015 = vmatpush1.msra.mxu0 0.0
    %2016 = vmatprep.subr.mxu0 0.0
    %2017 = vmatpush1.msra.mxu0 0.0
    %2018 = vmatprep.subr.mxu0 0.0
    %2019 = vmatpush1.msra.mxu0 0.0
    %2020 = vmatprep.subr.mxu0 0.0
    %2021 = vmatpush1.msra.mxu0 0.0
    %2022 = vmatprep.subr.mxu0 0.0
    %2023 = vmatpush1.msra.mxu0 0.0
    %2024 = vmatprep.subr.mxu0 0.0
    %2025 = vmatpush1.msra.mxu0 0.0
    %2026 = vmatprep.subr.mxu0 0.0
    %2027 = vmatpush1.msra.mxu0 0.0
    %2028 = vmatprep.subr.mxu0 0.0
    %2029 = vmatpush1.msra.mxu0 0.0
    %2030 = vmatprep.subr.mxu0 0.0
    %2031 = vmatpush1.msra.mxu0 0.0
    %2032 = vmatprep.subr.mxu0 0.0
    %2033 = vmatpush1.msra.mxu0 0.0
    %2034 = vmatprep.mubr.f32.mxu0 0.0
    %v2035 = vand.u32 %v1514, 4294901760
    %2036 = vmatmul.mubr.f32.gmra.mrb[0].mxu0 %v2035
    %v2037 = vpop.f32.mrb[0].mxu0
    %v2038 = vadd.f32 %v1957, %v2037
    %v2039 = vpop.f32.mrb[0].mxu0
    %2040 = vmatprep.mubr.f32.mxu0 0.0
    %v2041 = vand.u32 %v1517, 4294901760
    %2042 = vmatmul.mubr.f32.gmra.mrb[0].mxu0 %v2041
    %v2043 = vpop.f32.mrb[0].mxu0
    %v2044 = vadd.f32 %v1963, %v2043
    %v2045 = vpop.f32.mrb[0].mxu0
    %2046 = vdwg.mxu0
    %v2048 = vsel %vm63, %v802, 0
    %v2051 = vsel %vm63, %v803, 0
    %2053 = vmatprep.subr.mxu0 0.0
    %v2054 = vand.u32 %v806, 4294901760
    %2055 = vmatpush1.msra.mxu0 %v2054
    %2056 = vmatprep.subr.mxu0 0.0
    %v2057 = vand.u32 %v807, 4294901760
    %2058 = vmatpush1.msra.mxu0 %v2057
    %2059 = vmatprep.subr.mxu0 0.0
    %v2060 = vand.u32 %v808, 4294901760
    %2061 = vmatpush1.msra.mxu0 %v2060
    %2062 = vmatprep.subr.mxu0 0.0
    %v2063 = vand.u32 %v809, 4294901760
    %2064 = vmatpush1.msra.mxu0 %v2063
    %2065 = vmatprep.subr.mxu0 0.0
    %2066 = vmatpush1.msra.mxu0 0.0
    %2067 = vmatprep.subr.mxu0 0.0
    %2068 = vmatpush1.msra.mxu0 0.0
    %2069 = vmatprep.subr.mxu0 0.0
    %2070 = vmatpush1.msra.mxu0 0.0
    %2071 = vmatprep.subr.mxu0 0.0
    %2072 = vmatpush1.msra.mxu0 0.0
    %2073 = vmatprep.subr.mxu0 0.0
    %2074 = vmatpush1.msra.mxu0 0.0
    %2075 = vmatprep.subr.mxu0 0.0
    %2076 = vmatpush1.msra.mxu0 0.0
    %2077 = vmatprep.subr.mxu0 0.0
    %2078 = vmatpush1.msra.mxu0 0.0
    %2079 = vmatprep.subr.mxu0 0.0
    %2080 = vmatpush1.msra.mxu0 0.0
    %2081 = vmatprep.subr.mxu0 0.0
    %2082 = vmatpush1.msra.mxu0 0.0
    %2083 = vmatprep.subr.mxu0 0.0
    %2084 = vmatpush1.msra.mxu0 0.0
    %2085 = vmatprep.subr.mxu0 0.0
    %2086 = vmatpush1.msra.mxu0 0.0
    %2087 = vmatprep.subr.mxu0 0.0
    %2088 = vmatpush1.msra.mxu0 0.0
    %2089 = vmatprep.subr.mxu0 0.0
    %2090 = vmatpush1.msra.mxu0 0.0
    %2091 = vmatprep.subr.mxu0 0.0
    %2092 = vmatpush1.msra.mxu0 0.0
    %2093 = vmatprep.subr.mxu0 0.0
    %2094 = vmatpush1.msra.mxu0 0.0
    %2095 = vmatprep.subr.mxu0 0.0
    %2096 = vmatpush1.msra.mxu0 0.0
    %2097 = vmatprep.subr.mxu0 0.0
    %2098 = vmatpush1.msra.mxu0 0.0
    %2099 = vmatprep.subr.mxu0 0.0
    %2100 = vmatpush1.msra.mxu0 0.0
    %2101 = vmatprep.subr.mxu0 0.0
    %2102 = vmatpush1.msra.mxu0 0.0
    %2103 = vmatprep.subr.mxu0 0.0
    %2104 = vmatpush1.msra.mxu0 0.0
    %2105 = vmatprep.subr.mxu0 0.0
    %2106 = vmatpush1.msra.mxu0 0.0
    %2107 = vmatprep.subr.mxu0 0.0
    %2108 = vmatpush1.msra.mxu0 0.0
    %2109 = vmatprep.subr.mxu0 0.0
    %2110 = vmatpush1.msra.mxu0 0.0
    %2111 = vmatprep.subr.mxu0 0.0
    %2112 = vmatpush1.msra.mxu0 0.0
    %2113 = vmatprep.subr.mxu0 0.0
    %2114 = vmatpush1.msra.mxu0 0.0
    %2115 = vmatprep.subr.mxu0 0.0
    %2116 = vmatpush1.msra.mxu0 0.0
    %2117 = vmatprep.subr.mxu0 0.0
    %2118 = vmatpush1.msra.mxu0 0.0
    %2119 = vmatprep.subr.mxu0 0.0
    %2120 = vmatpush1.msra.mxu0 0.0
    %2121 = vmatprep.mubr.f32.mxu0 0.0
    %v2122 = vand.u32 %v2048, 4294901760
    %v2123 = vsub.f32 %v2048, %v2122
    %v2124 = vand.u32 %v2123, 4294901760
    %v2125 = vsub.f32 %v2123, %v2124
    %v2126 = vand.u32 %v2125, 4294901760
    %2127 = vmatmul.mubr.f32.gmra.mrb[0].mxu0 %v2126
    %v2128 = vpop.f32.mrb[0].mxu0
    %v2129 = vadd.f32 %v2038, %v2128
    %v2130 = vpop.f32.mrb[0].mxu0
    %2131 = vmatprep.mubr.f32.mxu0 0.0
    %v2132 = vand.u32 %v2051, 4294901760
    %v2133 = vsub.f32 %v2051, %v2132
    %v2134 = vand.u32 %v2133, 4294901760
    %v2135 = vsub.f32 %v2133, %v2134
    %v2136 = vand.u32 %v2135, 4294901760
    %2137 = vmatmul.mubr.f32.gmra.mrb[0].mxu0 %v2136
    %v2138 = vpop.f32.mrb[0].mxu0
    %v2139 = vadd.f32 %v2044, %v2138
    %v2140 = vpop.f32.mrb[0].mxu0
    %2141 = vdwg.mxu0
    %2142 = vmatprep.subr.mxu0 0.0
    %v2143 = vand.u32 %v806, 4294901760
    %v2144 = vsub.f32 %v806, %v2143
    %v2145 = vand.u32 %v2144, 4294901760
    %v2146 = vsub.f32 %v2144, %v2145
    %v2147 = vand.u32 %v2146, 4294901760
    %2148 = vmatpush1.msra.mxu0 %v2147
    %2149 = vmatprep.subr.mxu0 0.0
    %v2150 = vand.u32 %v807, 4294901760
    %v2151 = vsub.f32 %v807, %v2150
    %v2152 = vand.u32 %v2151, 4294901760
    %v2153 = vsub.f32 %v2151, %v2152
    %v2154 = vand.u32 %v2153, 4294901760
    %2155 = vmatpush1.msra.mxu0 %v2154
    %2156 = vmatprep.subr.mxu0 0.0
    %v2157 = vand.u32 %v808, 4294901760
    %v2158 = vsub.f32 %v808, %v2157
    %v2159 = vand.u32 %v2158, 4294901760
    %v2160 = vsub.f32 %v2158, %v2159
    %v2161 = vand.u32 %v2160, 4294901760
    %2162 = vmatpush1.msra.mxu0 %v2161
    %2163 = vmatprep.subr.mxu0 0.0
    %v2164 = vand.u32 %v809, 4294901760
    %v2165 = vsub.f32 %v809, %v2164
    %v2166 = vand.u32 %v2165, 4294901760
    %v2167 = vsub.f32 %v2165, %v2166
    %v2168 = vand.u32 %v2167, 4294901760
    %2169 = vmatpush1.msra.mxu0 %v2168
    %2170 = vmatprep.subr.mxu0 0.0
    %2171 = vmatpush1.msra.mxu0 0.0
    %2172 = vmatprep.subr.mxu0 0.0
    %2173 = vmatpush1.msra.mxu0 0.0
    %2174 = vmatprep.subr.mxu0 0.0
    %2175 = vmatpush1.msra.mxu0 0.0
    %2176 = vmatprep.subr.mxu0 0.0
    %2177 = vmatpush1.msra.mxu0 0.0
    %2178 = vmatprep.subr.mxu0 0.0
    %2179 = vmatpush1.msra.mxu0 0.0
    %2180 = vmatprep.subr.mxu0 0.0
    %2181 = vmatpush1.msra.mxu0 0.0
    %2182 = vmatprep.subr.mxu0 0.0
    %2183 = vmatpush1.msra.mxu0 0.0
    %2184 = vmatprep.subr.mxu0 0.0
    %2185 = vmatpush1.msra.mxu0 0.0
    %2186 = vmatprep.subr.mxu0 0.0
    %2187 = vmatpush1.msra.mxu0 0.0
    %2188 = vmatprep.subr.mxu0 0.0
    %2189 = vmatpush1.msra.mxu0 0.0
    %2190 = vmatprep.subr.mxu0 0.0
    %2191 = vmatpush1.msra.mxu0 0.0
    %2192 = vmatprep.subr.mxu0 0.0
    %2193 = vmatpush1.msra.mxu0 0.0
    %2194 = vmatprep.subr.mxu0 0.0
    %2195 = vmatpush1.msra.mxu0 0.0
    %2196 = vmatprep.subr.mxu0 0.0
    %2197 = vmatpush1.msra.mxu0 0.0
    %2198 = vmatprep.subr.mxu0 0.0
    %2199 = vmatpush1.msra.mxu0 0.0
    %2200 = vmatprep.subr.mxu0 0.0
    %2201 = vmatpush1.msra.mxu0 0.0
    %2202 = vmatprep.subr.mxu0 0.0
    %2203 = vmatpush1.msra.mxu0 0.0
    %2204 = vmatprep.subr.mxu0 0.0
    %2205 = vmatpush1.msra.mxu0 0.0
    %2206 = vmatprep.subr.mxu0 0.0
    %2207 = vmatpush1.msra.mxu0 0.0
    %2208 = vmatprep.subr.mxu0 0.0
    %2209 = vmatpush1.msra.mxu0 0.0
    %2210 = vmatprep.subr.mxu0 0.0
    %2211 = vmatpush1.msra.mxu0 0.0
    %2212 = vmatprep.subr.mxu0 0.0
    %2213 = vmatpush1.msra.mxu0 0.0
    %2214 = vmatprep.subr.mxu0 0.0
    %2215 = vmatpush1.msra.mxu0 0.0
    %2216 = vmatprep.subr.mxu0 0.0
    %2217 = vmatpush1.msra.mxu0 0.0
    %2218 = vmatprep.subr.mxu0 0.0
    %2219 = vmatpush1.msra.mxu0 0.0
    %2220 = vmatprep.subr.mxu0 0.0
    %2221 = vmatpush1.msra.mxu0 0.0
    %2222 = vmatprep.subr.mxu0 0.0
    %2223 = vmatpush1.msra.mxu0 0.0
    %2224 = vmatprep.subr.mxu0 0.0
    %2225 = vmatpush1.msra.mxu0 0.0
    %2226 = vmatprep.mubr.f32.mxu0 0.0
    %v2227 = vand.u32 %v2048, 4294901760
    %2228 = vmatmul.mubr.f32.gmra.mrb[0].mxu0 %v2227
    %v2229 = vpop.f32.mrb[0].mxu0
    %v2230 = vadd.f32 %v2129, %v2229
    %v2231 = vpop.f32.mrb[0].mxu0
    %2232 = vmatprep.mubr.f32.mxu0 0.0
    %v2233 = vand.u32 %v2051, 4294901760
    %2234 = vmatmul.mubr.f32.gmra.mrb[0].mxu0 %v2233
    %v2235 = vpop.f32.mrb[0].mxu0
    %v2236 = vadd.f32 %v2139, %v2235
    %v2237 = vpop.f32.mrb[0].mxu0
    %2238 = vdwg.mxu0
    %2239 = vmatprep.subr.mxu0 0.0
    %v2240 = vand.u32 %v806, 4294901760
    %v2241 = vsub.f32 %v806, %v2240
    %2242 = vmatpush1.msra.mxu0 %v2241
    %2243 = vmatprep.subr.mxu0 0.0
    %v2244 = vand.u32 %v807, 4294901760
    %v2245 = vsub.f32 %v807, %v2244
    %2246 = vmatpush1.msra.mxu0 %v2245
    %2247 = vmatprep.subr.mxu0 0.0
    %v2248 = vand.u32 %v808, 4294901760
    %v2249 = vsub.f32 %v808, %v2248
    %2250 = vmatpush1.msra.mxu0 %v2249
    %2251 = vmatprep.subr.mxu0 0.0
    %v2252 = vand.u32 %v809, 4294901760
    %v2253 = vsub.f32 %v809, %v2252
    %2254 = vmatpush1.msra.mxu0 %v2253
    %2255 = vmatprep.subr.mxu0 0.0
    %2256 = vmatpush1.msra.mxu0 0.0
    %2257 = vmatprep.subr.mxu0 0.0
    %2258 = vmatpush1.msra.mxu0 0.0
    %2259 = vmatprep.subr.mxu0 0.0
    %2260 = vmatpush1.msra.mxu0 0.0
    %2261 = vmatprep.subr.mxu0 0.0
    %2262 = vmatpush1.msra.mxu0 0.0
    %2263 = vmatprep.subr.mxu0 0.0
    %2264 = vmatpush1.msra.mxu0 0.0
    %2265 = vmatprep.subr.mxu0 0.0
    %2266 = vmatpush1.msra.mxu0 0.0
    %2267 = vmatprep.subr.mxu0 0.0
    %2268 = vmatpush1.msra.mxu0 0.0
    %2269 = vmatprep.subr.mxu0 0.0
    %2270 = vmatpush1.msra.mxu0 0.0
    %2271 = vmatprep.subr.mxu0 0.0
    %2272 = vmatpush1.msra.mxu0 0.0
    %2273 = vmatprep.subr.mxu0 0.0
    %2274 = vmatpush1.msra.mxu0 0.0
    %2275 = vmatprep.subr.mxu0 0.0
    %2276 = vmatpush1.msra.mxu0 0.0
    %2277 = vmatprep.subr.mxu0 0.0
    %2278 = vmatpush1.msra.mxu0 0.0
    %2279 = vmatprep.subr.mxu0 0.0
    %2280 = vmatpush1.msra.mxu0 0.0
    %2281 = vmatprep.subr.mxu0 0.0
    %2282 = vmatpush1.msra.mxu0 0.0
    %2283 = vmatprep.subr.mxu0 0.0
    %2284 = vmatpush1.msra.mxu0 0.0
    %2285 = vmatprep.subr.mxu0 0.0
    %2286 = vmatpush1.msra.mxu0 0.0
    %2287 = vmatprep.subr.mxu0 0.0
    %2288 = vmatpush1.msra.mxu0 0.0
    %2289 = vmatprep.subr.mxu0 0.0
    %2290 = vmatpush1.msra.mxu0 0.0
    %2291 = vmatprep.subr.mxu0 0.0
    %2292 = vmatpush1.msra.mxu0 0.0
    %2293 = vmatprep.subr.mxu0 0.0
    %2294 = vmatpush1.msra.mxu0 0.0
    %2295 = vmatprep.subr.mxu0 0.0
    %2296 = vmatpush1.msra.mxu0 0.0
    %2297 = vmatprep.subr.mxu0 0.0
    %2298 = vmatpush1.msra.mxu0 0.0
    %2299 = vmatprep.subr.mxu0 0.0
    %2300 = vmatpush1.msra.mxu0 0.0
    %2301 = vmatprep.subr.mxu0 0.0
    %2302 = vmatpush1.msra.mxu0 0.0
    %2303 = vmatprep.subr.mxu0 0.0
    %2304 = vmatpush1.msra.mxu0 0.0
    %2305 = vmatprep.subr.mxu0 0.0
    %2306 = vmatpush1.msra.mxu0 0.0
    %2307 = vmatprep.subr.mxu0 0.0
    %2308 = vmatpush1.msra.mxu0 0.0
    %2309 = vmatprep.subr.mxu0 0.0
    %2310 = vmatpush1.msra.mxu0 0.0
    %2311 = vmatprep.mubr.f32.mxu0 0.0
    %v2312 = vand.u32 %v2048, 4294901760
    %v2313 = vsub.f32 %v2048, %v2312
    %2314 = vmatmul.mubr.f32.gmra.mrb[0].mxu0 %v2313
    %v2315 = vpop.f32.mrb[0].mxu0
    %v2316 = vadd.f32 %v2230, %v2315
    %v2317 = vpop.f32.mrb[0].mxu0
    %2318 = vmatprep.mubr.f32.mxu0 0.0
    %v2319 = vand.u32 %v2051, 4294901760
    %v2320 = vsub.f32 %v2051, %v2319
    %2321 = vmatmul.mubr.f32.gmra.mrb[0].mxu0 %v2320
    %v2322 = vpop.f32.mrb[0].mxu0
    %v2323 = vadd.f32 %v2236, %v2322
    %v2324 = vpop.f32.mrb[0].mxu0
    %2325 = vdwg.mxu0
    %2326 = vmatprep.subr.mxu0 0.0
    %v2327 = vand.u32 %v806, 4294901760
    %2328 = vmatpush1.msra.mxu0 %v2327
    %2329 = vmatprep.subr.mxu0 0.0
    %v2330 = vand.u32 %v807, 4294901760
    %2331 = vmatpush1.msra.mxu0 %v2330
    %2332 = vmatprep.subr.mxu0 0.0
    %v2333 = vand.u32 %v808, 4294901760
    %2334 = vmatpush1.msra.mxu0 %v2333
    %2335 = vmatprep.subr.mxu0 0.0
    %v2336 = vand.u32 %v809, 4294901760
    %2337 = vmatpush1.msra.mxu0 %v2336
    %2338 = vmatprep.subr.mxu0 0.0
    %2339 = vmatpush1.msra.mxu0 0.0
    %2340 = vmatprep.subr.mxu0 0.0
    %2341 = vmatpush1.msra.mxu0 0.0
    %2342 = vmatprep.subr.mxu0 0.0
    %2343 = vmatpush1.msra.mxu0 0.0
    %2344 = vmatprep.subr.mxu0 0.0
    %2345 = vmatpush1.msra.mxu0 0.0
    %2346 = vmatprep.subr.mxu0 0.0
    %2347 = vmatpush1.msra.mxu0 0.0
    %2348 = vmatprep.subr.mxu0 0.0
    %2349 = vmatpush1.msra.mxu0 0.0
    %2350 = vmatprep.subr.mxu0 0.0
    %2351 = vmatpush1.msra.mxu0 0.0
    %2352 = vmatprep.subr.mxu0 0.0
    %2353 = vmatpush1.msra.mxu0 0.0
    %2354 = vmatprep.subr.mxu0 0.0
    %2355 = vmatpush1.msra.mxu0 0.0
    %2356 = vmatprep.subr.mxu0 0.0
    %2357 = vmatpush1.msra.mxu0 0.0
    %2358 = vmatprep.subr.mxu0 0.0
    %2359 = vmatpush1.msra.mxu0 0.0
    %2360 = vmatprep.subr.mxu0 0.0
    %2361 = vmatpush1.msra.mxu0 0.0
    %2362 = vmatprep.subr.mxu0 0.0
    %2363 = vmatpush1.msra.mxu0 0.0
    %2364 = vmatprep.subr.mxu0 0.0
    %2365 = vmatpush1.msra.mxu0 0.0
    %2366 = vmatprep.subr.mxu0 0.0
    %2367 = vmatpush1.msra.mxu0 0.0
    %2368 = vmatprep.subr.mxu0 0.0
    %2369 = vmatpush1.msra.mxu0 0.0
    %2370 = vmatprep.subr.mxu0 0.0
    %2371 = vmatpush1.msra.mxu0 0.0
    %2372 = vmatprep.subr.mxu0 0.0
    %2373 = vmatpush1.msra.mxu0 0.0
    %2374 = vmatprep.subr.mxu0 0.0
    %2375 = vmatpush1.msra.mxu0 0.0
    %2376 = vmatprep.subr.mxu0 0.0
    %2377 = vmatpush1.msra.mxu0 0.0
    %2378 = vmatprep.subr.mxu0 0.0
    %2379 = vmatpush1.msra.mxu0 0.0
    %2380 = vmatprep.subr.mxu0 0.0
    %2381 = vmatpush1.msra.mxu0 0.0
    %2382 = vmatprep.subr.mxu0 0.0
    %2383 = vmatpush1.msra.mxu0 0.0
    %2384 = vmatprep.subr.mxu0 0.0
    %2385 = vmatpush1.msra.mxu0 0.0
    %2386 = vmatprep.subr.mxu0 0.0
    %2387 = vmatpush1.msra.mxu0 0.0
    %2388 = vmatprep.subr.mxu0 0.0
    %2389 = vmatpush1.msra.mxu0 0.0
    %2390 = vmatprep.subr.mxu0 0.0
    %2391 = vmatpush1.msra.mxu0 0.0
    %2392 = vmatprep.subr.mxu0 0.0
    %2393 = vmatpush1.msra.mxu0 0.0
    %2394 = vmatprep.mubr.f32.mxu0 0.0
    %v2395 = vand.u32 %v2048, 4294901760
    %v2396 = vsub.f32 %v2048, %v2395
    %v2397 = vand.u32 %v2396, 4294901760
    %2398 = vmatmul.mubr.f32.gmra.mrb[0].mxu0 %v2397
    %v2399 = vpop.f32.mrb[0].mxu0
    %v2400 = vadd.f32 %v2316, %v2399
    %v2401 = vpop.f32.mrb[0].mxu0
    %2402 = vmatprep.mubr.f32.mxu0 0.0
    %v2403 = vand.u32 %v2051, 4294901760
    %v2404 = vsub.f32 %v2051, %v2403
    %v2405 = vand.u32 %v2404, 4294901760
    %2406 = vmatmul.mubr.f32.gmra.mrb[0].mxu0 %v2405
    %v2407 = vpop.f32.mrb[0].mxu0
    %v2408 = vadd.f32 %v2323, %v2407
    %v2409 = vpop.f32.mrb[0].mxu0
    %2410 = vdwg.mxu0
    %2411 = vmatprep.subr.mxu0 0.0
    %v2412 = vand.u32 %v806, 4294901760
    %v2413 = vsub.f32 %v806, %v2412
    %v2414 = vand.u32 %v2413, 4294901760
    %2415 = vmatpush1.msra.mxu0 %v2414
    %2416 = vmatprep.subr.mxu0 0.0
    %v2417 = vand.u32 %v807, 4294901760
    %v2418 = vsub.f32 %v807, %v2417
    %v2419 = vand.u32 %v2418, 4294901760
    %2420 = vmatpush1.msra.mxu0 %v2419
    %2421 = vmatprep.subr.mxu0 0.0
    %v2422 = vand.u32 %v808, 4294901760
    %v2423 = vsub.f32 %v808, %v2422
    %v2424 = vand.u32 %v2423, 4294901760
    %2425 = vmatpush1.msra.mxu0 %v2424
    %2426 = vmatprep.subr.mxu0 0.0
    %v2427 = vand.u32 %v809, 4294901760
    %v2428 = vsub.f32 %v809, %v2427
    %v2429 = vand.u32 %v2428, 4294901760
    %2430 = vmatpush1.msra.mxu0 %v2429
    %2431 = vmatprep.subr.mxu0 0.0
    %2432 = vmatpush1.msra.mxu0 0.0
    %2433 = vmatprep.subr.mxu0 0.0
    %2434 = vmatpush1.msra.mxu0 0.0
    %2435 = vmatprep.subr.mxu0 0.0
    %2436 = vmatpush1.msra.mxu0 0.0
    %2437 = vmatprep.subr.mxu0 0.0
    %2438 = vmatpush1.msra.mxu0 0.0
    %2439 = vmatprep.subr.mxu0 0.0
    %2440 = vmatpush1.msra.mxu0 0.0
    %2441 = vmatprep.subr.mxu0 0.0
    %2442 = vmatpush1.msra.mxu0 0.0
    %2443 = vmatprep.subr.mxu0 0.0
    %2444 = vmatpush1.msra.mxu0 0.0
    %2445 = vmatprep.subr.mxu0 0.0
    %2446 = vmatpush1.msra.mxu0 0.0
    %2447 = vmatprep.subr.mxu0 0.0
    %2448 = vmatpush1.msra.mxu0 0.0
    %2449 = vmatprep.subr.mxu0 0.0
    %2450 = vmatpush1.msra.mxu0 0.0
    %2451 = vmatprep.subr.mxu0 0.0
    %2452 = vmatpush1.msra.mxu0 0.0
    %2453 = vmatprep.subr.mxu0 0.0
    %2454 = vmatpush1.msra.mxu0 0.0
    %2455 = vmatprep.subr.mxu0 0.0
    %2456 = vmatpush1.msra.mxu0 0.0
    %2457 = vmatprep.subr.mxu0 0.0
    %2458 = vmatpush1.msra.mxu0 0.0
    %2459 = vmatprep.subr.mxu0 0.0
    %2460 = vmatpush1.msra.mxu0 0.0
    %2461 = vmatprep.subr.mxu0 0.0
    %2462 = vmatpush1.msra.mxu0 0.0
    %2463 = vmatprep.subr.mxu0 0.0
    %2464 = vmatpush1.msra.mxu0 0.0
    %2465 = vmatprep.subr.mxu0 0.0
    %2466 = vmatpush1.msra.mxu0 0.0
    %2467 = vmatprep.subr.mxu0 0.0
    %2468 = vmatpush1.msra.mxu0 0.0
    %2469 = vmatprep.subr.mxu0 0.0
    %2470 = vmatpush1.msra.mxu0 0.0
    %2471 = vmatprep.subr.mxu0 0.0
    %2472 = vmatpush1.msra.mxu0 0.0
    %2473 = vmatprep.subr.mxu0 0.0
    %2474 = vmatpush1.msra.mxu0 0.0
    %2475 = vmatprep.subr.mxu0 0.0
    %2476 = vmatpush1.msra.mxu0 0.0
    %2477 = vmatprep.subr.mxu0 0.0
    %2478 = vmatpush1.msra.mxu0 0.0
    %2479 = vmatprep.subr.mxu0 0.0
    %2480 = vmatpush1.msra.mxu0 0.0
    %2481 = vmatprep.subr.mxu0 0.0
    %2482 = vmatpush1.msra.mxu0 0.0
    %2483 = vmatprep.subr.mxu0 0.0
    %2484 = vmatpush1.msra.mxu0 0.0
    %2485 = vmatprep.subr.mxu0 0.0
    %2486 = vmatpush1.msra.mxu0 0.0
    %2487 = vmatprep.mubr.f32.mxu0 0.0
    %v2488 = vand.u32 %v2048, 4294901760
    %2489 = vmatmul.mubr.f32.gmra.mrb[0].mxu0 %v2488
    %v2490 = vpop.f32.mrb[0].mxu0
    %v2491 = vadd.f32 %v2400, %v2490
    %v2492 = vpop.f32.mrb[0].mxu0
    %2493 = vmatprep.mubr.f32.mxu0 0.0
    %v2494 = vand.u32 %v2051, 4294901760
    %2495 = vmatmul.mubr.f32.gmra.mrb[0].mxu0 %v2494
    %v2496 = vpop.f32.mrb[0].mxu0
    %v2497 = vadd.f32 %v2408, %v2496
    %v2498 = vpop.f32.mrb[0].mxu0
    %2499 = vdwg.mxu0
    %2500 = vmatprep.subr.mxu0 0.0
    %v2501 = vand.u32 %v806, 4294901760
    %2502 = vmatpush1.msra.mxu0 %v2501
    %2503 = vmatprep.subr.mxu0 0.0
    %v2504 = vand.u32 %v807, 4294901760
    %2505 = vmatpush1.msra.mxu0 %v2504
    %2506 = vmatprep.subr.mxu0 0.0
    %v2507 = vand.u32 %v808, 4294901760
    %2508 = vmatpush1.msra.mxu0 %v2507
    %2509 = vmatprep.subr.mxu0 0.0
    %v2510 = vand.u32 %v809, 4294901760
    %2511 = vmatpush1.msra.mxu0 %v2510
    %2512 = vmatprep.subr.mxu0 0.0
    %2513 = vmatpush1.msra.mxu0 0.0
    %2514 = vmatprep.subr.mxu0 0.0
    %2515 = vmatpush1.msra.mxu0 0.0
    %2516 = vmatprep.subr.mxu0 0.0
    %2517 = vmatpush1.msra.mxu0 0.0
    %2518 = vmatprep.subr.mxu0 0.0
    %2519 = vmatpush1.msra.mxu0 0.0
    %2520 = vmatprep.subr.mxu0 0.0
    %2521 = vmatpush1.msra.mxu0 0.0
    %2522 = vmatprep.subr.mxu0 0.0
    %2523 = vmatpush1.msra.mxu0 0.0
    %2524 = vmatprep.subr.mxu0 0.0
    %2525 = vmatpush1.msra.mxu0 0.0
    %2526 = vmatprep.subr.mxu0 0.0
    %2527 = vmatpush1.msra.mxu0 0.0
    %2528 = vmatprep.subr.mxu0 0.0
    %2529 = vmatpush1.msra.mxu0 0.0
    %2530 = vmatprep.subr.mxu0 0.0
    %2531 = vmatpush1.msra.mxu0 0.0
    %2532 = vmatprep.subr.mxu0 0.0
    %2533 = vmatpush1.msra.mxu0 0.0
    %2534 = vmatprep.subr.mxu0 0.0
    %2535 = vmatpush1.msra.mxu0 0.0
    %2536 = vmatprep.subr.mxu0 0.0
    %2537 = vmatpush1.msra.mxu0 0.0
    %2538 = vmatprep.subr.mxu0 0.0
    %2539 = vmatpush1.msra.mxu0 0.0
    %2540 = vmatprep.subr.mxu0 0.0
    %2541 = vmatpush1.msra.mxu0 0.0
    %2542 = vmatprep.subr.mxu0 0.0
    %2543 = vmatpush1.msra.mxu0 0.0
    %2544 = vmatprep.subr.mxu0 0.0
    %2545 = vmatpush1.msra.mxu0 0.0
    %2546 = vmatprep.subr.mxu0 0.0
    %2547 = vmatpush1.msra.mxu0 0.0
    %2548 = vmatprep.subr.mxu0 0.0
    %2549 = vmatpush1.msra.mxu0 0.0
    %2550 = vmatprep.subr.mxu0 0.0
    %2551 = vmatpush1.msra.mxu0 0.0
    %2552 = vmatprep.subr.mxu0 0.0
    %2553 = vmatpush1.msra.mxu0 0.0
    %2554 = vmatprep.subr.mxu0 0.0
    %2555 = vmatpush1.msra.mxu0 0.0
    %2556 = vmatprep.subr.mxu0 0.0
    %2557 = vmatpush1.msra.mxu0 0.0
    %2558 = vmatprep.subr.mxu0 0.0
    %2559 = vmatpush1.msra.mxu0 0.0
    %2560 = vmatprep.subr.mxu0 0.0
    %2561 = vmatpush1.msra.mxu0 0.0
    %2562 = vmatprep.subr.mxu0 0.0
    %2563 = vmatpush1.msra.mxu0 0.0
    %2564 = vmatprep.subr.mxu0 0.0
    %2565 = vmatpush1.msra.mxu0 0.0
    %2566 = vmatprep.subr.mxu0 0.0
    %2567 = vmatpush1.msra.mxu0 0.0
    %2568 = vmatprep.mubr.f32.mxu0 0.0
    %v2569 = vand.u32 %v2048, 4294901760
    %2570 = vmatmul.mubr.f32.gmra.mrb[0].mxu0 %v2569
    %v2571 = vpop.f32.mrb[0].mxu0
    %v2572 = vadd.f32 %v2491, %v2571
    %v2573 = vpop.f32.mrb[0].mxu0
    %2574 = vmatprep.mubr.f32.mxu0 0.0
    %v2575 = vand.u32 %v2051, 4294901760
    %2576 = vmatmul.mubr.f32.gmra.mrb[0].mxu0 %v2575
    %v2577 = vpop.f32.mrb[0].mxu0
    %v2578 = vadd.f32 %v2497, %v2577
    %v2579 = vpop.f32.mrb[0].mxu0
    %2580 = vdwg.mxu0
    %v2581 = vld [vmem:[%s3 + $0x50] sm:$0xff]
    %v2582 = vld [vmem:[%s3 + $0x58] sm:$0xff]
    %v2583 = vld [vmem:[%s3 + $0x60] sm:$0xff]
    %v2584 = vld [vmem:[%s3 + $0x68] sm:$0xff]
    %v2586 = vsel %vm63, %v1488, 0
    %v2589 = vsel %vm63, %v1494, 0
    %2591 = vmatprep.subr.mxu0 0.0
    %v2592 = vand.u32 %v2581, 4294901760
    %2593 = vmatpush1.msra.mxu0 %v2592
    %2594 = vmatprep.subr.mxu0 0.0
    %v2595 = vand.u32 %v2582, 4294901760
    %2596 = vmatpush1.msra.mxu0 %v2595
    %2597 = vmatprep.subr.mxu0 0.0
    %v2598 = vand.u32 %v2583, 4294901760
    %2599 = vmatpush1.msra.mxu0 %v2598
    %2600 = vmatprep.subr.mxu0 0.0
    %v2601 = vand.u32 %v2584, 4294901760
    %2602 = vmatpush1.msra.mxu0 %v2601
    %2603 = vmatprep.subr.mxu0 0.0
    %2604 = vmatpush1.msra.mxu0 0.0
    %2605 = vmatprep.subr.mxu0 0.0
    %2606 = vmatpush1.msra.mxu0 0.0
    %2607 = vmatprep.subr.mxu0 0.0
    %2608 = vmatpush1.msra.mxu0 0.0
    %2609 = vmatprep.subr.mxu0 0.0
    %2610 = vmatpush1.msra.mxu0 0.0
    %2611 = vmatprep.subr.mxu0 0.0
    %2612 = vmatpush1.msra.mxu0 0.0
    %2613 = vmatprep.subr.mxu0 0.0
    %2614 = vmatpush1.msra.mxu0 0.0
    %2615 = vmatprep.subr.mxu0 0.0
    %2616 = vmatpush1.msra.mxu0 0.0
    %2617 = vmatprep.subr.mxu0 0.0
    %2618 = vmatpush1.msra.mxu0 0.0
    %2619 = vmatprep.subr.mxu0 0.0
    %2620 = vmatpush1.msra.mxu0 0.0
    %2621 = vmatprep.subr.mxu0 0.0
    %2622 = vmatpush1.msra.mxu0 0.0
    %2623 = vmatprep.subr.mxu0 0.0
    %2624 = vmatpush1.msra.mxu0 0.0
    %2625 = vmatprep.subr.mxu0 0.0
    %2626 = vmatpush1.msra.mxu0 0.0
    %2627 = vmatprep.subr.mxu0 0.0
    %2628 = vmatpush1.msra.mxu0 0.0
    %2629 = vmatprep.subr.mxu0 0.0
    %2630 = vmatpush1.msra.mxu0 0.0
    %2631 = vmatprep.subr.mxu0 0.0
    %2632 = vmatpush1.msra.mxu0 0.0
    %2633 = vmatprep.subr.mxu0 0.0
    %2634 = vmatpush1.msra.mxu0 0.0
    %2635 = vmatprep.subr.mxu0 0.0
    %2636 = vmatpush1.msra.mxu0 0.0
    %2637 = vmatprep.subr.mxu0 0.0
    %2638 = vmatpush1.msra.mxu0 0.0
    %2639 = vmatprep.subr.mxu0 0.0
    %2640 = vmatpush1.msra.mxu0 0.0
    %2641 = vmatprep.subr.mxu0 0.0
    %2642 = vmatpush1.msra.mxu0 0.0
    %2643 = vmatprep.subr.mxu0 0.0
    %2644 = vmatpush1.msra.mxu0 0.0
    %2645 = vmatprep.subr.mxu0 0.0
    %2646 = vmatpush1.msra.mxu0 0.0
    %2647 = vmatprep.subr.mxu0 0.0
    %2648 = vmatpush1.msra.mxu0 0.0
    %2649 = vmatprep.subr.mxu0 0.0
    %2650 = vmatpush1.msra.mxu0 0.0
    %2651 = vmatprep.subr.mxu0 0.0
    %2652 = vmatpush1.msra.mxu0 0.0
    %2653 = vmatprep.subr.mxu0 0.0
    %2654 = vmatpush1.msra.mxu0 0.0
    %2655 = vmatprep.subr.mxu0 0.0
    %2656 = vmatpush1.msra.mxu0 0.0
    %2657 = vmatprep.subr.mxu0 0.0
    %2658 = vmatpush1.msra.mxu0 0.0
    %2659 = vmatprep.mubr.f32.mxu0 0.0
    %v2660 = vand.u32 %v2586, 4294901760
    %v2661 = vsub.f32 %v2586, %v2660
    %v2662 = vand.u32 %v2661, 4294901760
    %v2663 = vsub.f32 %v2661, %v2662
    %v2664 = vand.u32 %v2663, 4294901760
    %2665 = vmatmul.mubr.f32.gmra.mrb[0].mxu0 %v2664
    %v2666 = vpop.f32.mrb[0].mxu0
    %v2667 = vadd.f32 0.0, %v2666
    %v2668 = vpop.f32.mrb[0].mxu0
    %2669 = vmatprep.mubr.f32.mxu0 0.0
    %v2670 = vand.u32 %v2589, 4294901760
    %v2671 = vsub.f32 %v2589, %v2670
    %v2672 = vand.u32 %v2671, 4294901760
    %v2673 = vsub.f32 %v2671, %v2672
    %v2674 = vand.u32 %v2673, 4294901760
    %2675 = vmatmul.mubr.f32.gmra.mrb[0].mxu0 %v2674
    %v2676 = vpop.f32.mrb[0].mxu0
    %v2677 = vadd.f32 0.0, %v2676
    %v2678 = vpop.f32.mrb[0].mxu0
    %2679 = vdwg.mxu0
    %2680 = vmatprep.subr.mxu0 0.0
    %v2681 = vand.u32 %v2581, 4294901760
    %v2682 = vsub.f32 %v2581, %v2681
    %v2683 = vand.u32 %v2682, 4294901760
    %v2684 = vsub.f32 %v2682, %v2683
    %v2685 = vand.u32 %v2684, 4294901760
    %2686 = vmatpush1.msra.mxu0 %v2685
    %2687 = vmatprep.subr.mxu0 0.0
    %v2688 = vand.u32 %v2582, 4294901760
    %v2689 = vsub.f32 %v2582, %v2688
    %v2690 = vand.u32 %v2689, 4294901760
    %v2691 = vsub.f32 %v2689, %v2690
    %v2692 = vand.u32 %v2691, 4294901760
    %2693 = vmatpush1.msra.mxu0 %v2692
    %2694 = vmatprep.subr.mxu0 0.0
    %v2695 = vand.u32 %v2583, 4294901760
    %v2696 = vsub.f32 %v2583, %v2695
    %v2697 = vand.u32 %v2696, 4294901760
    %v2698 = vsub.f32 %v2696, %v2697
    %v2699 = vand.u32 %v2698, 4294901760
    %2700 = vmatpush1.msra.mxu0 %v2699
    %2701 = vmatprep.subr.mxu0 0.0
    %v2702 = vand.u32 %v2584, 4294901760
    %v2703 = vsub.f32 %v2584, %v2702
    %v2704 = vand.u32 %v2703, 4294901760
    %v2705 = vsub.f32 %v2703, %v2704
    %v2706 = vand.u32 %v2705, 4294901760
    %2707 = vmatpush1.msra.mxu0 %v2706
    %2708 = vmatprep.subr.mxu0 0.0
    %2709 = vmatpush1.msra.mxu0 0.0
    %2710 = vmatprep.subr.mxu0 0.0
    %2711 = vmatpush1.msra.mxu0 0.0
    %2712 = vmatprep.subr.mxu0 0.0
    %2713 = vmatpush1.msra.mxu0 0.0
    %2714 = vmatprep.subr.mxu0 0.0
    %2715 = vmatpush1.msra.mxu0 0.0
    %2716 = vmatprep.subr.mxu0 0.0
    %2717 = vmatpush1.msra.mxu0 0.0
    %2718 = vmatprep.subr.mxu0 0.0
    %2719 = vmatpush1.msra.mxu0 0.0
    %2720 = vmatprep.subr.mxu0 0.0
    %2721 = vmatpush1.msra.mxu0 0.0
    %2722 = vmatprep.subr.mxu0 0.0
    %2723 = vmatpush1.msra.mxu0 0.0
    %2724 = vmatprep.subr.mxu0 0.0
    %2725 = vmatpush1.msra.mxu0 0.0
    %2726 = vmatprep.subr.mxu0 0.0
    %2727 = vmatpush1.msra.mxu0 0.0
    %2728 = vmatprep.subr.mxu0 0.0
    %2729 = vmatpush1.msra.mxu0 0.0
    %2730 = vmatprep.subr.mxu0 0.0
    %2731 = vmatpush1.msra.mxu0 0.0
    %2732 = vmatprep.subr.mxu0 0.0
    %2733 = vmatpush1.msra.mxu0 0.0
    %2734 = vmatprep.subr.mxu0 0.0
    %2735 = vmatpush1.msra.mxu0 0.0
    %2736 = vmatprep.subr.mxu0 0.0
    %2737 = vmatpush1.msra.mxu0 0.0
    %2738 = vmatprep.subr.mxu0 0.0
    %2739 = vmatpush1.msra.mxu0 0.0
    %2740 = vmatprep.subr.mxu0 0.0
    %2741 = vmatpush1.msra.mxu0 0.0
    %2742 = vmatprep.subr.mxu0 0.0
    %2743 = vmatpush1.msra.mxu0 0.0
    %2744 = vmatprep.subr.mxu0 0.0
    %2745 = vmatpush1.msra.mxu0 0.0
    %2746 = vmatprep.subr.mxu0 0.0
    %2747 = vmatpush1.msra.mxu0 0.0
    %2748 = vmatprep.subr.mxu0 0.0
    %2749 = vmatpush1.msra.mxu0 0.0
    %2750 = vmatprep.subr.mxu0 0.0
    %2751 = vmatpush1.msra.mxu0 0.0
    %2752 = vmatprep.subr.mxu0 0.0
    %2753 = vmatpush1.msra.mxu0 0.0
    %2754 = vmatprep.subr.mxu0 0.0
    %2755 = vmatpush1.msra.mxu0 0.0
    %2756 = vmatprep.subr.mxu0 0.0
    %2757 = vmatpush1.msra.mxu0 0.0
    %2758 = vmatprep.subr.mxu0 0.0
    %2759 = vmatpush1.msra.mxu0 0.0
    %2760 = vmatprep.subr.mxu0 0.0
    %2761 = vmatpush1.msra.mxu0 0.0
    %2762 = vmatprep.subr.mxu0 0.0
    %2763 = vmatpush1.msra.mxu0 0.0
    %2764 = vmatprep.mubr.f32.mxu0 0.0
    %v2765 = vand.u32 %v2586, 4294901760
    %2766 = vmatmul.mubr.f32.gmra.mrb[0].mxu0 %v2765
    %v2767 = vpop.f32.mrb[0].mxu0
    %v2768 = vadd.f32 %v2667, %v2767
    %v2769 = vpop.f32.mrb[0].mxu0
    %2770 = vmatprep.mubr.f32.mxu0 0.0
    %v2771 = vand.u32 %v2589, 4294901760
    %2772 = vmatmul.mubr.f32.gmra.mrb[0].mxu0 %v2771
    %v2773 = vpop.f32.mrb[0].mxu0
    %v2774 = vadd.f32 %v2677, %v2773
    %v2775 = vpop.f32.mrb[0].mxu0
    %2776 = vdwg.mxu0
    %2777 = vmatprep.subr.mxu0 0.0
    %v2778 = vand.u32 %v2581, 4294901760
    %v2779 = vsub.f32 %v2581, %v2778
    %2780 = vmatpush1.msra.mxu0 %v2779
    %2781 = vmatprep.subr.mxu0 0.0
    %v2782 = vand.u32 %v2582, 4294901760
    %v2783 = vsub.f32 %v2582, %v2782
    %2784 = vmatpush1.msra.mxu0 %v2783
    %2785 = vmatprep.subr.mxu0 0.0
    %v2786 = vand.u32 %v2583, 4294901760
    %v2787 = vsub.f32 %v2583, %v2786
    %2788 = vmatpush1.msra.mxu0 %v2787
    %2789 = vmatprep.subr.mxu0 0.0
    %v2790 = vand.u32 %v2584, 4294901760
    %v2791 = vsub.f32 %v2584, %v2790
    %2792 = vmatpush1.msra.mxu0 %v2791
    %2793 = vmatprep.subr.mxu0 0.0
    %2794 = vmatpush1.msra.mxu0 0.0
    %2795 = vmatprep.subr.mxu0 0.0
    %2796 = vmatpush1.msra.mxu0 0.0
    %2797 = vmatprep.subr.mxu0 0.0
    %2798 = vmatpush1.msra.mxu0 0.0
    %2799 = vmatprep.subr.mxu0 0.0
    %2800 = vmatpush1.msra.mxu0 0.0
    %2801 = vmatprep.subr.mxu0 0.0
    %2802 = vmatpush1.msra.mxu0 0.0
    %2803 = vmatprep.subr.mxu0 0.0
    %2804 = vmatpush1.msra.mxu0 0.0
    %2805 = vmatprep.subr.mxu0 0.0
    %2806 = vmatpush1.msra.mxu0 0.0
    %2807 = vmatprep.subr.mxu0 0.0
    %2808 = vmatpush1.msra.mxu0 0.0
    %2809 = vmatprep.subr.mxu0 0.0
    %2810 = vmatpush1.msra.mxu0 0.0
    %2811 = vmatprep.subr.mxu0 0.0
    %2812 = vmatpush1.msra.mxu0 0.0
    %2813 = vmatprep.subr.mxu0 0.0
    %2814 = vmatpush1.msra.mxu0 0.0
    %2815 = vmatprep.subr.mxu0 0.0
    %2816 = vmatpush1.msra.mxu0 0.0
    %2817 = vmatprep.subr.mxu0 0.0
    %2818 = vmatpush1.msra.mxu0 0.0
    %2819 = vmatprep.subr.mxu0 0.0
    %2820 = vmatpush1.msra.mxu0 0.0
    %2821 = vmatprep.subr.mxu0 0.0
    %2822 = vmatpush1.msra.mxu0 0.0
    %2823 = vmatprep.subr.mxu0 0.0
    %2824 = vmatpush1.msra.mxu0 0.0
    %2825 = vmatprep.subr.mxu0 0.0
    %2826 = vmatpush1.msra.mxu0 0.0
    %2827 = vmatprep.subr.mxu0 0.0
    %2828 = vmatpush1.msra.mxu0 0.0
    %2829 = vmatprep.subr.mxu0 0.0
    %2830 = vmatpush1.msra.mxu0 0.0
    %2831 = vmatprep.subr.mxu0 0.0
    %2832 = vmatpush1.msra.mxu0 0.0
    %2833 = vmatprep.subr.mxu0 0.0
    %2834 = vmatpush1.msra.mxu0 0.0
    %2835 = vmatprep.subr.mxu0 0.0
    %2836 = vmatpush1.msra.mxu0 0.0
    %2837 = vmatprep.subr.mxu0 0.0
    %2838 = vmatpush1.msra.mxu0 0.0
    %2839 = vmatprep.subr.mxu0 0.0
    %2840 = vmatpush1.msra.mxu0 0.0
    %2841 = vmatprep.subr.mxu0 0.0
    %2842 = vmatpush1.msra.mxu0 0.0
    %2843 = vmatprep.subr.mxu0 0.0
    %2844 = vmatpush1.msra.mxu0 0.0
    %2845 = vmatprep.subr.mxu0 0.0
    %2846 = vmatpush1.msra.mxu0 0.0
    %2847 = vmatprep.subr.mxu0 0.0
    %2848 = vmatpush1.msra.mxu0 0.0
    %2849 = vmatprep.mubr.f32.mxu0 0.0
    %v2850 = vand.u32 %v2586, 4294901760
    %v2851 = vsub.f32 %v2586, %v2850
    %2852 = vmatmul.mubr.f32.gmra.mrb[0].mxu0 %v2851
    %v2853 = vpop.f32.mrb[0].mxu0
    %v2854 = vadd.f32 %v2768, %v2853
    %v2855 = vpop.f32.mrb[0].mxu0
    %2856 = vmatprep.mubr.f32.mxu0 0.0
    %v2857 = vand.u32 %v2589, 4294901760
    %v2858 = vsub.f32 %v2589, %v2857
    %2859 = vmatmul.mubr.f32.gmra.mrb[0].mxu0 %v2858
    %v2860 = vpop.f32.mrb[0].mxu0
    %v2861 = vadd.f32 %v2774, %v2860
    %v2862 = vpop.f32.mrb[0].mxu0
    %2863 = vdwg.mxu0
    %2864 = vmatprep.subr.mxu0 0.0
    %v2865 = vand.u32 %v2581, 4294901760
    %2866 = vmatpush1.msra.mxu0 %v2865
    %2867 = vmatprep.subr.mxu0 0.0
    %v2868 = vand.u32 %v2582, 4294901760
    %2869 = vmatpush1.msra.mxu0 %v2868
    %2870 = vmatprep.subr.mxu0 0.0
    %v2871 = vand.u32 %v2583, 4294901760
    %2872 = vmatpush1.msra.mxu0 %v2871
    %2873 = vmatprep.subr.mxu0 0.0
    %v2874 = vand.u32 %v2584, 4294901760
    %2875 = vmatpush1.msra.mxu0 %v2874
    %2876 = vmatprep.subr.mxu0 0.0
    %2877 = vmatpush1.msra.mxu0 0.0
    %2878 = vmatprep.subr.mxu0 0.0
    %2879 = vmatpush1.msra.mxu0 0.0
    %2880 = vmatprep.subr.mxu0 0.0
    %2881 = vmatpush1.msra.mxu0 0.0
    %2882 = vmatprep.subr.mxu0 0.0
    %2883 = vmatpush1.msra.mxu0 0.0
    %2884 = vmatprep.subr.mxu0 0.0
    %2885 = vmatpush1.msra.mxu0 0.0
    %2886 = vmatprep.subr.mxu0 0.0
    %2887 = vmatpush1.msra.mxu0 0.0
    %2888 = vmatprep.subr.mxu0 0.0
    %2889 = vmatpush1.msra.mxu0 0.0
    %2890 = vmatprep.subr.mxu0 0.0
    %2891 = vmatpush1.msra.mxu0 0.0
    %2892 = vmatprep.subr.mxu0 0.0
    %2893 = vmatpush1.msra.mxu0 0.0
    %2894 = vmatprep.subr.mxu0 0.0
    %2895 = vmatpush1.msra.mxu0 0.0
    %2896 = vmatprep.subr.mxu0 0.0
    %2897 = vmatpush1.msra.mxu0 0.0
    %2898 = vmatprep.subr.mxu0 0.0
    %2899 = vmatpush1.msra.mxu0 0.0
    %2900 = vmatprep.subr.mxu0 0.0
    %2901 = vmatpush1.msra.mxu0 0.0
    %2902 = vmatprep.subr.mxu0 0.0
    %2903 = vmatpush1.msra.mxu0 0.0
    %2904 = vmatprep.subr.mxu0 0.0
    %2905 = vmatpush1.msra.mxu0 0.0
    %2906 = vmatprep.subr.mxu0 0.0
    %2907 = vmatpush1.msra.mxu0 0.0
    %2908 = vmatprep.subr.mxu0 0.0
    %2909 = vmatpush1.msra.mxu0 0.0
    %2910 = vmatprep.subr.mxu0 0.0
    %2911 = vmatpush1.msra.mxu0 0.0
    %2912 = vmatprep.subr.mxu0 0.0
    %2913 = vmatpush1.msra.mxu0 0.0
    %2914 = vmatprep.subr.mxu0 0.0
    %2915 = vmatpush1.msra.mxu0 0.0
    %2916 = vmatprep.subr.mxu0 0.0
    %2917 = vmatpush1.msra.mxu0 0.0
    %2918 = vmatprep.subr.mxu0 0.0
    %2919 = vmatpush1.msra.mxu0 0.0
    %2920 = vmatprep.subr.mxu0 0.0
    %2921 = vmatpush1.msra.mxu0 0.0
    %2922 = vmatprep.subr.mxu0 0.0
    %2923 = vmatpush1.msra.mxu0 0.0
    %2924 = vmatprep.subr.mxu0 0.0
    %2925 = vmatpush1.msra.mxu0 0.0
    %2926 = vmatprep.subr.mxu0 0.0
    %2927 = vmatpush1.msra.mxu0 0.0
    %2928 = vmatprep.subr.mxu0 0.0
    %2929 = vmatpush1.msra.mxu0 0.0
    %2930 = vmatprep.subr.mxu0 0.0
    %2931 = vmatpush1.msra.mxu0 0.0
    %2932 = vmatprep.mubr.f32.mxu0 0.0
    %v2933 = vand.u32 %v2586, 4294901760
    %v2934 = vsub.f32 %v2586, %v2933
    %v2935 = vand.u32 %v2934, 4294901760
    %2936 = vmatmul.mubr.f32.gmra.mrb[0].mxu0 %v2935
    %v2937 = vpop.f32.mrb[0].mxu0
    %v2938 = vadd.f32 %v2854, %v2937
    %v2939 = vpop.f32.mrb[0].mxu0
    %2940 = vmatprep.mubr.f32.mxu0 0.0
    %v2941 = vand.u32 %v2589, 4294901760
    %v2942 = vsub.f32 %v2589, %v2941
    %v2943 = vand.u32 %v2942, 4294901760
    %2944 = vmatmul.mubr.f32.gmra.mrb[0].mxu0 %v2943
    %v2945 = vpop.f32.mrb[0].mxu0
    %v2946 = vadd.f32 %v2861, %v2945
    %v2947 = vpop.f32.mrb[0].mxu0
    %2948 = vdwg.mxu0
    %2949 = vmatprep.subr.mxu0 0.0
    %v2950 = vand.u32 %v2581, 4294901760
    %v2951 = vsub.f32 %v2581, %v2950
    %v2952 = vand.u32 %v2951, 4294901760
    %2953 = vmatpush1.msra.mxu0 %v2952
    %2954 = vmatprep.subr.mxu0 0.0
    %v2955 = vand.u32 %v2582, 4294901760
    %v2956 = vsub.f32 %v2582, %v2955
    %v2957 = vand.u32 %v2956, 4294901760
    %2958 = vmatpush1.msra.mxu0 %v2957
    %2959 = vmatprep.subr.mxu0 0.0
    %v2960 = vand.u32 %v2583, 4294901760
    %v2961 = vsub.f32 %v2583, %v2960
    %v2962 = vand.u32 %v2961, 4294901760
    %2963 = vmatpush1.msra.mxu0 %v2962
    %2964 = vmatprep.subr.mxu0 0.0
    %v2965 = vand.u32 %v2584, 4294901760
    %v2966 = vsub.f32 %v2584, %v2965
    %v2967 = vand.u32 %v2966, 4294901760
    %2968 = vmatpush1.msra.mxu0 %v2967
    %2969 = vmatprep.subr.mxu0 0.0
    %2970 = vmatpush1.msra.mxu0 0.0
    %2971 = vmatprep.subr.mxu0 0.0
    %2972 = vmatpush1.msra.mxu0 0.0
    %2973 = vmatprep.subr.mxu0 0.0
    %2974 = vmatpush1.msra.mxu0 0.0
    %2975 = vmatprep.subr.mxu0 0.0
    %2976 = vmatpush1.msra.mxu0 0.0
    %2977 = vmatprep.subr.mxu0 0.0
    %2978 = vmatpush1.msra.mxu0 0.0
    %2979 = vmatprep.subr.mxu0 0.0
    %2980 = vmatpush1.msra.mxu0 0.0
    %2981 = vmatprep.subr.mxu0 0.0
    %2982 = vmatpush1.msra.mxu0 0.0
    %2983 = vmatprep.subr.mxu0 0.0
    %2984 = vmatpush1.msra.mxu0 0.0
    %2985 = vmatprep.subr.mxu0 0.0
    %2986 = vmatpush1.msra.mxu0 0.0
    %2987 = vmatprep.subr.mxu0 0.0
    %2988 = vmatpush1.msra.mxu0 0.0
    %2989 = vmatprep.subr.mxu0 0.0
    %2990 = vmatpush1.msra.mxu0 0.0
    %2991 = vmatprep.subr.mxu0 0.0
    %2992 = vmatpush1.msra.mxu0 0.0
    %2993 = vmatprep.subr.mxu0 0.0
    %2994 = vmatpush1.msra.mxu0 0.0
    %2995 = vmatprep.subr.mxu0 0.0
    %2996 = vmatpush1.msra.mxu0 0.0
    %2997 = vmatprep.subr.mxu0 0.0
    %2998 = vmatpush1.msra.mxu0 0.0
    %2999 = vmatprep.subr.mxu0 0.0
    %3000 = vmatpush1.msra.mxu0 0.0
    %3001 = vmatprep.subr.mxu0 0.0
    %3002 = vmatpush1.msra.mxu0 0.0
    %3003 = vmatprep.subr.mxu0 0.0
    %3004 = vmatpush1.msra.mxu0 0.0
    %3005 = vmatprep.subr.mxu0 0.0
    %3006 = vmatpush1.msra.mxu0 0.0
    %3007 = vmatprep.subr.mxu0 0.0
    %3008 = vmatpush1.msra.mxu0 0.0
    %3009 = vmatprep.subr.mxu0 0.0
    %3010 = vmatpush1.msra.mxu0 0.0
    %3011 = vmatprep.subr.mxu0 0.0
    %3012 = vmatpush1.msra.mxu0 0.0
    %3013 = vmatprep.subr.mxu0 0.0
    %3014 = vmatpush1.msra.mxu0 0.0
    %3015 = vmatprep.subr.mxu0 0.0
    %3016 = vmatpush1.msra.mxu0 0.0
    %3017 = vmatprep.subr.mxu0 0.0
    %3018 = vmatpush1.msra.mxu0 0.0
    %3019 = vmatprep.subr.mxu0 0.0
    %3020 = vmatpush1.msra.mxu0 0.0
    %3021 = vmatprep.subr.mxu0 0.0
    %3022 = vmatpush1.msra.mxu0 0.0
    %3023 = vmatprep.subr.mxu0 0.0
    %3024 = vmatpush1.msra.mxu0 0.0
    %3025 = vmatprep.mubr.f32.mxu0 0.0
    %v3026 = vand.u32 %v2586, 4294901760
    %3027 = vmatmul.mubr.f32.gmra.mrb[0].mxu0 %v3026
    %v3028 = vpop.f32.mrb[0].mxu0
    %v3029 = vadd.f32 %v2938, %v3028
    %v3030 = vpop.f32.mrb[0].mxu0
    %3031 = vmatprep.mubr.f32.mxu0 0.0
    %v3032 = vand.u32 %v2589, 4294901760
    %3033 = vmatmul.mubr.f32.gmra.mrb[0].mxu0 %v3032
    %v3034 = vpop.f32.mrb[0].mxu0
    %v3035 = vadd.f32 %v2946, %v3034
    %v3036 = vpop.f32.mrb[0].mxu0
    %3037 = vdwg.mxu0
    %3038 = vmatprep.subr.mxu0 0.0
    %v3039 = vand.u32 %v2581, 4294901760
    %3040 = vmatpush1.msra.mxu0 %v3039
    %3041 = vmatprep.subr.mxu0 0.0
    %v3042 = vand.u32 %v2582, 4294901760
    %3043 = vmatpush1.msra.mxu0 %v3042
    %3044 = vmatprep.subr.mxu0 0.0
    %v3045 = vand.u32 %v2583, 4294901760
    %3046 = vmatpush1.msra.mxu0 %v3045
    %3047 = vmatprep.subr.mxu0 0.0
    %v3048 = vand.u32 %v2584, 4294901760
    %3049 = vmatpush1.msra.mxu0 %v3048
    %3050 = vmatprep.subr.mxu0 0.0
    %3051 = vmatpush1.msra.mxu0 0.0
    %3052 = vmatprep.subr.mxu0 0.0
    %3053 = vmatpush1.msra.mxu0 0.0
    %3054 = vmatprep.subr.mxu0 0.0
    %3055 = vmatpush1.msra.mxu0 0.0
    %3056 = vmatprep.subr.mxu0 0.0
    %3057 = vmatpush1.msra.mxu0 0.0
    %3058 = vmatprep.subr.mxu0 0.0
    %3059 = vmatpush1.msra.mxu0 0.0
    %3060 = vmatprep.subr.mxu0 0.0
    %3061 = vmatpush1.msra.mxu0 0.0
    %3062 = vmatprep.subr.mxu0 0.0
    %3063 = vmatpush1.msra.mxu0 0.0
    %3064 = vmatprep.subr.mxu0 0.0
    %3065 = vmatpush1.msra.mxu0 0.0
    %3066 = vmatprep.subr.mxu0 0.0
    %3067 = vmatpush1.msra.mxu0 0.0
    %3068 = vmatprep.subr.mxu0 0.0
    %3069 = vmatpush1.msra.mxu0 0.0
    %3070 = vmatprep.subr.mxu0 0.0
    %3071 = vmatpush1.msra.mxu0 0.0
    %3072 = vmatprep.subr.mxu0 0.0
    %3073 = vmatpush1.msra.mxu0 0.0
    %3074 = vmatprep.subr.mxu0 0.0
    %3075 = vmatpush1.msra.mxu0 0.0
    %3076 = vmatprep.subr.mxu0 0.0
    %3077 = vmatpush1.msra.mxu0 0.0
    %3078 = vmatprep.subr.mxu0 0.0
    %3079 = vmatpush1.msra.mxu0 0.0
    %3080 = vmatprep.subr.mxu0 0.0
    %3081 = vmatpush1.msra.mxu0 0.0
    %3082 = vmatprep.subr.mxu0 0.0
    %3083 = vmatpush1.msra.mxu0 0.0
    %3084 = vmatprep.subr.mxu0 0.0
    %3085 = vmatpush1.msra.mxu0 0.0
    %3086 = vmatprep.subr.mxu0 0.0
    %3087 = vmatpush1.msra.mxu0 0.0
    %3088 = vmatprep.subr.mxu0 0.0
    %3089 = vmatpush1.msra.mxu0 0.0
    %3090 = vmatprep.subr.mxu0 0.0
    %3091 = vmatpush1.msra.mxu0 0.0
    %3092 = vmatprep.subr.mxu0 0.0
    %3093 = vmatpush1.msra.mxu0 0.0
    %3094 = vmatprep.subr.mxu0 0.0
    %3095 = vmatpush1.msra.mxu0 0.0
    %3096 = vmatprep.subr.mxu0 0.0
    %3097 = vmatpush1.msra.mxu0 0.0
    %3098 = vmatprep.subr.mxu0 0.0
    %3099 = vmatpush1.msra.mxu0 0.0
    %3100 = vmatprep.subr.mxu0 0.0
    %3101 = vmatpush1.msra.mxu0 0.0
    %3102 = vmatprep.subr.mxu0 0.0
    %3103 = vmatpush1.msra.mxu0 0.0
    %3104 = vmatprep.subr.mxu0 0.0
    %3105 = vmatpush1.msra.mxu0 0.0
    %3106 = vmatprep.mubr.f32.mxu0 0.0
    %v3107 = vand.u32 %v2586, 4294901760
    %3108 = vmatmul.mubr.f32.gmra.mrb[0].mxu0 %v3107
    %v3109 = vpop.f32.mrb[0].mxu0
    %v3110 = vadd.f32 %v3029, %v3109
    %v3111 = vpop.f32.mrb[0].mxu0
    %3112 = vmatprep.mubr.f32.mxu0 0.0
    %v3113 = vand.u32 %v2589, 4294901760
    %3114 = vmatmul.mubr.f32.gmra.mrb[0].mxu0 %v3113
    %v3115 = vpop.f32.mrb[0].mxu0
    %v3116 = vadd.f32 %v3035, %v3115
    %v3117 = vpop.f32.mrb[0].mxu0
    %3118 = vdwg.mxu0
    %v3119 = vadd.f32 %v2572, %v3110
    %v3120 = vadd.f32 %v2578, %v3116
    %v3121 = vld [vmem:[%s3 + $0x70] sm:$0xff]
    %v3122 = vld [vmem:[%s3 + $0x78] sm:$0xff]
    %v3123 = vld [vmem:[%s3 + $0x80] sm:$0xff]
    %v3124 = vld [vmem:[%s3 + $0x88] sm:$0xff]
    %v3126 = vsel %vm63, %v1500, 0
    %v3129 = vsel %vm63, %v1506, 0
    %3131 = vmatprep.subr.mxu0 0.0
    %v3132 = vand.u32 %v3121, 4294901760
    %3133 = vmatpush1.msra.mxu0 %v3132
    %3134 = vmatprep.subr.mxu0 0.0
    %v3135 = vand.u32 %v3122, 4294901760
    %3136 = vmatpush1.msra.mxu0 %v3135
    %3137 = vmatprep.subr.mxu0 0.0
    %v3138 = vand.u32 %v3123, 4294901760
    %3139 = vmatpush1.msra.mxu0 %v3138
    %3140 = vmatprep.subr.mxu0 0.0
    %v3141 = vand.u32 %v3124, 4294901760
    %3142 = vmatpush1.msra.mxu0 %v3141
    %3143 = vmatprep.subr.mxu0 0.0
    %3144 = vmatpush1.msra.mxu0 0.0
    %3145 = vmatprep.subr.mxu0 0.0
    %3146 = vmatpush1.msra.mxu0 0.0
    %3147 = vmatprep.subr.mxu0 0.0
    %3148 = vmatpush1.msra.mxu0 0.0
    %3149 = vmatprep.subr.mxu0 0.0
    %3150 = vmatpush1.msra.mxu0 0.0
    %3151 = vmatprep.subr.mxu0 0.0
    %3152 = vmatpush1.msra.mxu0 0.0
    %3153 = vmatprep.subr.mxu0 0.0
    %3154 = vmatpush1.msra.mxu0 0.0
    %3155 = vmatprep.subr.mxu0 0.0
    %3156 = vmatpush1.msra.mxu0 0.0
    %3157 = vmatprep.subr.mxu0 0.0
    %3158 = vmatpush1.msra.mxu0 0.0
    %3159 = vmatprep.subr.mxu0 0.0
    %3160 = vmatpush1.msra.mxu0 0.0
    %3161 = vmatprep.subr.mxu0 0.0
    %3162 = vmatpush1.msra.mxu0 0.0
    %3163 = vmatprep.subr.mxu0 0.0
    %3164 = vmatpush1.msra.mxu0 0.0
    %3165 = vmatprep.subr.mxu0 0.0
    %3166 = vmatpush1.msra.mxu0 0.0
    %3167 = vmatprep.subr.mxu0 0.0
    %3168 = vmatpush1.msra.mxu0 0.0
    %3169 = vmatprep.subr.mxu0 0.0
    %3170 = vmatpush1.msra.mxu0 0.0
    %3171 = vmatprep.subr.mxu0 0.0
    %3172 = vmatpush1.msra.mxu0 0.0
    %3173 = vmatprep.subr.mxu0 0.0
    %3174 = vmatpush1.msra.mxu0 0.0
    %3175 = vmatprep.subr.mxu0 0.0
    %3176 = vmatpush1.msra.mxu0 0.0
    %3177 = vmatprep.subr.mxu0 0.0
    %3178 = vmatpush1.msra.mxu0 0.0
    %3179 = vmatprep.subr.mxu0 0.0
    %3180 = vmatpush1.msra.mxu0 0.0
    %3181 = vmatprep.subr.mxu0 0.0
    %3182 = vmatpush1.msra.mxu0 0.0
    %3183 = vmatprep.subr.mxu0 0.0
    %3184 = vmatpush1.msra.mxu0 0.0
    %3185 = vmatprep.subr.mxu0 0.0
    %3186 = vmatpush1.msra.mxu0 0.0
    %3187 = vmatprep.subr.mxu0 0.0
    %3188 = vmatpush1.msra.mxu0 0.0
    %3189 = vmatprep.subr.mxu0 0.0
    %3190 = vmatpush1.msra.mxu0 0.0
    %3191 = vmatprep.subr.mxu0 0.0
    %3192 = vmatpush1.msra.mxu0 0.0
    %3193 = vmatprep.subr.mxu0 0.0
    %3194 = vmatpush1.msra.mxu0 0.0
    %3195 = vmatprep.subr.mxu0 0.0
    %3196 = vmatpush1.msra.mxu0 0.0
    %3197 = vmatprep.subr.mxu0 0.0
    %3198 = vmatpush1.msra.mxu0 0.0
    %3199 = vmatprep.mubr.f32.mxu0 0.0
    %v3200 = vand.u32 %v3126, 4294901760
    %v3201 = vsub.f32 %v3126, %v3200
    %v3202 = vand.u32 %v3201, 4294901760
    %v3203 = vsub.f32 %v3201, %v3202
    %v3204 = vand.u32 %v3203, 4294901760
    %3205 = vmatmul.mubr.f32.gmra.mrb[0].mxu0 %v3204
    %v3206 = vpop.f32.mrb[0].mxu0
    %v3207 = vadd.f32 0.0, %v3206
    %v3208 = vpop.f32.mrb[0].mxu0
    %3209 = vmatprep.mubr.f32.mxu0 0.0
    %v3210 = vand.u32 %v3129, 4294901760
    %v3211 = vsub.f32 %v3129, %v3210
    %v3212 = vand.u32 %v3211, 4294901760
    %v3213 = vsub.f32 %v3211, %v3212
    %v3214 = vand.u32 %v3213, 4294901760
    %3215 = vmatmul.mubr.f32.gmra.mrb[0].mxu0 %v3214
    %v3216 = vpop.f32.mrb[0].mxu0
    %v3217 = vadd.f32 0.0, %v3216
    %v3218 = vpop.f32.mrb[0].mxu0
    %3219 = vdwg.mxu0
    %3220 = vmatprep.subr.mxu0 0.0
    %v3221 = vand.u32 %v3121, 4294901760
    %v3222 = vsub.f32 %v3121, %v3221
    %v3223 = vand.u32 %v3222, 4294901760
    %v3224 = vsub.f32 %v3222, %v3223
    %v3225 = vand.u32 %v3224, 4294901760
    %3226 = vmatpush1.msra.mxu0 %v3225
    %3227 = vmatprep.subr.mxu0 0.0
    %v3228 = vand.u32 %v3122, 4294901760
    %v3229 = vsub.f32 %v3122, %v3228
    %v3230 = vand.u32 %v3229, 4294901760
    %v3231 = vsub.f32 %v3229, %v3230
    %v3232 = vand.u32 %v3231, 4294901760
    %3233 = vmatpush1.msra.mxu0 %v3232
    %3234 = vmatprep.subr.mxu0 0.0
    %v3235 = vand.u32 %v3123, 4294901760
    %v3236 = vsub.f32 %v3123, %v3235
    %v3237 = vand.u32 %v3236, 4294901760
    %v3238 = vsub.f32 %v3236, %v3237
    %v3239 = vand.u32 %v3238, 4294901760
    %3240 = vmatpush1.msra.mxu0 %v3239
    %3241 = vmatprep.subr.mxu0 0.0
    %v3242 = vand.u32 %v3124, 4294901760
    %v3243 = vsub.f32 %v3124, %v3242
    %v3244 = vand.u32 %v3243, 4294901760
    %v3245 = vsub.f32 %v3243, %v3244
    %v3246 = vand.u32 %v3245, 4294901760
    %3247 = vmatpush1.msra.mxu0 %v3246
    %3248 = vmatprep.subr.mxu0 0.0
    %3249 = vmatpush1.msra.mxu0 0.0
    %3250 = vmatprep.subr.mxu0 0.0
    %3251 = vmatpush1.msra.mxu0 0.0
    %3252 = vmatprep.subr.mxu0 0.0
    %3253 = vmatpush1.msra.mxu0 0.0
    %3254 = vmatprep.subr.mxu0 0.0
    %3255 = vmatpush1.msra.mxu0 0.0
    %3256 = vmatprep.subr.mxu0 0.0
    %3257 = vmatpush1.msra.mxu0 0.0
    %3258 = vmatprep.subr.mxu0 0.0
    %3259 = vmatpush1.msra.mxu0 0.0
    %3260 = vmatprep.subr.mxu0 0.0
    %3261 = vmatpush1.msra.mxu0 0.0
    %3262 = vmatprep.subr.mxu0 0.0
    %3263 = vmatpush1.msra.mxu0 0.0
    %3264 = vmatprep.subr.mxu0 0.0
    %3265 = vmatpush1.msra.mxu0 0.0
    %3266 = vmatprep.subr.mxu0 0.0
    %3267 = vmatpush1.msra.mxu0 0.0
    %3268 = vmatprep.subr.mxu0 0.0
    %3269 = vmatpush1.msra.mxu0 0.0
    %3270 = vmatprep.subr.mxu0 0.0
    %3271 = vmatpush1.msra.mxu0 0.0
    %3272 = vmatprep.subr.mxu0 0.0
    %3273 = vmatpush1.msra.mxu0 0.0
    %3274 = vmatprep.subr.mxu0 0.0
    %3275 = vmatpush1.msra.mxu0 0.0
    %3276 = vmatprep.subr.mxu0 0.0
    %3277 = vmatpush1.msra.mxu0 0.0
    %3278 = vmatprep.subr.mxu0 0.0
    %3279 = vmatpush1.msra.mxu0 0.0
    %3280 = vmatprep.subr.mxu0 0.0
    %3281 = vmatpush1.msra.mxu0 0.0
    %3282 = vmatprep.subr.mxu0 0.0
    %3283 = vmatpush1.msra.mxu0 0.0
    %3284 = vmatprep.subr.mxu0 0.0
    %3285 = vmatpush1.msra.mxu0 0.0
    %3286 = vmatprep.subr.mxu0 0.0
    %3287 = vmatpush1.msra.mxu0 0.0
    %3288 = vmatprep.subr.mxu0 0.0
    %3289 = vmatpush1.msra.mxu0 0.0
    %3290 = vmatprep.subr.mxu0 0.0
    %3291 = vmatpush1.msra.mxu0 0.0
    %3292 = vmatprep.subr.mxu0 0.0
    %3293 = vmatpush1.msra.mxu0 0.0
    %3294 = vmatprep.subr.mxu0 0.0
    %3295 = vmatpush1.msra.mxu0 0.0
    %3296 = vmatprep.subr.mxu0 0.0
    %3297 = vmatpush1.msra.mxu0 0.0
    %3298 = vmatprep.subr.mxu0 0.0
    %3299 = vmatpush1.msra.mxu0 0.0
    %3300 = vmatprep.subr.mxu0 0.0
    %3301 = vmatpush1.msra.mxu0 0.0
    %3302 = vmatprep.subr.mxu0 0.0
    %3303 = vmatpush1.msra.mxu0 0.0
    %3304 = vmatprep.mubr.f32.mxu0 0.0
    %v3305 = vand.u32 %v3126, 4294901760
    %3306 = vmatmul.mubr.f32.gmra.mrb[0].mxu0 %v3305
    %v3307 = vpop.f32.mrb[0].mxu0
    %v3308 = vadd.f32 %v3207, %v3307
    %v3309 = vpop.f32.mrb[0].mxu0
    %3310 = vmatprep.mubr.f32.mxu0 0.0
    %v3311 = vand.u32 %v3129, 4294901760
    %3312 = vmatmul.mubr.f32.gmra.mrb[0].mxu0 %v3311
    %v3313 = vpop.f32.mrb[0].mxu0
    %v3314 = vadd.f32 %v3217, %v3313
    %v3315 = vpop.f32.mrb[0].mxu0
    %3316 = vdwg.mxu0
    %3317 = vmatprep.subr.mxu0 0.0
    %v3318 = vand.u32 %v3121, 4294901760
    %v3319 = vsub.f32 %v3121, %v3318
    %3320 = vmatpush1.msra.mxu0 %v3319
    %3321 = vmatprep.subr.mxu0 0.0
    %v3322 = vand.u32 %v3122, 4294901760
    %v3323 = vsub.f32 %v3122, %v3322
    %3324 = vmatpush1.msra.mxu0 %v3323
    %3325 = vmatprep.subr.mxu0 0.0
    %v3326 = vand.u32 %v3123, 4294901760
    %v3327 = vsub.f32 %v3123, %v3326
    %3328 = vmatpush1.msra.mxu0 %v3327
    %3329 = vmatprep.subr.mxu0 0.0
    %v3330 = vand.u32 %v3124, 4294901760
    %v3331 = vsub.f32 %v3124, %v3330
    %3332 = vmatpush1.msra.mxu0 %v3331
    %3333 = vmatprep.subr.mxu0 0.0
    %3334 = vmatpush1.msra.mxu0 0.0
    %3335 = vmatprep.subr.mxu0 0.0
    %3336 = vmatpush1.msra.mxu0 0.0
    %3337 = vmatprep.subr.mxu0 0.0
    %3338 = vmatpush1.msra.mxu0 0.0
    %3339 = vmatprep.subr.mxu0 0.0
    %3340 = vmatpush1.msra.mxu0 0.0
    %3341 = vmatprep.subr.mxu0 0.0
    %3342 = vmatpush1.msra.mxu0 0.0
    %3343 = vmatprep.subr.mxu0 0.0
    %3344 = vmatpush1.msra.mxu0 0.0
    %3345 = vmatprep.subr.mxu0 0.0
    %3346 = vmatpush1.msra.mxu0 0.0
    %3347 = vmatprep.subr.mxu0 0.0
    %3348 = vmatpush1.msra.mxu0 0.0
    %3349 = vmatprep.subr.mxu0 0.0
    %3350 = vmatpush1.msra.mxu0 0.0
    %3351 = vmatprep.subr.mxu0 0.0
    %3352 = vmatpush1.msra.mxu0 0.0
    %3353 = vmatprep.subr.mxu0 0.0
    %3354 = vmatpush1.msra.mxu0 0.0
    %3355 = vmatprep.subr.mxu0 0.0
    %3356 = vmatpush1.msra.mxu0 0.0
    %3357 = vmatprep.subr.mxu0 0.0
    %3358 = vmatpush1.msra.mxu0 0.0
    %3359 = vmatprep.subr.mxu0 0.0
    %3360 = vmatpush1.msra.mxu0 0.0
    %3361 = vmatprep.subr.mxu0 0.0
    %3362 = vmatpush1.msra.mxu0 0.0
    %3363 = vmatprep.subr.mxu0 0.0
    %3364 = vmatpush1.msra.mxu0 0.0
    %3365 = vmatprep.subr.mxu0 0.0
    %3366 = vmatpush1.msra.mxu0 0.0
    %3367 = vmatprep.subr.mxu0 0.0
    %3368 = vmatpush1.msra.mxu0 0.0
    %3369 = vmatprep.subr.mxu0 0.0
    %3370 = vmatpush1.msra.mxu0 0.0
    %3371 = vmatprep.subr.mxu0 0.0
    %3372 = vmatpush1.msra.mxu0 0.0
    %3373 = vmatprep.subr.mxu0 0.0
    %3374 = vmatpush1.msra.mxu0 0.0
    %3375 = vmatprep.subr.mxu0 0.0
    %3376 = vmatpush1.msra.mxu0 0.0
    %3377 = vmatprep.subr.mxu0 0.0
    %3378 = vmatpush1.msra.mxu0 0.0
    %3379 = vmatprep.subr.mxu0 0.0
    %3380 = vmatpush1.msra.mxu0 0.0
    %3381 = vmatprep.subr.mxu0 0.0
    %3382 = vmatpush1.msra.mxu0 0.0
    %3383 = vmatprep.subr.mxu0 0.0
    %3384 = vmatpush1.msra.mxu0 0.0
    %3385 = vmatprep.subr.mxu0 0.0
    %3386 = vmatpush1.msra.mxu0 0.0
    %3387 = vmatprep.subr.mxu0 0.0
    %3388 = vmatpush1.msra.mxu0 0.0
    %3389 = vmatprep.mubr.f32.mxu0 0.0
    %v3390 = vand.u32 %v3126, 4294901760
    %v3391 = vsub.f32 %v3126, %v3390
    %3392 = vmatmul.mubr.f32.gmra.mrb[0].mxu0 %v3391
    %v3393 = vpop.f32.mrb[0].mxu0
    %v3394 = vadd.f32 %v3308, %v3393
    %v3395 = vpop.f32.mrb[0].mxu0
    %3396 = vmatprep.mubr.f32.mxu0 0.0
    %v3397 = vand.u32 %v3129, 4294901760
    %v3398 = vsub.f32 %v3129, %v3397
    %3399 = vmatmul.mubr.f32.gmra.mrb[0].mxu0 %v3398
    %v3400 = vpop.f32.mrb[0].mxu0
    %v3401 = vadd.f32 %v3314, %v3400
    %v3402 = vpop.f32.mrb[0].mxu0
    %3403 = vdwg.mxu0
    %3404 = vmatprep.subr.mxu0 0.0
    %v3405 = vand.u32 %v3121, 4294901760
    %3406 = vmatpush1.msra.mxu0 %v3405
    %3407 = vmatprep.subr.mxu0 0.0
    %v3408 = vand.u32 %v3122, 4294901760
    %3409 = vmatpush1.msra.mxu0 %v3408
    %3410 = vmatprep.subr.mxu0 0.0
    %v3411 = vand.u32 %v3123, 4294901760
    %3412 = vmatpush1.msra.mxu0 %v3411
    %3413 = vmatprep.subr.mxu0 0.0
    %v3414 = vand.u32 %v3124, 4294901760
    %3415 = vmatpush1.msra.mxu0 %v3414
    %3416 = vmatprep.subr.mxu0 0.0
    %3417 = vmatpush1.msra.mxu0 0.0
    %3418 = vmatprep.subr.mxu0 0.0
    %3419 = vmatpush1.msra.mxu0 0.0
    %3420 = vmatprep.subr.mxu0 0.0
    %3421 = vmatpush1.msra.mxu0 0.0
    %3422 = vmatprep.subr.mxu0 0.0
    %3423 = vmatpush1.msra.mxu0 0.0
    %3424 = vmatprep.subr.mxu0 0.0
    %3425 = vmatpush1.msra.mxu0 0.0
    %3426 = vmatprep.subr.mxu0 0.0
    %3427 = vmatpush1.msra.mxu0 0.0
    %3428 = vmatprep.subr.mxu0 0.0
    %3429 = vmatpush1.msra.mxu0 0.0
    %3430 = vmatprep.subr.mxu0 0.0
    %3431 = vmatpush1.msra.mxu0 0.0
    %3432 = vmatprep.subr.mxu0 0.0
    %3433 = vmatpush1.msra.mxu0 0.0
    %3434 = vmatprep.subr.mxu0 0.0
    %3435 = vmatpush1.msra.mxu0 0.0
    %3436 = vmatprep.subr.mxu0 0.0
    %3437 = vmatpush1.msra.mxu0 0.0
    %3438 = vmatprep.subr.mxu0 0.0
    %3439 = vmatpush1.msra.mxu0 0.0
    %3440 = vmatprep.subr.mxu0 0.0
    %3441 = vmatpush1.msra.mxu0 0.0
    %3442 = vmatprep.subr.mxu0 0.0
    %3443 = vmatpush1.msra.mxu0 0.0
    %3444 = vmatprep.subr.mxu0 0.0
    %3445 = vmatpush1.msra.mxu0 0.0
    %3446 = vmatprep.subr.mxu0 0.0
    %3447 = vmatpush1.msra.mxu0 0.0
    %3448 = vmatprep.subr.mxu0 0.0
    %3449 = vmatpush1.msra.mxu0 0.0
    %3450 = vmatprep.subr.mxu0 0.0
    %3451 = vmatpush1.msra.mxu0 0.0
    %3452 = vmatprep.subr.mxu0 0.0
    %3453 = vmatpush1.msra.mxu0 0.0
    %3454 = vmatprep.subr.mxu0 0.0
    %3455 = vmatpush1.msra.mxu0 0.0
    %3456 = vmatprep.subr.mxu0 0.0
    %3457 = vmatpush1.msra.mxu0 0.0
    %3458 = vmatprep.subr.mxu0 0.0
    %3459 = vmatpush1.msra.mxu0 0.0
    %3460 = vmatprep.subr.mxu0 0.0
    %3461 = vmatpush1.msra.mxu0 0.0
    %3462 = vmatprep.subr.mxu0 0.0
    %3463 = vmatpush1.msra.mxu0 0.0
    %3464 = vmatprep.subr.mxu0 0.0
    %3465 = vmatpush1.msra.mxu0 0.0
    %3466 = vmatprep.subr.mxu0 0.0
    %3467 = vmatpush1.msra.mxu0 0.0
    %3468 = vmatprep.subr.mxu0 0.0
    %3469 = vmatpush1.msra.mxu0 0.0
    %3470 = vmatprep.subr.mxu0 0.0
    %3471 = vmatpush1.msra.mxu0 0.0
    %3472 = vmatprep.mubr.f32.mxu0 0.0
    %v3473 = vand.u32 %v3126, 4294901760
    %v3474 = vsub.f32 %v3126, %v3473
    %v3475 = vand.u32 %v3474, 4294901760
    %3476 = vmatmul.mubr.f32.gmra.mrb[0].mxu0 %v3475
    %v3477 = vpop.f32.mrb[0].mxu0
    %v3478 = vadd.f32 %v3394, %v3477
    %v3479 = vpop.f32.mrb[0].mxu0
    %3480 = vmatprep.mubr.f32.mxu0 0.0
    %v3481 = vand.u32 %v3129, 4294901760
    %v3482 = vsub.f32 %v3129, %v3481
    %v3483 = vand.u32 %v3482, 4294901760
    %3484 = vmatmul.mubr.f32.gmra.mrb[0].mxu0 %v3483
    %v3485 = vpop.f32.mrb[0].mxu0
    %v3486 = vadd.f32 %v3401, %v3485
    %v3487 = vpop.f32.mrb[0].mxu0
    %3488 = vdwg.mxu0
    %3489 = vmatprep.subr.mxu0 0.0
    %v3490 = vand.u32 %v3121, 4294901760
    %v3491 = vsub.f32 %v3121, %v3490
    %v3492 = vand.u32 %v3491, 4294901760
    %3493 = vmatpush1.msra.mxu0 %v3492
    %3494 = vmatprep.subr.mxu0 0.0
    %v3495 = vand.u32 %v3122, 4294901760
    %v3496 = vsub.f32 %v3122, %v3495
    %v3497 = vand.u32 %v3496, 4294901760
    %3498 = vmatpush1.msra.mxu0 %v3497
    %3499 = vmatprep.subr.mxu0 0.0
    %v3500 = vand.u32 %v3123, 4294901760
    %v3501 = vsub.f32 %v3123, %v3500
    %v3502 = vand.u32 %v3501, 4294901760
    %3503 = vmatpush1.msra.mxu0 %v3502
    %3504 = vmatprep.subr.mxu0 0.0
    %v3505 = vand.u32 %v3124, 4294901760
    %v3506 = vsub.f32 %v3124, %v3505
    %v3507 = vand.u32 %v3506, 4294901760
    %3508 = vmatpush1.msra.mxu0 %v3507
    %3509 = vmatprep.subr.mxu0 0.0
    %3510 = vmatpush1.msra.mxu0 0.0
    %3511 = vmatprep.subr.mxu0 0.0
    %3512 = vmatpush1.msra.mxu0 0.0
    %3513 = vmatprep.subr.mxu0 0.0
    %3514 = vmatpush1.msra.mxu0 0.0
    %3515 = vmatprep.subr.mxu0 0.0
    %3516 = vmatpush1.msra.mxu0 0.0
    %3517 = vmatprep.subr.mxu0 0.0
    %3518 = vmatpush1.msra.mxu0 0.0
    %3519 = vmatprep.subr.mxu0 0.0
    %3520 = vmatpush1.msra.mxu0 0.0
    %3521 = vmatprep.subr.mxu0 0.0
    %3522 = vmatpush1.msra.mxu0 0.0
    %3523 = vmatprep.subr.mxu0 0.0
    %3524 = vmatpush1.msra.mxu0 0.0
    %3525 = vmatprep.subr.mxu0 0.0
    %3526 = vmatpush1.msra.mxu0 0.0
    %3527 = vmatprep.subr.mxu0 0.0
    %3528 = vmatpush1.msra.mxu0 0.0
    %3529 = vmatprep.subr.mxu0 0.0
    %3530 = vmatpush1.msra.mxu0 0.0
    %3531 = vmatprep.subr.mxu0 0.0
    %3532 = vmatpush1.msra.mxu0 0.0
    %3533 = vmatprep.subr.mxu0 0.0
    %3534 = vmatpush1.msra.mxu0 0.0
    %3535 = vmatprep.subr.mxu0 0.0
    %3536 = vmatpush1.msra.mxu0 0.0
    %3537 = vmatprep.subr.mxu0 0.0
    %3538 = vmatpush1.msra.mxu0 0.0
    %3539 = vmatprep.subr.mxu0 0.0
    %3540 = vmatpush1.msra.mxu0 0.0
    %3541 = vmatprep.subr.mxu0 0.0
    %3542 = vmatpush1.msra.mxu0 0.0
    %3543 = vmatprep.subr.mxu0 0.0
    %3544 = vmatpush1.msra.mxu0 0.0
    %3545 = vmatprep.subr.mxu0 0.0
    %3546 = vmatpush1.msra.mxu0 0.0
    %3547 = vmatprep.subr.mxu0 0.0
    %3548 = vmatpush1.msra.mxu0 0.0
    %3549 = vmatprep.subr.mxu0 0.0
    %3550 = vmatpush1.msra.mxu0 0.0
    %3551 = vmatprep.subr.mxu0 0.0
    %3552 = vmatpush1.msra.mxu0 0.0
    %3553 = vmatprep.subr.mxu0 0.0
    %3554 = vmatpush1.msra.mxu0 0.0
    %3555 = vmatprep.subr.mxu0 0.0
    %3556 = vmatpush1.msra.mxu0 0.0
    %3557 = vmatprep.subr.mxu0 0.0
    %3558 = vmatpush1.msra.mxu0 0.0
    %3559 = vmatprep.subr.mxu0 0.0
    %3560 = vmatpush1.msra.mxu0 0.0
    %3561 = vmatprep.subr.mxu0 0.0
    %3562 = vmatpush1.msra.mxu0 0.0
    %3563 = vmatprep.subr.mxu0 0.0
    %3564 = vmatpush1.msra.mxu0 0.0
    %3565 = vmatprep.mubr.f32.mxu0 0.0
    %v3566 = vand.u32 %v3126, 4294901760
    %3567 = vmatmul.mubr.f32.gmra.mrb[0].mxu0 %v3566
    %v3568 = vpop.f32.mrb[0].mxu0
    %v3569 = vadd.f32 %v3478, %v3568
    %v3570 = vpop.f32.mrb[0].mxu0
    %3571 = vmatprep.mubr.f32.mxu0 0.0
    %v3572 = vand.u32 %v3129, 4294901760
    %3573 = vmatmul.mubr.f32.gmra.mrb[0].mxu0 %v3572
    %v3574 = vpop.f32.mrb[0].mxu0
    %v3575 = vadd.f32 %v3486, %v3574
    %v3576 = vpop.f32.mrb[0].mxu0
    %3577 = vdwg.mxu0
    %3578 = vmatprep.subr.mxu0 0.0
    %v3579 = vand.u32 %v3121, 4294901760
    %3580 = vmatpush1.msra.mxu0 %v3579
    %3581 = vmatprep.subr.mxu0 0.0
    %v3582 = vand.u32 %v3122, 4294901760
    %3583 = vmatpush1.msra.mxu0 %v3582
    %3584 = vmatprep.subr.mxu0 0.0
    %v3585 = vand.u32 %v3123, 4294901760
    %3586 = vmatpush1.msra.mxu0 %v3585
    %3587 = vmatprep.subr.mxu0 0.0
    %v3588 = vand.u32 %v3124, 4294901760
    %3589 = vmatpush1.msra.mxu0 %v3588
    %3590 = vmatprep.subr.mxu0 0.0
    %3591 = vmatpush1.msra.mxu0 0.0
    %3592 = vmatprep.subr.mxu0 0.0
    %3593 = vmatpush1.msra.mxu0 0.0
    %3594 = vmatprep.subr.mxu0 0.0
    %3595 = vmatpush1.msra.mxu0 0.0
    %3596 = vmatprep.subr.mxu0 0.0
    %3597 = vmatpush1.msra.mxu0 0.0
    %3598 = vmatprep.subr.mxu0 0.0
    %3599 = vmatpush1.msra.mxu0 0.0
    %3600 = vmatprep.subr.mxu0 0.0
    %3601 = vmatpush1.msra.mxu0 0.0
    %3602 = vmatprep.subr.mxu0 0.0
    %3603 = vmatpush1.msra.mxu0 0.0
    %3604 = vmatprep.subr.mxu0 0.0
    %3605 = vmatpush1.msra.mxu0 0.0
    %3606 = vmatprep.subr.mxu0 0.0
    %3607 = vmatpush1.msra.mxu0 0.0
    %3608 = vmatprep.subr.mxu0 0.0
    %3609 = vmatpush1.msra.mxu0 0.0
    %3610 = vmatprep.subr.mxu0 0.0
    %3611 = vmatpush1.msra.mxu0 0.0
    %3612 = vmatprep.subr.mxu0 0.0
    %3613 = vmatpush1.msra.mxu0 0.0
    %3614 = vmatprep.subr.mxu0 0.0
    %3615 = vmatpush1.msra.mxu0 0.0
    %3616 = vmatprep.subr.mxu0 0.0
    %3617 = vmatpush1.msra.mxu0 0.0
    %3618 = vmatprep.subr.mxu0 0.0
    %3619 = vmatpush1.msra.mxu0 0.0
    %3620 = vmatprep.subr.mxu0 0.0
    %3621 = vmatpush1.msra.mxu0 0.0
    %3622 = vmatprep.subr.mxu0 0.0
    %3623 = vmatpush1.msra.mxu0 0.0
    %3624 = vmatprep.subr.mxu0 0.0
    %3625 = vmatpush1.msra.mxu0 0.0
    %3626 = vmatprep.subr.mxu0 0.0
    %3627 = vmatpush1.msra.mxu0 0.0
    %3628 = vmatprep.subr.mxu0 0.0
    %3629 = vmatpush1.msra.mxu0 0.0
    %3630 = vmatprep.subr.mxu0 0.0
    %3631 = vmatpush1.msra.mxu0 0.0
    %3632 = vmatprep.subr.mxu0 0.0
    %3633 = vmatpush1.msra.mxu0 0.0
    %3634 = vmatprep.subr.mxu0 0.0
    %3635 = vmatpush1.msra.mxu0 0.0
    %3636 = vmatprep.subr.mxu0 0.0
    %3637 = vmatpush1.msra.mxu0 0.0
    %3638 = vmatprep.subr.mxu0 0.0
    %3639 = vmatpush1.msra.mxu0 0.0
    %3640 = vmatprep.subr.mxu0 0.0
    %3641 = vmatpush1.msra.mxu0 0.0
    %3642 = vmatprep.subr.mxu0 0.0
    %3643 = vmatpush1.msra.mxu0 0.0
    %3644 = vmatprep.subr.mxu0 0.0
    %3645 = vmatpush1.msra.mxu0 0.0
    %3646 = vmatprep.mubr.f32.mxu0 0.0
    %v3647 = vand.u32 %v3126, 4294901760
    %3648 = vmatmul.mubr.f32.gmra.mrb[0].mxu0 %v3647
    %v3649 = vpop.f32.mrb[0].mxu0
    %v3650 = vadd.f32 %v3569, %v3649
    %v3651 = vpop.f32.mrb[0].mxu0
    %3652 = vmatprep.mubr.f32.mxu0 0.0
    %v3653 = vand.u32 %v3129, 4294901760
    %3654 = vmatmul.mubr.f32.gmra.mrb[0].mxu0 %v3653
    %v3655 = vpop.f32.mrb[0].mxu0
    %v3656 = vadd.f32 %v3575, %v3655
    %v3657 = vpop.f32.mrb[0].mxu0
    %3658 = vdwg.mxu0
    %v3659 = vadd.f32 %v3119, %v3650
    %v3660 = vadd.f32 %v3120, %v3656
    %v3661 = vmul.f32 %v3659, 0.25
    %v3662 = vmul.f32 %v3660, 0.25
    %v3663 = vadd.f32 %v3661, %v18
    %v3664 = vadd.f32 %v3662, %v19
    %3665 = vst.msk [vmem:[#allocation2] sm:$0xff] %vm63, %v3663
    %3666 = vst.msk [vmem:[#allocation2 + $0x8] sm:$0xff] %vm63, %v3664
    %s3667 = scalar_lea.vmem %s2, 48
    %v3668 = vld [vmem:[%s3667] sm:$0xff]
    %v3669 = vld [vmem:[%s3667 + $0x8] sm:$0xff]
    %v3670 = vld [vmem:[%s3667 + $0x10] sm:$0xff]
    %v3671 = vld [vmem:[%s3667 + $0x18] sm:$0xff]
    %v3672 = vld [vmem:[%s3667 + $0x20] sm:$0xff]
    %v3673 = vld [vmem:[%s3667 + $0x28] sm:$0xff]
    %v3675 = vsel %vm816, %v3668, 0
    %v3678 = vsel %vm816, %v3669, 0
    %v3681 = vsel %vm816, %v3670, 0
    %v3684 = vsel %vm816, %v3671, 0
    %v3687 = vsel %vm816, %v3672, 0
    %v3690 = vsel %vm816, %v3673, 0
    %3692 = vmatprep.subr.mxu0 0.0
    %v3693 = vand.u32 %v804, 4294901760
    %3694 = vmatpush1.msra.mxu0 %v3693
    %3695 = vmatprep.subr.mxu0 0.0
    %v3696 = vand.u32 %v805, 4294901760
    %3697 = vmatpush1.msra.mxu0 %v3696
    %3698 = vmatprep.subr.mxu0 0.0
    %3699 = vmatpush1.msra.mxu0 0.0
    %3700 = vmatprep.subr.mxu0 0.0
    %3701 = vmatpush1.msra.mxu0 0.0
    %3702 = vmatprep.subr.mxu0 0.0
    %3703 = vmatpush1.msra.mxu0 0.0
    %3704 = vmatprep.subr.mxu0 0.0
    %3705 = vmatpush1.msra.mxu0 0.0
    %3706 = vmatprep.subr.mxu0 0.0
    %3707 = vmatpush1.msra.mxu0 0.0
    %3708 = vmatprep.subr.mxu0 0.0
    %3709 = vmatpush1.msra.mxu0 0.0
    %3710 = vmatprep.subr.mxu0 0.0
    %3711 = vmatpush1.msra.mxu0 0.0
    %3712 = vmatprep.subr.mxu0 0.0
    %3713 = vmatpush1.msra.mxu0 0.0
    %3714 = vmatprep.subr.mxu0 0.0
    %3715 = vmatpush1.msra.mxu0 0.0
    %3716 = vmatprep.subr.mxu0 0.0
    %3717 = vmatpush1.msra.mxu0 0.0
    %3718 = vmatprep.subr.mxu0 0.0
    %3719 = vmatpush1.msra.mxu0 0.0
    %3720 = vmatprep.subr.mxu0 0.0
    %3721 = vmatpush1.msra.mxu0 0.0
    %3722 = vmatprep.subr.mxu0 0.0
    %3723 = vmatpush1.msra.mxu0 0.0
    %3724 = vmatprep.subr.mxu0 0.0
    %3725 = vmatpush1.msra.mxu0 0.0
    %3726 = vmatprep.subr.mxu0 0.0
    %3727 = vmatpush1.msra.mxu0 0.0
    %3728 = vmatprep.subr.mxu0 0.0
    %3729 = vmatpush1.msra.mxu0 0.0
    %3730 = vmatprep.subr.mxu0 0.0
    %3731 = vmatpush1.msra.mxu0 0.0
    %3732 = vmatprep.subr.mxu0 0.0
    %3733 = vmatpush1.msra.mxu0 0.0
    %3734 = vmatprep.subr.mxu0 0.0
    %3735 = vmatpush1.msra.mxu0 0.0
    %3736 = vmatprep.subr.mxu0 0.0
    %3737 = vmatpush1.msra.mxu0 0.0
    %3738 = vmatprep.subr.mxu0 0.0
    %3739 = vmatpush1.msra.mxu0 0.0
    %3740 = vmatprep.subr.mxu0 0.0
    %3741 = vmatpush1.msra.mxu0 0.0
    %3742 = vmatprep.subr.mxu0 0.0
    %3743 = vmatpush1.msra.mxu0 0.0
    %3744 = vmatprep.subr.mxu0 0.0
    %3745 = vmatpush1.msra.mxu0 0.0
    %3746 = vmatprep.subr.mxu0 0.0
    %3747 = vmatpush1.msra.mxu0 0.0
    %3748 = vmatprep.subr.mxu0 0.0
    %3749 = vmatpush1.msra.mxu0 0.0
    %3750 = vmatprep.subr.mxu0 0.0
    %3751 = vmatpush1.msra.mxu0 0.0
    %3752 = vmatprep.subr.mxu0 0.0
    %3753 = vmatpush1.msra.mxu0 0.0
    %3754 = vmatprep.subr.mxu0 0.0
    %3755 = vmatpush1.msra.mxu0 0.0
    %3756 = vmatprep.subr.mxu0 0.0
    %3757 = vmatpush1.msra.mxu0 0.0
    %3758 = vmatprep.mubr.f32.mxu0 0.0
    %v3759 = vand.u32 %v3675, 4294901760
    %v3760 = vsub.f32 %v3675, %v3759
    %v3761 = vand.u32 %v3760, 4294901760
    %v3762 = vsub.f32 %v3760, %v3761
    %v3763 = vand.u32 %v3762, 4294901760
    %3764 = vmatmul.mubr.f32.gmra.mrb[0].mxu0 %v3763
    %v3765 = vpop.f32.mrb[0].mxu0
    %v3766 = vadd.f32 0.0, %v3765
    %v3767 = vpop.f32.mrb[0].mxu0
    %3768 = vmatprep.mubr.f32.mxu0 0.0
    %v3769 = vand.u32 %v3678, 4294901760
    %v3770 = vsub.f32 %v3678, %v3769
    %v3771 = vand.u32 %v3770, 4294901760
    %v3772 = vsub.f32 %v3770, %v3771
    %v3773 = vand.u32 %v3772, 4294901760
    %3774 = vmatmul.mubr.f32.gmra.mrb[0].mxu0 %v3773
    %v3775 = vpop.f32.mrb[0].mxu0
    %v3776 = vadd.f32 0.0, %v3775
    %v3777 = vpop.f32.mrb[0].mxu0
    %3778 = vmatprep.mubr.f32.mxu0 0.0
    %v3779 = vand.u32 %v3681, 4294901760
    %v3780 = vsub.f32 %v3681, %v3779
    %v3781 = vand.u32 %v3780, 4294901760
    %v3782 = vsub.f32 %v3780, %v3781
    %v3783 = vand.u32 %v3782, 4294901760
    %3784 = vmatmul.mubr.f32.gmra.mrb[0].mxu0 %v3783
    %v3785 = vpop.f32.mrb[0].mxu0
    %v3786 = vadd.f32 0.0, %v3785
    %v3787 = vpop.f32.mrb[0].mxu0
    %3788 = vmatprep.mubr.f32.mxu0 0.0
    %v3789 = vand.u32 %v3684, 4294901760
    %v3790 = vsub.f32 %v3684, %v3789
    %v3791 = vand.u32 %v3790, 4294901760
    %v3792 = vsub.f32 %v3790, %v3791
    %v3793 = vand.u32 %v3792, 4294901760
    %3794 = vmatmul.mubr.f32.gmra.mrb[0].mxu0 %v3793
    %v3795 = vpop.f32.mrb[0].mxu0
    %v3796 = vadd.f32 0.0, %v3795
    %v3797 = vpop.f32.mrb[0].mxu0
    %3798 = vmatprep.mubr.f32.mxu0 0.0
    %v3799 = vand.u32 %v3687, 4294901760
    %v3800 = vsub.f32 %v3687, %v3799
    %v3801 = vand.u32 %v3800, 4294901760
    %v3802 = vsub.f32 %v3800, %v3801
    %v3803 = vand.u32 %v3802, 4294901760
    %3804 = vmatmul.mubr.f32.gmra.mrb[0].mxu0 %v3803
    %v3805 = vpop.f32.mrb[0].mxu0
    %v3806 = vadd.f32 0.0, %v3805
    %v3807 = vpop.f32.mrb[0].mxu0
    %3808 = vmatprep.mubr.f32.mxu0 0.0
    %v3809 = vand.u32 %v3690, 4294901760
    %v3810 = vsub.f32 %v3690, %v3809
    %v3811 = vand.u32 %v3810, 4294901760
    %v3812 = vsub.f32 %v3810, %v3811
    %v3813 = vand.u32 %v3812, 4294901760
    %3814 = vmatmul.mubr.f32.gmra.mrb[0].mxu0 %v3813
    %v3815 = vpop.f32.mrb[0].mxu0
    %v3816 = vadd.f32 0.0, %v3815
    %v3817 = vpop.f32.mrb[0].mxu0
    %3818 = vdwg.mxu0
    %3819 = vmatprep.subr.mxu0 0.0
    %v3820 = vand.u32 %v804, 4294901760
    %v3821 = vsub.f32 %v804, %v3820
    %v3822 = vand.u32 %v3821, 4294901760
    %v3823 = vsub.f32 %v3821, %v3822
    %v3824 = vand.u32 %v3823, 4294901760
    %3825 = vmatpush1.msra.mxu0 %v3824
    %3826 = vmatprep.subr.mxu0 0.0
    %v3827 = vand.u32 %v805, 4294901760
    %v3828 = vsub.f32 %v805, %v3827
    %v3829 = vand.u32 %v3828, 4294901760
    %v3830 = vsub.f32 %v3828, %v3829
    %v3831 = vand.u32 %v3830, 4294901760
    %3832 = vmatpush1.msra.mxu0 %v3831
    %3833 = vmatprep.subr.mxu0 0.0
    %3834 = vmatpush1.msra.mxu0 0.0
    %3835 = vmatprep.subr.mxu0 0.0
    %3836 = vmatpush1.msra.mxu0 0.0
    %3837 = vmatprep.subr.mxu0 0.0
    %3838 = vmatpush1.msra.mxu0 0.0
    %3839 = vmatprep.subr.mxu0 0.0
    %3840 = vmatpush1.msra.mxu0 0.0
    %3841 = vmatprep.subr.mxu0 0.0
    %3842 = vmatpush1.msra.mxu0 0.0
    %3843 = vmatprep.subr.mxu0 0.0
    %3844 = vmatpush1.msra.mxu0 0.0
    %3845 = vmatprep.subr.mxu0 0.0
    %3846 = vmatpush1.msra.mxu0 0.0
    %3847 = vmatprep.subr.mxu0 0.0
    %3848 = vmatpush1.msra.mxu0 0.0
    %3849 = vmatprep.subr.mxu0 0.0
    %3850 = vmatpush1.msra.mxu0 0.0
    %3851 = vmatprep.subr.mxu0 0.0
    %3852 = vmatpush1.msra.mxu0 0.0
    %3853 = vmatprep.subr.mxu0 0.0
    %3854 = vmatpush1.msra.mxu0 0.0
    %3855 = vmatprep.subr.mxu0 0.0
    %3856 = vmatpush1.msra.mxu0 0.0
    %3857 = vmatprep.subr.mxu0 0.0
    %3858 = vmatpush1.msra.mxu0 0.0
    %3859 = vmatprep.subr.mxu0 0.0
    %3860 = vmatpush1.msra.mxu0 0.0
    %3861 = vmatprep.subr.mxu0 0.0
    %3862 = vmatpush1.msra.mxu0 0.0
    %3863 = vmatprep.subr.mxu0 0.0
    %3864 = vmatpush1.msra.mxu0 0.0
    %3865 = vmatprep.subr.mxu0 0.0
    %3866 = vmatpush1.msra.mxu0 0.0
    %3867 = vmatprep.subr.mxu0 0.0
    %3868 = vmatpush1.msra.mxu0 0.0
    %3869 = vmatprep.subr.mxu0 0.0
    %3870 = vmatpush1.msra.mxu0 0.0
    %3871 = vmatprep.subr.mxu0 0.0
    %3872 = vmatpush1.msra.mxu0 0.0
    %3873 = vmatprep.subr.mxu0 0.0
    %3874 = vmatpush1.msra.mxu0 0.0
    %3875 = vmatprep.subr.mxu0 0.0
    %3876 = vmatpush1.msra.mxu0 0.0
    %3877 = vmatprep.subr.mxu0 0.0
    %3878 = vmatpush1.msra.mxu0 0.0
    %3879 = vmatprep.subr.mxu0 0.0
    %3880 = vmatpush1.msra.mxu0 0.0
    %3881 = vmatprep.subr.mxu0 0.0
    %3882 = vmatpush1.msra.mxu0 0.0
    %3883 = vmatprep.subr.mxu0 0.0
    %3884 = vmatpush1.msra.mxu0 0.0
    %3885 = vmatprep.subr.mxu0 0.0
    %3886 = vmatpush1.msra.mxu0 0.0
    %3887 = vmatprep.subr.mxu0 0.0
    %3888 = vmatpush1.msra.mxu0 0.0
    %3889 = vmatprep.subr.mxu0 0.0
    %3890 = vmatpush1.msra.mxu0 0.0
    %3891 = vmatprep.subr.mxu0 0.0
    %3892 = vmatpush1.msra.mxu0 0.0
    %3893 = vmatprep.mubr.f32.mxu0 0.0
    %v3894 = vand.u32 %v3675, 4294901760
    %3895 = vmatmul.mubr.f32.gmra.mrb[0].mxu0 %v3894
    %v3896 = vpop.f32.mrb[0].mxu0
    %v3897 = vadd.f32 %v3766, %v3896
    %v3898 = vpop.f32.mrb[0].mxu0
    %3899 = vmatprep.mubr.f32.mxu0 0.0
    %v3900 = vand.u32 %v3678, 4294901760
    %3901 = vmatmul.mubr.f32.gmra.mrb[0].mxu0 %v3900
    %v3902 = vpop.f32.mrb[0].mxu0
    %v3903 = vadd.f32 %v3776, %v3902
    %v3904 = vpop.f32.mrb[0].mxu0
    %3905 = vmatprep.mubr.f32.mxu0 0.0
    %v3906 = vand.u32 %v3681, 4294901760
    %3907 = vmatmul.mubr.f32.gmra.mrb[0].mxu0 %v3906
    %v3908 = vpop.f32.mrb[0].mxu0
    %v3909 = vadd.f32 %v3786, %v3908
    %v3910 = vpop.f32.mrb[0].mxu0
    %3911 = vmatprep.mubr.f32.mxu0 0.0
    %v3912 = vand.u32 %v3684, 4294901760
    %3913 = vmatmul.mubr.f32.gmra.mrb[0].mxu0 %v3912
    %v3914 = vpop.f32.mrb[0].mxu0
    %v3915 = vadd.f32 %v3796, %v3914
    %v3916 = vpop.f32.mrb[0].mxu0
    %3917 = vmatprep.mubr.f32.mxu0 0.0
    %v3918 = vand.u32 %v3687, 4294901760
    %3919 = vmatmul.mubr.f32.gmra.mrb[0].mxu0 %v3918
    %v3920 = vpop.f32.mrb[0].mxu0
    %v3921 = vadd.f32 %v3806, %v3920
    %v3922 = vpop.f32.mrb[0].mxu0
    %3923 = vmatprep.mubr.f32.mxu0 0.0
    %v3924 = vand.u32 %v3690, 4294901760
    %3925 = vmatmul.mubr.f32.gmra.mrb[0].mxu0 %v3924
    %v3926 = vpop.f32.mrb[0].mxu0
    %v3927 = vadd.f32 %v3816, %v3926
    %v3928 = vpop.f32.mrb[0].mxu0
    %3929 = vdwg.mxu0
    %3930 = vmatprep.subr.mxu0 0.0
    %v3931 = vand.u32 %v804, 4294901760
    %v3932 = vsub.f32 %v804, %v3931
    %3933 = vmatpush1.msra.mxu0 %v3932
    %3934 = vmatprep.subr.mxu0 0.0
    %v3935 = vand.u32 %v805, 4294901760
    %v3936 = vsub.f32 %v805, %v3935
    %3937 = vmatpush1.msra.mxu0 %v3936
    %3938 = vmatprep.subr.mxu0 0.0
    %3939 = vmatpush1.msra.mxu0 0.0
    %3940 = vmatprep.subr.mxu0 0.0
    %3941 = vmatpush1.msra.mxu0 0.0
    %3942 = vmatprep.subr.mxu0 0.0
    %3943 = vmatpush1.msra.mxu0 0.0
    %3944 = vmatprep.subr.mxu0 0.0
    %3945 = vmatpush1.msra.mxu0 0.0
    %3946 = vmatprep.subr.mxu0 0.0
    %3947 = vmatpush1.msra.mxu0 0.0
    %3948 = vmatprep.subr.mxu0 0.0
    %3949 = vmatpush1.msra.mxu0 0.0
    %3950 = vmatprep.subr.mxu0 0.0
    %3951 = vmatpush1.msra.mxu0 0.0
    %3952 = vmatprep.subr.mxu0 0.0
    %3953 = vmatpush1.msra.mxu0 0.0
    %3954 = vmatprep.subr.mxu0 0.0
    %3955 = vmatpush1.msra.mxu0 0.0
    %3956 = vmatprep.subr.mxu0 0.0
    %3957 = vmatpush1.msra.mxu0 0.0
    %3958 = vmatprep.subr.mxu0 0.0
    %3959 = vmatpush1.msra.mxu0 0.0
    %3960 = vmatprep.subr.mxu0 0.0
    %3961 = vmatpush1.msra.mxu0 0.0
    %3962 = vmatprep.subr.mxu0 0.0
    %3963 = vmatpush1.msra.mxu0 0.0
    %3964 = vmatprep.subr.mxu0 0.0
    %3965 = vmatpush1.msra.mxu0 0.0
    %3966 = vmatprep.subr.mxu0 0.0
    %3967 = vmatpush1.msra.mxu0 0.0
    %3968 = vmatprep.subr.mxu0 0.0
    %3969 = vmatpush1.msra.mxu0 0.0
    %3970 = vmatprep.subr.mxu0 0.0
    %3971 = vmatpush1.msra.mxu0 0.0
    %3972 = vmatprep.subr.mxu0 0.0
    %3973 = vmatpush1.msra.mxu0 0.0
    %3974 = vmatprep.subr.mxu0 0.0
    %3975 = vmatpush1.msra.mxu0 0.0
    %3976 = vmatprep.subr.mxu0 0.0
    %3977 = vmatpush1.msra.mxu0 0.0
    %3978 = vmatprep.subr.mxu0 0.0
    %3979 = vmatpush1.msra.mxu0 0.0
    %3980 = vmatprep.subr.mxu0 0.0
    %3981 = vmatpush1.msra.mxu0 0.0
    %3982 = vmatprep.subr.mxu0 0.0
    %3983 = vmatpush1.msra.mxu0 0.0
    %3984 = vmatprep.subr.mxu0 0.0
    %3985 = vmatpush1.msra.mxu0 0.0
    %3986 = vmatprep.subr.mxu0 0.0
    %3987 = vmatpush1.msra.mxu0 0.0
    %3988 = vmatprep.subr.mxu0 0.0
    %3989 = vmatpush1.msra.mxu0 0.0
    %3990 = vmatprep.subr.mxu0 0.0
    %3991 = vmatpush1.msra.mxu0 0.0
    %3992 = vmatprep.subr.mxu0 0.0
    %3993 = vmatpush1.msra.mxu0 0.0
    %3994 = vmatprep.subr.mxu0 0.0
    %3995 = vmatpush1.msra.mxu0 0.0
    %3996 = vmatprep.subr.mxu0 0.0
    %3997 = vmatpush1.msra.mxu0 0.0
    %3998 = vmatprep.mubr.f32.mxu0 0.0
    %v3999 = vand.u32 %v3675, 4294901760
    %v4000 = vsub.f32 %v3675, %v3999
    %4001 = vmatmul.mubr.f32.gmra.mrb[0].mxu0 %v4000
    %v4002 = vpop.f32.mrb[0].mxu0
    %v4003 = vadd.f32 %v3897, %v4002
    %v4004 = vpop.f32.mrb[0].mxu0
    %4005 = vmatprep.mubr.f32.mxu0 0.0
    %v4006 = vand.u32 %v3678, 4294901760
    %v4007 = vsub.f32 %v3678, %v4006
    %4008 = vmatmul.mubr.f32.gmra.mrb[0].mxu0 %v4007
    %v4009 = vpop.f32.mrb[0].mxu0
    %v4010 = vadd.f32 %v3903, %v4009
    %v4011 = vpop.f32.mrb[0].mxu0
    %4012 = vmatprep.mubr.f32.mxu0 0.0
    %v4013 = vand.u32 %v3681, 4294901760
    %v4014 = vsub.f32 %v3681, %v4013
    %4015 = vmatmul.mubr.f32.gmra.mrb[0].mxu0 %v4014
    %v4016 = vpop.f32.mrb[0].mxu0
    %v4017 = vadd.f32 %v3909, %v4016
    %v4018 = vpop.f32.mrb[0].mxu0
    %4019 = vmatprep.mubr.f32.mxu0 0.0
    %v4020 = vand.u32 %v3684, 4294901760
    %v4021 = vsub.f32 %v3684, %v4020
    %4022 = vmatmul.mubr.f32.gmra.mrb[0].mxu0 %v4021
    %v4023 = vpop.f32.mrb[0].mxu0
    %v4024 = vadd.f32 %v3915, %v4023
    %v4025 = vpop.f32.mrb[0].mxu0
    %4026 = vmatprep.mubr.f32.mxu0 0.0
    %v4027 = vand.u32 %v3687, 4294901760
    %v4028 = vsub.f32 %v3687, %v4027
    %4029 = vmatmul.mubr.f32.gmra.mrb[0].mxu0 %v4028
    %v4030 = vpop.f32.mrb[0].mxu0
    %v4031 = vadd.f32 %v3921, %v4030
    %v4032 = vpop.f32.mrb[0].mxu0
    %4033 = vmatprep.mubr.f32.mxu0 0.0
    %v4034 = vand.u32 %v3690, 4294901760
    %v4035 = vsub.f32 %v3690, %v4034
    %4036 = vmatmul.mubr.f32.gmra.mrb[0].mxu0 %v4035
    %v4037 = vpop.f32.mrb[0].mxu0
    %v4038 = vadd.f32 %v3927, %v4037
    %v4039 = vpop.f32.mrb[0].mxu0
    %4040 = vdwg.mxu0
    %4041 = vmatprep.subr.mxu0 0.0
    %v4042 = vand.u32 %v804, 4294901760
    %4043 = vmatpush1.msra.mxu0 %v4042
    %4044 = vmatprep.subr.mxu0 0.0
    %v4045 = vand.u32 %v805, 4294901760
    %4046 = vmatpush1.msra.mxu0 %v4045
    %4047 = vmatprep.subr.mxu0 0.0
    %4048 = vmatpush1.msra.mxu0 0.0
    %4049 = vmatprep.subr.mxu0 0.0
    %4050 = vmatpush1.msra.mxu0 0.0
    %4051 = vmatprep.subr.mxu0 0.0
    %4052 = vmatpush1.msra.mxu0 0.0
    %4053 = vmatprep.subr.mxu0 0.0
    %4054 = vmatpush1.msra.mxu0 0.0
    %4055 = vmatprep.subr.mxu0 0.0
    %4056 = vmatpush1.msra.mxu0 0.0
    %4057 = vmatprep.subr.mxu0 0.0
    %4058 = vmatpush1.msra.mxu0 0.0
    %4059 = vmatprep.subr.mxu0 0.0
    %4060 = vmatpush1.msra.mxu0 0.0
    %4061 = vmatprep.subr.mxu0 0.0
    %4062 = vmatpush1.msra.mxu0 0.0
    %4063 = vmatprep.subr.mxu0 0.0
    %4064 = vmatpush1.msra.mxu0 0.0
    %4065 = vmatprep.subr.mxu0 0.0
    %4066 = vmatpush1.msra.mxu0 0.0
    %4067 = vmatprep.subr.mxu0 0.0
    %4068 = vmatpush1.msra.mxu0 0.0
    %4069 = vmatprep.subr.mxu0 0.0
    %4070 = vmatpush1.msra.mxu0 0.0
    %4071 = vmatprep.subr.mxu0 0.0
    %4072 = vmatpush1.msra.mxu0 0.0
    %4073 = vmatprep.subr.mxu0 0.0
    %4074 = vmatpush1.msra.mxu0 0.0
    %4075 = vmatprep.subr.mxu0 0.0
    %4076 = vmatpush1.msra.mxu0 0.0
    %4077 = vmatprep.subr.mxu0 0.0
    %4078 = vmatpush1.msra.mxu0 0.0
    %4079 = vmatprep.subr.mxu0 0.0
    %4080 = vmatpush1.msra.mxu0 0.0
    %4081 = vmatprep.subr.mxu0 0.0
    %4082 = vmatpush1.msra.mxu0 0.0
    %4083 = vmatprep.subr.mxu0 0.0
    %4084 = vmatpush1.msra.mxu0 0.0
    %4085 = vmatprep.subr.mxu0 0.0
    %4086 = vmatpush1.msra.mxu0 0.0
    %4087 = vmatprep.subr.mxu0 0.0
    %4088 = vmatpush1.msra.mxu0 0.0
    %4089 = vmatprep.subr.mxu0 0.0
    %4090 = vmatpush1.msra.mxu0 0.0
    %4091 = vmatprep.subr.mxu0 0.0
    %4092 = vmatpush1.msra.mxu0 0.0
    %4093 = vmatprep.subr.mxu0 0.0
    %4094 = vmatpush1.msra.mxu0 0.0
    %4095 = vmatprep.subr.mxu0 0.0
    %4096 = vmatpush1.msra.mxu0 0.0
    %4097 = vmatprep.subr.mxu0 0.0
    %4098 = vmatpush1.msra.mxu0 0.0
    %4099 = vmatprep.subr.mxu0 0.0
    %4100 = vmatpush1.msra.mxu0 0.0
    %4101 = vmatprep.subr.mxu0 0.0
    %4102 = vmatpush1.msra.mxu0 0.0
    %4103 = vmatprep.subr.mxu0 0.0
    %4104 = vmatpush1.msra.mxu0 0.0
    %4105 = vmatprep.subr.mxu0 0.0
    %4106 = vmatpush1.msra.mxu0 0.0
    %4107 = vmatprep.mubr.f32.mxu0 0.0
    %v4108 = vand.u32 %v3675, 4294901760
    %v4109 = vsub.f32 %v3675, %v4108
    %v4110 = vand.u32 %v4109, 4294901760
    %4111 = vmatmul.mubr.f32.gmra.mrb[0].mxu0 %v4110
    %v4112 = vpop.f32.mrb[0].mxu0
    %v4113 = vadd.f32 %v4003, %v4112
    %v4114 = vpop.f32.mrb[0].mxu0
    %4115 = vmatprep.mubr.f32.mxu0 0.0
    %v4116 = vand.u32 %v3678, 4294901760
    %v4117 = vsub.f32 %v3678, %v4116
    %v4118 = vand.u32 %v4117, 4294901760
    %4119 = vmatmul.mubr.f32.gmra.mrb[0].mxu0 %v4118
    %v4120 = vpop.f32.mrb[0].mxu0
    %v4121 = vadd.f32 %v4010, %v4120
    %v4122 = vpop.f32.mrb[0].mxu0
    %4123 = vmatprep.mubr.f32.mxu0 0.0
    %v4124 = vand.u32 %v3681, 4294901760
    %v4125 = vsub.f32 %v3681, %v4124
    %v4126 = vand.u32 %v4125, 4294901760
    %4127 = vmatmul.mubr.f32.gmra.mrb[0].mxu0 %v4126
    %v4128 = vpop.f32.mrb[0].mxu0
    %v4129 = vadd.f32 %v4017, %v4128
    %v4130 = vpop.f32.mrb[0].mxu0
    %4131 = vmatprep.mubr.f32.mxu0 0.0
    %v4132 = vand.u32 %v3684, 4294901760
    %v4133 = vsub.f32 %v3684, %v4132
    %v4134 = vand.u32 %v4133, 4294901760
    %4135 = vmatmul.mubr.f32.gmra.mrb[0].mxu0 %v4134
    %v4136 = vpop.f32.mrb[0].mxu0
    %v4137 = vadd.f32 %v4024, %v4136
    %v4138 = vpop.f32.mrb[0].mxu0
    %4139 = vmatprep.mubr.f32.mxu0 0.0
    %v4140 = vand.u32 %v3687, 4294901760
    %v4141 = vsub.f32 %v3687, %v4140
    %v4142 = vand.u32 %v4141, 4294901760
    %4143 = vmatmul.mubr.f32.gmra.mrb[0].mxu0 %v4142
    %v4144 = vpop.f32.mrb[0].mxu0
    %v4145 = vadd.f32 %v4031, %v4144
    %v4146 = vpop.f32.mrb[0].mxu0
    %4147 = vmatprep.mubr.f32.mxu0 0.0
    %v4148 = vand.u32 %v3690, 4294901760
    %v4149 = vsub.f32 %v3690, %v4148
    %v4150 = vand.u32 %v4149, 4294901760
    %4151 = vmatmul.mubr.f32.gmra.mrb[0].mxu0 %v4150
    %v4152 = vpop.f32.mrb[0].mxu0
    %v4153 = vadd.f32 %v4038, %v4152
    %v4154 = vpop.f32.mrb[0].mxu0
    %4155 = vdwg.mxu0
    %4156 = vmatprep.subr.mxu0 0.0
    %v4157 = vand.u32 %v804, 4294901760
    %v4158 = vsub.f32 %v804, %v4157
    %v4159 = vand.u32 %v4158, 4294901760
    %4160 = vmatpush1.msra.mxu0 %v4159
    %4161 = vmatprep.subr.mxu0 0.0
    %v4162 = vand.u32 %v805, 4294901760
    %v4163 = vsub.f32 %v805, %v4162
    %v4164 = vand.u32 %v4163, 4294901760
    %4165 = vmatpush1.msra.mxu0 %v4164
    %4166 = vmatprep.subr.mxu0 0.0
    %4167 = vmatpush1.msra.mxu0 0.0
    %4168 = vmatprep.subr.mxu0 0.0
    %4169 = vmatpush1.msra.mxu0 0.0
    %4170 = vmatprep.subr.mxu0 0.0
    %4171 = vmatpush1.msra.mxu0 0.0
    %4172 = vmatprep.subr.mxu0 0.0
    %4173 = vmatpush1.msra.mxu0 0.0
    %4174 = vmatprep.subr.mxu0 0.0
    %4175 = vmatpush1.msra.mxu0 0.0
    %4176 = vmatprep.subr.mxu0 0.0
    %4177 = vmatpush1.msra.mxu0 0.0
    %4178 = vmatprep.subr.mxu0 0.0
    %4179 = vmatpush1.msra.mxu0 0.0
    %4180 = vmatprep.subr.mxu0 0.0
    %4181 = vmatpush1.msra.mxu0 0.0
    %4182 = vmatprep.subr.mxu0 0.0
    %4183 = vmatpush1.msra.mxu0 0.0
    %4184 = vmatprep.subr.mxu0 0.0
    %4185 = vmatpush1.msra.mxu0 0.0
    %4186 = vmatprep.subr.mxu0 0.0
    %4187 = vmatpush1.msra.mxu0 0.0
    %4188 = vmatprep.subr.mxu0 0.0
    %4189 = vmatpush1.msra.mxu0 0.0
    %4190 = vmatprep.subr.mxu0 0.0
    %4191 = vmatpush1.msra.mxu0 0.0
    %4192 = vmatprep.subr.mxu0 0.0
    %4193 = vmatpush1.msra.mxu0 0.0
    %4194 = vmatprep.subr.mxu0 0.0
    %4195 = vmatpush1.msra.mxu0 0.0
    %4196 = vmatprep.subr.mxu0 0.0
    %4197 = vmatpush1.msra.mxu0 0.0
    %4198 = vmatprep.subr.mxu0 0.0
    %4199 = vmatpush1.msra.mxu0 0.0
    %4200 = vmatprep.subr.mxu0 0.0
    %4201 = vmatpush1.msra.mxu0 0.0
    %4202 = vmatprep.subr.mxu0 0.0
    %4203 = vmatpush1.msra.mxu0 0.0
    %4204 = vmatprep.subr.mxu0 0.0
    %4205 = vmatpush1.msra.mxu0 0.0
    %4206 = vmatprep.subr.mxu0 0.0
    %4207 = vmatpush1.msra.mxu0 0.0
    %4208 = vmatprep.subr.mxu0 0.0
    %4209 = vmatpush1.msra.mxu0 0.0
    %4210 = vmatprep.subr.mxu0 0.0
    %4211 = vmatpush1.msra.mxu0 0.0
    %4212 = vmatprep.subr.mxu0 0.0
    %4213 = vmatpush1.msra.mxu0 0.0
    %4214 = vmatprep.subr.mxu0 0.0
    %4215 = vmatpush1.msra.mxu0 0.0
    %4216 = vmatprep.subr.mxu0 0.0
    %4217 = vmatpush1.msra.mxu0 0.0
    %4218 = vmatprep.subr.mxu0 0.0
    %4219 = vmatpush1.msra.mxu0 0.0
    %4220 = vmatprep.subr.mxu0 0.0
    %4221 = vmatpush1.msra.mxu0 0.0
    %4222 = vmatprep.subr.mxu0 0.0
    %4223 = vmatpush1.msra.mxu0 0.0
    %4224 = vmatprep.subr.mxu0 0.0
    %4225 = vmatpush1.msra.mxu0 0.0
    %4226 = vmatprep.mubr.f32.mxu0 0.0
    %v4227 = vand.u32 %v3675, 4294901760
    %4228 = vmatmul.mubr.f32.gmra.mrb[0].mxu0 %v4227
    %v4229 = vpop.f32.mrb[0].mxu0
    %v4230 = vadd.f32 %v4113, %v4229
    %v4231 = vpop.f32.mrb[0].mxu0
    %4232 = vmatprep.mubr.f32.mxu0 0.0
    %v4233 = vand.u32 %v3678, 4294901760
    %4234 = vmatmul.mubr.f32.gmra.mrb[0].mxu0 %v4233
    %v4235 = vpop.f32.mrb[0].mxu0
    %v4236 = vadd.f32 %v4121, %v4235
    %v4237 = vpop.f32.mrb[0].mxu0
    %4238 = vmatprep.mubr.f32.mxu0 0.0
    %v4239 = vand.u32 %v3681, 4294901760
    %4240 = vmatmul.mubr.f32.gmra.mrb[0].mxu0 %v4239
    %v4241 = vpop.f32.mrb[0].mxu0
    %v4242 = vadd.f32 %v4129, %v4241
    %v4243 = vpop.f32.mrb[0].mxu0
    %4244 = vmatprep.mubr.f32.mxu0 0.0
    %v4245 = vand.u32 %v3684, 4294901760
    %4246 = vmatmul.mubr.f32.gmra.mrb[0].mxu0 %v4245
    %v4247 = vpop.f32.mrb[0].mxu0
    %v4248 = vadd.f32 %v4137, %v4247
    %v4249 = vpop.f32.mrb[0].mxu0
    %4250 = vmatprep.mubr.f32.mxu0 0.0
    %v4251 = vand.u32 %v3687, 4294901760
    %4252 = vmatmul.mubr.f32.gmra.mrb[0].mxu0 %v4251
    %v4253 = vpop.f32.mrb[0].mxu0
    %v4254 = vadd.f32 %v4145, %v4253
    %v4255 = vpop.f32.mrb[0].mxu0
    %4256 = vmatprep.mubr.f32.mxu0 0.0
    %v4257 = vand.u32 %v3690, 4294901760
    %4258 = vmatmul.mubr.f32.gmra.mrb[0].mxu0 %v4257
    %v4259 = vpop.f32.mrb[0].mxu0
    %v4260 = vadd.f32 %v4153, %v4259
    %v4261 = vpop.f32.mrb[0].mxu0
    %4262 = vdwg.mxu0
    %4263 = vmatprep.subr.mxu0 0.0
    %v4264 = vand.u32 %v804, 4294901760
    %4265 = vmatpush1.msra.mxu0 %v4264
    %4266 = vmatprep.subr.mxu0 0.0
    %v4267 = vand.u32 %v805, 4294901760
    %4268 = vmatpush1.msra.mxu0 %v4267
    %4269 = vmatprep.subr.mxu0 0.0
    %4270 = vmatpush1.msra.mxu0 0.0
    %4271 = vmatprep.subr.mxu0 0.0
    %4272 = vmatpush1.msra.mxu0 0.0
    %4273 = vmatprep.subr.mxu0 0.0
    %4274 = vmatpush1.msra.mxu0 0.0
    %4275 = vmatprep.subr.mxu0 0.0
    %4276 = vmatpush1.msra.mxu0 0.0
    %4277 = vmatprep.subr.mxu0 0.0
    %4278 = vmatpush1.msra.mxu0 0.0
    %4279 = vmatprep.subr.mxu0 0.0
    %4280 = vmatpush1.msra.mxu0 0.0
    %4281 = vmatprep.subr.mxu0 0.0
    %4282 = vmatpush1.msra.mxu0 0.0
    %4283 = vmatprep.subr.mxu0 0.0
    %4284 = vmatpush1.msra.mxu0 0.0
    %4285 = vmatprep.subr.mxu0 0.0
    %4286 = vmatpush1.msra.mxu0 0.0
    %4287 = vmatprep.subr.mxu0 0.0
    %4288 = vmatpush1.msra.mxu0 0.0
    %4289 = vmatprep.subr.mxu0 0.0
    %4290 = vmatpush1.msra.mxu0 0.0
    %4291 = vmatprep.subr.mxu0 0.0
    %4292 = vmatpush1.msra.mxu0 0.0
    %4293 = vmatprep.subr.mxu0 0.0
    %4294 = vmatpush1.msra.mxu0 0.0
    %4295 = vmatprep.subr.mxu0 0.0
    %4296 = vmatpush1.msra.mxu0 0.0
    %4297 = vmatprep.subr.mxu0 0.0
    %4298 = vmatpush1.msra.mxu0 0.0
    %4299 = vmatprep.subr.mxu0 0.0
    %4300 = vmatpush1.msra.mxu0 0.0
    %4301 = vmatprep.subr.mxu0 0.0
    %4302 = vmatpush1.msra.mxu0 0.0
    %4303 = vmatprep.subr.mxu0 0.0
    %4304 = vmatpush1.msra.mxu0 0.0
    %4305 = vmatprep.subr.mxu0 0.0
    %4306 = vmatpush1.msra.mxu0 0.0
    %4307 = vmatprep.subr.mxu0 0.0
    %4308 = vmatpush1.msra.mxu0 0.0
    %4309 = vmatprep.subr.mxu0 0.0
    %4310 = vmatpush1.msra.mxu0 0.0
    %4311 = vmatprep.subr.mxu0 0.0
    %4312 = vmatpush1.msra.mxu0 0.0
    %4313 = vmatprep.subr.mxu0 0.0
    %4314 = vmatpush1.msra.mxu0 0.0
    %4315 = vmatprep.subr.mxu0 0.0
    %4316 = vmatpush1.msra.mxu0 0.0
    %4317 = vmatprep.subr.mxu0 0.0
    %4318 = vmatpush1.msra.mxu0 0.0
    %4319 = vmatprep.subr.mxu0 0.0
    %4320 = vmatpush1.msra.mxu0 0.0
    %4321 = vmatprep.subr.mxu0 0.0
    %4322 = vmatpush1.msra.mxu0 0.0
    %4323 = vmatprep.subr.mxu0 0.0
    %4324 = vmatpush1.msra.mxu0 0.0
    %4325 = vmatprep.subr.mxu0 0.0
    %4326 = vmatpush1.msra.mxu0 0.0
    %4327 = vmatprep.subr.mxu0 0.0
    %4328 = vmatpush1.msra.mxu0 0.0
    %4329 = vmatprep.mubr.f32.mxu0 0.0
    %v4330 = vand.u32 %v3675, 4294901760
    %4331 = vmatmul.mubr.f32.gmra.mrb[0].mxu0 %v4330
    %v4332 = vpop.f32.mrb[0].mxu0
    %v4333 = vadd.f32 %v4230, %v4332
    %v4334 = vpop.f32.mrb[0].mxu0
    %4335 = vmatprep.mubr.f32.mxu0 0.0
    %v4336 = vand.u32 %v3678, 4294901760
    %4337 = vmatmul.mubr.f32.gmra.mrb[0].mxu0 %v4336
    %v4338 = vpop.f32.mrb[0].mxu0
    %v4339 = vadd.f32 %v4236, %v4338
    %v4340 = vpop.f32.mrb[0].mxu0
    %4341 = vmatprep.mubr.f32.mxu0 0.0
    %v4342 = vand.u32 %v3681, 4294901760
    %4343 = vmatmul.mubr.f32.gmra.mrb[0].mxu0 %v4342
    %v4344 = vpop.f32.mrb[0].mxu0
    %v4345 = vadd.f32 %v4242, %v4344
    %v4346 = vpop.f32.mrb[0].mxu0
    %4347 = vmatprep.mubr.f32.mxu0 0.0
    %v4348 = vand.u32 %v3684, 4294901760
    %4349 = vmatmul.mubr.f32.gmra.mrb[0].mxu0 %v4348
    %v4350 = vpop.f32.mrb[0].mxu0
    %v4351 = vadd.f32 %v4248, %v4350
    %v4352 = vpop.f32.mrb[0].mxu0
    %4353 = vmatprep.mubr.f32.mxu0 0.0
    %v4354 = vand.u32 %v3687, 4294901760
    %4355 = vmatmul.mubr.f32.gmra.mrb[0].mxu0 %v4354
    %v4356 = vpop.f32.mrb[0].mxu0
    %v4357 = vadd.f32 %v4254, %v4356
    %v4358 = vpop.f32.mrb[0].mxu0
    %4359 = vmatprep.mubr.f32.mxu0 0.0
    %v4360 = vand.u32 %v3690, 4294901760
    %4361 = vmatmul.mubr.f32.gmra.mrb[0].mxu0 %v4360
    %v4362 = vpop.f32.mrb[0].mxu0
    %v4363 = vadd.f32 %v4260, %v4362
    %v4364 = vpop.f32.mrb[0].mxu0
    %4365 = vdwg.mxu0
    %v4366 = vld [vmem:[%s3 + $0x30] sm:$0xff]
    %v4367 = vld [vmem:[%s3 + $0x38] sm:$0xff]
    %v4368 = vld [vmem:[%s3 + $0x40] sm:$0xff]
    %v4369 = vld [vmem:[%s3 + $0x48] sm:$0xff]
    %v4371 = vsel %vm63, %v4333, 0
    %v4374 = vsel %vm63, %v4339, 0
    %4376 = vmatprep.subr.mxu0 0.0
    %v4377 = vand.u32 %v4366, 4294901760
    %4378 = vmatpush1.msra.mxu0 %v4377
    %4379 = vmatprep.subr.mxu0 0.0
    %v4380 = vand.u32 %v4367, 4294901760
    %4381 = vmatpush1.msra.mxu0 %v4380
    %4382 = vmatprep.subr.mxu0 0.0
    %v4383 = vand.u32 %v4368, 4294901760
    %4384 = vmatpush1.msra.mxu0 %v4383
    %4385 = vmatprep.subr.mxu0 0.0
    %v4386 = vand.u32 %v4369, 4294901760
    %4387 = vmatpush1.msra.mxu0 %v4386
    %4388 = vmatprep.subr.mxu0 0.0
    %4389 = vmatpush1.msra.mxu0 0.0
    %4390 = vmatprep.subr.mxu0 0.0
    %4391 = vmatpush1.msra.mxu0 0.0
    %4392 = vmatprep.subr.mxu0 0.0
    %4393 = vmatpush1.msra.mxu0 0.0
    %4394 = vmatprep.subr.mxu0 0.0
    %4395 = vmatpush1.msra.mxu0 0.0
    %4396 = vmatprep.subr.mxu0 0.0
    %4397 = vmatpush1.msra.mxu0 0.0
    %4398 = vmatprep.subr.mxu0 0.0
    %4399 = vmatpush1.msra.mxu0 0.0
    %4400 = vmatprep.subr.mxu0 0.0
    %4401 = vmatpush1.msra.mxu0 0.0
    %4402 = vmatprep.subr.mxu0 0.0
    %4403 = vmatpush1.msra.mxu0 0.0
    %4404 = vmatprep.subr.mxu0 0.0
    %4405 = vmatpush1.msra.mxu0 0.0
    %4406 = vmatprep.subr.mxu0 0.0
    %4407 = vmatpush1.msra.mxu0 0.0
    %4408 = vmatprep.subr.mxu0 0.0
    %4409 = vmatpush1.msra.mxu0 0.0
    %4410 = vmatprep.subr.mxu0 0.0
    %4411 = vmatpush1.msra.mxu0 0.0
    %4412 = vmatprep.subr.mxu0 0.0
    %4413 = vmatpush1.msra.mxu0 0.0
    %4414 = vmatprep.subr.mxu0 0.0
    %4415 = vmatpush1.msra.mxu0 0.0
    %4416 = vmatprep.subr.mxu0 0.0
    %4417 = vmatpush1.msra.mxu0 0.0
    %4418 = vmatprep.subr.mxu0 0.0
    %4419 = vmatpush1.msra.mxu0 0.0
    %4420 = vmatprep.subr.mxu0 0.0
    %4421 = vmatpush1.msra.mxu0 0.0
    %4422 = vmatprep.subr.mxu0 0.0
    %4423 = vmatpush1.msra.mxu0 0.0
    %4424 = vmatprep.subr.mxu0 0.0
    %4425 = vmatpush1.msra.mxu0 0.0
    %4426 = vmatprep.subr.mxu0 0.0
    %4427 = vmatpush1.msra.mxu0 0.0
    %4428 = vmatprep.subr.mxu0 0.0
    %4429 = vmatpush1.msra.mxu0 0.0
    %4430 = vmatprep.subr.mxu0 0.0
    %4431 = vmatpush1.msra.mxu0 0.0
    %4432 = vmatprep.subr.mxu0 0.0
    %4433 = vmatpush1.msra.mxu0 0.0
    %4434 = vmatprep.subr.mxu0 0.0
    %4435 = vmatpush1.msra.mxu0 0.0
    %4436 = vmatprep.subr.mxu0 0.0
    %4437 = vmatpush1.msra.mxu0 0.0
    %4438 = vmatprep.subr.mxu0 0.0
    %4439 = vmatpush1.msra.mxu0 0.0
    %4440 = vmatprep.subr.mxu0 0.0
    %4441 = vmatpush1.msra.mxu0 0.0
    %4442 = vmatprep.subr.mxu0 0.0
    %4443 = vmatpush1.msra.mxu0 0.0
    %4444 = vmatprep.mubr.f32.mxu0 0.0
    %v4445 = vand.u32 %v4371, 4294901760
    %v4446 = vsub.f32 %v4371, %v4445
    %v4447 = vand.u32 %v4446, 4294901760
    %v4448 = vsub.f32 %v4446, %v4447
    %v4449 = vand.u32 %v4448, 4294901760
    %4450 = vmatmul.mubr.f32.gmra.mrb[0].mxu0 %v4449
    %v4451 = vpop.f32.mrb[0].mxu0
    %v4452 = vadd.f32 0.0, %v4451
    %v4453 = vpop.f32.mrb[0].mxu0
    %4454 = vmatprep.mubr.f32.mxu0 0.0
    %v4455 = vand.u32 %v4374, 4294901760
    %v4456 = vsub.f32 %v4374, %v4455
    %v4457 = vand.u32 %v4456, 4294901760
    %v4458 = vsub.f32 %v4456, %v4457
    %v4459 = vand.u32 %v4458, 4294901760
    %4460 = vmatmul.mubr.f32.gmra.mrb[0].mxu0 %v4459
    %v4461 = vpop.f32.mrb[0].mxu0
    %v4462 = vadd.f32 0.0, %v4461
    %v4463 = vpop.f32.mrb[0].mxu0
    %4464 = vdwg.mxu0
    %4465 = vmatprep.subr.mxu0 0.0
    %v4466 = vand.u32 %v4366, 4294901760
    %v4467 = vsub.f32 %v4366, %v4466
    %v4468 = vand.u32 %v4467, 4294901760
    %v4469 = vsub.f32 %v4467, %v4468
    %v4470 = vand.u32 %v4469, 4294901760
    %4471 = vmatpush1.msra.mxu0 %v4470
    %4472 = vmatprep.subr.mxu0 0.0
    %v4473 = vand.u32 %v4367, 4294901760
    %v4474 = vsub.f32 %v4367, %v4473
    %v4475 = vand.u32 %v4474, 4294901760
    %v4476 = vsub.f32 %v4474, %v4475
    %v4477 = vand.u32 %v4476, 4294901760
    %4478 = vmatpush1.msra.mxu0 %v4477
    %4479 = vmatprep.subr.mxu0 0.0
    %v4480 = vand.u32 %v4368, 4294901760
    %v4481 = vsub.f32 %v4368, %v4480
    %v4482 = vand.u32 %v4481, 4294901760
    %v4483 = vsub.f32 %v4481, %v4482
    %v4484 = vand.u32 %v4483, 4294901760
    %4485 = vmatpush1.msra.mxu0 %v4484
    %4486 = vmatprep.subr.mxu0 0.0
    %v4487 = vand.u32 %v4369, 4294901760
    %v4488 = vsub.f32 %v4369, %v4487
    %v4489 = vand.u32 %v4488, 4294901760
    %v4490 = vsub.f32 %v4488, %v4489
    %v4491 = vand.u32 %v4490, 4294901760
    %4492 = vmatpush1.msra.mxu0 %v4491
    %4493 = vmatprep.subr.mxu0 0.0
    %4494 = vmatpush1.msra.mxu0 0.0
    %4495 = vmatprep.subr.mxu0 0.0
    %4496 = vmatpush1.msra.mxu0 0.0
    %4497 = vmatprep.subr.mxu0 0.0
    %4498 = vmatpush1.msra.mxu0 0.0
    %4499 = vmatprep.subr.mxu0 0.0
    %4500 = vmatpush1.msra.mxu0 0.0
    %4501 = vmatprep.subr.mxu0 0.0
    %4502 = vmatpush1.msra.mxu0 0.0
    %4503 = vmatprep.subr.mxu0 0.0
    %4504 = vmatpush1.msra.mxu0 0.0
    %4505 = vmatprep.subr.mxu0 0.0
    %4506 = vmatpush1.msra.mxu0 0.0
    %4507 = vmatprep.subr.mxu0 0.0
    %4508 = vmatpush1.msra.mxu0 0.0
    %4509 = vmatprep.subr.mxu0 0.0
    %4510 = vmatpush1.msra.mxu0 0.0
    %4511 = vmatprep.subr.mxu0 0.0
    %4512 = vmatpush1.msra.mxu0 0.0
    %4513 = vmatprep.subr.mxu0 0.0
    %4514 = vmatpush1.msra.mxu0 0.0
    %4515 = vmatprep.subr.mxu0 0.0
    %4516 = vmatpush1.msra.mxu0 0.0
    %4517 = vmatprep.subr.mxu0 0.0
    %4518 = vmatpush1.msra.mxu0 0.0
    %4519 = vmatprep.subr.mxu0 0.0
    %4520 = vmatpush1.msra.mxu0 0.0
    %4521 = vmatprep.subr.mxu0 0.0
    %4522 = vmatpush1.msra.mxu0 0.0
    %4523 = vmatprep.subr.mxu0 0.0
    %4524 = vmatpush1.msra.mxu0 0.0
    %4525 = vmatprep.subr.mxu0 0.0
    %4526 = vmatpush1.msra.mxu0 0.0
    %4527 = vmatprep.subr.mxu0 0.0
    %4528 = vmatpush1.msra.mxu0 0.0
    %4529 = vmatprep.subr.mxu0 0.0
    %4530 = vmatpush1.msra.mxu0 0.0
    %4531 = vmatprep.subr.mxu0 0.0
    %4532 = vmatpush1.msra.mxu0 0.0
    %4533 = vmatprep.subr.mxu0 0.0
    %4534 = vmatpush1.msra.mxu0 0.0
    %4535 = vmatprep.subr.mxu0 0.0
    %4536 = vmatpush1.msra.mxu0 0.0
    %4537 = vmatprep.subr.mxu0 0.0
    %4538 = vmatpush1.msra.mxu0 0.0
    %4539 = vmatprep.subr.mxu0 0.0
    %4540 = vmatpush1.msra.mxu0 0.0
    %4541 = vmatprep.subr.mxu0 0.0
    %4542 = vmatpush1.msra.mxu0 0.0
    %4543 = vmatprep.subr.mxu0 0.0
    %4544 = vmatpush1.msra.mxu0 0.0
    %4545 = vmatprep.subr.mxu0 0.0
    %4546 = vmatpush1.msra.mxu0 0.0
    %4547 = vmatprep.subr.mxu0 0.0
    %4548 = vmatpush1.msra.mxu0 0.0
    %4549 = vmatprep.mubr.f32.mxu0 0.0
    %v4550 = vand.u32 %v4371, 4294901760
    %4551 = vmatmul.mubr.f32.gmra.mrb[0].mxu0 %v4550
    %v4552 = vpop.f32.mrb[0].mxu0
    %v4553 = vadd.f32 %v4452, %v4552
    %v4554 = vpop.f32.mrb[0].mxu0
    %4555 = vmatprep.mubr.f32.mxu0 0.0
    %v4556 = vand.u32 %v4374, 4294901760
    %4557 = vmatmul.mubr.f32.gmra.mrb[0].mxu0 %v4556
    %v4558 = vpop.f32.mrb[0].mxu0
    %v4559 = vadd.f32 %v4462, %v4558
    %v4560 = vpop.f32.mrb[0].mxu0
    %4561 = vdwg.mxu0
    %4562 = vmatprep.subr.mxu0 0.0
    %v4563 = vand.u32 %v4366, 4294901760
    %v4564 = vsub.f32 %v4366, %v4563
    %4565 = vmatpush1.msra.mxu0 %v4564
    %4566 = vmatprep.subr.mxu0 0.0
    %v4567 = vand.u32 %v4367, 4294901760
    %v4568 = vsub.f32 %v4367, %v4567
    %4569 = vmatpush1.msra.mxu0 %v4568
    %4570 = vmatprep.subr.mxu0 0.0
    %v4571 = vand.u32 %v4368, 4294901760
    %v4572 = vsub.f32 %v4368, %v4571
    %4573 = vmatpush1.msra.mxu0 %v4572
    %4574 = vmatprep.subr.mxu0 0.0
    %v4575 = vand.u32 %v4369, 4294901760
    %v4576 = vsub.f32 %v4369, %v4575
    %4577 = vmatpush1.msra.mxu0 %v4576
    %4578 = vmatprep.subr.mxu0 0.0
    %4579 = vmatpush1.msra.mxu0 0.0
    %4580 = vmatprep.subr.mxu0 0.0
    %4581 = vmatpush1.msra.mxu0 0.0
    %4582 = vmatprep.subr.mxu0 0.0
    %4583 = vmatpush1.msra.mxu0 0.0
    %4584 = vmatprep.subr.mxu0 0.0
    %4585 = vmatpush1.msra.mxu0 0.0
    %4586 = vmatprep.subr.mxu0 0.0
    %4587 = vmatpush1.msra.mxu0 0.0
    %4588 = vmatprep.subr.mxu0 0.0
    %4589 = vmatpush1.msra.mxu0 0.0
    %4590 = vmatprep.subr.mxu0 0.0
    %4591 = vmatpush1.msra.mxu0 0.0
    %4592 = vmatprep.subr.mxu0 0.0
    %4593 = vmatpush1.msra.mxu0 0.0
    %4594 = vmatprep.subr.mxu0 0.0
    %4595 = vmatpush1.msra.mxu0 0.0
    %4596 = vmatprep.subr.mxu0 0.0
    %4597 = vmatpush1.msra.mxu0 0.0
    %4598 = vmatprep.subr.mxu0 0.0
    %4599 = vmatpush1.msra.mxu0 0.0
    %4600 = vmatprep.subr.mxu0 0.0
    %4601 = vmatpush1.msra.mxu0 0.0
    %4602 = vmatprep.subr.mxu0 0.0
    %4603 = vmatpush1.msra.mxu0 0.0
    %4604 = vmatprep.subr.mxu0 0.0
    %4605 = vmatpush1.msra.mxu0 0.0
    %4606 = vmatprep.subr.mxu0 0.0
    %4607 = vmatpush1.msra.mxu0 0.0
    %4608 = vmatprep.subr.mxu0 0.0
    %4609 = vmatpush1.msra.mxu0 0.0
    %4610 = vmatprep.subr.mxu0 0.0
    %4611 = vmatpush1.msra.mxu0 0.0
    %4612 = vmatprep.subr.mxu0 0.0
    %4613 = vmatpush1.msra.mxu0 0.0
    %4614 = vmatprep.subr.mxu0 0.0
    %4615 = vmatpush1.msra.mxu0 0.0
    %4616 = vmatprep.subr.mxu0 0.0
    %4617 = vmatpush1.msra.mxu0 0.0
    %4618 = vmatprep.subr.mxu0 0.0
    %4619 = vmatpush1.msra.mxu0 0.0
    %4620 = vmatprep.subr.mxu0 0.0
    %4621 = vmatpush1.msra.mxu0 0.0
    %4622 = vmatprep.subr.mxu0 0.0
    %4623 = vmatpush1.msra.mxu0 0.0
    %4624 = vmatprep.subr.mxu0 0.0
    %4625 = vmatpush1.msra.mxu0 0.0
    %4626 = vmatprep.subr.mxu0 0.0
    %4627 = vmatpush1.msra.mxu0 0.0
    %4628 = vmatprep.subr.mxu0 0.0
    %4629 = vmatpush1.msra.mxu0 0.0
    %4630 = vmatprep.subr.mxu0 0.0
    %4631 = vmatpush1.msra.mxu0 0.0
    %4632 = vmatprep.subr.mxu0 0.0
    %4633 = vmatpush1.msra.mxu0 0.0
    %4634 = vmatprep.mubr.f32.mxu0 0.0
    %v4635 = vand.u32 %v4371, 4294901760
    %v4636 = vsub.f32 %v4371, %v4635
    %4637 = vmatmul.mubr.f32.gmra.mrb[0].mxu0 %v4636
    %v4638 = vpop.f32.mrb[0].mxu0
    %v4639 = vadd.f32 %v4553, %v4638
    %v4640 = vpop.f32.mrb[0].mxu0
    %4641 = vmatprep.mubr.f32.mxu0 0.0
    %v4642 = vand.u32 %v4374, 4294901760
    %v4643 = vsub.f32 %v4374, %v4642
    %4644 = vmatmul.mubr.f32.gmra.mrb[0].mxu0 %v4643
    %v4645 = vpop.f32.mrb[0].mxu0
    %v4646 = vadd.f32 %v4559, %v4645
    %v4647 = vpop.f32.mrb[0].mxu0
    %4648 = vdwg.mxu0
    %4649 = vmatprep.subr.mxu0 0.0
    %v4650 = vand.u32 %v4366, 4294901760
    %4651 = vmatpush1.msra.mxu0 %v4650
    %4652 = vmatprep.subr.mxu0 0.0
    %v4653 = vand.u32 %v4367, 4294901760
    %4654 = vmatpush1.msra.mxu0 %v4653
    %4655 = vmatprep.subr.mxu0 0.0
    %v4656 = vand.u32 %v4368, 4294901760
    %4657 = vmatpush1.msra.mxu0 %v4656
    %4658 = vmatprep.subr.mxu0 0.0
    %v4659 = vand.u32 %v4369, 4294901760
    %4660 = vmatpush1.msra.mxu0 %v4659
    %4661 = vmatprep.subr.mxu0 0.0
    %4662 = vmatpush1.msra.mxu0 0.0
    %4663 = vmatprep.subr.mxu0 0.0
    %4664 = vmatpush1.msra.mxu0 0.0
    %4665 = vmatprep.subr.mxu0 0.0
    %4666 = vmatpush1.msra.mxu0 0.0
    %4667 = vmatprep.subr.mxu0 0.0
    %4668 = vmatpush1.msra.mxu0 0.0
    %4669 = vmatprep.subr.mxu0 0.0
    %4670 = vmatpush1.msra.mxu0 0.0
    %4671 = vmatprep.subr.mxu0 0.0
    %4672 = vmatpush1.msra.mxu0 0.0
    %4673 = vmatprep.subr.mxu0 0.0
    %4674 = vmatpush1.msra.mxu0 0.0
    %4675 = vmatprep.subr.mxu0 0.0
    %4676 = vmatpush1.msra.mxu0 0.0
    %4677 = vmatprep.subr.mxu0 0.0
    %4678 = vmatpush1.msra.mxu0 0.0
    %4679 = vmatprep.subr.mxu0 0.0
    %4680 = vmatpush1.msra.mxu0 0.0
    %4681 = vmatprep.subr.mxu0 0.0
    %4682 = vmatpush1.msra.mxu0 0.0
    %4683 = vmatprep.subr.mxu0 0.0
    %4684 = vmatpush1.msra.mxu0 0.0
    %4685 = vmatprep.subr.mxu0 0.0
    %4686 = vmatpush1.msra.mxu0 0.0
    %4687 = vmatprep.subr.mxu0 0.0
    %4688 = vmatpush1.msra.mxu0 0.0
    %4689 = vmatprep.subr.mxu0 0.0
    %4690 = vmatpush1.msra.mxu0 0.0
    %4691 = vmatprep.subr.mxu0 0.0
    %4692 = vmatpush1.msra.mxu0 0.0
    %4693 = vmatprep.subr.mxu0 0.0
    %4694 = vmatpush1.msra.mxu0 0.0
    %4695 = vmatprep.subr.mxu0 0.0
    %4696 = vmatpush1.msra.mxu0 0.0
    %4697 = vmatprep.subr.mxu0 0.0
    %4698 = vmatpush1.msra.mxu0 0.0
    %4699 = vmatprep.subr.mxu0 0.0
    %4700 = vmatpush1.msra.mxu0 0.0
    %4701 = vmatprep.subr.mxu0 0.0
    %4702 = vmatpush1.msra.mxu0 0.0
    %4703 = vmatprep.subr.mxu0 0.0
    %4704 = vmatpush1.msra.mxu0 0.0
    %4705 = vmatprep.subr.mxu0 0.0
    %4706 = vmatpush1.msra.mxu0 0.0
    %4707 = vmatprep.subr.mxu0 0.0
    %4708 = vmatpush1.msra.mxu0 0.0
    %4709 = vmatprep.subr.mxu0 0.0
    %4710 = vmatpush1.msra.mxu0 0.0
    %4711 = vmatprep.subr.mxu0 0.0
    %4712 = vmatpush1.msra.mxu0 0.0
    %4713 = vmatprep.subr.mxu0 0.0
    %4714 = vmatpush1.msra.mxu0 0.0
    %4715 = vmatprep.subr.mxu0 0.0
    %4716 = vmatpush1.msra.mxu0 0.0
    %4717 = vmatprep.mubr.f32.mxu0 0.0
    %v4718 = vand.u32 %v4371, 4294901760
    %v4719 = vsub.f32 %v4371, %v4718
    %v4720 = vand.u32 %v4719, 4294901760
    %4721 = vmatmul.mubr.f32.gmra.mrb[0].mxu0 %v4720
    %v4722 = vpop.f32.mrb[0].mxu0
    %v4723 = vadd.f32 %v4639, %v4722
    %v4724 = vpop.f32.mrb[0].mxu0
    %4725 = vmatprep.mubr.f32.mxu0 0.0
    %v4726 = vand.u32 %v4374, 4294901760
    %v4727 = vsub.f32 %v4374, %v4726
    %v4728 = vand.u32 %v4727, 4294901760
    %4729 = vmatmul.mubr.f32.gmra.mrb[0].mxu0 %v4728
    %v4730 = vpop.f32.mrb[0].mxu0
    %v4731 = vadd.f32 %v4646, %v4730
    %v4732 = vpop.f32.mrb[0].mxu0
    %4733 = vdwg.mxu0
    %4734 = vmatprep.subr.mxu0 0.0
    %v4735 = vand.u32 %v4366, 4294901760
    %v4736 = vsub.f32 %v4366, %v4735
    %v4737 = vand.u32 %v4736, 4294901760
    %4738 = vmatpush1.msra.mxu0 %v4737
    %4739 = vmatprep.subr.mxu0 0.0
    %v4740 = vand.u32 %v4367, 4294901760
    %v4741 = vsub.f32 %v4367, %v4740
    %v4742 = vand.u32 %v4741, 4294901760
    %4743 = vmatpush1.msra.mxu0 %v4742
    %4744 = vmatprep.subr.mxu0 0.0
    %v4745 = vand.u32 %v4368, 4294901760
    %v4746 = vsub.f32 %v4368, %v4745
    %v4747 = vand.u32 %v4746, 4294901760
    %4748 = vmatpush1.msra.mxu0 %v4747
    %4749 = vmatprep.subr.mxu0 0.0
    %v4750 = vand.u32 %v4369, 4294901760
    %v4751 = vsub.f32 %v4369, %v4750
    %v4752 = vand.u32 %v4751, 4294901760
    %4753 = vmatpush1.msra.mxu0 %v4752
    %4754 = vmatprep.subr.mxu0 0.0
    %4755 = vmatpush1.msra.mxu0 0.0
    %4756 = vmatprep.subr.mxu0 0.0
    %4757 = vmatpush1.msra.mxu0 0.0
    %4758 = vmatprep.subr.mxu0 0.0
    %4759 = vmatpush1.msra.mxu0 0.0
    %4760 = vmatprep.subr.mxu0 0.0
    %4761 = vmatpush1.msra.mxu0 0.0
    %4762 = vmatprep.subr.mxu0 0.0
    %4763 = vmatpush1.msra.mxu0 0.0
    %4764 = vmatprep.subr.mxu0 0.0
    %4765 = vmatpush1.msra.mxu0 0.0
    %4766 = vmatprep.subr.mxu0 0.0
    %4767 = vmatpush1.msra.mxu0 0.0
    %4768 = vmatprep.subr.mxu0 0.0
    %4769 = vmatpush1.msra.mxu0 0.0
    %4770 = vmatprep.subr.mxu0 0.0
    %4771 = vmatpush1.msra.mxu0 0.0
    %4772 = vmatprep.subr.mxu0 0.0
    %4773 = vmatpush1.msra.mxu0 0.0
    %4774 = vmatprep.subr.mxu0 0.0
    %4775 = vmatpush1.msra.mxu0 0.0
    %4776 = vmatprep.subr.mxu0 0.0
    %4777 = vmatpush1.msra.mxu0 0.0
    %4778 = vmatprep.subr.mxu0 0.0
    %4779 = vmatpush1.msra.mxu0 0.0
    %4780 = vmatprep.subr.mxu0 0.0
    %4781 = vmatpush1.msra.mxu0 0.0
    %4782 = vmatprep.subr.mxu0 0.0
    %4783 = vmatpush1.msra.mxu0 0.0
    %4784 = vmatprep.subr.mxu0 0.0
    %4785 = vmatpush1.msra.mxu0 0.0
    %4786 = vmatprep.subr.mxu0 0.0
    %4787 = vmatpush1.msra.mxu0 0.0
    %4788 = vmatprep.subr.mxu0 0.0
    %4789 = vmatpush1.msra.mxu0 0.0
    %4790 = vmatprep.subr.mxu0 0.0
    %4791 = vmatpush1.msra.mxu0 0.0
    %4792 = vmatprep.subr.mxu0 0.0
    %4793 = vmatpush1.msra.mxu0 0.0
    %4794 = vmatprep.subr.mxu0 0.0
    %4795 = vmatpush1.msra.mxu0 0.0
    %4796 = vmatprep.subr.mxu0 0.0
    %4797 = vmatpush1.msra.mxu0 0.0
    %4798 = vmatprep.subr.mxu0 0.0
    %4799 = vmatpush1.msra.mxu0 0.0
    %4800 = vmatprep.subr.mxu0 0.0
    %4801 = vmatpush1.msra.mxu0 0.0
    %4802 = vmatprep.subr.mxu0 0.0
    %4803 = vmatpush1.msra.mxu0 0.0
    %4804 = vmatprep.subr.mxu0 0.0
    %4805 = vmatpush1.msra.mxu0 0.0
    %4806 = vmatprep.subr.mxu0 0.0
    %4807 = vmatpush1.msra.mxu0 0.0
    %4808 = vmatprep.subr.mxu0 0.0
    %4809 = vmatpush1.msra.mxu0 0.0
    %4810 = vmatprep.mubr.f32.mxu0 0.0
    %v4811 = vand.u32 %v4371, 4294901760
    %4812 = vmatmul.mubr.f32.gmra.mrb[0].mxu0 %v4811
    %v4813 = vpop.f32.mrb[0].mxu0
    %v4814 = vadd.f32 %v4723, %v4813
    %v4815 = vpop.f32.mrb[0].mxu0
    %4816 = vmatprep.mubr.f32.mxu0 0.0
    %v4817 = vand.u32 %v4374, 4294901760
    %4818 = vmatmul.mubr.f32.gmra.mrb[0].mxu0 %v4817
    %v4819 = vpop.f32.mrb[0].mxu0
    %v4820 = vadd.f32 %v4731, %v4819
    %v4821 = vpop.f32.mrb[0].mxu0
    %4822 = vdwg.mxu0
    %4823 = vmatprep.subr.mxu0 0.0
    %v4824 = vand.u32 %v4366, 4294901760
    %4825 = vmatpush1.msra.mxu0 %v4824
    %4826 = vmatprep.subr.mxu0 0.0
    %v4827 = vand.u32 %v4367, 4294901760
    %4828 = vmatpush1.msra.mxu0 %v4827
    %4829 = vmatprep.subr.mxu0 0.0
    %v4830 = vand.u32 %v4368, 4294901760
    %4831 = vmatpush1.msra.mxu0 %v4830
    %4832 = vmatprep.subr.mxu0 0.0
    %v4833 = vand.u32 %v4369, 4294901760
    %4834 = vmatpush1.msra.mxu0 %v4833
    %4835 = vmatprep.subr.mxu0 0.0
    %4836 = vmatpush1.msra.mxu0 0.0
    %4837 = vmatprep.subr.mxu0 0.0
    %4838 = vmatpush1.msra.mxu0 0.0
    %4839 = vmatprep.subr.mxu0 0.0
    %4840 = vmatpush1.msra.mxu0 0.0
    %4841 = vmatprep.subr.mxu0 0.0
    %4842 = vmatpush1.msra.mxu0 0.0
    %4843 = vmatprep.subr.mxu0 0.0
    %4844 = vmatpush1.msra.mxu0 0.0
    %4845 = vmatprep.subr.mxu0 0.0
    %4846 = vmatpush1.msra.mxu0 0.0
    %4847 = vmatprep.subr.mxu0 0.0
    %4848 = vmatpush1.msra.mxu0 0.0
    %4849 = vmatprep.subr.mxu0 0.0
    %4850 = vmatpush1.msra.mxu0 0.0
    %4851 = vmatprep.subr.mxu0 0.0
    %4852 = vmatpush1.msra.mxu0 0.0
    %4853 = vmatprep.subr.mxu0 0.0
    %4854 = vmatpush1.msra.mxu0 0.0
    %4855 = vmatprep.subr.mxu0 0.0
    %4856 = vmatpush1.msra.mxu0 0.0
    %4857 = vmatprep.subr.mxu0 0.0
    %4858 = vmatpush1.msra.mxu0 0.0
    %4859 = vmatprep.subr.mxu0 0.0
    %4860 = vmatpush1.msra.mxu0 0.0
    %4861 = vmatprep.subr.mxu0 0.0
    %4862 = vmatpush1.msra.mxu0 0.0
    %4863 = vmatprep.subr.mxu0 0.0
    %4864 = vmatpush1.msra.mxu0 0.0
    %4865 = vmatprep.subr.mxu0 0.0
    %4866 = vmatpush1.msra.mxu0 0.0
    %4867 = vmatprep.subr.mxu0 0.0
    %4868 = vmatpush1.msra.mxu0 0.0
    %4869 = vmatprep.subr.mxu0 0.0
    %4870 = vmatpush1.msra.mxu0 0.0
    %4871 = vmatprep.subr.mxu0 0.0
    %4872 = vmatpush1.msra.mxu0 0.0
    %4873 = vmatprep.subr.mxu0 0.0
    %4874 = vmatpush1.msra.mxu0 0.0
    %4875 = vmatprep.subr.mxu0 0.0
    %4876 = vmatpush1.msra.mxu0 0.0
    %4877 = vmatprep.subr.mxu0 0.0
    %4878 = vmatpush1.msra.mxu0 0.0
    %4879 = vmatprep.subr.mxu0 0.0
    %4880 = vmatpush1.msra.mxu0 0.0
    %4881 = vmatprep.subr.mxu0 0.0
    %4882 = vmatpush1.msra.mxu0 0.0
    %4883 = vmatprep.subr.mxu0 0.0
    %4884 = vmatpush1.msra.mxu0 0.0
    %4885 = vmatprep.subr.mxu0 0.0
    %4886 = vmatpush1.msra.mxu0 0.0
    %4887 = vmatprep.subr.mxu0 0.0
    %4888 = vmatpush1.msra.mxu0 0.0
    %4889 = vmatprep.subr.mxu0 0.0
    %4890 = vmatpush1.msra.mxu0 0.0
    %4891 = vmatprep.mubr.f32.mxu0 0.0
    %v4892 = vand.u32 %v4371, 4294901760
    %4893 = vmatmul.mubr.f32.gmra.mrb[0].mxu0 %v4892
    %v4894 = vpop.f32.mrb[0].mxu0
    %v4895 = vadd.f32 %v4814, %v4894
    %v4896 = vpop.f32.mrb[0].mxu0
    %4897 = vmatprep.mubr.f32.mxu0 0.0
    %v4898 = vand.u32 %v4374, 4294901760
    %4899 = vmatmul.mubr.f32.gmra.mrb[0].mxu0 %v4898
    %v4900 = vpop.f32.mrb[0].mxu0
    %v4901 = vadd.f32 %v4820, %v4900
    %v4902 = vpop.f32.mrb[0].mxu0
    %4903 = vdwg.mxu0
    %v4905 = vsel %vm63, %v804, 0
    %v4908 = vsel %vm63, %v805, 0
    %4910 = vmatprep.subr.mxu0 0.0
    %v4911 = vand.u32 %v806, 4294901760
    %4912 = vmatpush1.msra.mxu0 %v4911
    %4913 = vmatprep.subr.mxu0 0.0
    %v4914 = vand.u32 %v807, 4294901760
    %4915 = vmatpush1.msra.mxu0 %v4914
    %4916 = vmatprep.subr.mxu0 0.0
    %v4917 = vand.u32 %v808, 4294901760
    %4918 = vmatpush1.msra.mxu0 %v4917
    %4919 = vmatprep.subr.mxu0 0.0
    %v4920 = vand.u32 %v809, 4294901760
    %4921 = vmatpush1.msra.mxu0 %v4920
    %4922 = vmatprep.subr.mxu0 0.0
    %4923 = vmatpush1.msra.mxu0 0.0
    %4924 = vmatprep.subr.mxu0 0.0
    %4925 = vmatpush1.msra.mxu0 0.0
    %4926 = vmatprep.subr.mxu0 0.0
    %4927 = vmatpush1.msra.mxu0 0.0
    %4928 = vmatprep.subr.mxu0 0.0
    %4929 = vmatpush1.msra.mxu0 0.0
    %4930 = vmatprep.subr.mxu0 0.0
    %4931 = vmatpush1.msra.mxu0 0.0
    %4932 = vmatprep.subr.mxu0 0.0
    %4933 = vmatpush1.msra.mxu0 0.0
    %4934 = vmatprep.subr.mxu0 0.0
    %4935 = vmatpush1.msra.mxu0 0.0
    %4936 = vmatprep.subr.mxu0 0.0
    %4937 = vmatpush1.msra.mxu0 0.0
    %4938 = vmatprep.subr.mxu0 0.0
    %4939 = vmatpush1.msra.mxu0 0.0
    %4940 = vmatprep.subr.mxu0 0.0
    %4941 = vmatpush1.msra.mxu0 0.0
    %4942 = vmatprep.subr.mxu0 0.0
    %4943 = vmatpush1.msra.mxu0 0.0
    %4944 = vmatprep.subr.mxu0 0.0
    %4945 = vmatpush1.msra.mxu0 0.0
    %4946 = vmatprep.subr.mxu0 0.0
    %4947 = vmatpush1.msra.mxu0 0.0
    %4948 = vmatprep.subr.mxu0 0.0
    %4949 = vmatpush1.msra.mxu0 0.0
    %4950 = vmatprep.subr.mxu0 0.0
    %4951 = vmatpush1.msra.mxu0 0.0
    %4952 = vmatprep.subr.mxu0 0.0
    %4953 = vmatpush1.msra.mxu0 0.0
    %4954 = vmatprep.subr.mxu0 0.0
    %4955 = vmatpush1.msra.mxu0 0.0
    %4956 = vmatprep.subr.mxu0 0.0
    %4957 = vmatpush1.msra.mxu0 0.0
    %4958 = vmatprep.subr.mxu0 0.0
    %4959 = vmatpush1.msra.mxu0 0.0
    %4960 = vmatprep.subr.mxu0 0.0
    %4961 = vmatpush1.msra.mxu0 0.0
    %4962 = vmatprep.subr.mxu0 0.0
    %4963 = vmatpush1.msra.mxu0 0.0
    %4964 = vmatprep.subr.mxu0 0.0
    %4965 = vmatpush1.msra.mxu0 0.0
    %4966 = vmatprep.subr.mxu0 0.0
    %4967 = vmatpush1.msra.mxu0 0.0
    %4968 = vmatprep.subr.mxu0 0.0
    %4969 = vmatpush1.msra.mxu0 0.0
    %4970 = vmatprep.subr.mxu0 0.0
    %4971 = vmatpush1.msra.mxu0 0.0
    %4972 = vmatprep.subr.mxu0 0.0
    %4973 = vmatpush1.msra.mxu0 0.0
    %4974 = vmatprep.subr.mxu0 0.0
    %4975 = vmatpush1.msra.mxu0 0.0
    %4976 = vmatprep.subr.mxu0 0.0
    %4977 = vmatpush1.msra.mxu0 0.0
    %4978 = vmatprep.mubr.f32.mxu0 0.0
    %v4979 = vand.u32 %v4905, 4294901760
    %v4980 = vsub.f32 %v4905, %v4979
    %v4981 = vand.u32 %v4980, 4294901760
    %v4982 = vsub.f32 %v4980, %v4981
    %v4983 = vand.u32 %v4982, 4294901760
    %4984 = vmatmul.mubr.f32.gmra.mrb[0].mxu0 %v4983
    %v4985 = vpop.f32.mrb[0].mxu0
    %v4986 = vadd.f32 %v4895, %v4985
    %v4987 = vpop.f32.mrb[0].mxu0
    %4988 = vmatprep.mubr.f32.mxu0 0.0
    %v4989 = vand.u32 %v4908, 4294901760
    %v4990 = vsub.f32 %v4908, %v4989
    %v4991 = vand.u32 %v4990, 4294901760
    %v4992 = vsub.f32 %v4990, %v4991
    %v4993 = vand.u32 %v4992, 4294901760
    %4994 = vmatmul.mubr.f32.gmra.mrb[0].mxu0 %v4993
    %v4995 = vpop.f32.mrb[0].mxu0
    %v4996 = vadd.f32 %v4901, %v4995
    %v4997 = vpop.f32.mrb[0].mxu0
    %4998 = vdwg.mxu0
    %4999 = vmatprep.subr.mxu0 0.0
    %v5000 = vand.u32 %v806, 4294901760
    %v5001 = vsub.f32 %v806, %v5000
    %v5002 = vand.u32 %v5001, 4294901760
    %v5003 = vsub.f32 %v5001, %v5002
    %v5004 = vand.u32 %v5003, 4294901760
    %5005 = vmatpush1.msra.mxu0 %v5004
    %5006 = vmatprep.subr.mxu0 0.0
    %v5007 = vand.u32 %v807, 4294901760
    %v5008 = vsub.f32 %v807, %v5007
    %v5009 = vand.u32 %v5008, 4294901760
    %v5010 = vsub.f32 %v5008, %v5009
    %v5011 = vand.u32 %v5010, 4294901760
    %5012 = vmatpush1.msra.mxu0 %v5011
    %5013 = vmatprep.subr.mxu0 0.0
    %v5014 = vand.u32 %v808, 4294901760
    %v5015 = vsub.f32 %v808, %v5014
    %v5016 = vand.u32 %v5015, 4294901760
    %v5017 = vsub.f32 %v5015, %v5016
    %v5018 = vand.u32 %v5017, 4294901760
    %5019 = vmatpush1.msra.mxu0 %v5018
    %5020 = vmatprep.subr.mxu0 0.0
    %v5021 = vand.u32 %v809, 4294901760
    %v5022 = vsub.f32 %v809, %v5021
    %v5023 = vand.u32 %v5022, 4294901760
    %v5024 = vsub.f32 %v5022, %v5023
    %v5025 = vand.u32 %v5024, 4294901760
    %5026 = vmatpush1.msra.mxu0 %v5025
    %5027 = vmatprep.subr.mxu0 0.0
    %5028 = vmatpush1.msra.mxu0 0.0
    %5029 = vmatprep.subr.mxu0 0.0
    %5030 = vmatpush1.msra.mxu0 0.0
    %5031 = vmatprep.subr.mxu0 0.0
    %5032 = vmatpush1.msra.mxu0 0.0
    %5033 = vmatprep.subr.mxu0 0.0
    %5034 = vmatpush1.msra.mxu0 0.0
    %5035 = vmatprep.subr.mxu0 0.0
    %5036 = vmatpush1.msra.mxu0 0.0
    %5037 = vmatprep.subr.mxu0 0.0
    %5038 = vmatpush1.msra.mxu0 0.0
    %5039 = vmatprep.subr.mxu0 0.0
    %5040 = vmatpush1.msra.mxu0 0.0
    %5041 = vmatprep.subr.mxu0 0.0
    %5042 = vmatpush1.msra.mxu0 0.0
    %5043 = vmatprep.subr.mxu0 0.0
    %5044 = vmatpush1.msra.mxu0 0.0
    %5045 = vmatprep.subr.mxu0 0.0
    %5046 = vmatpush1.msra.mxu0 0.0
    %5047 = vmatprep.subr.mxu0 0.0
    %5048 = vmatpush1.msra.mxu0 0.0
    %5049 = vmatprep.subr.mxu0 0.0
    %5050 = vmatpush1.msra.mxu0 0.0
    %5051 = vmatprep.subr.mxu0 0.0
    %5052 = vmatpush1.msra.mxu0 0.0
    %5053 = vmatprep.subr.mxu0 0.0
    %5054 = vmatpush1.msra.mxu0 0.0
    %5055 = vmatprep.subr.mxu0 0.0
    %5056 = vmatpush1.msra.mxu0 0.0
    %5057 = vmatprep.subr.mxu0 0.0
    %5058 = vmatpush1.msra.mxu0 0.0
    %5059 = vmatprep.subr.mxu0 0.0
    %5060 = vmatpush1.msra.mxu0 0.0
    %5061 = vmatprep.subr.mxu0 0.0
    %5062 = vmatpush1.msra.mxu0 0.0
    %5063 = vmatprep.subr.mxu0 0.0
    %5064 = vmatpush1.msra.mxu0 0.0
    %5065 = vmatprep.subr.mxu0 0.0
    %5066 = vmatpush1.msra.mxu0 0.0
    %5067 = vmatprep.subr.mxu0 0.0
    %5068 = vmatpush1.msra.mxu0 0.0
    %5069 = vmatprep.subr.mxu0 0.0
    %5070 = vmatpush1.msra.mxu0 0.0
    %5071 = vmatprep.subr.mxu0 0.0
    %5072 = vmatpush1.msra.mxu0 0.0
    %5073 = vmatprep.subr.mxu0 0.0
    %5074 = vmatpush1.msra.mxu0 0.0
    %5075 = vmatprep.subr.mxu0 0.0
    %5076 = vmatpush1.msra.mxu0 0.0
    %5077 = vmatprep.subr.mxu0 0.0
    %5078 = vmatpush1.msra.mxu0 0.0
    %5079 = vmatprep.subr.mxu0 0.0
    %5080 = vmatpush1.msra.mxu0 0.0
    %5081 = vmatprep.subr.mxu0 0.0
    %5082 = vmatpush1.msra.mxu0 0.0
    %5083 = vmatprep.mubr.f32.mxu0 0.0
    %v5084 = vand.u32 %v4905, 4294901760
    %5085 = vmatmul.mubr.f32.gmra.mrb[0].mxu0 %v5084
    %v5086 = vpop.f32.mrb[0].mxu0
    %v5087 = vadd.f32 %v4986, %v5086
    %v5088 = vpop.f32.mrb[0].mxu0
    %5089 = vmatprep.mubr.f32.mxu0 0.0
    %v5090 = vand.u32 %v4908, 4294901760
    %5091 = vmatmul.mubr.f32.gmra.mrb[0].mxu0 %v5090
    %v5092 = vpop.f32.mrb[0].mxu0
    %v5093 = vadd.f32 %v4996, %v5092
    %v5094 = vpop.f32.mrb[0].mxu0
    %5095 = vdwg.mxu0
    %5096 = vmatprep.subr.mxu0 0.0
    %v5097 = vand.u32 %v806, 4294901760
    %v5098 = vsub.f32 %v806, %v5097
    %5099 = vmatpush1.msra.mxu0 %v5098
    %5100 = vmatprep.subr.mxu0 0.0
    %v5101 = vand.u32 %v807, 4294901760
    %v5102 = vsub.f32 %v807, %v5101
    %5103 = vmatpush1.msra.mxu0 %v5102
    %5104 = vmatprep.subr.mxu0 0.0
    %v5105 = vand.u32 %v808, 4294901760
    %v5106 = vsub.f32 %v808, %v5105
    %5107 = vmatpush1.msra.mxu0 %v5106
    %5108 = vmatprep.subr.mxu0 0.0
    %v5109 = vand.u32 %v809, 4294901760
    %v5110 = vsub.f32 %v809, %v5109
    %5111 = vmatpush1.msra.mxu0 %v5110
    %5112 = vmatprep.subr.mxu0 0.0
    %5113 = vmatpush1.msra.mxu0 0.0
    %5114 = vmatprep.subr.mxu0 0.0
    %5115 = vmatpush1.msra.mxu0 0.0
    %5116 = vmatprep.subr.mxu0 0.0
    %5117 = vmatpush1.msra.mxu0 0.0
    %5118 = vmatprep.subr.mxu0 0.0
    %5119 = vmatpush1.msra.mxu0 0.0
    %5120 = vmatprep.subr.mxu0 0.0
    %5121 = vmatpush1.msra.mxu0 0.0
    %5122 = vmatprep.subr.mxu0 0.0
    %5123 = vmatpush1.msra.mxu0 0.0
    %5124 = vmatprep.subr.mxu0 0.0
    %5125 = vmatpush1.msra.mxu0 0.0
    %5126 = vmatprep.subr.mxu0 0.0
    %5127 = vmatpush1.msra.mxu0 0.0
    %5128 = vmatprep.subr.mxu0 0.0
    %5129 = vmatpush1.msra.mxu0 0.0
    %5130 = vmatprep.subr.mxu0 0.0
    %5131 = vmatpush1.msra.mxu0 0.0
    %5132 = vmatprep.subr.mxu0 0.0
    %5133 = vmatpush1.msra.mxu0 0.0
    %5134 = vmatprep.subr.mxu0 0.0
    %5135 = vmatpush1.msra.mxu0 0.0
    %5136 = vmatprep.subr.mxu0 0.0
    %5137 = vmatpush1.msra.mxu0 0.0
    %5138 = vmatprep.subr.mxu0 0.0
    %5139 = vmatpush1.msra.mxu0 0.0
    %5140 = vmatprep.subr.mxu0 0.0
    %5141 = vmatpush1.msra.mxu0 0.0
    %5142 = vmatprep.subr.mxu0 0.0
    %5143 = vmatpush1.msra.mxu0 0.0
    %5144 = vmatprep.subr.mxu0 0.0
    %5145 = vmatpush1.msra.mxu0 0.0
    %5146 = vmatprep.subr.mxu0 0.0
    %5147 = vmatpush1.msra.mxu0 0.0
    %5148 = vmatprep.subr.mxu0 0.0
    %5149 = vmatpush1.msra.mxu0 0.0
    %5150 = vmatprep.subr.mxu0 0.0
    %5151 = vmatpush1.msra.mxu0 0.0
    %5152 = vmatprep.subr.mxu0 0.0
    %5153 = vmatpush1.msra.mxu0 0.0
    %5154 = vmatprep.subr.mxu0 0.0
    %5155 = vmatpush1.msra.mxu0 0.0
    %5156 = vmatprep.subr.mxu0 0.0
    %5157 = vmatpush1.msra.mxu0 0.0
    %5158 = vmatprep.subr.mxu0 0.0
    %5159 = vmatpush1.msra.mxu0 0.0
    %5160 = vmatprep.subr.mxu0 0.0
    %5161 = vmatpush1.msra.mxu0 0.0
    %5162 = vmatprep.subr.mxu0 0.0
    %5163 = vmatpush1.msra.mxu0 0.0
    %5164 = vmatprep.subr.mxu0 0.0
    %5165 = vmatpush1.msra.mxu0 0.0
    %5166 = vmatprep.subr.mxu0 0.0
    %5167 = vmatpush1.msra.mxu0 0.0
    %5168 = vmatprep.mubr.f32.mxu0 0.0
    %v5169 = vand.u32 %v4905, 4294901760
    %v5170 = vsub.f32 %v4905, %v5169
    %5171 = vmatmul.mubr.f32.gmra.mrb[0].mxu0 %v5170
    %v5172 = vpop.f32.mrb[0].mxu0
    %v5173 = vadd.f32 %v5087, %v5172
    %v5174 = vpop.f32.mrb[0].mxu0
    %5175 = vmatprep.mubr.f32.mxu0 0.0
    %v5176 = vand.u32 %v4908, 4294901760
    %v5177 = vsub.f32 %v4908, %v5176
    %5178 = vmatmul.mubr.f32.gmra.mrb[0].mxu0 %v5177
    %v5179 = vpop.f32.mrb[0].mxu0
    %v5180 = vadd.f32 %v5093, %v5179
    %v5181 = vpop.f32.mrb[0].mxu0
    %5182 = vdwg.mxu0
    %5183 = vmatprep.subr.mxu0 0.0
    %v5184 = vand.u32 %v806, 4294901760
    %5185 = vmatpush1.msra.mxu0 %v5184
    %5186 = vmatprep.subr.mxu0 0.0
    %v5187 = vand.u32 %v807, 4294901760
    %5188 = vmatpush1.msra.mxu0 %v5187
    %5189 = vmatprep.subr.mxu0 0.0
    %v5190 = vand.u32 %v808, 4294901760
    %5191 = vmatpush1.msra.mxu0 %v5190
    %5192 = vmatprep.subr.mxu0 0.0
    %v5193 = vand.u32 %v809, 4294901760
    %5194 = vmatpush1.msra.mxu0 %v5193
    %5195 = vmatprep.subr.mxu0 0.0
    %5196 = vmatpush1.msra.mxu0 0.0
    %5197 = vmatprep.subr.mxu0 0.0
    %5198 = vmatpush1.msra.mxu0 0.0
    %5199 = vmatprep.subr.mxu0 0.0
    %5200 = vmatpush1.msra.mxu0 0.0
    %5201 = vmatprep.subr.mxu0 0.0
    %5202 = vmatpush1.msra.mxu0 0.0
    %5203 = vmatprep.subr.mxu0 0.0
    %5204 = vmatpush1.msra.mxu0 0.0
    %5205 = vmatprep.subr.mxu0 0.0
    %5206 = vmatpush1.msra.mxu0 0.0
    %5207 = vmatprep.subr.mxu0 0.0
    %5208 = vmatpush1.msra.mxu0 0.0
    %5209 = vmatprep.subr.mxu0 0.0
    %5210 = vmatpush1.msra.mxu0 0.0
    %5211 = vmatprep.subr.mxu0 0.0
    %5212 = vmatpush1.msra.mxu0 0.0
    %5213 = vmatprep.subr.mxu0 0.0
    %5214 = vmatpush1.msra.mxu0 0.0
    %5215 = vmatprep.subr.mxu0 0.0
    %5216 = vmatpush1.msra.mxu0 0.0
    %5217 = vmatprep.subr.mxu0 0.0
    %5218 = vmatpush1.msra.mxu0 0.0
    %5219 = vmatprep.subr.mxu0 0.0
    %5220 = vmatpush1.msra.mxu0 0.0
    %5221 = vmatprep.subr.mxu0 0.0
    %5222 = vmatpush1.msra.mxu0 0.0
    %5223 = vmatprep.subr.mxu0 0.0
    %5224 = vmatpush1.msra.mxu0 0.0
    %5225 = vmatprep.subr.mxu0 0.0
    %5226 = vmatpush1.msra.mxu0 0.0
    %5227 = vmatprep.subr.mxu0 0.0
    %5228 = vmatpush1.msra.mxu0 0.0
    %5229 = vmatprep.subr.mxu0 0.0
    %5230 = vmatpush1.msra.mxu0 0.0
    %5231 = vmatprep.subr.mxu0 0.0
    %5232 = vmatpush1.msra.mxu0 0.0
    %5233 = vmatprep.subr.mxu0 0.0
    %5234 = vmatpush1.msra.mxu0 0.0
    %5235 = vmatprep.subr.mxu0 0.0
    %5236 = vmatpush1.msra.mxu0 0.0
    %5237 = vmatprep.subr.mxu0 0.0
    %5238 = vmatpush1.msra.mxu0 0.0
    %5239 = vmatprep.subr.mxu0 0.0
    %5240 = vmatpush1.msra.mxu0 0.0
    %5241 = vmatprep.subr.mxu0 0.0
    %5242 = vmatpush1.msra.mxu0 0.0
    %5243 = vmatprep.subr.mxu0 0.0
    %5244 = vmatpush1.msra.mxu0 0.0
    %5245 = vmatprep.subr.mxu0 0.0
    %5246 = vmatpush1.msra.mxu0 0.0
    %5247 = vmatprep.subr.mxu0 0.0
    %5248 = vmatpush1.msra.mxu0 0.0
    %5249 = vmatprep.subr.mxu0 0.0
    %5250 = vmatpush1.msra.mxu0 0.0
    %5251 = vmatprep.mubr.f32.mxu0 0.0
    %v5252 = vand.u32 %v4905, 4294901760
    %v5253 = vsub.f32 %v4905, %v5252
    %v5254 = vand.u32 %v5253, 4294901760
    %5255 = vmatmul.mubr.f32.gmra.mrb[0].mxu0 %v5254
    %v5256 = vpop.f32.mrb[0].mxu0
    %v5257 = vadd.f32 %v5173, %v5256
    %v5258 = vpop.f32.mrb[0].mxu0
    %5259 = vmatprep.mubr.f32.mxu0 0.0
    %v5260 = vand.u32 %v4908, 4294901760
    %v5261 = vsub.f32 %v4908, %v5260
    %v5262 = vand.u32 %v5261, 4294901760
    %5263 = vmatmul.mubr.f32.gmra.mrb[0].mxu0 %v5262
    %v5264 = vpop.f32.mrb[0].mxu0
    %v5265 = vadd.f32 %v5180, %v5264
    %v5266 = vpop.f32.mrb[0].mxu0
    %5267 = vdwg.mxu0
    %5268 = vmatprep.subr.mxu0 0.0
    %v5269 = vand.u32 %v806, 4294901760
    %v5270 = vsub.f32 %v806, %v5269
    %v5271 = vand.u32 %v5270, 4294901760
    %5272 = vmatpush1.msra.mxu0 %v5271
    %5273 = vmatprep.subr.mxu0 0.0
    %v5274 = vand.u32 %v807, 4294901760
    %v5275 = vsub.f32 %v807, %v5274
    %v5276 = vand.u32 %v5275, 4294901760
    %5277 = vmatpush1.msra.mxu0 %v5276
    %5278 = vmatprep.subr.mxu0 0.0
    %v5279 = vand.u32 %v808, 4294901760
    %v5280 = vsub.f32 %v808, %v5279
    %v5281 = vand.u32 %v5280, 4294901760
    %5282 = vmatpush1.msra.mxu0 %v5281
    %5283 = vmatprep.subr.mxu0 0.0
    %v5284 = vand.u32 %v809, 4294901760
    %v5285 = vsub.f32 %v809, %v5284
    %v5286 = vand.u32 %v5285, 4294901760
    %5287 = vmatpush1.msra.mxu0 %v5286
    %5288 = vmatprep.subr.mxu0 0.0
    %5289 = vmatpush1.msra.mxu0 0.0
    %5290 = vmatprep.subr.mxu0 0.0
    %5291 = vmatpush1.msra.mxu0 0.0
    %5292 = vmatprep.subr.mxu0 0.0
    %5293 = vmatpush1.msra.mxu0 0.0
    %5294 = vmatprep.subr.mxu0 0.0
    %5295 = vmatpush1.msra.mxu0 0.0
    %5296 = vmatprep.subr.mxu0 0.0
    %5297 = vmatpush1.msra.mxu0 0.0
    %5298 = vmatprep.subr.mxu0 0.0
    %5299 = vmatpush1.msra.mxu0 0.0
    %5300 = vmatprep.subr.mxu0 0.0
    %5301 = vmatpush1.msra.mxu0 0.0
    %5302 = vmatprep.subr.mxu0 0.0
    %5303 = vmatpush1.msra.mxu0 0.0
    %5304 = vmatprep.subr.mxu0 0.0
    %5305 = vmatpush1.msra.mxu0 0.0
    %5306 = vmatprep.subr.mxu0 0.0
    %5307 = vmatpush1.msra.mxu0 0.0
    %5308 = vmatprep.subr.mxu0 0.0
    %5309 = vmatpush1.msra.mxu0 0.0
    %5310 = vmatprep.subr.mxu0 0.0
    %5311 = vmatpush1.msra.mxu0 0.0
    %5312 = vmatprep.subr.mxu0 0.0
    %5313 = vmatpush1.msra.mxu0 0.0
    %5314 = vmatprep.subr.mxu0 0.0
    %5315 = vmatpush1.msra.mxu0 0.0
    %5316 = vmatprep.subr.mxu0 0.0
    %5317 = vmatpush1.msra.mxu0 0.0
    %5318 = vmatprep.subr.mxu0 0.0
    %5319 = vmatpush1.msra.mxu0 0.0
    %5320 = vmatprep.subr.mxu0 0.0
    %5321 = vmatpush1.msra.mxu0 0.0
    %5322 = vmatprep.subr.mxu0 0.0
    %5323 = vmatpush1.msra.mxu0 0.0
    %5324 = vmatprep.subr.mxu0 0.0
    %5325 = vmatpush1.msra.mxu0 0.0
    %5326 = vmatprep.subr.mxu0 0.0
    %5327 = vmatpush1.msra.mxu0 0.0
    %5328 = vmatprep.subr.mxu0 0.0
    %5329 = vmatpush1.msra.mxu0 0.0
    %5330 = vmatprep.subr.mxu0 0.0
    %5331 = vmatpush1.msra.mxu0 0.0
    %5332 = vmatprep.subr.mxu0 0.0
    %5333 = vmatpush1.msra.mxu0 0.0
    %5334 = vmatprep.subr.mxu0 0.0
    %5335 = vmatpush1.msra.mxu0 0.0
    %5336 = vmatprep.subr.mxu0 0.0
    %5337 = vmatpush1.msra.mxu0 0.0
    %5338 = vmatprep.subr.mxu0 0.0
    %5339 = vmatpush1.msra.mxu0 0.0
    %5340 = vmatprep.subr.mxu0 0.0
    %5341 = vmatpush1.msra.mxu0 0.0
    %5342 = vmatprep.subr.mxu0 0.0
    %5343 = vmatpush1.msra.mxu0 0.0
    %5344 = vmatprep.mubr.f32.mxu0 0.0
    %v5345 = vand.u32 %v4905, 4294901760
    %5346 = vmatmul.mubr.f32.gmra.mrb[0].mxu0 %v5345
    %v5347 = vpop.f32.mrb[0].mxu0
    %v5348 = vadd.f32 %v5257, %v5347
    %v5349 = vpop.f32.mrb[0].mxu0
    %5350 = vmatprep.mubr.f32.mxu0 0.0
    %v5351 = vand.u32 %v4908, 4294901760
    %5352 = vmatmul.mubr.f32.gmra.mrb[0].mxu0 %v5351
    %v5353 = vpop.f32.mrb[0].mxu0
    %v5354 = vadd.f32 %v5265, %v5353
    %v5355 = vpop.f32.mrb[0].mxu0
    %5356 = vdwg.mxu0
    %5357 = vmatprep.subr.mxu0 0.0
    %v5358 = vand.u32 %v806, 4294901760
    %5359 = vmatpush1.msra.mxu0 %v5358
    %5360 = vmatprep.subr.mxu0 0.0
    %v5361 = vand.u32 %v807, 4294901760
    %5362 = vmatpush1.msra.mxu0 %v5361
    %5363 = vmatprep.subr.mxu0 0.0
    %v5364 = vand.u32 %v808, 4294901760
    %5365 = vmatpush1.msra.mxu0 %v5364
    %5366 = vmatprep.subr.mxu0 0.0
    %v5367 = vand.u32 %v809, 4294901760
    %5368 = vmatpush1.msra.mxu0 %v5367
    %5369 = vmatprep.subr.mxu0 0.0
    %5370 = vmatpush1.msra.mxu0 0.0
    %5371 = vmatprep.subr.mxu0 0.0
    %5372 = vmatpush1.msra.mxu0 0.0
    %5373 = vmatprep.subr.mxu0 0.0
    %5374 = vmatpush1.msra.mxu0 0.0
    %5375 = vmatprep.subr.mxu0 0.0
    %5376 = vmatpush1.msra.mxu0 0.0
    %5377 = vmatprep.subr.mxu0 0.0
    %5378 = vmatpush1.msra.mxu0 0.0
    %5379 = vmatprep.subr.mxu0 0.0
    %5380 = vmatpush1.msra.mxu0 0.0
    %5381 = vmatprep.subr.mxu0 0.0
    %5382 = vmatpush1.msra.mxu0 0.0
    %5383 = vmatprep.subr.mxu0 0.0
    %5384 = vmatpush1.msra.mxu0 0.0
    %5385 = vmatprep.subr.mxu0 0.0
    %5386 = vmatpush1.msra.mxu0 0.0
    %5387 = vmatprep.subr.mxu0 0.0
    %5388 = vmatpush1.msra.mxu0 0.0
    %5389 = vmatprep.subr.mxu0 0.0
    %5390 = vmatpush1.msra.mxu0 0.0
    %5391 = vmatprep.subr.mxu0 0.0
    %5392 = vmatpush1.msra.mxu0 0.0
    %5393 = vmatprep.subr.mxu0 0.0
    %5394 = vmatpush1.msra.mxu0 0.0
    %5395 = vmatprep.subr.mxu0 0.0
    %5396 = vmatpush1.msra.mxu0 0.0
    %5397 = vmatprep.subr.mxu0 0.0
    %5398 = vmatpush1.msra.mxu0 0.0
    %5399 = vmatprep.subr.mxu0 0.0
    %5400 = vmatpush1.msra.mxu0 0.0
    %5401 = vmatprep.subr.mxu0 0.0
    %5402 = vmatpush1.msra.mxu0 0.0
    %5403 = vmatprep.subr.mxu0 0.0
    %5404 = vmatpush1.msra.mxu0 0.0
    %5405 = vmatprep.subr.mxu0 0.0
    %5406 = vmatpush1.msra.mxu0 0.0
    %5407 = vmatprep.subr.mxu0 0.0
    %5408 = vmatpush1.msra.mxu0 0.0
    %5409 = vmatprep.subr.mxu0 0.0
    %5410 = vmatpush1.msra.mxu0 0.0
    %5411 = vmatprep.subr.mxu0 0.0
    %5412 = vmatpush1.msra.mxu0 0.0
    %5413 = vmatprep.subr.mxu0 0.0
    %5414 = vmatpush1.msra.mxu0 0.0
    %5415 = vmatprep.subr.mxu0 0.0
    %5416 = vmatpush1.msra.mxu0 0.0
    %5417 = vmatprep.subr.mxu0 0.0
    %5418 = vmatpush1.msra.mxu0 0.0
    %5419 = vmatprep.subr.mxu0 0.0
    %5420 = vmatpush1.msra.mxu0 0.0
    %5421 = vmatprep.subr.mxu0 0.0
    %5422 = vmatpush1.msra.mxu0 0.0
    %5423 = vmatprep.subr.mxu0 0.0
    %5424 = vmatpush1.msra.mxu0 0.0
    %5425 = vmatprep.mubr.f32.mxu0 0.0
    %v5426 = vand.u32 %v4905, 4294901760
    %5427 = vmatmul.mubr.f32.gmra.mrb[0].mxu0 %v5426
    %v5428 = vpop.f32.mrb[0].mxu0
    %v5429 = vadd.f32 %v5348, %v5428
    %v5430 = vpop.f32.mrb[0].mxu0
    %5431 = vmatprep.mubr.f32.mxu0 0.0
    %v5432 = vand.u32 %v4908, 4294901760
    %5433 = vmatmul.mubr.f32.gmra.mrb[0].mxu0 %v5432
    %v5434 = vpop.f32.mrb[0].mxu0
    %v5435 = vadd.f32 %v5354, %v5434
    %v5436 = vpop.f32.mrb[0].mxu0
    %5437 = vdwg.mxu0
    %v5438 = vld [vmem:[%s3 + $0x50] sm:$0xff]
    %v5439 = vld [vmem:[%s3 + $0x58] sm:$0xff]
    %v5440 = vld [vmem:[%s3 + $0x60] sm:$0xff]
    %v5441 = vld [vmem:[%s3 + $0x68] sm:$0xff]
    %v5443 = vsel %vm63, %v4345, 0
    %v5446 = vsel %vm63, %v4351, 0
    %5448 = vmatprep.subr.mxu0 0.0
    %v5449 = vand.u32 %v5438, 4294901760
    %5450 = vmatpush1.msra.mxu0 %v5449
    %5451 = vmatprep.subr.mxu0 0.0
    %v5452 = vand.u32 %v5439, 4294901760
    %5453 = vmatpush1.msra.mxu0 %v5452
    %5454 = vmatprep.subr.mxu0 0.0
    %v5455 = vand.u32 %v5440, 4294901760
    %5456 = vmatpush1.msra.mxu0 %v5455
    %5457 = vmatprep.subr.mxu0 0.0
    %v5458 = vand.u32 %v5441, 4294901760
    %5459 = vmatpush1.msra.mxu0 %v5458
    %5460 = vmatprep.subr.mxu0 0.0
    %5461 = vmatpush1.msra.mxu0 0.0
    %5462 = vmatprep.subr.mxu0 0.0
    %5463 = vmatpush1.msra.mxu0 0.0
    %5464 = vmatprep.subr.mxu0 0.0
    %5465 = vmatpush1.msra.mxu0 0.0
    %5466 = vmatprep.subr.mxu0 0.0
    %5467 = vmatpush1.msra.mxu0 0.0
    %5468 = vmatprep.subr.mxu0 0.0
    %5469 = vmatpush1.msra.mxu0 0.0
    %5470 = vmatprep.subr.mxu0 0.0
    %5471 = vmatpush1.msra.mxu0 0.0
    %5472 = vmatprep.subr.mxu0 0.0
    %5473 = vmatpush1.msra.mxu0 0.0
    %5474 = vmatprep.subr.mxu0 0.0
    %5475 = vmatpush1.msra.mxu0 0.0
    %5476 = vmatprep.subr.mxu0 0.0
    %5477 = vmatpush1.msra.mxu0 0.0
    %5478 = vmatprep.subr.mxu0 0.0
    %5479 = vmatpush1.msra.mxu0 0.0
    %5480 = vmatprep.subr.mxu0 0.0
    %5481 = vmatpush1.msra.mxu0 0.0
    %5482 = vmatprep.subr.mxu0 0.0
    %5483 = vmatpush1.msra.mxu0 0.0
    %5484 = vmatprep.subr.mxu0 0.0
    %5485 = vmatpush1.msra.mxu0 0.0
    %5486 = vmatprep.subr.mxu0 0.0
    %5487 = vmatpush1.msra.mxu0 0.0
    %5488 = vmatprep.subr.mxu0 0.0
    %5489 = vmatpush1.msra.mxu0 0.0
    %5490 = vmatprep.subr.mxu0 0.0
    %5491 = vmatpush1.msra.mxu0 0.0
    %5492 = vmatprep.subr.mxu0 0.0
    %5493 = vmatpush1.msra.mxu0 0.0
    %5494 = vmatprep.subr.mxu0 0.0
    %5495 = vmatpush1.msra.mxu0 0.0
    %5496 = vmatprep.subr.mxu0 0.0
    %5497 = vmatpush1.msra.mxu0 0.0
    %5498 = vmatprep.subr.mxu0 0.0
    %5499 = vmatpush1.msra.mxu0 0.0
    %5500 = vmatprep.subr.mxu0 0.0
    %5501 = vmatpush1.msra.mxu0 0.0
    %5502 = vmatprep.subr.mxu0 0.0
    %5503 = vmatpush1.msra.mxu0 0.0
    %5504 = vmatprep.subr.mxu0 0.0
    %5505 = vmatpush1.msra.mxu0 0.0
    %5506 = vmatprep.subr.mxu0 0.0
    %5507 = vmatpush1.msra.mxu0 0.0
    %5508 = vmatprep.subr.mxu0 0.0
    %5509 = vmatpush1.msra.mxu0 0.0
    %5510 = vmatprep.subr.mxu0 0.0
    %5511 = vmatpush1.msra.mxu0 0.0
    %5512 = vmatprep.subr.mxu0 0.0
    %5513 = vmatpush1.msra.mxu0 0.0
    %5514 = vmatprep.subr.mxu0 0.0
    %5515 = vmatpush1.msra.mxu0 0.0
    %5516 = vmatprep.mubr.f32.mxu0 0.0
    %v5517 = vand.u32 %v5443, 4294901760
    %v5518 = vsub.f32 %v5443, %v5517
    %v5519 = vand.u32 %v5518, 4294901760
    %v5520 = vsub.f32 %v5518, %v5519
    %v5521 = vand.u32 %v5520, 4294901760
    %5522 = vmatmul.mubr.f32.gmra.mrb[0].mxu0 %v5521
    %v5523 = vpop.f32.mrb[0].mxu0
    %v5524 = vadd.f32 0.0, %v5523
    %v5525 = vpop.f32.mrb[0].mxu0
    %5526 = vmatprep.mubr.f32.mxu0 0.0
    %v5527 = vand.u32 %v5446, 4294901760
    %v5528 = vsub.f32 %v5446, %v5527
    %v5529 = vand.u32 %v5528, 4294901760
    %v5530 = vsub.f32 %v5528, %v5529
    %v5531 = vand.u32 %v5530, 4294901760
    %5532 = vmatmul.mubr.f32.gmra.mrb[0].mxu0 %v5531
    %v5533 = vpop.f32.mrb[0].mxu0
    %v5534 = vadd.f32 0.0, %v5533
    %v5535 = vpop.f32.mrb[0].mxu0
    %5536 = vdwg.mxu0
    %5537 = vmatprep.subr.mxu0 0.0
    %v5538 = vand.u32 %v5438, 4294901760
    %v5539 = vsub.f32 %v5438, %v5538
    %v5540 = vand.u32 %v5539, 4294901760
    %v5541 = vsub.f32 %v5539, %v5540
    %v5542 = vand.u32 %v5541, 4294901760
    %5543 = vmatpush1.msra.mxu0 %v5542
    %5544 = vmatprep.subr.mxu0 0.0
    %v5545 = vand.u32 %v5439, 4294901760
    %v5546 = vsub.f32 %v5439, %v5545
    %v5547 = vand.u32 %v5546, 4294901760
    %v5548 = vsub.f32 %v5546, %v5547
    %v5549 = vand.u32 %v5548, 4294901760
    %5550 = vmatpush1.msra.mxu0 %v5549
    %5551 = vmatprep.subr.mxu0 0.0
    %v5552 = vand.u32 %v5440, 4294901760
    %v5553 = vsub.f32 %v5440, %v5552
    %v5554 = vand.u32 %v5553, 4294901760
    %v5555 = vsub.f32 %v5553, %v5554
    %v5556 = vand.u32 %v5555, 4294901760
    %5557 = vmatpush1.msra.mxu0 %v5556
    %5558 = vmatprep.subr.mxu0 0.0
    %v5559 = vand.u32 %v5441, 4294901760
    %v5560 = vsub.f32 %v5441, %v5559
    %v5561 = vand.u32 %v5560, 4294901760
    %v5562 = vsub.f32 %v5560, %v5561
    %v5563 = vand.u32 %v5562, 4294901760
    %5564 = vmatpush1.msra.mxu0 %v5563
    %5565 = vmatprep.subr.mxu0 0.0
    %5566 = vmatpush1.msra.mxu0 0.0
    %5567 = vmatprep.subr.mxu0 0.0
    %5568 = vmatpush1.msra.mxu0 0.0
    %5569 = vmatprep.subr.mxu0 0.0
    %5570 = vmatpush1.msra.mxu0 0.0
    %5571 = vmatprep.subr.mxu0 0.0
    %5572 = vmatpush1.msra.mxu0 0.0
    %5573 = vmatprep.subr.mxu0 0.0
    %5574 = vmatpush1.msra.mxu0 0.0
    %5575 = vmatprep.subr.mxu0 0.0
    %5576 = vmatpush1.msra.mxu0 0.0
    %5577 = vmatprep.subr.mxu0 0.0
    %5578 = vmatpush1.msra.mxu0 0.0
    %5579 = vmatprep.subr.mxu0 0.0
    %5580 = vmatpush1.msra.mxu0 0.0
    %5581 = vmatprep.subr.mxu0 0.0
    %5582 = vmatpush1.msra.mxu0 0.0
    %5583 = vmatprep.subr.mxu0 0.0
    %5584 = vmatpush1.msra.mxu0 0.0
    %5585 = vmatprep.subr.mxu0 0.0
    %5586 = vmatpush1.msra.mxu0 0.0
    %5587 = vmatprep.subr.mxu0 0.0
    %5588 = vmatpush1.msra.mxu0 0.0
    %5589 = vmatprep.subr.mxu0 0.0
    %5590 = vmatpush1.msra.mxu0 0.0
    %5591 = vmatprep.subr.mxu0 0.0
    %5592 = vmatpush1.msra.mxu0 0.0
    %5593 = vmatprep.subr.mxu0 0.0
    %5594 = vmatpush1.msra.mxu0 0.0
    %5595 = vmatprep.subr.mxu0 0.0
    %5596 = vmatpush1.msra.mxu0 0.0
    %5597 = vmatprep.subr.mxu0 0.0
    %5598 = vmatpush1.msra.mxu0 0.0
    %5599 = vmatprep.subr.mxu0 0.0
    %5600 = vmatpush1.msra.mxu0 0.0
    %5601 = vmatprep.subr.mxu0 0.0
    %5602 = vmatpush1.msra.mxu0 0.0
    %5603 = vmatprep.subr.mxu0 0.0
    %5604 = vmatpush1.msra.mxu0 0.0
    %5605 = vmatprep.subr.mxu0 0.0
    %5606 = vmatpush1.msra.mxu0 0.0
    %5607 = vmatprep.subr.mxu0 0.0
    %5608 = vmatpush1.msra.mxu0 0.0
    %5609 = vmatprep.subr.mxu0 0.0
    %5610 = vmatpush1.msra.mxu0 0.0
    %5611 = vmatprep.subr.mxu0 0.0
    %5612 = vmatpush1.msra.mxu0 0.0
    %5613 = vmatprep.subr.mxu0 0.0
    %5614 = vmatpush1.msra.mxu0 0.0
    %5615 = vmatprep.subr.mxu0 0.0
    %5616 = vmatpush1.msra.mxu0 0.0
    %5617 = vmatprep.subr.mxu0 0.0
    %5618 = vmatpush1.msra.mxu0 0.0
    %5619 = vmatprep.subr.mxu0 0.0
    %5620 = vmatpush1.msra.mxu0 0.0
    %5621 = vmatprep.mubr.f32.mxu0 0.0
    %v5622 = vand.u32 %v5443, 4294901760
    %5623 = vmatmul.mubr.f32.gmra.mrb[0].mxu0 %v5622
    %v5624 = vpop.f32.mrb[0].mxu0
    %v5625 = vadd.f32 %v5524, %v5624
    %v5626 = vpop.f32.mrb[0].mxu0
    %5627 = vmatprep.mubr.f32.mxu0 0.0
    %v5628 = vand.u32 %v5446, 4294901760
    %5629 = vmatmul.mubr.f32.gmra.mrb[0].mxu0 %v5628
    %v5630 = vpop.f32.mrb[0].mxu0
    %v5631 = vadd.f32 %v5534, %v5630
    %v5632 = vpop.f32.mrb[0].mxu0
    %5633 = vdwg.mxu0
    %5634 = vmatprep.subr.mxu0 0.0
    %v5635 = vand.u32 %v5438, 4294901760
    %v5636 = vsub.f32 %v5438, %v5635
    %5637 = vmatpush1.msra.mxu0 %v5636
    %5638 = vmatprep.subr.mxu0 0.0
    %v5639 = vand.u32 %v5439, 4294901760
    %v5640 = vsub.f32 %v5439, %v5639
    %5641 = vmatpush1.msra.mxu0 %v5640
    %5642 = vmatprep.subr.mxu0 0.0
    %v5643 = vand.u32 %v5440, 4294901760
    %v5644 = vsub.f32 %v5440, %v5643
    %5645 = vmatpush1.msra.mxu0 %v5644
    %5646 = vmatprep.subr.mxu0 0.0
    %v5647 = vand.u32 %v5441, 4294901760
    %v5648 = vsub.f32 %v5441, %v5647
    %5649 = vmatpush1.msra.mxu0 %v5648
    %5650 = vmatprep.subr.mxu0 0.0
    %5651 = vmatpush1.msra.mxu0 0.0
    %5652 = vmatprep.subr.mxu0 0.0
    %5653 = vmatpush1.msra.mxu0 0.0
    %5654 = vmatprep.subr.mxu0 0.0
    %5655 = vmatpush1.msra.mxu0 0.0
    %5656 = vmatprep.subr.mxu0 0.0
    %5657 = vmatpush1.msra.mxu0 0.0
    %5658 = vmatprep.subr.mxu0 0.0
    %5659 = vmatpush1.msra.mxu0 0.0
    %5660 = vmatprep.subr.mxu0 0.0
    %5661 = vmatpush1.msra.mxu0 0.0
    %5662 = vmatprep.subr.mxu0 0.0
    %5663 = vmatpush1.msra.mxu0 0.0
    %5664 = vmatprep.subr.mxu0 0.0
    %5665 = vmatpush1.msra.mxu0 0.0
    %5666 = vmatprep.subr.mxu0 0.0
    %5667 = vmatpush1.msra.mxu0 0.0
    %5668 = vmatprep.subr.mxu0 0.0
    %5669 = vmatpush1.msra.mxu0 0.0
    %5670 = vmatprep.subr.mxu0 0.0
    %5671 = vmatpush1.msra.mxu0 0.0
    %5672 = vmatprep.subr.mxu0 0.0
    %5673 = vmatpush1.msra.mxu0 0.0
    %5674 = vmatprep.subr.mxu0 0.0
    %5675 = vmatpush1.msra.mxu0 0.0
    %5676 = vmatprep.subr.mxu0 0.0
    %5677 = vmatpush1.msra.mxu0 0.0
    %5678 = vmatprep.subr.mxu0 0.0
    %5679 = vmatpush1.msra.mxu0 0.0
    %5680 = vmatprep.subr.mxu0 0.0
    %5681 = vmatpush1.msra.mxu0 0.0
    %5682 = vmatprep.subr.mxu0 0.0
    %5683 = vmatpush1.msra.mxu0 0.0
    %5684 = vmatprep.subr.mxu0 0.0
    %5685 = vmatpush1.msra.mxu0 0.0
    %5686 = vmatprep.subr.mxu0 0.0
    %5687 = vmatpush1.msra.mxu0 0.0
    %5688 = vmatprep.subr.mxu0 0.0
    %5689 = vmatpush1.msra.mxu0 0.0
    %5690 = vmatprep.subr.mxu0 0.0
    %5691 = vmatpush1.msra.mxu0 0.0
    %5692 = vmatprep.subr.mxu0 0.0
    %5693 = vmatpush1.msra.mxu0 0.0
    %5694 = vmatprep.subr.mxu0 0.0
    %5695 = vmatpush1.msra.mxu0 0.0
    %5696 = vmatprep.subr.mxu0 0.0
    %5697 = vmatpush1.msra.mxu0 0.0
    %5698 = vmatprep.subr.mxu0 0.0
    %5699 = vmatpush1.msra.mxu0 0.0
    %5700 = vmatprep.subr.mxu0 0.0
    %5701 = vmatpush1.msra.mxu0 0.0
    %5702 = vmatprep.subr.mxu0 0.0
    %5703 = vmatpush1.msra.mxu0 0.0
    %5704 = vmatprep.subr.mxu0 0.0
    %5705 = vmatpush1.msra.mxu0 0.0
    %5706 = vmatprep.mubr.f32.mxu0 0.0
    %v5707 = vand.u32 %v5443, 4294901760
    %v5708 = vsub.f32 %v5443, %v5707
    %5709 = vmatmul.mubr.f32.gmra.mrb[0].mxu0 %v5708
    %v5710 = vpop.f32.mrb[0].mxu0
    %v5711 = vadd.f32 %v5625, %v5710
    %v5712 = vpop.f32.mrb[0].mxu0
    %5713 = vmatprep.mubr.f32.mxu0 0.0
    %v5714 = vand.u32 %v5446, 4294901760
    %v5715 = vsub.f32 %v5446, %v5714
    %5716 = vmatmul.mubr.f32.gmra.mrb[0].mxu0 %v5715
    %v5717 = vpop.f32.mrb[0].mxu0
    %v5718 = vadd.f32 %v5631, %v5717
    %v5719 = vpop.f32.mrb[0].mxu0
    %5720 = vdwg.mxu0
    %5721 = vmatprep.subr.mxu0 0.0
    %v5722 = vand.u32 %v5438, 4294901760
    %5723 = vmatpush1.msra.mxu0 %v5722
    %5724 = vmatprep.subr.mxu0 0.0
    %v5725 = vand.u32 %v5439, 4294901760
    %5726 = vmatpush1.msra.mxu0 %v5725
    %5727 = vmatprep.subr.mxu0 0.0
    %v5728 = vand.u32 %v5440, 4294901760
    %5729 = vmatpush1.msra.mxu0 %v5728
    %5730 = vmatprep.subr.mxu0 0.0
    %v5731 = vand.u32 %v5441, 4294901760
    %5732 = vmatpush1.msra.mxu0 %v5731
    %5733 = vmatprep.subr.mxu0 0.0
    %5734 = vmatpush1.msra.mxu0 0.0
    %5735 = vmatprep.subr.mxu0 0.0
    %5736 = vmatpush1.msra.mxu0 0.0
    %5737 = vmatprep.subr.mxu0 0.0
    %5738 = vmatpush1.msra.mxu0 0.0
    %5739 = vmatprep.subr.mxu0 0.0
    %5740 = vmatpush1.msra.mxu0 0.0
    %5741 = vmatprep.subr.mxu0 0.0
    %5742 = vmatpush1.msra.mxu0 0.0
    %5743 = vmatprep.subr.mxu0 0.0
    %5744 = vmatpush1.msra.mxu0 0.0
    %5745 = vmatprep.subr.mxu0 0.0
    %5746 = vmatpush1.msra.mxu0 0.0
    %5747 = vmatprep.subr.mxu0 0.0
    %5748 = vmatpush1.msra.mxu0 0.0
    %5749 = vmatprep.subr.mxu0 0.0
    %5750 = vmatpush1.msra.mxu0 0.0
    %5751 = vmatprep.subr.mxu0 0.0
    %5752 = vmatpush1.msra.mxu0 0.0
    %5753 = vmatprep.subr.mxu0 0.0
    %5754 = vmatpush1.msra.mxu0 0.0
    %5755 = vmatprep.subr.mxu0 0.0
    %5756 = vmatpush1.msra.mxu0 0.0
    %5757 = vmatprep.subr.mxu0 0.0
    %5758 = vmatpush1.msra.mxu0 0.0
    %5759 = vmatprep.subr.mxu0 0.0
    %5760 = vmatpush1.msra.mxu0 0.0
    %5761 = vmatprep.subr.mxu0 0.0
    %5762 = vmatpush1.msra.mxu0 0.0
    %5763 = vmatprep.subr.mxu0 0.0
    %5764 = vmatpush1.msra.mxu0 0.0
    %5765 = vmatprep.subr.mxu0 0.0
    %5766 = vmatpush1.msra.mxu0 0.0
    %5767 = vmatprep.subr.mxu0 0.0
    %5768 = vmatpush1.msra.mxu0 0.0
    %5769 = vmatprep.subr.mxu0 0.0
    %5770 = vmatpush1.msra.mxu0 0.0
    %5771 = vmatprep.subr.mxu0 0.0
    %5772 = vmatpush1.msra.mxu0 0.0
    %5773 = vmatprep.subr.mxu0 0.0
    %5774 = vmatpush1.msra.mxu0 0.0
    %5775 = vmatprep.subr.mxu0 0.0
    %5776 = vmatpush1.msra.mxu0 0.0
    %5777 = vmatprep.subr.mxu0 0.0
    %5778 = vmatpush1.msra.mxu0 0.0
    %5779 = vmatprep.subr.mxu0 0.0
    %5780 = vmatpush1.msra.mxu0 0.0
    %5781 = vmatprep.subr.mxu0 0.0
    %5782 = vmatpush1.msra.mxu0 0.0
    %5783 = vmatprep.subr.mxu0 0.0
    %5784 = vmatpush1.msra.mxu0 0.0
    %5785 = vmatprep.subr.mxu0 0.0
    %5786 = vmatpush1.msra.mxu0 0.0
    %5787 = vmatprep.subr.mxu0 0.0
    %5788 = vmatpush1.msra.mxu0 0.0
    %5789 = vmatprep.mubr.f32.mxu0 0.0
    %v5790 = vand.u32 %v5443, 4294901760
    %v5791 = vsub.f32 %v5443, %v5790
    %v5792 = vand.u32 %v5791, 4294901760
    %5793 = vmatmul.mubr.f32.gmra.mrb[0].mxu0 %v5792
    %v5794 = vpop.f32.mrb[0].mxu0
    %v5795 = vadd.f32 %v5711, %v5794
    %v5796 = vpop.f32.mrb[0].mxu0
    %5797 = vmatprep.mubr.f32.mxu0 0.0
    %v5798 = vand.u32 %v5446, 4294901760
    %v5799 = vsub.f32 %v5446, %v5798
    %v5800 = vand.u32 %v5799, 4294901760
    %5801 = vmatmul.mubr.f32.gmra.mrb[0].mxu0 %v5800
    %v5802 = vpop.f32.mrb[0].mxu0
    %v5803 = vadd.f32 %v5718, %v5802
    %v5804 = vpop.f32.mrb[0].mxu0
    %5805 = vdwg.mxu0
    %5806 = vmatprep.subr.mxu0 0.0
    %v5807 = vand.u32 %v5438, 4294901760
    %v5808 = vsub.f32 %v5438, %v5807
    %v5809 = vand.u32 %v5808, 4294901760
    %5810 = vmatpush1.msra.mxu0 %v5809
    %5811 = vmatprep.subr.mxu0 0.0
    %v5812 = vand.u32 %v5439, 4294901760
    %v5813 = vsub.f32 %v5439, %v5812
    %v5814 = vand.u32 %v5813, 4294901760
    %5815 = vmatpush1.msra.mxu0 %v5814
    %5816 = vmatprep.subr.mxu0 0.0
    %v5817 = vand.u32 %v5440, 4294901760
    %v5818 = vsub.f32 %v5440, %v5817
    %v5819 = vand.u32 %v5818, 4294901760
    %5820 = vmatpush1.msra.mxu0 %v5819
    %5821 = vmatprep.subr.mxu0 0.0
    %v5822 = vand.u32 %v5441, 4294901760
    %v5823 = vsub.f32 %v5441, %v5822
    %v5824 = vand.u32 %v5823, 4294901760
    %5825 = vmatpush1.msra.mxu0 %v5824
    %5826 = vmatprep.subr.mxu0 0.0
    %5827 = vmatpush1.msra.mxu0 0.0
    %5828 = vmatprep.subr.mxu0 0.0
    %5829 = vmatpush1.msra.mxu0 0.0
    %5830 = vmatprep.subr.mxu0 0.0
    %5831 = vmatpush1.msra.mxu0 0.0
    %5832 = vmatprep.subr.mxu0 0.0
    %5833 = vmatpush1.msra.mxu0 0.0
    %5834 = vmatprep.subr.mxu0 0.0
    %5835 = vmatpush1.msra.mxu0 0.0
    %5836 = vmatprep.subr.mxu0 0.0
    %5837 = vmatpush1.msra.mxu0 0.0
    %5838 = vmatprep.subr.mxu0 0.0
    %5839 = vmatpush1.msra.mxu0 0.0
    %5840 = vmatprep.subr.mxu0 0.0
    %5841 = vmatpush1.msra.mxu0 0.0
    %5842 = vmatprep.subr.mxu0 0.0
    %5843 = vmatpush1.msra.mxu0 0.0
    %5844 = vmatprep.subr.mxu0 0.0
    %5845 = vmatpush1.msra.mxu0 0.0
    %5846 = vmatprep.subr.mxu0 0.0
    %5847 = vmatpush1.msra.mxu0 0.0
    %5848 = vmatprep.subr.mxu0 0.0
    %5849 = vmatpush1.msra.mxu0 0.0
    %5850 = vmatprep.subr.mxu0 0.0
    %5851 = vmatpush1.msra.mxu0 0.0
    %5852 = vmatprep.subr.mxu0 0.0
    %5853 = vmatpush1.msra.mxu0 0.0
    %5854 = vmatprep.subr.mxu0 0.0
    %5855 = vmatpush1.msra.mxu0 0.0
    %5856 = vmatprep.subr.mxu0 0.0
    %5857 = vmatpush1.msra.mxu0 0.0
    %5858 = vmatprep.subr.mxu0 0.0
    %5859 = vmatpush1.msra.mxu0 0.0
    %5860 = vmatprep.subr.mxu0 0.0
    %5861 = vmatpush1.msra.mxu0 0.0
    %5862 = vmatprep.subr.mxu0 0.0
    %5863 = vmatpush1.msra.mxu0 0.0
    %5864 = vmatprep.subr.mxu0 0.0
    %5865 = vmatpush1.msra.mxu0 0.0
    %5866 = vmatprep.subr.mxu0 0.0
    %5867 = vmatpush1.msra.mxu0 0.0
    %5868 = vmatprep.subr.mxu0 0.0
    %5869 = vmatpush1.msra.mxu0 0.0
    %5870 = vmatprep.subr.mxu0 0.0
    %5871 = vmatpush1.msra.mxu0 0.0
    %5872 = vmatprep.subr.mxu0 0.0
    %5873 = vmatpush1.msra.mxu0 0.0
    %5874 = vmatprep.subr.mxu0 0.0
    %5875 = vmatpush1.msra.mxu0 0.0
    %5876 = vmatprep.subr.mxu0 0.0
    %5877 = vmatpush1.msra.mxu0 0.0
    %5878 = vmatprep.subr.mxu0 0.0
    %5879 = vmatpush1.msra.mxu0 0.0
    %5880 = vmatprep.subr.mxu0 0.0
    %5881 = vmatpush1.msra.mxu0 0.0
    %5882 = vmatprep.mubr.f32.mxu0 0.0
    %v5883 = vand.u32 %v5443, 4294901760
    %5884 = vmatmul.mubr.f32.gmra.mrb[0].mxu0 %v5883
    %v5885 = vpop.f32.mrb[0].mxu0
    %v5886 = vadd.f32 %v5795, %v5885
    %v5887 = vpop.f32.mrb[0].mxu0
    %5888 = vmatprep.mubr.f32.mxu0 0.0
    %v5889 = vand.u32 %v5446, 4294901760
    %5890 = vmatmul.mubr.f32.gmra.mrb[0].mxu0 %v5889
    %v5891 = vpop.f32.mrb[0].mxu0
    %v5892 = vadd.f32 %v5803, %v5891
    %v5893 = vpop.f32.mrb[0].mxu0
    %5894 = vdwg.mxu0
    %5895 = vmatprep.subr.mxu0 0.0
    %v5896 = vand.u32 %v5438, 4294901760
    %5897 = vmatpush1.msra.mxu0 %v5896
    %5898 = vmatprep.subr.mxu0 0.0
    %v5899 = vand.u32 %v5439, 4294901760
    %5900 = vmatpush1.msra.mxu0 %v5899
    %5901 = vmatprep.subr.mxu0 0.0
    %v5902 = vand.u32 %v5440, 4294901760
    %5903 = vmatpush1.msra.mxu0 %v5902
    %5904 = vmatprep.subr.mxu0 0.0
    %v5905 = vand.u32 %v5441, 4294901760
    %5906 = vmatpush1.msra.mxu0 %v5905
    %5907 = vmatprep.subr.mxu0 0.0
    %5908 = vmatpush1.msra.mxu0 0.0
    %5909 = vmatprep.subr.mxu0 0.0
    %5910 = vmatpush1.msra.mxu0 0.0
    %5911 = vmatprep.subr.mxu0 0.0
    %5912 = vmatpush1.msra.mxu0 0.0
    %5913 = vmatprep.subr.mxu0 0.0
    %5914 = vmatpush1.msra.mxu0 0.0
    %5915 = vmatprep.subr.mxu0 0.0
    %5916 = vmatpush1.msra.mxu0 0.0
    %5917 = vmatprep.subr.mxu0 0.0
    %5918 = vmatpush1.msra.mxu0 0.0
    %5919 = vmatprep.subr.mxu0 0.0
    %5920 = vmatpush1.msra.mxu0 0.0
    %5921 = vmatprep.subr.mxu0 0.0
    %5922 = vmatpush1.msra.mxu0 0.0
    %5923 = vmatprep.subr.mxu0 0.0
    %5924 = vmatpush1.msra.mxu0 0.0
    %5925 = vmatprep.subr.mxu0 0.0
    %5926 = vmatpush1.msra.mxu0 0.0
    %5927 = vmatprep.subr.mxu0 0.0
    %5928 = vmatpush1.msra.mxu0 0.0
    %5929 = vmatprep.subr.mxu0 0.0
    %5930 = vmatpush1.msra.mxu0 0.0
    %5931 = vmatprep.subr.mxu0 0.0
    %5932 = vmatpush1.msra.mxu0 0.0
    %5933 = vmatprep.subr.mxu0 0.0
    %5934 = vmatpush1.msra.mxu0 0.0
    %5935 = vmatprep.subr.mxu0 0.0
    %5936 = vmatpush1.msra.mxu0 0.0
    %5937 = vmatprep.subr.mxu0 0.0
    %5938 = vmatpush1.msra.mxu0 0.0
    %5939 = vmatprep.subr.mxu0 0.0
    %5940 = vmatpush1.msra.mxu0 0.0
    %5941 = vmatprep.subr.mxu0 0.0
    %5942 = vmatpush1.msra.mxu0 0.0
    %5943 = vmatprep.subr.mxu0 0.0
    %5944 = vmatpush1.msra.mxu0 0.0
    %5945 = vmatprep.subr.mxu0 0.0
    %5946 = vmatpush1.msra.mxu0 0.0
    %5947 = vmatprep.subr.mxu0 0.0
    %5948 = vmatpush1.msra.mxu0 0.0
    %5949 = vmatprep.subr.mxu0 0.0
    %5950 = vmatpush1.msra.mxu0 0.0
    %5951 = vmatprep.subr.mxu0 0.0
    %5952 = vmatpush1.msra.mxu0 0.0
    %5953 = vmatprep.subr.mxu0 0.0
    %5954 = vmatpush1.msra.mxu0 0.0
    %5955 = vmatprep.subr.mxu0 0.0
    %5956 = vmatpush1.msra.mxu0 0.0
    %5957 = vmatprep.subr.mxu0 0.0
    %5958 = vmatpush1.msra.mxu0 0.0
    %5959 = vmatprep.subr.mxu0 0.0
    %5960 = vmatpush1.msra.mxu0 0.0
    %5961 = vmatprep.subr.mxu0 0.0
    %5962 = vmatpush1.msra.mxu0 0.0
    %5963 = vmatprep.mubr.f32.mxu0 0.0
    %v5964 = vand.u32 %v5443, 4294901760
    %5965 = vmatmul.mubr.f32.gmra.mrb[0].mxu0 %v5964
    %v5966 = vpop.f32.mrb[0].mxu0
    %v5967 = vadd.f32 %v5886, %v5966
    %v5968 = vpop.f32.mrb[0].mxu0
    %5969 = vmatprep.mubr.f32.mxu0 0.0
    %v5970 = vand.u32 %v5446, 4294901760
    %5971 = vmatmul.mubr.f32.gmra.mrb[0].mxu0 %v5970
    %v5972 = vpop.f32.mrb[0].mxu0
    %v5973 = vadd.f32 %v5892, %v5972
    %v5974 = vpop.f32.mrb[0].mxu0
    %5975 = vdwg.mxu0
    %v5976 = vadd.f32 %v5429, %v5967
    %v5977 = vadd.f32 %v5435, %v5973
    %v5978 = vld [vmem:[%s3 + $0x70] sm:$0xff]
    %v5979 = vld [vmem:[%s3 + $0x78] sm:$0xff]
    %v5980 = vld [vmem:[%s3 + $0x80] sm:$0xff]
    %v5981 = vld [vmem:[%s3 + $0x88] sm:$0xff]
    %v5983 = vsel %vm63, %v4357, 0
    %v5986 = vsel %vm63, %v4363, 0
    %5988 = vmatprep.subr.mxu0 0.0
    %v5989 = vand.u32 %v5978, 4294901760
    %5990 = vmatpush1.msra.mxu0 %v5989
    %5991 = vmatprep.subr.mxu0 0.0
    %v5992 = vand.u32 %v5979, 4294901760
    %5993 = vmatpush1.msra.mxu0 %v5992
    %5994 = vmatprep.subr.mxu0 0.0
    %v5995 = vand.u32 %v5980, 4294901760
    %5996 = vmatpush1.msra.mxu0 %v5995
    %5997 = vmatprep.subr.mxu0 0.0
    %v5998 = vand.u32 %v5981, 4294901760
    %5999 = vmatpush1.msra.mxu0 %v5998
    %6000 = vmatprep.subr.mxu0 0.0
    %6001 = vmatpush1.msra.mxu0 0.0
    %6002 = vmatprep.subr.mxu0 0.0
    %6003 = vmatpush1.msra.mxu0 0.0
    %6004 = vmatprep.subr.mxu0 0.0
    %6005 = vmatpush1.msra.mxu0 0.0
    %6006 = vmatprep.subr.mxu0 0.0
    %6007 = vmatpush1.msra.mxu0 0.0
    %6008 = vmatprep.subr.mxu0 0.0
    %6009 = vmatpush1.msra.mxu0 0.0
    %6010 = vmatprep.subr.mxu0 0.0
    %6011 = vmatpush1.msra.mxu0 0.0
    %6012 = vmatprep.subr.mxu0 0.0
    %6013 = vmatpush1.msra.mxu0 0.0
    %6014 = vmatprep.subr.mxu0 0.0
    %6015 = vmatpush1.msra.mxu0 0.0
    %6016 = vmatprep.subr.mxu0 0.0
    %6017 = vmatpush1.msra.mxu0 0.0
    %6018 = vmatprep.subr.mxu0 0.0
    %6019 = vmatpush1.msra.mxu0 0.0
    %6020 = vmatprep.subr.mxu0 0.0
    %6021 = vmatpush1.msra.mxu0 0.0
    %6022 = vmatprep.subr.mxu0 0.0
    %6023 = vmatpush1.msra.mxu0 0.0
    %6024 = vmatprep.subr.mxu0 0.0
    %6025 = vmatpush1.msra.mxu0 0.0
    %6026 = vmatprep.subr.mxu0 0.0
    %6027 = vmatpush1.msra.mxu0 0.0
    %6028 = vmatprep.subr.mxu0 0.0
    %6029 = vmatpush1.msra.mxu0 0.0
    %6030 = vmatprep.subr.mxu0 0.0
    %6031 = vmatpush1.msra.mxu0 0.0
    %6032 = vmatprep.subr.mxu0 0.0
    %6033 = vmatpush1.msra.mxu0 0.0
    %6034 = vmatprep.subr.mxu0 0.0
    %6035 = vmatpush1.msra.mxu0 0.0
    %6036 = vmatprep.subr.mxu0 0.0
    %6037 = vmatpush1.msra.mxu0 0.0
    %6038 = vmatprep.subr.mxu0 0.0
    %6039 = vmatpush1.msra.mxu0 0.0
    %6040 = vmatprep.subr.mxu0 0.0
    %6041 = vmatpush1.msra.mxu0 0.0
    %6042 = vmatprep.subr.mxu0 0.0
    %6043 = vmatpush1.msra.mxu0 0.0
    %6044 = vmatprep.subr.mxu0 0.0
    %6045 = vmatpush1.msra.mxu0 0.0
    %6046 = vmatprep.subr.mxu0 0.0
    %6047 = vmatpush1.msra.mxu0 0.0
    %6048 = vmatprep.subr.mxu0 0.0
    %6049 = vmatpush1.msra.mxu0 0.0
    %6050 = vmatprep.subr.mxu0 0.0
    %6051 = vmatpush1.msra.mxu0 0.0
    %6052 = vmatprep.subr.mxu0 0.0
    %6053 = vmatpush1.msra.mxu0 0.0
    %6054 = vmatprep.subr.mxu0 0.0
    %6055 = vmatpush1.msra.mxu0 0.0
    %6056 = vmatprep.mubr.f32.mxu0 0.0
    %v6057 = vand.u32 %v5983, 4294901760
    %v6058 = vsub.f32 %v5983, %v6057
    %v6059 = vand.u32 %v6058, 4294901760
    %v6060 = vsub.f32 %v6058, %v6059
    %v6061 = vand.u32 %v6060, 4294901760
    %6062 = vmatmul.mubr.f32.gmra.mrb[0].mxu0 %v6061
    %v6063 = vpop.f32.mrb[0].mxu0
    %v6064 = vadd.f32 0.0, %v6063
    %v6065 = vpop.f32.mrb[0].mxu0
    %6066 = vmatprep.mubr.f32.mxu0 0.0
    %v6067 = vand.u32 %v5986, 4294901760
    %v6068 = vsub.f32 %v5986, %v6067
    %v6069 = vand.u32 %v6068, 4294901760
    %v6070 = vsub.f32 %v6068, %v6069
    %v6071 = vand.u32 %v6070, 4294901760
    %6072 = vmatmul.mubr.f32.gmra.mrb[0].mxu0 %v6071
    %v6073 = vpop.f32.mrb[0].mxu0
    %v6074 = vadd.f32 0.0, %v6073
    %v6075 = vpop.f32.mrb[0].mxu0
    %6076 = vdwg.mxu0
    %6077 = vmatprep.subr.mxu0 0.0
    %v6078 = vand.u32 %v5978, 4294901760
    %v6079 = vsub.f32 %v5978, %v6078
    %v6080 = vand.u32 %v6079, 4294901760
    %v6081 = vsub.f32 %v6079, %v6080
    %v6082 = vand.u32 %v6081, 4294901760
    %6083 = vmatpush1.msra.mxu0 %v6082
    %6084 = vmatprep.subr.mxu0 0.0
    %v6085 = vand.u32 %v5979, 4294901760
    %v6086 = vsub.f32 %v5979, %v6085
    %v6087 = vand.u32 %v6086, 4294901760
    %v6088 = vsub.f32 %v6086, %v6087
    %v6089 = vand.u32 %v6088, 4294901760
    %6090 = vmatpush1.msra.mxu0 %v6089
    %6091 = vmatprep.subr.mxu0 0.0
    %v6092 = vand.u32 %v5980, 4294901760
    %v6093 = vsub.f32 %v5980, %v6092
    %v6094 = vand.u32 %v6093, 4294901760
    %v6095 = vsub.f32 %v6093, %v6094
    %v6096 = vand.u32 %v6095, 4294901760
    %6097 = vmatpush1.msra.mxu0 %v6096
    %6098 = vmatprep.subr.mxu0 0.0
    %v6099 = vand.u32 %v5981, 4294901760
    %v6100 = vsub.f32 %v5981, %v6099
    %v6101 = vand.u32 %v6100, 4294901760
    %v6102 = vsub.f32 %v6100, %v6101
    %v6103 = vand.u32 %v6102, 4294901760
    %6104 = vmatpush1.msra.mxu0 %v6103
    %6105 = vmatprep.subr.mxu0 0.0
    %6106 = vmatpush1.msra.mxu0 0.0
    %6107 = vmatprep.subr.mxu0 0.0
    %6108 = vmatpush1.msra.mxu0 0.0
    %6109 = vmatprep.subr.mxu0 0.0
    %6110 = vmatpush1.msra.mxu0 0.0
    %6111 = vmatprep.subr.mxu0 0.0
    %6112 = vmatpush1.msra.mxu0 0.0
    %6113 = vmatprep.subr.mxu0 0.0
    %6114 = vmatpush1.msra.mxu0 0.0
    %6115 = vmatprep.subr.mxu0 0.0
    %6116 = vmatpush1.msra.mxu0 0.0
    %6117 = vmatprep.subr.mxu0 0.0
    %6118 = vmatpush1.msra.mxu0 0.0
    %6119 = vmatprep.subr.mxu0 0.0
    %6120 = vmatpush1.msra.mxu0 0.0
    %6121 = vmatprep.subr.mxu0 0.0
    %6122 = vmatpush1.msra.mxu0 0.0
    %6123 = vmatprep.subr.mxu0 0.0
    %6124 = vmatpush1.msra.mxu0 0.0
    %6125 = vmatprep.subr.mxu0 0.0
    %6126 = vmatpush1.msra.mxu0 0.0
    %6127 = vmatprep.subr.mxu0 0.0
    %6128 = vmatpush1.msra.mxu0 0.0
    %6129 = vmatprep.subr.mxu0 0.0
    %6130 = vmatpush1.msra.mxu0 0.0
    %6131 = vmatprep.subr.mxu0 0.0
    %6132 = vmatpush1.msra.mxu0 0.0
    %6133 = vmatprep.subr.mxu0 0.0
    %6134 = vmatpush1.msra.mxu0 0.0
    %6135 = vmatprep.subr.mxu0 0.0
    %6136 = vmatpush1.msra.mxu0 0.0
    %6137 = vmatprep.subr.mxu0 0.0
    %6138 = vmatpush1.msra.mxu0 0.0
    %6139 = vmatprep.subr.mxu0 0.0
    %6140 = vmatpush1.msra.mxu0 0.0
    %6141 = vmatprep.subr.mxu0 0.0
    %6142 = vmatpush1.msra.mxu0 0.0
    %6143 = vmatprep.subr.mxu0 0.0
    %6144 = vmatpush1.msra.mxu0 0.0
    %6145 = vmatprep.subr.mxu0 0.0
    %6146 = vmatpush1.msra.mxu0 0.0
    %6147 = vmatprep.subr.mxu0 0.0
    %6148 = vmatpush1.msra.mxu0 0.0
    %6149 = vmatprep.subr.mxu0 0.0
    %6150 = vmatpush1.msra.mxu0 0.0
    %6151 = vmatprep.subr.mxu0 0.0
    %6152 = vmatpush1.msra.mxu0 0.0
    %6153 = vmatprep.subr.mxu0 0.0
    %6154 = vmatpush1.msra.mxu0 0.0
    %6155 = vmatprep.subr.mxu0 0.0
    %6156 = vmatpush1.msra.mxu0 0.0
    %6157 = vmatprep.subr.mxu0 0.0
    %6158 = vmatpush1.msra.mxu0 0.0
    %6159 = vmatprep.subr.mxu0 0.0
    %6160 = vmatpush1.msra.mxu0 0.0
    %6161 = vmatprep.mubr.f32.mxu0 0.0
    %v6162 = vand.u32 %v5983, 4294901760
    %6163 = vmatmul.mubr.f32.gmra.mrb[0].mxu0 %v6162
    %v6164 = vpop.f32.mrb[0].mxu0
    %v6165 = vadd.f32 %v6064, %v6164
    %v6166 = vpop.f32.mrb[0].mxu0
    %6167 = vmatprep.mubr.f32.mxu0 0.0
    %v6168 = vand.u32 %v5986, 4294901760
    %6169 = vmatmul.mubr.f32.gmra.mrb[0].mxu0 %v6168
    %v6170 = vpop.f32.mrb[0].mxu0
    %v6171 = vadd.f32 %v6074, %v6170
    %v6172 = vpop.f32.mrb[0].mxu0
    %6173 = vdwg.mxu0
    %6174 = vmatprep.subr.mxu0 0.0
    %v6175 = vand.u32 %v5978, 4294901760
    %v6176 = vsub.f32 %v5978, %v6175
    %6177 = vmatpush1.msra.mxu0 %v6176
    %6178 = vmatprep.subr.mxu0 0.0
    %v6179 = vand.u32 %v5979, 4294901760
    %v6180 = vsub.f32 %v5979, %v6179
    %6181 = vmatpush1.msra.mxu0 %v6180
    %6182 = vmatprep.subr.mxu0 0.0
    %v6183 = vand.u32 %v5980, 4294901760
    %v6184 = vsub.f32 %v5980, %v6183
    %6185 = vmatpush1.msra.mxu0 %v6184
    %6186 = vmatprep.subr.mxu0 0.0
    %v6187 = vand.u32 %v5981, 4294901760
    %v6188 = vsub.f32 %v5981, %v6187
    %6189 = vmatpush1.msra.mxu0 %v6188
    %6190 = vmatprep.subr.mxu0 0.0
    %6191 = vmatpush1.msra.mxu0 0.0
    %6192 = vmatprep.subr.mxu0 0.0
    %6193 = vmatpush1.msra.mxu0 0.0
    %6194 = vmatprep.subr.mxu0 0.0
    %6195 = vmatpush1.msra.mxu0 0.0
    %6196 = vmatprep.subr.mxu0 0.0
    %6197 = vmatpush1.msra.mxu0 0.0
    %6198 = vmatprep.subr.mxu0 0.0
    %6199 = vmatpush1.msra.mxu0 0.0
    %6200 = vmatprep.subr.mxu0 0.0
    %6201 = vmatpush1.msra.mxu0 0.0
    %6202 = vmatprep.subr.mxu0 0.0
    %6203 = vmatpush1.msra.mxu0 0.0
    %6204 = vmatprep.subr.mxu0 0.0
    %6205 = vmatpush1.msra.mxu0 0.0
    %6206 = vmatprep.subr.mxu0 0.0
    %6207 = vmatpush1.msra.mxu0 0.0
    %6208 = vmatprep.subr.mxu0 0.0
    %6209 = vmatpush1.msra.mxu0 0.0
    %6210 = vmatprep.subr.mxu0 0.0
    %6211 = vmatpush1.msra.mxu0 0.0
    %6212 = vmatprep.subr.mxu0 0.0
    %6213 = vmatpush1.msra.mxu0 0.0
    %6214 = vmatprep.subr.mxu0 0.0
    %6215 = vmatpush1.msra.mxu0 0.0
    %6216 = vmatprep.subr.mxu0 0.0
    %6217 = vmatpush1.msra.mxu0 0.0
    %6218 = vmatprep.subr.mxu0 0.0
    %6219 = vmatpush1.msra.mxu0 0.0
    %6220 = vmatprep.subr.mxu0 0.0
    %6221 = vmatpush1.msra.mxu0 0.0
    %6222 = vmatprep.subr.mxu0 0.0
    %6223 = vmatpush1.msra.mxu0 0.0
    %6224 = vmatprep.subr.mxu0 0.0
    %6225 = vmatpush1.msra.mxu0 0.0
    %6226 = vmatprep.subr.mxu0 0.0
    %6227 = vmatpush1.msra.mxu0 0.0
    %6228 = vmatprep.subr.mxu0 0.0
    %6229 = vmatpush1.msra.mxu0 0.0
    %6230 = vmatprep.subr.mxu0 0.0
    %6231 = vmatpush1.msra.mxu0 0.0
    %6232 = vmatprep.subr.mxu0 0.0
    %6233 = vmatpush1.msra.mxu0 0.0
    %6234 = vmatprep.subr.mxu0 0.0
    %6235 = vmatpush1.msra.mxu0 0.0
    %6236 = vmatprep.subr.mxu0 0.0
    %6237 = vmatpush1.msra.mxu0 0.0
    %6238 = vmatprep.subr.mxu0 0.0
    %6239 = vmatpush1.msra.mxu0 0.0
    %6240 = vmatprep.subr.mxu0 0.0
    %6241 = vmatpush1.msra.mxu0 0.0
    %6242 = vmatprep.subr.mxu0 0.0
    %6243 = vmatpush1.msra.mxu0 0.0
    %6244 = vmatprep.subr.mxu0 0.0
    %6245 = vmatpush1.msra.mxu0 0.0
    %6246 = vmatprep.mubr.f32.mxu0 0.0
    %v6247 = vand.u32 %v5983, 4294901760
    %v6248 = vsub.f32 %v5983, %v6247
    %6249 = vmatmul.mubr.f32.gmra.mrb[0].mxu0 %v6248
    %v6250 = vpop.f32.mrb[0].mxu0
    %v6251 = vadd.f32 %v6165, %v6250
    %v6252 = vpop.f32.mrb[0].mxu0
    %6253 = vmatprep.mubr.f32.mxu0 0.0
    %v6254 = vand.u32 %v5986, 4294901760
    %v6255 = vsub.f32 %v5986, %v6254
    %6256 = vmatmul.mubr.f32.gmra.mrb[0].mxu0 %v6255
    %v6257 = vpop.f32.mrb[0].mxu0
    %v6258 = vadd.f32 %v6171, %v6257
    %v6259 = vpop.f32.mrb[0].mxu0
    %6260 = vdwg.mxu0
    %6261 = vmatprep.subr.mxu0 0.0
    %v6262 = vand.u32 %v5978, 4294901760
    %6263 = vmatpush1.msra.mxu0 %v6262
    %6264 = vmatprep.subr.mxu0 0.0
    %v6265 = vand.u32 %v5979, 4294901760
    %6266 = vmatpush1.msra.mxu0 %v6265
    %6267 = vmatprep.subr.mxu0 0.0
    %v6268 = vand.u32 %v5980, 4294901760
    %6269 = vmatpush1.msra.mxu0 %v6268
    %6270 = vmatprep.subr.mxu0 0.0
    %v6271 = vand.u32 %v5981, 4294901760
    %6272 = vmatpush1.msra.mxu0 %v6271
    %6273 = vmatprep.subr.mxu0 0.0
    %6274 = vmatpush1.msra.mxu0 0.0
    %6275 = vmatprep.subr.mxu0 0.0
    %6276 = vmatpush1.msra.mxu0 0.0
    %6277 = vmatprep.subr.mxu0 0.0
    %6278 = vmatpush1.msra.mxu0 0.0
    %6279 = vmatprep.subr.mxu0 0.0
    %6280 = vmatpush1.msra.mxu0 0.0
    %6281 = vmatprep.subr.mxu0 0.0
    %6282 = vmatpush1.msra.mxu0 0.0
    %6283 = vmatprep.subr.mxu0 0.0
    %6284 = vmatpush1.msra.mxu0 0.0
    %6285 = vmatprep.subr.mxu0 0.0
    %6286 = vmatpush1.msra.mxu0 0.0
    %6287 = vmatprep.subr.mxu0 0.0
    %6288 = vmatpush1.msra.mxu0 0.0
    %6289 = vmatprep.subr.mxu0 0.0
    %6290 = vmatpush1.msra.mxu0 0.0
    %6291 = vmatprep.subr.mxu0 0.0
    %6292 = vmatpush1.msra.mxu0 0.0
    %6293 = vmatprep.subr.mxu0 0.0
    %6294 = vmatpush1.msra.mxu0 0.0
    %6295 = vmatprep.subr.mxu0 0.0
    %6296 = vmatpush1.msra.mxu0 0.0
    %6297 = vmatprep.subr.mxu0 0.0
    %6298 = vmatpush1.msra.mxu0 0.0
    %6299 = vmatprep.subr.mxu0 0.0
    %6300 = vmatpush1.msra.mxu0 0.0
    %6301 = vmatprep.subr.mxu0 0.0
    %6302 = vmatpush1.msra.mxu0 0.0
    %6303 = vmatprep.subr.mxu0 0.0
    %6304 = vmatpush1.msra.mxu0 0.0
    %6305 = vmatprep.subr.mxu0 0.0
    %6306 = vmatpush1.msra.mxu0 0.0
    %6307 = vmatprep.subr.mxu0 0.0
    %6308 = vmatpush1.msra.mxu0 0.0
    %6309 = vmatprep.subr.mxu0 0.0
    %6310 = vmatpush1.msra.mxu0 0.0
    %6311 = vmatprep.subr.mxu0 0.0
    %6312 = vmatpush1.msra.mxu0 0.0
    %6313 = vmatprep.subr.mxu0 0.0
    %6314 = vmatpush1.msra.mxu0 0.0
    %6315 = vmatprep.subr.mxu0 0.0
    %6316 = vmatpush1.msra.mxu0 0.0
    %6317 = vmatprep.subr.mxu0 0.0
    %6318 = vmatpush1.msra.mxu0 0.0
    %6319 = vmatprep.subr.mxu0 0.0
    %6320 = vmatpush1.msra.mxu0 0.0
    %6321 = vmatprep.subr.mxu0 0.0
    %6322 = vmatpush1.msra.mxu0 0.0
    %6323 = vmatprep.subr.mxu0 0.0
    %6324 = vmatpush1.msra.mxu0 0.0
    %6325 = vmatprep.subr.mxu0 0.0
    %6326 = vmatpush1.msra.mxu0 0.0
    %6327 = vmatprep.subr.mxu0 0.0
    %6328 = vmatpush1.msra.mxu0 0.0
    %6329 = vmatprep.mubr.f32.mxu0 0.0
    %v6330 = vand.u32 %v5983, 4294901760
    %v6331 = vsub.f32 %v5983, %v6330
    %v6332 = vand.u32 %v6331, 4294901760
    %6333 = vmatmul.mubr.f32.gmra.mrb[0].mxu0 %v6332
    %v6334 = vpop.f32.mrb[0].mxu0
    %v6335 = vadd.f32 %v6251, %v6334
    %v6336 = vpop.f32.mrb[0].mxu0
    %6337 = vmatprep.mubr.f32.mxu0 0.0
    %v6338 = vand.u32 %v5986, 4294901760
    %v6339 = vsub.f32 %v5986, %v6338
    %v6340 = vand.u32 %v6339, 4294901760
    %6341 = vmatmul.mubr.f32.gmra.mrb[0].mxu0 %v6340
    %v6342 = vpop.f32.mrb[0].mxu0
    %v6343 = vadd.f32 %v6258, %v6342
    %v6344 = vpop.f32.mrb[0].mxu0
    %6345 = vdwg.mxu0
    %6346 = vmatprep.subr.mxu0 0.0
    %v6347 = vand.u32 %v5978, 4294901760
    %v6348 = vsub.f32 %v5978, %v6347
    %v6349 = vand.u32 %v6348, 4294901760
    %6350 = vmatpush1.msra.mxu0 %v6349
    %6351 = vmatprep.subr.mxu0 0.0
    %v6352 = vand.u32 %v5979, 4294901760
    %v6353 = vsub.f32 %v5979, %v6352
    %v6354 = vand.u32 %v6353, 4294901760
    %6355 = vmatpush1.msra.mxu0 %v6354
    %6356 = vmatprep.subr.mxu0 0.0
    %v6357 = vand.u32 %v5980, 4294901760
    %v6358 = vsub.f32 %v5980, %v6357
    %v6359 = vand.u32 %v6358, 4294901760
    %6360 = vmatpush1.msra.mxu0 %v6359
    %6361 = vmatprep.subr.mxu0 0.0
    %v6362 = vand.u32 %v5981, 4294901760
    %v6363 = vsub.f32 %v5981, %v6362
    %v6364 = vand.u32 %v6363, 4294901760
    %6365 = vmatpush1.msra.mxu0 %v6364
    %6366 = vmatprep.subr.mxu0 0.0
    %6367 = vmatpush1.msra.mxu0 0.0
    %6368 = vmatprep.subr.mxu0 0.0
    %6369 = vmatpush1.msra.mxu0 0.0
    %6370 = vmatprep.subr.mxu0 0.0
    %6371 = vmatpush1.msra.mxu0 0.0
    %6372 = vmatprep.subr.mxu0 0.0
    %6373 = vmatpush1.msra.mxu0 0.0
    %6374 = vmatprep.subr.mxu0 0.0
    %6375 = vmatpush1.msra.mxu0 0.0
    %6376 = vmatprep.subr.mxu0 0.0
    %6377 = vmatpush1.msra.mxu0 0.0
    %6378 = vmatprep.subr.mxu0 0.0
    %6379 = vmatpush1.msra.mxu0 0.0
    %6380 = vmatprep.subr.mxu0 0.0
    %6381 = vmatpush1.msra.mxu0 0.0
    %6382 = vmatprep.subr.mxu0 0.0
    %6383 = vmatpush1.msra.mxu0 0.0
    %6384 = vmatprep.subr.mxu0 0.0
    %6385 = vmatpush1.msra.mxu0 0.0
    %6386 = vmatprep.subr.mxu0 0.0
    %6387 = vmatpush1.msra.mxu0 0.0
    %6388 = vmatprep.subr.mxu0 0.0
    %6389 = vmatpush1.msra.mxu0 0.0
    %6390 = vmatprep.subr.mxu0 0.0
    %6391 = vmatpush1.msra.mxu0 0.0
    %6392 = vmatprep.subr.mxu0 0.0
    %6393 = vmatpush1.msra.mxu0 0.0
    %6394 = vmatprep.subr.mxu0 0.0
    %6395 = vmatpush1.msra.mxu0 0.0
    %6396 = vmatprep.subr.mxu0 0.0
    %6397 = vmatpush1.msra.mxu0 0.0
    %6398 = vmatprep.subr.mxu0 0.0
    %6399 = vmatpush1.msra.mxu0 0.0
    %6400 = vmatprep.subr.mxu0 0.0
    %6401 = vmatpush1.msra.mxu0 0.0
    %6402 = vmatprep.subr.mxu0 0.0
    %6403 = vmatpush1.msra.mxu0 0.0
    %6404 = vmatprep.subr.mxu0 0.0
    %6405 = vmatpush1.msra.mxu0 0.0
    %6406 = vmatprep.subr.mxu0 0.0
    %6407 = vmatpush1.msra.mxu0 0.0
    %6408 = vmatprep.subr.mxu0 0.0
    %6409 = vmatpush1.msra.mxu0 0.0
    %6410 = vmatprep.subr.mxu0 0.0
    %6411 = vmatpush1.msra.mxu0 0.0
    %6412 = vmatprep.subr.mxu0 0.0
    %6413 = vmatpush1.msra.mxu0 0.0
    %6414 = vmatprep.subr.mxu0 0.0
    %6415 = vmatpush1.msra.mxu0 0.0
    %6416 = vmatprep.subr.mxu0 0.0
    %6417 = vmatpush1.msra.mxu0 0.0
    %6418 = vmatprep.subr.mxu0 0.0
    %6419 = vmatpush1.msra.mxu0 0.0
    %6420 = vmatprep.subr.mxu0 0.0
    %6421 = vmatpush1.msra.mxu0 0.0
    %6422 = vmatprep.mubr.f32.mxu0 0.0
    %v6423 = vand.u32 %v5983, 4294901760
    %6424 = vmatmul.mubr.f32.gmra.mrb[0].mxu0 %v6423
    %v6425 = vpop.f32.mrb[0].mxu0
    %v6426 = vadd.f32 %v6335, %v6425
    %v6427 = vpop.f32.mrb[0].mxu0
    %6428 = vmatprep.mubr.f32.mxu0 0.0
    %v6429 = vand.u32 %v5986, 4294901760
    %6430 = vmatmul.mubr.f32.gmra.mrb[0].mxu0 %v6429
    %v6431 = vpop.f32.mrb[0].mxu0
    %v6432 = vadd.f32 %v6343, %v6431
    %v6433 = vpop.f32.mrb[0].mxu0
    %6434 = vdwg.mxu0
    %6435 = vmatprep.subr.mxu0 0.0
    %v6436 = vand.u32 %v5978, 4294901760
    %6437 = vmatpush1.msra.mxu0 %v6436
    %6438 = vmatprep.subr.mxu0 0.0
    %v6439 = vand.u32 %v5979, 4294901760
    %6440 = vmatpush1.msra.mxu0 %v6439
    %6441 = vmatprep.subr.mxu0 0.0
    %v6442 = vand.u32 %v5980, 4294901760
    %6443 = vmatpush1.msra.mxu0 %v6442
    %6444 = vmatprep.subr.mxu0 0.0
    %v6445 = vand.u32 %v5981, 4294901760
    %6446 = vmatpush1.msra.mxu0 %v6445
    %6447 = vmatprep.subr.mxu0 0.0
    %6448 = vmatpush1.msra.mxu0 0.0
    %6449 = vmatprep.subr.mxu0 0.0
    %6450 = vmatpush1.msra.mxu0 0.0
    %6451 = vmatprep.subr.mxu0 0.0
    %6452 = vmatpush1.msra.mxu0 0.0
    %6453 = vmatprep.subr.mxu0 0.0
    %6454 = vmatpush1.msra.mxu0 0.0
    %6455 = vmatprep.subr.mxu0 0.0
    %6456 = vmatpush1.msra.mxu0 0.0
    %6457 = vmatprep.subr.mxu0 0.0
    %6458 = vmatpush1.msra.mxu0 0.0
    %6459 = vmatprep.subr.mxu0 0.0
    %6460 = vmatpush1.msra.mxu0 0.0
    %6461 = vmatprep.subr.mxu0 0.0
    %6462 = vmatpush1.msra.mxu0 0.0
    %6463 = vmatprep.subr.mxu0 0.0
    %6464 = vmatpush1.msra.mxu0 0.0
    %6465 = vmatprep.subr.mxu0 0.0
    %6466 = vmatpush1.msra.mxu0 0.0
    %6467 = vmatprep.subr.mxu0 0.0
    %6468 = vmatpush1.msra.mxu0 0.0
    %6469 = vmatprep.subr.mxu0 0.0
    %6470 = vmatpush1.msra.mxu0 0.0
    %6471 = vmatprep.subr.mxu0 0.0
    %6472 = vmatpush1.msra.mxu0 0.0
    %6473 = vmatprep.subr.mxu0 0.0
    %6474 = vmatpush1.msra.mxu0 0.0
    %6475 = vmatprep.subr.mxu0 0.0
    %6476 = vmatpush1.msra.mxu0 0.0
    %6477 = vmatprep.subr.mxu0 0.0
    %6478 = vmatpush1.msra.mxu0 0.0
    %6479 = vmatprep.subr.mxu0 0.0
    %6480 = vmatpush1.msra.mxu0 0.0
    %6481 = vmatprep.subr.mxu0 0.0
    %6482 = vmatpush1.msra.mxu0 0.0
    %6483 = vmatprep.subr.mxu0 0.0
    %6484 = vmatpush1.msra.mxu0 0.0
    %6485 = vmatprep.subr.mxu0 0.0
    %6486 = vmatpush1.msra.mxu0 0.0
    %6487 = vmatprep.subr.mxu0 0.0
    %6488 = vmatpush1.msra.mxu0 0.0
    %6489 = vmatprep.subr.mxu0 0.0
    %6490 = vmatpush1.msra.mxu0 0.0
    %6491 = vmatprep.subr.mxu0 0.0
    %6492 = vmatpush1.msra.mxu0 0.0
    %6493 = vmatprep.subr.mxu0 0.0
    %6494 = vmatpush1.msra.mxu0 0.0
    %6495 = vmatprep.subr.mxu0 0.0
    %6496 = vmatpush1.msra.mxu0 0.0
    %6497 = vmatprep.subr.mxu0 0.0
    %6498 = vmatpush1.msra.mxu0 0.0
    %6499 = vmatprep.subr.mxu0 0.0
    %6500 = vmatpush1.msra.mxu0 0.0
    %6501 = vmatprep.subr.mxu0 0.0
    %6502 = vmatpush1.msra.mxu0 0.0
    %6503 = vmatprep.mubr.f32.mxu0 0.0
    %v6504 = vand.u32 %v5983, 4294901760
    %6505 = vmatmul.mubr.f32.gmra.mrb[0].mxu0 %v6504
    %v6506 = vpop.f32.mrb[0].mxu0
    %v6507 = vadd.f32 %v6426, %v6506
    %v6508 = vpop.f32.mrb[0].mxu0
    %6509 = vmatprep.mubr.f32.mxu0 0.0
    %v6510 = vand.u32 %v5986, 4294901760
    %6511 = vmatmul.mubr.f32.gmra.mrb[0].mxu0 %v6510
    %v6512 = vpop.f32.mrb[0].mxu0
    %v6513 = vadd.f32 %v6432, %v6512
    %v6514 = vpop.f32.mrb[0].mxu0
    %6515 = vdwg.mxu0
    %v6516 = vadd.f32 %v5976, %v6507
    %v6517 = vadd.f32 %v5977, %v6513
    %v6518 = vmul.f32 %v6516, 0.25
    %v6519 = vmul.f32 %v6517, 0.25
    %v6520 = vadd.f32 %v6518, %v20
    %v6521 = vadd.f32 %v6519, %v21
    %6522 = vst.msk [vmem:[#allocation2 + $0x10] sm:$0xff] %vm63, %v6520
    %6523 = vst.msk [vmem:[#allocation2 + $0x18] sm:$0xff] %vm63, %v6521
    // Predicated region
    $region18: #{tpu_custom_call.1} parent=1 // pred_check
      _
    $region19: #{tpu_custom_call.1} parent=1 // pred_check_branch
      %6525 = sbr.rel (0) target = $region21
    $region20: #{tpu_custom_call.1} parent=1 // pred_region
      %s6527 = ssub.s32 512, 512
      %6528 = vsyncadd [#allocation3], %s6527
      %s6529 = sshll.u32 [#allocation2], 4
      %s6530 = int_to_ptr.vmem [resolvable:$true] %s6529
      %6535 = dma.vmem_to_hbm [thread:$0]  %s6530, 512, %s4, [#allocation3], 128, 128, 8
    $region21: #{tpu_custom_call.1} parent=1 // pred_fallthru
      _
    // Predicated region
    $region22: #{tpu_custom_call.1} parent=1 // pred_check
      _
    $region23: #{tpu_custom_call.1} parent=1 // pred_check_branch
      %6537 = sbr.rel (0) target = $region25
    $region24: #{tpu_custom_call.1} parent=1 // pred_region
      %6538 = dma.done [#allocation3], 512
    $region25: #{tpu_custom_call.1} parent=1 // pred_fallthru
      _
    %6539 = vsyncpa [#allocation3], 1

</llo_original>
